<compile_context>
chip_gen: v5e
topology: v5e:2x2
jax: 0.10.0
libtpu: 0.0.40
codegen_flags: <defaults>
</compile_context>

<pallas_src>
import functools
import math

import jax
import jax.numpy as jnp
from jax.experimental import pallas as pl
from jax.experimental.pallas import tpu as pltpu

_F32 = jnp.float32
_BF16 = jnp.bfloat16
_LANE = 128
_VMEM = pl.BlockSpec(memory_space=pltpu.MemorySpace.VMEM)

_BLK_KEYS = ("ln1_g", "ln1_b", "w_qkv", "b_qkv", "w_proj", "b_proj",
             "ln2_g", "ln2_b", "w_fc1", "b_fc1", "w_fc2", "b_fc2")
_POOL_KEYS = ("dw_w", "dw_b", "fc_w", "fc_b")


# ----------------------------- in-kernel helpers ----------------------------

def _mm(a, b):
    """MXU matmul: bf16 operands, f32 accumulation (weights are already bf16)."""
    return jnp.dot(a.astype(_BF16), b.astype(_BF16), preferred_element_type=_F32)


def _layernorm(x, g, b, eps):
    mu = jnp.mean(x, axis=-1, keepdims=True)
    var = jnp.mean(jnp.square(x - mu), axis=-1, keepdims=True)
    return (x - mu) * jax.lax.rsqrt(var + eps) * g + b


def _erf(x):
    # Abramowitz & Stegun 7.1.26 (|err| < 1.5e-7): only exp / mul / add / where.
    p = 0.3275911
    a1, a2, a3, a4, a5 = (0.254829592, -0.284496736, 1.421413741,
                          -1.453152027, 1.061405429)
    z = jnp.abs(x)
    t = 1.0 / (1.0 + p * z)
    poly = ((((a5 * t + a4) * t + a3) * t + a2) * t + a1) * t
    y = 1.0 - poly * jnp.exp(-z * z)
    return jnp.where(x >= 0, y, -y)


def _gelu_exact(x):
    # PyTorch nn.GELU default is the exact erf form.
    return 0.5 * x * (1.0 + _erf(x * 0.7071067811865476))


def _block(x3, blk, heads, eps):
    """Pre-norm transformer block on VMEM-resident values. x3: (B, T, C) f32."""
    B, T, C = x3.shape
    dh = C // heads
    x2 = x3.reshape(B * T, C)

    # ---------------- attention branch ----------------
    y = _layernorm(x2, blk["ln1_g"][...], blk["ln1_b"][...], eps)
    qkv = _mm(y, blk["w_qkv"][...]) + blk["b_qkv"][...]      # (B*T, 3C); q pre-scaled
    qkv3 = qkv.reshape(B, T, 3 * C)
    wproj = blk["w_proj"][...]                               # (heads, dh, C) bf16
    attn = jnp.zeros((B * T, C), _F32)
    # Static loop over heads; every op inside is batched over B (a 4-D two-batch-dim
    # einsum would unroll to the same per-(b,h) matmuls after Mosaic lowering).
    for h in range(heads):
        q = qkv3[:, :, h * dh:(h + 1) * dh]
        k = qkv3[:, :, C + h * dh:C + (h + 1) * dh]
        v = qkv3[:, :, 2 * C + h * dh:2 * C + (h + 1) * dh]
        s = jnp.einsum("btd,bsd->bts", q.astype(_BF16), k.astype(_BF16),
                       preferred_element_type=_F32)          # (B, T, T) f32
        m = jnp.max(s, axis=-1, keepdims=True)
        p = jnp.exp(s - m)
        l = jnp.sum(p, axis=-1, keepdims=True)
        ctx = jnp.einsum("bts,bsd->btd", p.astype(_BF16), v.astype(_BF16),
                         preferred_element_type=_F32)        # (B, T, dh)
        ctx = ctx * pl.reciprocal(l, approx=True)
        # Fold the head-concat away: contract with this head's w_proj row block.
        attn = attn + _mm(ctx.reshape(B * T, dh), wproj[h])
    x2 = x2 + attn + blk["b_proj"][...]

    # ------------------- MLP branch --------------------
    y = _layernorm(x2, blk["ln2_g"][...], blk["ln2_b"][...], eps)
    hdn = _gelu_exact(_mm(y, blk["w_fc1"][...]) + blk["b_fc1"][...])
    x2 = x2 + _mm(hdn, blk["w_fc2"][...]) + blk["b_fc2"][...]
    return x2.reshape(B, T, C)


def _head_pool(x3, pool, H, W, R, K):
    """conv_head_pooling (groups=G depthwise conv, kernel=3, stride=2, pad=1) + cls fc.
    x3: (B, 1+H*W, G) -> (B, 1+(H/2)*(W/2), R*G).  Implemented as K*K shifted full-tile
    FMAs on the zero-padded, channel-tiled image (stride-1 superset), then a stride-2
    subsample — no per-pixel assembly, no HBM repeat."""
    B, _, G = x3.shape
    C1 = R * G
    pad = 1                                                    # stride // 2, stride = 2

    img = x3[:, 1:, :].reshape(B, H, W, G)
    zr = jnp.zeros((B, pad, W, G), _F32)
    xp = jnp.concatenate([zr, img, zr], axis=1)                # (B, H+2, W, G)
    zc = jnp.zeros((B, H + 2 * pad, pad, G), _F32)
    xp = jnp.concatenate([zc, xp, zc], axis=2)                 # (B, H+2, W+2, G)
    # broadcast each input channel over its R output channels (r-major order)
    xp = jnp.concatenate([xp] * R, axis=-1)                    # (B, H+2, W+2, R*G)

    wk = pool["dw_w"][...]                                     # (K, K, R*G) f32
    acc = jnp.zeros((B, H, W, C1), _F32)
    for kh in range(K):
        for kw in range(K):
            tap = xp[:, kh:kh + H, kw:kw + W, :]               # full-tile shifted slice
            acc = acc + tap * wk[kh, kw:kw + 1, :]             # (1, C1) lane broadcast
    acc = acc + pool["dw_b"][...]

    # stride-2 subsample of the stride-1 result (rows/cols 0, 2, ...)
    acc = jnp.concatenate([acc[:, i:i + 1] for i in range(0, H, 2)], axis=1)
    acc = jnp.concatenate([acc[:, :, j:j + 1] for j in range(0, W, 2)], axis=2)
    tok = acc.reshape(B, (H // 2) * (W // 2), C1)

    cls = _mm(x3[:, 0, :], pool["fc_w"][...]) + pool["fc_b"][...]   # (B, C1)
    return jnp.concatenate([cls.reshape(B, 1, C1), tok], axis=1)


# ------------------------------ fused kernel --------------------------------

def _make_pit_kernel(B, N0, dims, heads, depth, hw0, eps_blk, eps_final, pool_k):
    n_stage = len(dims)

    def kernel(*refs):
        *ins, out_ref = refs
        it = iter(ins)
        nxt = lambda: next(it)

        patches = nxt()                               # (B*N0, Kin) bf16
        w_patch, b_patch, pos, cls_tok = nxt(), nxt(), nxt(), nxt()
        stage_blocks, pools = [], []
        for s in range(n_stage):
            stage_blocks.append([{k: nxt() for k in _BLK_KEYS} for _ in range(depth[s])])
            if s < n_stage - 1:
                pools.append({k: nxt() for k in _POOL_KEYS})
        norm_g, norm_b, head_w, head_b = nxt(), nxt(), nxt(), nxt()

        # ---- patch embedding + pos embed + cls token ----
        emb = _mm(patches[...], w_patch[...]) + b_patch[...]          # (B*N0, C0)
        emb = emb.reshape(B, N0, dims[0]) + pos[...]                  # pos broadcast on B
        cls0 = jnp.broadcast_to(cls_tok[...].reshape(1, 1, dims[0]), (B, 1, dims[0]))
        x = jnp.concatenate([cls0, emb], axis=1)                      # (B, 1+N0, C0)

        # ---- stages: transformer blocks (+ pooling between stages) ----
        H, W = hw0
        for s in range(n_stage):
            for blk in stage_blocks[s]:
                x = _block(x, blk, heads[s], eps_blk)
            if s < n_stage - 1:
                R = dims[s + 1] // dims[s]
                x = _head_pool(x, pools[s], H, W, R, pool_k)
                H, W = H // 2, W // 2

        # ---- final LayerNorm + classification head (lane-padded, unmasked store) ----
        y = _layernorm(x[:, 0, :], norm_g[...], norm_b[...], eps_final)
        out_ref[...] = _mm(y, head_w[...]) + head_b[...]

    return kernel


# ------------------------------- wrappers ------------------------------------

def _flatten_params(params, cfg):
    flat = [params["patch_w"], params["patch_b"], params["pos_embed"], params["cls_token"]]
    n_stage = len(cfg["heads"])
    for s in range(n_stage):
        for blk in params["stages"][s]:
            flat += [blk[k] for k in _BLK_KEYS]
        if s < n_stage - 1:
            flat += [params["pools"][s][k] for k in _POOL_KEYS]
    flat += [params["norm_g"], params["norm_b"], params["head_w"], params["head_b"]]
    return flat


def pooling_transformer_forward(params, x_nchw, cfg):
    patch = cfg["patch_size"]
    assert cfg["stride"] == patch                     # see TODO in header
    B, Cin, H, W = x_nchw.shape
    Ho, Wo = H // patch, W // patch
    N0, Kin = Ho * Wo, Cin * patch * patch

    # im2col: stride == kernel so this is a pure reshape/transpose (one-time, outside).
    p = x_nchw.reshape(B, Cin, Ho, patch, Wo, patch)
    p = p.transpose(0, 2, 4, 1, 3, 5).reshape(B * N0, Kin).astype(_BF16)

    dims = [b * h for b, h in zip(cfg["base_dims"], cfg["heads"])]
    ncls_pad = ((cfg["num_classes"] + _LANE - 1) // _LANE) * _LANE

    kernel = _make_pit_kernel(
        B=B, N0=N0, dims=dims, heads=tuple(cfg["heads"]), depth=tuple(cfg["depth"]),
        hw0=(Ho, Wo), eps_blk=1e-6, eps_final=1e-6, pool_k=3)

    flat = _flatten_params(params, cfg)
    out = pl.pallas_call(
        kernel,
        out_shape=jax.ShapeDtypeStruct((B, ncls_pad), _F32),
        in_specs=[_VMEM] * (1 + len(flat)),
        out_specs=_VMEM,
        compiler_params=pltpu.CompilerParams(vmem_limit_bytes=32 * 1024 * 1024),
    )(p, *flat)
    return out[:, :cfg["num_classes"]]


# ------------------------------- init / main --------------------------------

def init_params(key, cfg):
    """Parameters are created directly in the kernel's inference layout:
    matmul weights bf16 (cast once, half the DMA bytes), biases/LN/pos f32, q-scale
    folded into w_qkv/b_qkv, w_proj stored head-major, head padded to 128 lanes."""
    in_chans, patch, stride = cfg["in_chans"], cfg["patch_size"], cfg["stride"]
    img, base_dims, heads = cfg["img_size"], cfg["base_dims"], cfg["heads"]
    depth, mlp_ratio, num_classes = cfg["depth"], cfg["mlp_ratio"], cfg["num_classes"]

    Ho = (img[0] - patch) // stride + 1
    Wo = (img[1] - patch) // stride + 1
    dims = [b * h for b, h in zip(base_dims, heads)]
    ncls_pad = ((num_classes + _LANE - 1) // _LANE) * _LANE

    keys = iter(jax.random.split(key, 256))
    nrm = lambda shape, s=0.02: s * jax.random.normal(next(keys), shape, _F32)

    params = {
        "patch_w": nrm((in_chans * patch * patch, dims[0])).astype(_BF16),
        "patch_b": jnp.zeros((1, dims[0]), _F32),
        "pos_embed": nrm((Ho * Wo, dims[0])),
        "cls_token": nrm((1, dims[0])),
        "norm_g": jnp.ones((1, dims[-1]), _F32),
        "norm_b": jnp.zeros((1, dims[-1]), _F32),
        "head_w": jnp.pad(nrm((dims[-1], num_classes)),
                          ((0, 0), (0, ncls_pad - num_classes))).astype(_BF16),
        "head_b": jnp.zeros((1, ncls_pad), _F32),
        "stages": [],
        "pools": [],
    }
    for s, C in enumerate(dims):
        dh = base_dims[s]
        scale = 1.0 / math.sqrt(dh)
        blocks = []
        for _ in range(depth[s]):
            w_qkv = nrm((C, 3 * C)).at[:, :C].multiply(scale)     # fold 1/sqrt(dh) into q
            b_qkv = jnp.zeros((1, 3 * C), _F32).at[:, :C].multiply(scale)
            blocks.append({
                "ln1_g": jnp.ones((1, C), _F32), "ln1_b": jnp.zeros((1, C), _F32),
                "w_qkv": w_qkv.astype(_BF16), "b_qkv": b_qkv,
                "w_proj": nrm((C, C)).reshape(heads[s], dh, C).astype(_BF16),
                "b_proj": jnp.zeros((1, C), _F32),
                "ln2_g": jnp.ones((1, C), _F32), "ln2_b": jnp.zeros((1, C), _F32),
                "w_fc1": nrm((C, mlp_ratio * C)).astype(_BF16),
                "b_fc1": jnp.zeros((1, mlp_ratio * C), _F32),
                "w_fc2": nrm((mlp_ratio * C, C)).astype(_BF16),
                "b_fc2": jnp.zeros((1, C), _F32),
            })
        params["stages"].append(blocks)
        if s < len(dims) - 1:
            R = dims[s + 1] // dims[s]                # out channels per group (kernel=3)
            params["pools"].append({
                "dw_w": nrm((3, 3, R * C)),           # r-major channel order (see NOTE)
                "dw_b": jnp.zeros((1, R * C), _F32),
                "fc_w": nrm((C, dims[s + 1])).astype(_BF16),
                "fc_b": jnp.zeros((1, dims[s + 1]), _F32),
            })
    return params


if __name__ == "__main__":
    cfg = dict(img_size=(16, 16), patch_size=4, stride=4,
               base_dims=[16, 16], depth=[1, 1], heads=[2, 4],
               mlp_ratio=4, num_classes=10, in_chans=3)

    key = jax.random.PRNGKey(0)
    pkey, xkey = jax.random.split(key)
    params = init_params(pkey, cfg)
    x = jax.random.normal(xkey, (2, 3, 16, 16), _F32)      # NCHW, like PyTorch

    fwd = jax.jit(functools.partial(pooling_transformer_forward, cfg=cfg))
    logits = fwd(params, x)
    jax.block_until_ready(logits)
    assert logits.shape == (2, cfg["num_classes"]) and logits.dtype == jnp.float32
    print("KERNEL_OK")
</pallas_src>

<mosaic_0001>
module attributes {stable_mosaic.version = 11 : i64} {
  func.func @kernel(%arg0: memref<32x48xbf16, #tpu.memory_space<vmem>>, %arg1: memref<48x32xbf16, #tpu.memory_space<vmem>>, %arg2: memref<1x32xf32, #tpu.memory_space<vmem>>, %arg3: memref<16x32xf32, #tpu.memory_space<vmem>>, %arg4: memref<1x32xf32, #tpu.memory_space<vmem>>, %arg5: memref<1x32xf32, #tpu.memory_space<vmem>>, %arg6: memref<1x32xf32, #tpu.memory_space<vmem>>, %arg7: memref<32x96xbf16, #tpu.memory_space<vmem>>, %arg8: memref<1x96xf32, #tpu.memory_space<vmem>>, %arg9: memref<2x16x32xbf16, #tpu.memory_space<vmem>>, %arg10: memref<1x32xf32, #tpu.memory_space<vmem>>, %arg11: memref<1x32xf32, #tpu.memory_space<vmem>>, %arg12: memref<1x32xf32, #tpu.memory_space<vmem>>, %arg13: memref<32x128xbf16, #tpu.memory_space<vmem>>, %arg14: memref<1x128xf32, #tpu.memory_space<vmem>>, %arg15: memref<128x32xbf16, #tpu.memory_space<vmem>>, %arg16: memref<1x32xf32, #tpu.memory_space<vmem>>, %arg17: memref<3x3x64xf32, #tpu.memory_space<vmem>>, %arg18: memref<1x64xf32, #tpu.memory_space<vmem>>, %arg19: memref<32x64xbf16, #tpu.memory_space<vmem>>, %arg20: memref<1x64xf32, #tpu.memory_space<vmem>>, %arg21: memref<1x64xf32, #tpu.memory_space<vmem>>, %arg22: memref<1x64xf32, #tpu.memory_space<vmem>>, %arg23: memref<64x192xbf16, #tpu.memory_space<vmem>>, %arg24: memref<1x192xf32, #tpu.memory_space<vmem>>, %arg25: memref<4x16x64xbf16, #tpu.memory_space<vmem>>, %arg26: memref<1x64xf32, #tpu.memory_space<vmem>>, %arg27: memref<1x64xf32, #tpu.memory_space<vmem>>, %arg28: memref<1x64xf32, #tpu.memory_space<vmem>>, %arg29: memref<64x256xbf16, #tpu.memory_space<vmem>>, %arg30: memref<1x256xf32, #tpu.memory_space<vmem>>, %arg31: memref<256x64xbf16, #tpu.memory_space<vmem>>, %arg32: memref<1x64xf32, #tpu.memory_space<vmem>>, %arg33: memref<1x64xf32, #tpu.memory_space<vmem>>, %arg34: memref<1x64xf32, #tpu.memory_space<vmem>>, %arg35: memref<64x128xbf16, #tpu.memory_space<vmem>>, %arg36: memref<1x128xf32, #tpu.memory_space<vmem>>, %arg37: memref<2x128xf32, #tpu.memory_space<vmem>>) attributes {dimension_semantics = [], scalar_prefetch = 0 : i64, scratch_operands = 0 : i64, tpu.core_type = #tpu.core_type<tc>} {
    %c0 = arith.constant 0 : index
    %c0_0 = arith.constant 0 : index
    %0 = vector.load %arg0[%c0, %c0_0] : memref<32x48xbf16, #tpu.memory_space<vmem>>, vector<32x48xbf16>
    %c0_1 = arith.constant 0 : index
    %c0_2 = arith.constant 0 : index
    %1 = vector.load %arg1[%c0_1, %c0_2] : memref<48x32xbf16, #tpu.memory_space<vmem>>, vector<48x32xbf16>
    %cst = arith.constant dense<0.000000e+00> : vector<32x32xf32>
    %2 = tpu.matmul %0, %1, %cst {dimension_numbers = #tpu.dot_dimension_numbers<[1], [0], [0], [1], [0, 0, 1, 1], [], []>} : vector<32x48xbf16>, vector<48x32xbf16>, vector<32x32xf32> -> vector<32x32xf32>
    %c0_3 = arith.constant 0 : index
    %c0_4 = arith.constant 0 : index
    %3 = vector.load %arg2[%c0_3, %c0_4] : memref<1x32xf32, #tpu.memory_space<vmem>>, vector<1x32xf32>
    %4 = vector.broadcast %3 : vector<1x32xf32> to vector<32x32xf32>
    %5 = arith.addf %2, %4 : vector<32x32xf32>
    %6 = vector.shape_cast %5 : vector<32x32xf32> to vector<2x16x32xf32>
    %c0_5 = arith.constant 0 : index
    %c0_6 = arith.constant 0 : index
    %7 = vector.load %arg3[%c0_5, %c0_6] : memref<16x32xf32, #tpu.memory_space<vmem>>, vector<16x32xf32>
    %8 = vector.shape_cast %7 : vector<16x32xf32> to vector<1x16x32xf32>
    %9 = vector.broadcast %8 : vector<1x16x32xf32> to vector<2x16x32xf32>
    %10 = arith.addf %6, %9 : vector<2x16x32xf32>
    %c0_7 = arith.constant 0 : index
    %c0_8 = arith.constant 0 : index
    %11 = vector.load %arg4[%c0_7, %c0_8] : memref<1x32xf32, #tpu.memory_space<vmem>>, vector<1x32xf32>
    %12 = vector.shape_cast %11 : vector<1x32xf32> to vector<1x1x32xf32>
    %13 = vector.shape_cast %12 : vector<1x1x32xf32> to vector<1x1x32xf32>
    %14 = vector.broadcast %13 : vector<1x1x32xf32> to vector<2x1x32xf32>
    %15 = tpu.concatenate %14, %10 in 1 : vector<2x1x32xf32>, vector<2x16x32xf32> -> vector<2x17x32xf32>
    %16 = vector.shape_cast %15 : vector<2x17x32xf32> to vector<34x32xf32>
    %c0_9 = arith.constant 0 : index
    %c0_10 = arith.constant 0 : index
    %17 = vector.load %arg5[%c0_9, %c0_10] : memref<1x32xf32, #tpu.memory_space<vmem>>, vector<1x32xf32>
    %c0_11 = arith.constant 0 : index
    %c0_12 = arith.constant 0 : index
    %18 = vector.load %arg6[%c0_11, %c0_12] : memref<1x32xf32, #tpu.memory_space<vmem>>, vector<1x32xf32>
    %cst_13 = arith.constant dense<0.000000e+00> : vector<34xf32>
    %19 = vector.multi_reduction <add>, %16, %cst_13 [1] : vector<34x32xf32> to vector<34xf32>
    %20 = vector.shape_cast %19 : vector<34xf32> to vector<34x1xf32>
    %cst_14 = arith.constant 3.200000e+01 : f32
    %21 = vector.broadcast %cst_14 : f32 to vector<34x1xf32>
    %22 = arith.divf %20, %21 : vector<34x1xf32>
    %23 = vector.broadcast %22 : vector<34x1xf32> to vector<34x32xf32>
    %24 = arith.subf %16, %23 : vector<34x32xf32>
    %25 = arith.mulf %24, %24 : vector<34x32xf32>
    %cst_15 = arith.constant dense<0.000000e+00> : vector<34xf32>
    %26 = vector.multi_reduction <add>, %25, %cst_15 [1] : vector<34x32xf32> to vector<34xf32>
    %27 = vector.shape_cast %26 : vector<34xf32> to vector<34x1xf32>
    %cst_16 = arith.constant 3.200000e+01 : f32
    %28 = vector.broadcast %cst_16 : f32 to vector<34x1xf32>
    %29 = arith.divf %27, %28 : vector<34x1xf32>
    %30 = vector.broadcast %22 : vector<34x1xf32> to vector<34x32xf32>
    %31 = arith.subf %16, %30 : vector<34x32xf32>
    %cst_17 = arith.constant 9.99999997E-7 : f32
    %32 = vector.broadcast %cst_17 : f32 to vector<34x1xf32>
    %33 = arith.addf %29, %32 : vector<34x1xf32>
    %34 = math.rsqrt %33 : vector<34x1xf32>
    %35 = vector.broadcast %34 : vector<34x1xf32> to vector<34x32xf32>
    %36 = arith.mulf %31, %35 : vector<34x32xf32>
    %37 = vector.broadcast %17 : vector<1x32xf32> to vector<34x32xf32>
    %38 = arith.mulf %36, %37 : vector<34x32xf32>
    %39 = vector.broadcast %18 : vector<1x32xf32> to vector<34x32xf32>
    %40 = arith.addf %38, %39 : vector<34x32xf32>
    %c0_18 = arith.constant 0 : index
    %c0_19 = arith.constant 0 : index
    %41 = vector.load %arg7[%c0_18, %c0_19] : memref<32x96xbf16, #tpu.memory_space<vmem>>, vector<32x96xbf16>
    %42 = arith.truncf %40 : vector<34x32xf32> to vector<34x32xbf16>
    %cst_20 = arith.constant dense<0.000000e+00> : vector<34x96xf32>
    %43 = tpu.matmul %42, %41, %cst_20 {dimension_numbers = #tpu.dot_dimension_numbers<[1], [0], [0], [1], [0, 0, 1, 1], [], []>} : vector<34x32xbf16>, vector<32x96xbf16>, vector<34x96xf32> -> vector<34x96xf32>
    %c0_21 = arith.constant 0 : index
    %c0_22 = arith.constant 0 : index
    %44 = vector.load %arg8[%c0_21, %c0_22] : memref<1x96xf32, #tpu.memory_space<vmem>>, vector<1x96xf32>
    %45 = vector.broadcast %44 : vector<1x96xf32> to vector<34x96xf32>
    %46 = arith.addf %43, %45 : vector<34x96xf32>
    %47 = vector.shape_cast %46 : vector<34x96xf32> to vector<2x17x96xf32>
    %c0_23 = arith.constant 0 : index
    %c0_24 = arith.constant 0 : index
    %c0_25 = arith.constant 0 : index
    %48 = vector.load %arg9[%c0_23, %c0_24, %c0_25] : memref<2x16x32xbf16, #tpu.memory_space<vmem>>, vector<2x16x32xbf16>
    %cst_26 = arith.constant 0.000000e+00 : f32
    %49 = vector.broadcast %cst_26 : f32 to vector<34x32xf32>
    %50 = vector.extract_strided_slice %47 {offsets = [0, 0, 0], sizes = [2, 17, 16], strides = [1, 1, 1]} : vector<2x17x96xf32> to vector<2x17x16xf32>
    %51 = vector.extract_strided_slice %47 {offsets = [0, 0, 32], sizes = [2, 17, 16], strides = [1, 1, 1]} : vector<2x17x96xf32> to vector<2x17x16xf32>
    %52 = vector.extract_strided_slice %47 {offsets = [0, 0, 64], sizes = [2, 17, 16], strides = [1, 1, 1]} : vector<2x17x96xf32> to vector<2x17x16xf32>
    %53 = arith.truncf %50 : vector<2x17x16xf32> to vector<2x17x16xbf16>
    %54 = arith.truncf %51 : vector<2x17x16xf32> to vector<2x17x16xbf16>
    "tpu.trace_start"() <{level = 10 : i32, message = "btd,bsd->bts"}> : () -> ()
    %cst_27 = arith.constant dense<0.000000e+00> : vector<2x17x17xf32>
    %55 = tpu.matmul %53, %54, %cst_27 {dimension_numbers = #tpu.dot_dimension_numbers<[2], [2], [1], [1], [0, 0, 0, 1, 1, 1], [0], [0]>} : vector<2x17x16xbf16>, vector<2x17x16xbf16>, vector<2x17x17xf32> -> vector<2x17x17xf32>
    "tpu.trace_stop"() : () -> ()
    %cst_28 = arith.constant dense<0xFF800000> : vector<2x17xf32>
    %56 = vector.multi_reduction <maximumf>, %55, %cst_28 [2] : vector<2x17x17xf32> to vector<2x17xf32>
    %57 = vector.shape_cast %56 : vector<2x17xf32> to vector<2x17x1xf32>
    %58 = vector.broadcast %57 : vector<2x17x1xf32> to vector<2x17x17xf32>
    %59 = arith.subf %55, %58 : vector<2x17x17xf32>
    %60 = math.exp %59 : vector<2x17x17xf32>
    %cst_29 = arith.constant dense<0.000000e+00> : vector<2x17xf32>
    %61 = vector.multi_reduction <add>, %60, %cst_29 [2] : vector<2x17x17xf32> to vector<2x17xf32>
    %62 = vector.shape_cast %61 : vector<2x17xf32> to vector<2x17x1xf32>
    %63 = arith.truncf %60 : vector<2x17x17xf32> to vector<2x17x17xbf16>
    %64 = arith.truncf %52 : vector<2x17x16xf32> to vector<2x17x16xbf16>
    "tpu.trace_start"() <{level = 10 : i32, message = "bts,bsd->btd"}> : () -> ()
    %cst_30 = arith.constant dense<0.000000e+00> : vector<2x17x16xf32>
    %65 = tpu.matmul %63, %64, %cst_30 {dimension_numbers = #tpu.dot_dimension_numbers<[2], [1], [1], [2], [0, 0, 0, 1, 1, 2], [0], [0]>} : vector<2x17x17xbf16>, vector<2x17x16xbf16>, vector<2x17x16xf32> -> vector<2x17x16xf32>
    "tpu.trace_stop"() : () -> ()
    %66 = tpu.reciprocal %62 {approx = true} : vector<2x17x1xf32> -> vector<2x17x1xf32>
    %67 = vector.broadcast %66 : vector<2x17x1xf32> to vector<2x17x16xf32>
    %68 = arith.mulf %65, %67 : vector<2x17x16xf32>
    %69 = vector.shape_cast %68 : vector<2x17x16xf32> to vector<34x16xf32>
    %70 = vector.extract_strided_slice %48 {offsets = [0, 0, 0], sizes = [1, 16, 32], strides = [1, 1, 1]} : vector<2x16x32xbf16> to vector<1x16x32xbf16>
    %71 = vector.shape_cast %70 : vector<1x16x32xbf16> to vector<16x32xbf16>
    %72 = arith.truncf %69 : vector<34x16xf32> to vector<34x16xbf16>
    %cst_31 = arith.constant dense<0.000000e+00> : vector<34x32xf32>
    %73 = tpu.matmul %72, %71, %cst_31 {dimension_numbers = #tpu.dot_dimension_numbers<[1], [0], [0], [1], [0, 0, 1, 1], [], []>} : vector<34x16xbf16>, vector<16x32xbf16>, vector<34x32xf32> -> vector<34x32xf32>
    %74 = arith.addf %49, %73 : vector<34x32xf32>
    %75 = vector.extract_strided_slice %47 {offsets = [0, 0, 16], sizes = [2, 17, 16], strides = [1, 1, 1]} : vector<2x17x96xf32> to vector<2x17x16xf32>
    %76 = vector.extract_strided_slice %47 {offsets = [0, 0, 48], sizes = [2, 17, 16], strides = [1, 1, 1]} : vector<2x17x96xf32> to vector<2x17x16xf32>
    %77 = vector.extract_strided_slice %47 {offsets = [0, 0, 80], sizes = [2, 17, 16], strides = [1, 1, 1]} : vector<2x17x96xf32> to vector<2x17x16xf32>
    %78 = arith.truncf %75 : vector<2x17x16xf32> to vector<2x17x16xbf16>
    %79 = arith.truncf %76 : vector<2x17x16xf32> to vector<2x17x16xbf16>
    "tpu.trace_start"() <{level = 10 : i32, message = "btd,bsd->bts"}> : () -> ()
    %cst_32 = arith.constant dense<0.000000e+00> : vector<2x17x17xf32>
    %80 = tpu.matmul %78, %79, %cst_32 {dimension_numbers = #tpu.dot_dimension_numbers<[2], [2], [1], [1], [0, 0, 0, 1, 1, 1], [0], [0]>} : vector<2x17x16xbf16>, vector<2x17x16xbf16>, vector<2x17x17xf32> -> vector<2x17x17xf32>
    "tpu.trace_stop"() : () -> ()
    %cst_33 = arith.constant dense<0xFF800000> : vector<2x17xf32>
    %81 = vector.multi_reduction <maximumf>, %80, %cst_33 [2] : vector<2x17x17xf32> to vector<2x17xf32>
    %82 = vector.shape_cast %81 : vector<2x17xf32> to vector<2x17x1xf32>
    %83 = vector.broadcast %82 : vector<2x17x1xf32> to vector<2x17x17xf32>
    %84 = arith.subf %80, %83 : vector<2x17x17xf32>
    %85 = math.exp %84 : vector<2x17x17xf32>
    %cst_34 = arith.constant dense<0.000000e+00> : vector<2x17xf32>
    %86 = vector.multi_reduction <add>, %85, %cst_34 [2] : vector<2x17x17xf32> to vector<2x17xf32>
    %87 = vector.shape_cast %86 : vector<2x17xf32> to vector<2x17x1xf32>
    %88 = arith.truncf %85 : vector<2x17x17xf32> to vector<2x17x17xbf16>
    %89 = arith.truncf %77 : vector<2x17x16xf32> to vector<2x17x16xbf16>
    "tpu.trace_start"() <{level = 10 : i32, message = "bts,bsd->btd"}> : () -> ()
    %cst_35 = arith.constant dense<0.000000e+00> : vector<2x17x16xf32>
    %90 = tpu.matmul %88, %89, %cst_35 {dimension_numbers = #tpu.dot_dimension_numbers<[2], [1], [1], [2], [0, 0, 0, 1, 1, 2], [0], [0]>} : vector<2x17x17xbf16>, vector<2x17x16xbf16>, vector<2x17x16xf32> -> vector<2x17x16xf32>
    "tpu.trace_stop"() : () -> ()
    %91 = tpu.reciprocal %87 {approx = true} : vector<2x17x1xf32> -> vector<2x17x1xf32>
    %92 = vector.broadcast %91 : vector<2x17x1xf32> to vector<2x17x16xf32>
    %93 = arith.mulf %90, %92 : vector<2x17x16xf32>
    %94 = vector.shape_cast %93 : vector<2x17x16xf32> to vector<34x16xf32>
    %95 = vector.extract_strided_slice %48 {offsets = [1, 0, 0], sizes = [1, 16, 32], strides = [1, 1, 1]} : vector<2x16x32xbf16> to vector<1x16x32xbf16>
    %96 = vector.shape_cast %95 : vector<1x16x32xbf16> to vector<16x32xbf16>
    %97 = arith.truncf %94 : vector<34x16xf32> to vector<34x16xbf16>
    %cst_36 = arith.constant dense<0.000000e+00> : vector<34x32xf32>
    %98 = tpu.matmul %97, %96, %cst_36 {dimension_numbers = #tpu.dot_dimension_numbers<[1], [0], [0], [1], [0, 0, 1, 1], [], []>} : vector<34x16xbf16>, vector<16x32xbf16>, vector<34x32xf32> -> vector<34x32xf32>
    %99 = arith.addf %74, %98 : vector<34x32xf32>
    %100 = arith.addf %16, %99 : vector<34x32xf32>
    %c0_37 = arith.constant 0 : index
    %c0_38 = arith.constant 0 : index
    %101 = vector.load %arg10[%c0_37, %c0_38] : memref<1x32xf32, #tpu.memory_space<vmem>>, vector<1x32xf32>
    %102 = vector.broadcast %101 : vector<1x32xf32> to vector<34x32xf32>
    %103 = arith.addf %100, %102 : vector<34x32xf32>
    %c0_39 = arith.constant 0 : index
    %c0_40 = arith.constant 0 : index
    %104 = vector.load %arg11[%c0_39, %c0_40] : memref<1x32xf32, #tpu.memory_space<vmem>>, vector<1x32xf32>
    %c0_41 = arith.constant 0 : index
    %c0_42 = arith.constant 0 : index
    %105 = vector.load %arg12[%c0_41, %c0_42] : memref<1x32xf32, #tpu.memory_space<vmem>>, vector<1x32xf32>
    %cst_43 = arith.constant dense<0.000000e+00> : vector<34xf32>
    %106 = vector.multi_reduction <add>, %103, %cst_43 [1] : vector<34x32xf32> to vector<34xf32>
    %107 = vector.shape_cast %106 : vector<34xf32> to vector<34x1xf32>
    %cst_44 = arith.constant 3.200000e+01 : f32
    %108 = vector.broadcast %cst_44 : f32 to vector<34x1xf32>
    %109 = arith.divf %107, %108 : vector<34x1xf32>
    %110 = vector.broadcast %109 : vector<34x1xf32> to vector<34x32xf32>
    %111 = arith.subf %103, %110 : vector<34x32xf32>
    %112 = arith.mulf %111, %111 : vector<34x32xf32>
    %cst_45 = arith.constant dense<0.000000e+00> : vector<34xf32>
    %113 = vector.multi_reduction <add>, %112, %cst_45 [1] : vector<34x32xf32> to vector<34xf32>
    %114 = vector.shape_cast %113 : vector<34xf32> to vector<34x1xf32>
    %cst_46 = arith.constant 3.200000e+01 : f32
    %115 = vector.broadcast %cst_46 : f32 to vector<34x1xf32>
    %116 = arith.divf %114, %115 : vector<34x1xf32>
    %117 = vector.broadcast %109 : vector<34x1xf32> to vector<34x32xf32>
    %118 = arith.subf %103, %117 : vector<34x32xf32>
    %cst_47 = arith.constant 9.99999997E-7 : f32
    %119 = vector.broadcast %cst_47 : f32 to vector<34x1xf32>
    %120 = arith.addf %116, %119 : vector<34x1xf32>
    %121 = math.rsqrt %120 : vector<34x1xf32>
    %122 = vector.broadcast %121 : vector<34x1xf32> to vector<34x32xf32>
    %123 = arith.mulf %118, %122 : vector<34x32xf32>
    %124 = vector.broadcast %104 : vector<1x32xf32> to vector<34x32xf32>
    %125 = arith.mulf %123, %124 : vector<34x32xf32>
    %126 = vector.broadcast %105 : vector<1x32xf32> to vector<34x32xf32>
    %127 = arith.addf %125, %126 : vector<34x32xf32>
    %c0_48 = arith.constant 0 : index
    %c0_49 = arith.constant 0 : index
    %128 = vector.load %arg13[%c0_48, %c0_49] : memref<32x128xbf16, #tpu.memory_space<vmem>>, vector<32x128xbf16>
    %129 = arith.truncf %127 : vector<34x32xf32> to vector<34x32xbf16>
    %cst_50 = arith.constant dense<0.000000e+00> : vector<34x128xf32>
    %130 = tpu.matmul %129, %128, %cst_50 {dimension_numbers = #tpu.dot_dimension_numbers<[1], [0], [0], [1], [0, 0, 1, 1], [], []>} : vector<34x32xbf16>, vector<32x128xbf16>, vector<34x128xf32> -> vector<34x128xf32>
    %c0_51 = arith.constant 0 : index
    %c0_52 = arith.constant 0 : index
    %131 = vector.load %arg14[%c0_51, %c0_52] : memref<1x128xf32, #tpu.memory_space<vmem>>, vector<1x128xf32>
    %132 = vector.broadcast %131 : vector<1x128xf32> to vector<34x128xf32>
    %133 = arith.addf %130, %132 : vector<34x128xf32>
    %cst_53 = arith.constant 5.000000e-01 : f32
    %134 = vector.broadcast %cst_53 : f32 to vector<34x128xf32>
    %135 = arith.mulf %134, %133 : vector<34x128xf32>
    %cst_54 = arith.constant 0.707106769 : f32
    %136 = vector.broadcast %cst_54 : f32 to vector<34x128xf32>
    %137 = arith.mulf %133, %136 : vector<34x128xf32>
    %138 = math.absf %137 : vector<34x128xf32>
    %cst_55 = arith.constant 0.327591091 : f32
    %139 = vector.broadcast %cst_55 : f32 to vector<34x128xf32>
    %140 = arith.mulf %139, %138 : vector<34x128xf32>
    %cst_56 = arith.constant 1.000000e+00 : f32
    %141 = vector.broadcast %cst_56 : f32 to vector<34x128xf32>
    %142 = arith.addf %141, %140 : vector<34x128xf32>
    %cst_57 = arith.constant 1.000000e+00 : f32
    %143 = vector.broadcast %cst_57 : f32 to vector<34x128xf32>
    %144 = arith.divf %143, %142 : vector<34x128xf32>
    %cst_58 = arith.constant 1.06140542 : f32
    %145 = vector.broadcast %cst_58 : f32 to vector<34x128xf32>
    %146 = arith.mulf %145, %144 : vector<34x128xf32>
    %cst_59 = arith.constant -1.45315206 : f32
    %147 = vector.broadcast %cst_59 : f32 to vector<34x128xf32>
    %148 = arith.addf %146, %147 : vector<34x128xf32>
    %149 = arith.mulf %148, %144 : vector<34x128xf32>
    %cst_60 = arith.constant 1.42141378 : f32
    %150 = vector.broadcast %cst_60 : f32 to vector<34x128xf32>
    %151 = arith.addf %149, %150 : vector<34x128xf32>
    %152 = arith.mulf %151, %144 : vector<34x128xf32>
    %cst_61 = arith.constant -0.284496725 : f32
    %153 = vector.broadcast %cst_61 : f32 to vector<34x128xf32>
    %154 = arith.addf %152, %153 : vector<34x128xf32>
    %155 = arith.mulf %154, %144 : vector<34x128xf32>
    %cst_62 = arith.constant 0.254829586 : f32
    %156 = vector.broadcast %cst_62 : f32 to vector<34x128xf32>
    %157 = arith.addf %155, %156 : vector<34x128xf32>
    %158 = arith.mulf %157, %144 : vector<34x128xf32>
    %cst_63 = arith.constant 0.000000e+00 : f32
    %159 = vector.broadcast %cst_63 : f32 to vector<34x128xf32>
    %160 = arith.subf %159, %138 : vector<34x128xf32>
    %161 = arith.mulf %160, %138 : vector<34x128xf32>
    %162 = math.exp %161 : vector<34x128xf32>
    %163 = arith.mulf %158, %162 : vector<34x128xf32>
    %cst_64 = arith.constant 1.000000e+00 : f32
    %164 = vector.broadcast %cst_64 : f32 to vector<34x128xf32>
    %165 = arith.subf %164, %163 : vector<34x128xf32>
    %cst_65 = arith.constant 0.000000e+00 : f32
    %166 = vector.broadcast %cst_65 : f32 to vector<34x128xf32>
    %167 = arith.cmpf oge, %137, %166 : vector<34x128xf32>
    %cst_66 = arith.constant 0.000000e+00 : f32
    %168 = vector.broadcast %cst_66 : f32 to vector<34x128xf32>
    %169 = arith.subf %168, %165 : vector<34x128xf32>
    %170 = arith.select %167, %165, %169 : vector<34x128xi1>, vector<34x128xf32>
    %cst_67 = arith.constant 1.000000e+00 : f32
    %171 = vector.broadcast %cst_67 : f32 to vector<34x128xf32>
    %172 = arith.addf %171, %170 : vector<34x128xf32>
    %173 = arith.mulf %135, %172 : vector<34x128xf32>
    %c0_68 = arith.constant 0 : index
    %c0_69 = arith.constant 0 : index
    %174 = vector.load %arg15[%c0_68, %c0_69] : memref<128x32xbf16, #tpu.memory_space<vmem>>, vector<128x32xbf16>
    %175 = arith.truncf %173 : vector<34x128xf32> to vector<34x128xbf16>
    %cst_70 = arith.constant dense<0.000000e+00> : vector<34x32xf32>
    %176 = tpu.matmul %175, %174, %cst_70 {dimension_numbers = #tpu.dot_dimension_numbers<[1], [0], [0], [1], [0, 0, 1, 1], [], []>} : vector<34x128xbf16>, vector<128x32xbf16>, vector<34x32xf32> -> vector<34x32xf32>
    %177 = arith.addf %103, %176 : vector<34x32xf32>
    %c0_71 = arith.constant 0 : index
    %c0_72 = arith.constant 0 : index
    %178 = vector.load %arg16[%c0_71, %c0_72] : memref<1x32xf32, #tpu.memory_space<vmem>>, vector<1x32xf32>
    %179 = vector.broadcast %178 : vector<1x32xf32> to vector<34x32xf32>
    %180 = arith.addf %177, %179 : vector<34x32xf32>
    %181 = vector.shape_cast %180 : vector<34x32xf32> to vector<2x17x32xf32>
    %182 = vector.extract_strided_slice %181 {offsets = [0, 1, 0], sizes = [2, 16, 32], strides = [1, 1, 1]} : vector<2x17x32xf32> to vector<2x16x32xf32>
    %183 = vector.shape_cast %182 : vector<2x16x32xf32> to vector<2x4x4x32xf32>
    %cst_73 = arith.constant 0.000000e+00 : f32
    %184 = vector.broadcast %cst_73 : f32 to vector<2x1x4x32xf32>
    %185 = tpu.concatenate %184, %183, %184 in 1 : vector<2x1x4x32xf32>, vector<2x4x4x32xf32>, vector<2x1x4x32xf32> -> vector<2x6x4x32xf32>
    %cst_74 = arith.constant 0.000000e+00 : f32
    %186 = vector.broadcast %cst_74 : f32 to vector<2x6x1x32xf32>
    %187 = tpu.concatenate %186, %185, %186 in 2 : vector<2x6x1x32xf32>, vector<2x6x4x32xf32>, vector<2x6x1x32xf32> -> vector<2x6x6x32xf32>
    %188 = tpu.concatenate %187, %187 in 3 : vector<2x6x6x32xf32>, vector<2x6x6x32xf32> -> vector<2x6x6x64xf32>
    %c0_75 = arith.constant 0 : index
    %c0_76 = arith.constant 0 : index
    %c0_77 = arith.constant 0 : index
    %189 = vector.load %arg17[%c0_75, %c0_76, %c0_77] : memref<3x3x64xf32, #tpu.memory_space<vmem>>, vector<3x3x64xf32>
    %cst_78 = arith.constant 0.000000e+00 : f32
    %190 = vector.broadcast %cst_78 : f32 to vector<2x4x4x64xf32>
    %191 = vector.extract_strided_slice %188 {offsets = [0, 0, 0, 0], sizes = [2, 4, 4, 64], strides = [1, 1, 1, 1]} : vector<2x6x6x64xf32> to vector<2x4x4x64xf32>
    %192 = vector.extract_strided_slice %189 {offsets = [0, 0, 0], sizes = [1, 1, 64], strides = [1, 1, 1]} : vector<3x3x64xf32> to vector<1x1x64xf32>
    %193 = vector.shape_cast %192 : vector<1x1x64xf32> to vector<1x64xf32>
    %194 = vector.shape_cast %193 : vector<1x64xf32> to vector<1x1x1x64xf32>
    %195 = vector.broadcast %194 : vector<1x1x1x64xf32> to vector<2x4x4x64xf32>
    %196 = arith.mulf %191, %195 : vector<2x4x4x64xf32>
    %197 = arith.addf %190, %196 : vector<2x4x4x64xf32>
    %198 = vector.extract_strided_slice %188 {offsets = [0, 0, 1, 0], sizes = [2, 4, 4, 64], strides = [1, 1, 1, 1]} : vector<2x6x6x64xf32> to vector<2x4x4x64xf32>
    %199 = vector.extract_strided_slice %189 {offsets = [0, 1, 0], sizes = [1, 1, 64], strides = [1, 1, 1]} : vector<3x3x64xf32> to vector<1x1x64xf32>
    %200 = vector.shape_cast %199 : vector<1x1x64xf32> to vector<1x64xf32>
    %201 = vector.shape_cast %200 : vector<1x64xf32> to vector<1x1x1x64xf32>
    %202 = vector.broadcast %201 : vector<1x1x1x64xf32> to vector<2x4x4x64xf32>
    %203 = arith.mulf %198, %202 : vector<2x4x4x64xf32>
    %204 = arith.addf %197, %203 : vector<2x4x4x64xf32>
    %205 = vector.extract_strided_slice %188 {offsets = [0, 0, 2, 0], sizes = [2, 4, 4, 64], strides = [1, 1, 1, 1]} : vector<2x6x6x64xf32> to vector<2x4x4x64xf32>
    %206 = vector.extract_strided_slice %189 {offsets = [0, 2, 0], sizes = [1, 1, 64], strides = [1, 1, 1]} : vector<3x3x64xf32> to vector<1x1x64xf32>
    %207 = vector.shape_cast %206 : vector<1x1x64xf32> to vector<1x64xf32>
    %208 = vector.shape_cast %207 : vector<1x64xf32> to vector<1x1x1x64xf32>
    %209 = vector.broadcast %208 : vector<1x1x1x64xf32> to vector<2x4x4x64xf32>
    %210 = arith.mulf %205, %209 : vector<2x4x4x64xf32>
    %211 = arith.addf %204, %210 : vector<2x4x4x64xf32>
    %212 = vector.extract_strided_slice %188 {offsets = [0, 1, 0, 0], sizes = [2, 4, 4, 64], strides = [1, 1, 1, 1]} : vector<2x6x6x64xf32> to vector<2x4x4x64xf32>
    %213 = vector.extract_strided_slice %189 {offsets = [1, 0, 0], sizes = [1, 1, 64], strides = [1, 1, 1]} : vector<3x3x64xf32> to vector<1x1x64xf32>
    %214 = vector.shape_cast %213 : vector<1x1x64xf32> to vector<1x64xf32>
    %215 = vector.shape_cast %214 : vector<1x64xf32> to vector<1x1x1x64xf32>
    %216 = vector.broadcast %215 : vector<1x1x1x64xf32> to vector<2x4x4x64xf32>
    %217 = arith.mulf %212, %216 : vector<2x4x4x64xf32>
    %218 = arith.addf %211, %217 : vector<2x4x4x64xf32>
    %219 = vector.extract_strided_slice %188 {offsets = [0, 1, 1, 0], sizes = [2, 4, 4, 64], strides = [1, 1, 1, 1]} : vector<2x6x6x64xf32> to vector<2x4x4x64xf32>
    %220 = vector.extract_strided_slice %189 {offsets = [1, 1, 0], sizes = [1, 1, 64], strides = [1, 1, 1]} : vector<3x3x64xf32> to vector<1x1x64xf32>
    %221 = vector.shape_cast %220 : vector<1x1x64xf32> to vector<1x64xf32>
    %222 = vector.shape_cast %221 : vector<1x64xf32> to vector<1x1x1x64xf32>
    %223 = vector.broadcast %222 : vector<1x1x1x64xf32> to vector<2x4x4x64xf32>
    %224 = arith.mulf %219, %223 : vector<2x4x4x64xf32>
    %225 = arith.addf %218, %224 : vector<2x4x4x64xf32>
    %226 = vector.extract_strided_slice %188 {offsets = [0, 1, 2, 0], sizes = [2, 4, 4, 64], strides = [1, 1, 1, 1]} : vector<2x6x6x64xf32> to vector<2x4x4x64xf32>
    %227 = vector.extract_strided_slice %189 {offsets = [1, 2, 0], sizes = [1, 1, 64], strides = [1, 1, 1]} : vector<3x3x64xf32> to vector<1x1x64xf32>
    %228 = vector.shape_cast %227 : vector<1x1x64xf32> to vector<1x64xf32>
    %229 = vector.shape_cast %228 : vector<1x64xf32> to vector<1x1x1x64xf32>
    %230 = vector.broadcast %229 : vector<1x1x1x64xf32> to vector<2x4x4x64xf32>
    %231 = arith.mulf %226, %230 : vector<2x4x4x64xf32>
    %232 = arith.addf %225, %231 : vector<2x4x4x64xf32>
    %233 = vector.extract_strided_slice %188 {offsets = [0, 2, 0, 0], sizes = [2, 4, 4, 64], strides = [1, 1, 1, 1]} : vector<2x6x6x64xf32> to vector<2x4x4x64xf32>
    %234 = vector.extract_strided_slice %189 {offsets = [2, 0, 0], sizes = [1, 1, 64], strides = [1, 1, 1]} : vector<3x3x64xf32> to vector<1x1x64xf32>
    %235 = vector.shape_cast %234 : vector<1x1x64xf32> to vector<1x64xf32>
    %236 = vector.shape_cast %235 : vector<1x64xf32> to vector<1x1x1x64xf32>
    %237 = vector.broadcast %236 : vector<1x1x1x64xf32> to vector<2x4x4x64xf32>
    %238 = arith.mulf %233, %237 : vector<2x4x4x64xf32>
    %239 = arith.addf %232, %238 : vector<2x4x4x64xf32>
    %240 = vector.extract_strided_slice %188 {offsets = [0, 2, 1, 0], sizes = [2, 4, 4, 64], strides = [1, 1, 1, 1]} : vector<2x6x6x64xf32> to vector<2x4x4x64xf32>
    %241 = vector.extract_strided_slice %189 {offsets = [2, 1, 0], sizes = [1, 1, 64], strides = [1, 1, 1]} : vector<3x3x64xf32> to vector<1x1x64xf32>
    %242 = vector.shape_cast %241 : vector<1x1x64xf32> to vector<1x64xf32>
    %243 = vector.shape_cast %242 : vector<1x64xf32> to vector<1x1x1x64xf32>
    %244 = vector.broadcast %243 : vector<1x1x1x64xf32> to vector<2x4x4x64xf32>
    %245 = arith.mulf %240, %244 : vector<2x4x4x64xf32>
    %246 = arith.addf %239, %245 : vector<2x4x4x64xf32>
    %247 = vector.extract_strided_slice %188 {offsets = [0, 2, 2, 0], sizes = [2, 4, 4, 64], strides = [1, 1, 1, 1]} : vector<2x6x6x64xf32> to vector<2x4x4x64xf32>
    %248 = vector.extract_strided_slice %189 {offsets = [2, 2, 0], sizes = [1, 1, 64], strides = [1, 1, 1]} : vector<3x3x64xf32> to vector<1x1x64xf32>
    %249 = vector.shape_cast %248 : vector<1x1x64xf32> to vector<1x64xf32>
    %250 = vector.shape_cast %249 : vector<1x64xf32> to vector<1x1x1x64xf32>
    %251 = vector.broadcast %250 : vector<1x1x1x64xf32> to vector<2x4x4x64xf32>
    %252 = arith.mulf %247, %251 : vector<2x4x4x64xf32>
    %253 = arith.addf %246, %252 : vector<2x4x4x64xf32>
    %c0_79 = arith.constant 0 : index
    %c0_80 = arith.constant 0 : index
    %254 = vector.load %arg18[%c0_79, %c0_80] : memref<1x64xf32, #tpu.memory_space<vmem>>, vector<1x64xf32>
    %255 = vector.shape_cast %254 : vector<1x64xf32> to vector<1x1x1x64xf32>
    %256 = vector.broadcast %255 : vector<1x1x1x64xf32> to vector<2x4x4x64xf32>
    %257 = arith.addf %253, %256 : vector<2x4x4x64xf32>
    %258 = vector.extract_strided_slice %257 {offsets = [0, 0, 0, 0], sizes = [2, 1, 4, 64], strides = [1, 1, 1, 1]} : vector<2x4x4x64xf32> to vector<2x1x4x64xf32>
    %259 = vector.extract_strided_slice %257 {offsets = [0, 2, 0, 0], sizes = [2, 1, 4, 64], strides = [1, 1, 1, 1]} : vector<2x4x4x64xf32> to vector<2x1x4x64xf32>
    %260 = tpu.concatenate %258, %259 in 1 : vector<2x1x4x64xf32>, vector<2x1x4x64xf32> -> vector<2x2x4x64xf32>
    %261 = vector.extract_strided_slice %260 {offsets = [0, 0, 0, 0], sizes = [2, 2, 1, 64], strides = [1, 1, 1, 1]} : vector<2x2x4x64xf32> to vector<2x2x1x64xf32>
    %262 = vector.extract_strided_slice %260 {offsets = [0, 0, 2, 0], sizes = [2, 2, 1, 64], strides = [1, 1, 1, 1]} : vector<2x2x4x64xf32> to vector<2x2x1x64xf32>
    %263 = tpu.concatenate %261, %262 in 2 : vector<2x2x1x64xf32>, vector<2x2x1x64xf32> -> vector<2x2x2x64xf32>
    %264 = vector.shape_cast %263 : vector<2x2x2x64xf32> to vector<2x4x64xf32>
    %265 = vector.extract_strided_slice %181 {offsets = [0, 0, 0], sizes = [2, 1, 32], strides = [1, 1, 1]} : vector<2x17x32xf32> to vector<2x1x32xf32>
    %266 = vector.shape_cast %265 : vector<2x1x32xf32> to vector<2x32xf32>
    %c0_81 = arith.constant 0 : index
    %c0_82 = arith.constant 0 : index
    %267 = vector.load %arg19[%c0_81, %c0_82] : memref<32x64xbf16, #tpu.memory_space<vmem>>, vector<32x64xbf16>
    %268 = arith.truncf %266 : vector<2x32xf32> to vector<2x32xbf16>
    %cst_83 = arith.constant dense<0.000000e+00> : vector<2x64xf32>
    %269 = tpu.matmul %268, %267, %cst_83 {dimension_numbers = #tpu.dot_dimension_numbers<[1], [0], [0], [1], [0, 0, 1, 1], [], []>} : vector<2x32xbf16>, vector<32x64xbf16>, vector<2x64xf32> -> vector<2x64xf32>
    %c0_84 = arith.constant 0 : index
    %c0_85 = arith.constant 0 : index
    %270 = vector.load %arg20[%c0_84, %c0_85] : memref<1x64xf32, #tpu.memory_space<vmem>>, vector<1x64xf32>
    %271 = vector.broadcast %270 : vector<1x64xf32> to vector<2x64xf32>
    %272 = arith.addf %269, %271 : vector<2x64xf32>
    %273 = vector.shape_cast %272 : vector<2x64xf32> to vector<2x1x64xf32>
    %274 = tpu.concatenate %273, %264 in 1 : vector<2x1x64xf32>, vector<2x4x64xf32> -> vector<2x5x64xf32>
    %275 = vector.shape_cast %274 : vector<2x5x64xf32> to vector<10x64xf32>
    %c0_86 = arith.constant 0 : index
    %c0_87 = arith.constant 0 : index
    %276 = vector.load %arg21[%c0_86, %c0_87] : memref<1x64xf32, #tpu.memory_space<vmem>>, vector<1x64xf32>
    %c0_88 = arith.constant 0 : index
    %c0_89 = arith.constant 0 : index
    %277 = vector.load %arg22[%c0_88, %c0_89] : memref<1x64xf32, #tpu.memory_space<vmem>>, vector<1x64xf32>
    %cst_90 = arith.constant dense<0.000000e+00> : vector<10xf32>
    %278 = vector.multi_reduction <add>, %275, %cst_90 [1] : vector<10x64xf32> to vector<10xf32>
    %279 = vector.shape_cast %278 : vector<10xf32> to vector<10x1xf32>
    %cst_91 = arith.constant 6.400000e+01 : f32
    %280 = vector.broadcast %cst_91 : f32 to vector<10x1xf32>
    %281 = arith.divf %279, %280 : vector<10x1xf32>
    %282 = vector.broadcast %281 : vector<10x1xf32> to vector<10x64xf32>
    %283 = arith.subf %275, %282 : vector<10x64xf32>
    %284 = arith.mulf %283, %283 : vector<10x64xf32>
    %cst_92 = arith.constant dense<0.000000e+00> : vector<10xf32>
    %285 = vector.multi_reduction <add>, %284, %cst_92 [1] : vector<10x64xf32> to vector<10xf32>
    %286 = vector.shape_cast %285 : vector<10xf32> to vector<10x1xf32>
    %cst_93 = arith.constant 6.400000e+01 : f32
    %287 = vector.broadcast %cst_93 : f32 to vector<10x1xf32>
    %288 = arith.divf %286, %287 : vector<10x1xf32>
    %289 = vector.broadcast %281 : vector<10x1xf32> to vector<10x64xf32>
    %290 = arith.subf %275, %289 : vector<10x64xf32>
    %cst_94 = arith.constant 9.99999997E-7 : f32
    %291 = vector.broadcast %cst_94 : f32 to vector<10x1xf32>
    %292 = arith.addf %288, %291 : vector<10x1xf32>
    %293 = math.rsqrt %292 : vector<10x1xf32>
    %294 = vector.broadcast %293 : vector<10x1xf32> to vector<10x64xf32>
    %295 = arith.mulf %290, %294 : vector<10x64xf32>
    %296 = vector.broadcast %276 : vector<1x64xf32> to vector<10x64xf32>
    %297 = arith.mulf %295, %296 : vector<10x64xf32>
    %298 = vector.broadcast %277 : vector<1x64xf32> to vector<10x64xf32>
    %299 = arith.addf %297, %298 : vector<10x64xf32>
    %c0_95 = arith.constant 0 : index
    %c0_96 = arith.constant 0 : index
    %300 = vector.load %arg23[%c0_95, %c0_96] : memref<64x192xbf16, #tpu.memory_space<vmem>>, vector<64x192xbf16>
    %301 = arith.truncf %299 : vector<10x64xf32> to vector<10x64xbf16>
    %cst_97 = arith.constant dense<0.000000e+00> : vector<10x192xf32>
    %302 = tpu.matmul %301, %300, %cst_97 {dimension_numbers = #tpu.dot_dimension_numbers<[1], [0], [0], [1], [0, 0, 1, 1], [], []>} : vector<10x64xbf16>, vector<64x192xbf16>, vector<10x192xf32> -> vector<10x192xf32>
    %c0_98 = arith.constant 0 : index
    %c0_99 = arith.constant 0 : index
    %303 = vector.load %arg24[%c0_98, %c0_99] : memref<1x192xf32, #tpu.memory_space<vmem>>, vector<1x192xf32>
    %304 = vector.broadcast %303 : vector<1x192xf32> to vector<10x192xf32>
    %305 = arith.addf %302, %304 : vector<10x192xf32>
    %306 = vector.shape_cast %305 : vector<10x192xf32> to vector<2x5x192xf32>
    %c0_100 = arith.constant 0 : index
    %c0_101 = arith.constant 0 : index
    %c0_102 = arith.constant 0 : index
    %307 = vector.load %arg25[%c0_100, %c0_101, %c0_102] : memref<4x16x64xbf16, #tpu.memory_space<vmem>>, vector<4x16x64xbf16>
    %cst_103 = arith.constant 0.000000e+00 : f32
    %308 = vector.broadcast %cst_103 : f32 to vector<10x64xf32>
    %309 = vector.extract_strided_slice %306 {offsets = [0, 0, 0], sizes = [2, 5, 16], strides = [1, 1, 1]} : vector<2x5x192xf32> to vector<2x5x16xf32>
    %310 = vector.extract_strided_slice %306 {offsets = [0, 0, 64], sizes = [2, 5, 16], strides = [1, 1, 1]} : vector<2x5x192xf32> to vector<2x5x16xf32>
    %311 = vector.extract_strided_slice %306 {offsets = [0, 0, 128], sizes = [2, 5, 16], strides = [1, 1, 1]} : vector<2x5x192xf32> to vector<2x5x16xf32>
    %312 = arith.truncf %309 : vector<2x5x16xf32> to vector<2x5x16xbf16>
    %313 = arith.truncf %310 : vector<2x5x16xf32> to vector<2x5x16xbf16>
    "tpu.trace_start"() <{level = 10 : i32, message = "btd,bsd->bts"}> : () -> ()
    %cst_104 = arith.constant dense<0.000000e+00> : vector<2x5x5xf32>
    %314 = tpu.matmul %312, %313, %cst_104 {dimension_numbers = #tpu.dot_dimension_numbers<[2], [2], [1], [1], [0, 0, 0, 1, 1, 1], [0], [0]>} : vector<2x5x16xbf16>, vector<2x5x16xbf16>, vector<2x5x5xf32> -> vector<2x5x5xf32>
    "tpu.trace_stop"() : () -> ()
    %cst_105 = arith.constant dense<0xFF800000> : vector<2x5xf32>
    %315 = vector.multi_reduction <maximumf>, %314, %cst_105 [2] : vector<2x5x5xf32> to vector<2x5xf32>
    %316 = vector.shape_cast %315 : vector<2x5xf32> to vector<2x5x1xf32>
    %317 = vector.broadcast %316 : vector<2x5x1xf32> to vector<2x5x5xf32>
    %318 = arith.subf %314, %317 : vector<2x5x5xf32>
    %319 = math.exp %318 : vector<2x5x5xf32>
    %cst_106 = arith.constant dense<0.000000e+00> : vector<2x5xf32>
    %320 = vector.multi_reduction <add>, %319, %cst_106 [2] : vector<2x5x5xf32> to vector<2x5xf32>
    %321 = vector.shape_cast %320 : vector<2x5xf32> to vector<2x5x1xf32>
    %322 = arith.truncf %319 : vector<2x5x5xf32> to vector<2x5x5xbf16>
    %323 = arith.truncf %311 : vector<2x5x16xf32> to vector<2x5x16xbf16>
    "tpu.trace_start"() <{level = 10 : i32, message = "bts,bsd->btd"}> : () -> ()
    %cst_107 = arith.constant dense<0.000000e+00> : vector<2x5x16xf32>
    %324 = tpu.matmul %322, %323, %cst_107 {dimension_numbers = #tpu.dot_dimension_numbers<[2], [1], [1], [2], [0, 0, 0, 1, 1, 2], [0], [0]>} : vector<2x5x5xbf16>, vector<2x5x16xbf16>, vector<2x5x16xf32> -> vector<2x5x16xf32>
    "tpu.trace_stop"() : () -> ()
    %325 = tpu.reciprocal %321 {approx = true} : vector<2x5x1xf32> -> vector<2x5x1xf32>
    %326 = vector.broadcast %325 : vector<2x5x1xf32> to vector<2x5x16xf32>
    %327 = arith.mulf %324, %326 : vector<2x5x16xf32>
    %328 = vector.shape_cast %327 : vector<2x5x16xf32> to vector<10x16xf32>
    %329 = vector.extract_strided_slice %307 {offsets = [0, 0, 0], sizes = [1, 16, 64], strides = [1, 1, 1]} : vector<4x16x64xbf16> to vector<1x16x64xbf16>
    %330 = vector.shape_cast %329 : vector<1x16x64xbf16> to vector<16x64xbf16>
    %331 = arith.truncf %328 : vector<10x16xf32> to vector<10x16xbf16>
    %cst_108 = arith.constant dense<0.000000e+00> : vector<10x64xf32>
    %332 = tpu.matmul %331, %330, %cst_108 {dimension_numbers = #tpu.dot_dimension_numbers<[1], [0], [0], [1], [0, 0, 1, 1], [], []>} : vector<10x16xbf16>, vector<16x64xbf16>, vector<10x64xf32> -> vector<10x64xf32>
    %333 = arith.addf %308, %332 : vector<10x64xf32>
    %334 = vector.extract_strided_slice %306 {offsets = [0, 0, 16], sizes = [2, 5, 16], strides = [1, 1, 1]} : vector<2x5x192xf32> to vector<2x5x16xf32>
    %335 = vector.extract_strided_slice %306 {offsets = [0, 0, 80], sizes = [2, 5, 16], strides = [1, 1, 1]} : vector<2x5x192xf32> to vector<2x5x16xf32>
    %336 = vector.extract_strided_slice %306 {offsets = [0, 0, 144], sizes = [2, 5, 16], strides = [1, 1, 1]} : vector<2x5x192xf32> to vector<2x5x16xf32>
    %337 = arith.truncf %334 : vector<2x5x16xf32> to vector<2x5x16xbf16>
    %338 = arith.truncf %335 : vector<2x5x16xf32> to vector<2x5x16xbf16>
    "tpu.trace_start"() <{level = 10 : i32, message = "btd,bsd->bts"}> : () -> ()
    %cst_109 = arith.constant dense<0.000000e+00> : vector<2x5x5xf32>
    %339 = tpu.matmul %337, %338, %cst_109 {dimension_numbers = #tpu.dot_dimension_numbers<[2], [2], [1], [1], [0, 0, 0, 1, 1, 1], [0], [0]>} : vector<2x5x16xbf16>, vector<2x5x16xbf16>, vector<2x5x5xf32> -> vector<2x5x5xf32>
    "tpu.trace_stop"() : () -> ()
    %cst_110 = arith.constant dense<0xFF800000> : vector<2x5xf32>
    %340 = vector.multi_reduction <maximumf>, %339, %cst_110 [2] : vector<2x5x5xf32> to vector<2x5xf32>
    %341 = vector.shape_cast %340 : vector<2x5xf32> to vector<2x5x1xf32>
    %342 = vector.broadcast %341 : vector<2x5x1xf32> to vector<2x5x5xf32>
    %343 = arith.subf %339, %342 : vector<2x5x5xf32>
    %344 = math.exp %343 : vector<2x5x5xf32>
    %cst_111 = arith.constant dense<0.000000e+00> : vector<2x5xf32>
    %345 = vector.multi_reduction <add>, %344, %cst_111 [2] : vector<2x5x5xf32> to vector<2x5xf32>
    %346 = vector.shape_cast %345 : vector<2x5xf32> to vector<2x5x1xf32>
    %347 = arith.truncf %344 : vector<2x5x5xf32> to vector<2x5x5xbf16>
    %348 = arith.truncf %336 : vector<2x5x16xf32> to vector<2x5x16xbf16>
    "tpu.trace_start"() <{level = 10 : i32, message = "bts,bsd->btd"}> : () -> ()
    %cst_112 = arith.constant dense<0.000000e+00> : vector<2x5x16xf32>
    %349 = tpu.matmul %347, %348, %cst_112 {dimension_numbers = #tpu.dot_dimension_numbers<[2], [1], [1], [2], [0, 0, 0, 1, 1, 2], [0], [0]>} : vector<2x5x5xbf16>, vector<2x5x16xbf16>, vector<2x5x16xf32> -> vector<2x5x16xf32>
    "tpu.trace_stop"() : () -> ()
    %350 = tpu.reciprocal %346 {approx = true} : vector<2x5x1xf32> -> vector<2x5x1xf32>
    %351 = vector.broadcast %350 : vector<2x5x1xf32> to vector<2x5x16xf32>
    %352 = arith.mulf %349, %351 : vector<2x5x16xf32>
    %353 = vector.shape_cast %352 : vector<2x5x16xf32> to vector<10x16xf32>
    %354 = vector.extract_strided_slice %307 {offsets = [1, 0, 0], sizes = [1, 16, 64], strides = [1, 1, 1]} : vector<4x16x64xbf16> to vector<1x16x64xbf16>
    %355 = vector.shape_cast %354 : vector<1x16x64xbf16> to vector<16x64xbf16>
    %356 = arith.truncf %353 : vector<10x16xf32> to vector<10x16xbf16>
    %cst_113 = arith.constant dense<0.000000e+00> : vector<10x64xf32>
    %357 = tpu.matmul %356, %355, %cst_113 {dimension_numbers = #tpu.dot_dimension_numbers<[1], [0], [0], [1], [0, 0, 1, 1], [], []>} : vector<10x16xbf16>, vector<16x64xbf16>, vector<10x64xf32> -> vector<10x64xf32>
    %358 = arith.addf %333, %357 : vector<10x64xf32>
    %359 = vector.extract_strided_slice %306 {offsets = [0, 0, 32], sizes = [2, 5, 16], strides = [1, 1, 1]} : vector<2x5x192xf32> to vector<2x5x16xf32>
    %360 = vector.extract_strided_slice %306 {offsets = [0, 0, 96], sizes = [2, 5, 16], strides = [1, 1, 1]} : vector<2x5x192xf32> to vector<2x5x16xf32>
    %361 = vector.extract_strided_slice %306 {offsets = [0, 0, 160], sizes = [2, 5, 16], strides = [1, 1, 1]} : vector<2x5x192xf32> to vector<2x5x16xf32>
    %362 = arith.truncf %359 : vector<2x5x16xf32> to vector<2x5x16xbf16>
    %363 = arith.truncf %360 : vector<2x5x16xf32> to vector<2x5x16xbf16>
    "tpu.trace_start"() <{level = 10 : i32, message = "btd,bsd->bts"}> : () -> ()
    %cst_114 = arith.constant dense<0.000000e+00> : vector<2x5x5xf32>
    %364 = tpu.matmul %362, %363, %cst_114 {dimension_numbers = #tpu.dot_dimension_numbers<[2], [2], [1], [1], [0, 0, 0, 1, 1, 1], [0], [0]>} : vector<2x5x16xbf16>, vector<2x5x16xbf16>, vector<2x5x5xf32> -> vector<2x5x5xf32>
    "tpu.trace_stop"() : () -> ()
    %cst_115 = arith.constant dense<0xFF800000> : vector<2x5xf32>
    %365 = vector.multi_reduction <maximumf>, %364, %cst_115 [2] : vector<2x5x5xf32> to vector<2x5xf32>
    %366 = vector.shape_cast %365 : vector<2x5xf32> to vector<2x5x1xf32>
    %367 = vector.broadcast %366 : vector<2x5x1xf32> to vector<2x5x5xf32>
    %368 = arith.subf %364, %367 : vector<2x5x5xf32>
    %369 = math.exp %368 : vector<2x5x5xf32>
    %cst_116 = arith.constant dense<0.000000e+00> : vector<2x5xf32>
    %370 = vector.multi_reduction <add>, %369, %cst_116 [2] : vector<2x5x5xf32> to vector<2x5xf32>
    %371 = vector.shape_cast %370 : vector<2x5xf32> to vector<2x5x1xf32>
    %372 = arith.truncf %369 : vector<2x5x5xf32> to vector<2x5x5xbf16>
    %373 = arith.truncf %361 : vector<2x5x16xf32> to vector<2x5x16xbf16>
    "tpu.trace_start"() <{level = 10 : i32, message = "bts,bsd->btd"}> : () -> ()
    %cst_117 = arith.constant dense<0.000000e+00> : vector<2x5x16xf32>
    %374 = tpu.matmul %372, %373, %cst_117 {dimension_numbers = #tpu.dot_dimension_numbers<[2], [1], [1], [2], [0, 0, 0, 1, 1, 2], [0], [0]>} : vector<2x5x5xbf16>, vector<2x5x16xbf16>, vector<2x5x16xf32> -> vector<2x5x16xf32>
    "tpu.trace_stop"() : () -> ()
    %375 = tpu.reciprocal %371 {approx = true} : vector<2x5x1xf32> -> vector<2x5x1xf32>
    %376 = vector.broadcast %375 : vector<2x5x1xf32> to vector<2x5x16xf32>
    %377 = arith.mulf %374, %376 : vector<2x5x16xf32>
    %378 = vector.shape_cast %377 : vector<2x5x16xf32> to vector<10x16xf32>
    %379 = vector.extract_strided_slice %307 {offsets = [2, 0, 0], sizes = [1, 16, 64], strides = [1, 1, 1]} : vector<4x16x64xbf16> to vector<1x16x64xbf16>
    %380 = vector.shape_cast %379 : vector<1x16x64xbf16> to vector<16x64xbf16>
    %381 = arith.truncf %378 : vector<10x16xf32> to vector<10x16xbf16>
    %cst_118 = arith.constant dense<0.000000e+00> : vector<10x64xf32>
    %382 = tpu.matmul %381, %380, %cst_118 {dimension_numbers = #tpu.dot_dimension_numbers<[1], [0], [0], [1], [0, 0, 1, 1], [], []>} : vector<10x16xbf16>, vector<16x64xbf16>, vector<10x64xf32> -> vector<10x64xf32>
    %383 = arith.addf %358, %382 : vector<10x64xf32>
    %384 = vector.extract_strided_slice %306 {offsets = [0, 0, 48], sizes = [2, 5, 16], strides = [1, 1, 1]} : vector<2x5x192xf32> to vector<2x5x16xf32>
    %385 = vector.extract_strided_slice %306 {offsets = [0, 0, 112], sizes = [2, 5, 16], strides = [1, 1, 1]} : vector<2x5x192xf32> to vector<2x5x16xf32>
    %386 = vector.extract_strided_slice %306 {offsets = [0, 0, 176], sizes = [2, 5, 16], strides = [1, 1, 1]} : vector<2x5x192xf32> to vector<2x5x16xf32>
    %387 = arith.truncf %384 : vector<2x5x16xf32> to vector<2x5x16xbf16>
    %388 = arith.truncf %385 : vector<2x5x16xf32> to vector<2x5x16xbf16>
    "tpu.trace_start"() <{level = 10 : i32, message = "btd,bsd->bts"}> : () -> ()
    %cst_119 = arith.constant dense<0.000000e+00> : vector<2x5x5xf32>
    %389 = tpu.matmul %387, %388, %cst_119 {dimension_numbers = #tpu.dot_dimension_numbers<[2], [2], [1], [1], [0, 0, 0, 1, 1, 1], [0], [0]>} : vector<2x5x16xbf16>, vector<2x5x16xbf16>, vector<2x5x5xf32> -> vector<2x5x5xf32>
    "tpu.trace_stop"() : () -> ()
    %cst_120 = arith.constant dense<0xFF800000> : vector<2x5xf32>
    %390 = vector.multi_reduction <maximumf>, %389, %cst_120 [2] : vector<2x5x5xf32> to vector<2x5xf32>
    %391 = vector.shape_cast %390 : vector<2x5xf32> to vector<2x5x1xf32>
    %392 = vector.broadcast %391 : vector<2x5x1xf32> to vector<2x5x5xf32>
    %393 = arith.subf %389, %392 : vector<2x5x5xf32>
    %394 = math.exp %393 : vector<2x5x5xf32>
    %cst_121 = arith.constant dense<0.000000e+00> : vector<2x5xf32>
    %395 = vector.multi_reduction <add>, %394, %cst_121 [2] : vector<2x5x5xf32> to vector<2x5xf32>
    %396 = vector.shape_cast %395 : vector<2x5xf32> to vector<2x5x1xf32>
    %397 = arith.truncf %394 : vector<2x5x5xf32> to vector<2x5x5xbf16>
    %398 = arith.truncf %386 : vector<2x5x16xf32> to vector<2x5x16xbf16>
    "tpu.trace_start"() <{level = 10 : i32, message = "bts,bsd->btd"}> : () -> ()
    %cst_122 = arith.constant dense<0.000000e+00> : vector<2x5x16xf32>
    %399 = tpu.matmul %397, %398, %cst_122 {dimension_numbers = #tpu.dot_dimension_numbers<[2], [1], [1], [2], [0, 0, 0, 1, 1, 2], [0], [0]>} : vector<2x5x5xbf16>, vector<2x5x16xbf16>, vector<2x5x16xf32> -> vector<2x5x16xf32>
    "tpu.trace_stop"() : () -> ()
    %400 = tpu.reciprocal %396 {approx = true} : vector<2x5x1xf32> -> vector<2x5x1xf32>
    %401 = vector.broadcast %400 : vector<2x5x1xf32> to vector<2x5x16xf32>
    %402 = arith.mulf %399, %401 : vector<2x5x16xf32>
    %403 = vector.shape_cast %402 : vector<2x5x16xf32> to vector<10x16xf32>
    %404 = vector.extract_strided_slice %307 {offsets = [3, 0, 0], sizes = [1, 16, 64], strides = [1, 1, 1]} : vector<4x16x64xbf16> to vector<1x16x64xbf16>
    %405 = vector.shape_cast %404 : vector<1x16x64xbf16> to vector<16x64xbf16>
    %406 = arith.truncf %403 : vector<10x16xf32> to vector<10x16xbf16>
    %cst_123 = arith.constant dense<0.000000e+00> : vector<10x64xf32>
    %407 = tpu.matmul %406, %405, %cst_123 {dimension_numbers = #tpu.dot_dimension_numbers<[1], [0], [0], [1], [0, 0, 1, 1], [], []>} : vector<10x16xbf16>, vector<16x64xbf16>, vector<10x64xf32> -> vector<10x64xf32>
    %408 = arith.addf %383, %407 : vector<10x64xf32>
    %409 = arith.addf %275, %408 : vector<10x64xf32>
    %c0_124 = arith.constant 0 : index
    %c0_125 = arith.constant 0 : index
    %410 = vector.load %arg26[%c0_124, %c0_125] : memref<1x64xf32, #tpu.memory_space<vmem>>, vector<1x64xf32>
    %411 = vector.broadcast %410 : vector<1x64xf32> to vector<10x64xf32>
    %412 = arith.addf %409, %411 : vector<10x64xf32>
    %c0_126 = arith.constant 0 : index
    %c0_127 = arith.constant 0 : index
    %413 = vector.load %arg27[%c0_126, %c0_127] : memref<1x64xf32, #tpu.memory_space<vmem>>, vector<1x64xf32>
    %c0_128 = arith.constant 0 : index
    %c0_129 = arith.constant 0 : index
    %414 = vector.load %arg28[%c0_128, %c0_129] : memref<1x64xf32, #tpu.memory_space<vmem>>, vector<1x64xf32>
    %cst_130 = arith.constant dense<0.000000e+00> : vector<10xf32>
    %415 = vector.multi_reduction <add>, %412, %cst_130 [1] : vector<10x64xf32> to vector<10xf32>
    %416 = vector.shape_cast %415 : vector<10xf32> to vector<10x1xf32>
    %cst_131 = arith.constant 6.400000e+01 : f32
    %417 = vector.broadcast %cst_131 : f32 to vector<10x1xf32>
    %418 = arith.divf %416, %417 : vector<10x1xf32>
    %419 = vector.broadcast %418 : vector<10x1xf32> to vector<10x64xf32>
    %420 = arith.subf %412, %419 : vector<10x64xf32>
    %421 = arith.mulf %420, %420 : vector<10x64xf32>
    %cst_132 = arith.constant dense<0.000000e+00> : vector<10xf32>
    %422 = vector.multi_reduction <add>, %421, %cst_132 [1] : vector<10x64xf32> to vector<10xf32>
    %423 = vector.shape_cast %422 : vector<10xf32> to vector<10x1xf32>
    %cst_133 = arith.constant 6.400000e+01 : f32
    %424 = vector.broadcast %cst_133 : f32 to vector<10x1xf32>
    %425 = arith.divf %423, %424 : vector<10x1xf32>
    %426 = vector.broadcast %418 : vector<10x1xf32> to vector<10x64xf32>
    %427 = arith.subf %412, %426 : vector<10x64xf32>
    %cst_134 = arith.constant 9.99999997E-7 : f32
    %428 = vector.broadcast %cst_134 : f32 to vector<10x1xf32>
    %429 = arith.addf %425, %428 : vector<10x1xf32>
    %430 = math.rsqrt %429 : vector<10x1xf32>
    %431 = vector.broadcast %430 : vector<10x1xf32> to vector<10x64xf32>
    %432 = arith.mulf %427, %431 : vector<10x64xf32>
    %433 = vector.broadcast %413 : vector<1x64xf32> to vector<10x64xf32>
    %434 = arith.mulf %432, %433 : vector<10x64xf32>
    %435 = vector.broadcast %414 : vector<1x64xf32> to vector<10x64xf32>
    %436 = arith.addf %434, %435 : vector<10x64xf32>
    %c0_135 = arith.constant 0 : index
    %c0_136 = arith.constant 0 : index
    %437 = vector.load %arg29[%c0_135, %c0_136] : memref<64x256xbf16, #tpu.memory_space<vmem>>, vector<64x256xbf16>
    %438 = arith.truncf %436 : vector<10x64xf32> to vector<10x64xbf16>
    %cst_137 = arith.constant dense<0.000000e+00> : vector<10x256xf32>
    %439 = tpu.matmul %438, %437, %cst_137 {dimension_numbers = #tpu.dot_dimension_numbers<[1], [0], [0], [1], [0, 0, 1, 1], [], []>} : vector<10x64xbf16>, vector<64x256xbf16>, vector<10x256xf32> -> vector<10x256xf32>
    %c0_138 = arith.constant 0 : index
    %c0_139 = arith.constant 0 : index
    %440 = vector.load %arg30[%c0_138, %c0_139] : memref<1x256xf32, #tpu.memory_space<vmem>>, vector<1x256xf32>
    %441 = vector.broadcast %440 : vector<1x256xf32> to vector<10x256xf32>
    %442 = arith.addf %439, %441 : vector<10x256xf32>
    %cst_140 = arith.constant 5.000000e-01 : f32
    %443 = vector.broadcast %cst_140 : f32 to vector<10x256xf32>
    %444 = arith.mulf %443, %442 : vector<10x256xf32>
    %cst_141 = arith.constant 0.707106769 : f32
    %445 = vector.broadcast %cst_141 : f32 to vector<10x256xf32>
    %446 = arith.mulf %442, %445 : vector<10x256xf32>
    %447 = math.absf %446 : vector<10x256xf32>
    %cst_142 = arith.constant 0.327591091 : f32
    %448 = vector.broadcast %cst_142 : f32 to vector<10x256xf32>
    %449 = arith.mulf %448, %447 : vector<10x256xf32>
    %cst_143 = arith.constant 1.000000e+00 : f32
    %450 = vector.broadcast %cst_143 : f32 to vector<10x256xf32>
    %451 = arith.addf %450, %449 : vector<10x256xf32>
    %cst_144 = arith.constant 1.000000e+00 : f32
    %452 = vector.broadcast %cst_144 : f32 to vector<10x256xf32>
    %453 = arith.divf %452, %451 : vector<10x256xf32>
    %cst_145 = arith.constant 1.06140542 : f32
    %454 = vector.broadcast %cst_145 : f32 to vector<10x256xf32>
    %455 = arith.mulf %454, %453 : vector<10x256xf32>
    %cst_146 = arith.constant -1.45315206 : f32
    %456 = vector.broadcast %cst_146 : f32 to vector<10x256xf32>
    %457 = arith.addf %455, %456 : vector<10x256xf32>
    %458 = arith.mulf %457, %453 : vector<10x256xf32>
    %cst_147 = arith.constant 1.42141378 : f32
    %459 = vector.broadcast %cst_147 : f32 to vector<10x256xf32>
    %460 = arith.addf %458, %459 : vector<10x256xf32>
    %461 = arith.mulf %460, %453 : vector<10x256xf32>
    %cst_148 = arith.constant -0.284496725 : f32
    %462 = vector.broadcast %cst_148 : f32 to vector<10x256xf32>
    %463 = arith.addf %461, %462 : vector<10x256xf32>
    %464 = arith.mulf %463, %453 : vector<10x256xf32>
    %cst_149 = arith.constant 0.254829586 : f32
    %465 = vector.broadcast %cst_149 : f32 to vector<10x256xf32>
    %466 = arith.addf %464, %465 : vector<10x256xf32>
    %467 = arith.mulf %466, %453 : vector<10x256xf32>
    %cst_150 = arith.constant 0.000000e+00 : f32
    %468 = vector.broadcast %cst_150 : f32 to vector<10x256xf32>
    %469 = arith.subf %468, %447 : vector<10x256xf32>
    %470 = arith.mulf %469, %447 : vector<10x256xf32>
    %471 = math.exp %470 : vector<10x256xf32>
    %472 = arith.mulf %467, %471 : vector<10x256xf32>
    %cst_151 = arith.constant 1.000000e+00 : f32
    %473 = vector.broadcast %cst_151 : f32 to vector<10x256xf32>
    %474 = arith.subf %473, %472 : vector<10x256xf32>
    %cst_152 = arith.constant 0.000000e+00 : f32
    %475 = vector.broadcast %cst_152 : f32 to vector<10x256xf32>
    %476 = arith.cmpf oge, %446, %475 : vector<10x256xf32>
    %cst_153 = arith.constant 0.000000e+00 : f32
    %477 = vector.broadcast %cst_153 : f32 to vector<10x256xf32>
    %478 = arith.subf %477, %474 : vector<10x256xf32>
    %479 = arith.select %476, %474, %478 : vector<10x256xi1>, vector<10x256xf32>
    %cst_154 = arith.constant 1.000000e+00 : f32
    %480 = vector.broadcast %cst_154 : f32 to vector<10x256xf32>
    %481 = arith.addf %480, %479 : vector<10x256xf32>
    %482 = arith.mulf %444, %481 : vector<10x256xf32>
    %c0_155 = arith.constant 0 : index
    %c0_156 = arith.constant 0 : index
    %483 = vector.load %arg31[%c0_155, %c0_156] : memref<256x64xbf16, #tpu.memory_space<vmem>>, vector<256x64xbf16>
    %484 = arith.truncf %482 : vector<10x256xf32> to vector<10x256xbf16>
    %cst_157 = arith.constant dense<0.000000e+00> : vector<10x64xf32>
    %485 = tpu.matmul %484, %483, %cst_157 {dimension_numbers = #tpu.dot_dimension_numbers<[1], [0], [0], [1], [0, 0, 1, 1], [], []>} : vector<10x256xbf16>, vector<256x64xbf16>, vector<10x64xf32> -> vector<10x64xf32>
    %486 = arith.addf %412, %485 : vector<10x64xf32>
    %c0_158 = arith.constant 0 : index
    %c0_159 = arith.constant 0 : index
    %487 = vector.load %arg32[%c0_158, %c0_159] : memref<1x64xf32, #tpu.memory_space<vmem>>, vector<1x64xf32>
    %488 = vector.broadcast %487 : vector<1x64xf32> to vector<10x64xf32>
    %489 = arith.addf %486, %488 : vector<10x64xf32>
    %490 = vector.shape_cast %489 : vector<10x64xf32> to vector<2x5x64xf32>
    %491 = vector.extract_strided_slice %490 {offsets = [0, 0, 0], sizes = [2, 1, 64], strides = [1, 1, 1]} : vector<2x5x64xf32> to vector<2x1x64xf32>
    %492 = vector.shape_cast %491 : vector<2x1x64xf32> to vector<2x64xf32>
    %c0_160 = arith.constant 0 : index
    %c0_161 = arith.constant 0 : index
    %493 = vector.load %arg33[%c0_160, %c0_161] : memref<1x64xf32, #tpu.memory_space<vmem>>, vector<1x64xf32>
    %c0_162 = arith.constant 0 : index
    %c0_163 = arith.constant 0 : index
    %494 = vector.load %arg34[%c0_162, %c0_163] : memref<1x64xf32, #tpu.memory_space<vmem>>, vector<1x64xf32>
    %cst_164 = arith.constant dense<0.000000e+00> : vector<2xf32>
    %495 = vector.multi_reduction <add>, %492, %cst_164 [1] : vector<2x64xf32> to vector<2xf32>
    %496 = vector.shape_cast %495 : vector<2xf32> to vector<2x1xf32>
    %cst_165 = arith.constant 6.400000e+01 : f32
    %497 = vector.broadcast %cst_165 : f32 to vector<2x1xf32>
    %498 = arith.divf %496, %497 : vector<2x1xf32>
    %499 = vector.broadcast %498 : vector<2x1xf32> to vector<2x64xf32>
    %500 = arith.subf %492, %499 : vector<2x64xf32>
    %501 = arith.mulf %500, %500 : vector<2x64xf32>
    %cst_166 = arith.constant dense<0.000000e+00> : vector<2xf32>
    %502 = vector.multi_reduction <add>, %501, %cst_166 [1] : vector<2x64xf32> to vector<2xf32>
    %503 = vector.shape_cast %502 : vector<2xf32> to vector<2x1xf32>
    %cst_167 = arith.constant 6.400000e+01 : f32
    %504 = vector.broadcast %cst_167 : f32 to vector<2x1xf32>
    %505 = arith.divf %503, %504 : vector<2x1xf32>
    %506 = vector.broadcast %498 : vector<2x1xf32> to vector<2x64xf32>
    %507 = arith.subf %492, %506 : vector<2x64xf32>
    %cst_168 = arith.constant 9.99999997E-7 : f32
    %508 = vector.broadcast %cst_168 : f32 to vector<2x1xf32>
    %509 = arith.addf %505, %508 : vector<2x1xf32>
    %510 = math.rsqrt %509 : vector<2x1xf32>
    %511 = vector.broadcast %510 : vector<2x1xf32> to vector<2x64xf32>
    %512 = arith.mulf %507, %511 : vector<2x64xf32>
    %513 = vector.broadcast %493 : vector<1x64xf32> to vector<2x64xf32>
    %514 = arith.mulf %512, %513 : vector<2x64xf32>
    %515 = vector.broadcast %494 : vector<1x64xf32> to vector<2x64xf32>
    %516 = arith.addf %514, %515 : vector<2x64xf32>
    %c0_169 = arith.constant 0 : index
    %c0_170 = arith.constant 0 : index
    %517 = vector.load %arg35[%c0_169, %c0_170] : memref<64x128xbf16, #tpu.memory_space<vmem>>, vector<64x128xbf16>
    %518 = arith.truncf %516 : vector<2x64xf32> to vector<2x64xbf16>
    %cst_171 = arith.constant dense<0.000000e+00> : vector<2x128xf32>
    %519 = tpu.matmul %518, %517, %cst_171 {dimension_numbers = #tpu.dot_dimension_numbers<[1], [0], [0], [1], [0, 0, 1, 1], [], []>} : vector<2x64xbf16>, vector<64x128xbf16>, vector<2x128xf32> -> vector<2x128xf32>
    %c0_172 = arith.constant 0 : index
    %c0_173 = arith.constant 0 : index
    %520 = vector.load %arg36[%c0_172, %c0_173] : memref<1x128xf32, #tpu.memory_space<vmem>>, vector<1x128xf32>
    %521 = vector.broadcast %520 : vector<1x128xf32> to vector<2x128xf32>
    %522 = arith.addf %519, %521 : vector<2x128xf32>
    %c0_174 = arith.constant 0 : index
    %c0_175 = arith.constant 0 : index
    %523 = vector.load %arg37[%c0_174, %c0_175] : memref<2x128xf32, #tpu.memory_space<vmem>>, vector<2x128xf32>
    tpu.vector_store %arg37[%c0_174, %c0_175], %522 {strides = array<i32>} : memref<2x128xf32, #tpu.memory_space<vmem>>, vector<2x128xf32>,
    return
  }
}

</mosaic_0001>

<llo_original>
// kernel: pooling_transformer_forward.1
$region0: #{pooling_transformer_forward.1}
  #allocation0 [shape = 'u32[]', space=smem, size = 0x4, offset = 0x4, fixed_abs, tag = 'smem constant byte address 0x4 - core index']
  #allocation1 [shape = 'u32[72,128]{1,0:T(1,128)}', space=vmem, size = 0x9000, scoped, tag = 'internal scratch']
  %s0 = inlined_call_operand.smem [shape: u32[38], index: -1, kind: input, shape index: {}]
  %s1 = sld [smem:[%s0]]
  %s2 = scalar_lea.smem %s0, 1
  %s3 = sld [smem:[%s2]]
  %s4 = scalar_lea.smem %s0, 2
  %s5 = sld [smem:[%s4]]
  %s6 = scalar_lea.smem %s0, 3
  %s7 = sld [smem:[%s6]]
  %s8 = scalar_lea.smem %s0, 4
  %s9 = sld [smem:[%s8]]
  %s10 = scalar_lea.smem %s0, 5
  %s11 = sld [smem:[%s10]]
  %s12 = scalar_lea.smem %s0, 6
  %s13 = sld [smem:[%s12]]
  %s14 = scalar_lea.smem %s0, 7
  %s15 = sld [smem:[%s14]]
  %s16 = scalar_lea.smem %s0, 8
  %s17 = sld [smem:[%s16]]
  %s18 = scalar_lea.smem %s0, 9
  %s19 = sld [smem:[%s18]]
  %s20 = scalar_lea.smem %s0, 10
  %s21 = sld [smem:[%s20]]
  %s22 = scalar_lea.smem %s0, 11
  %s23 = sld [smem:[%s22]]
  %s24 = scalar_lea.smem %s0, 12
  %s25 = sld [smem:[%s24]]
  %s26 = scalar_lea.smem %s0, 13
  %s27 = sld [smem:[%s26]]
  %s28 = scalar_lea.smem %s0, 14
  %s29 = sld [smem:[%s28]]
  %s30 = scalar_lea.smem %s0, 15
  %s31 = sld [smem:[%s30]]
  %s32 = scalar_lea.smem %s0, 16
  %s33 = sld [smem:[%s32]]
  %s34 = scalar_lea.smem %s0, 17
  %s35 = sld [smem:[%s34]]
  %s36 = scalar_lea.smem %s0, 18
  %s37 = sld [smem:[%s36]]
  %s38 = scalar_lea.smem %s0, 19
  %s39 = sld [smem:[%s38]]
  %s40 = scalar_lea.smem %s0, 20
  %s41 = sld [smem:[%s40]]
  %s42 = scalar_lea.smem %s0, 21
  %s43 = sld [smem:[%s42]]
  %s44 = scalar_lea.smem %s0, 22
  %s45 = sld [smem:[%s44]]
  %s46 = scalar_lea.smem %s0, 23
  %s47 = sld [smem:[%s46]]
  %s48 = scalar_lea.smem %s0, 24
  %s49 = sld [smem:[%s48]]
  %s50 = scalar_lea.smem %s0, 25
  %s51 = sld [smem:[%s50]]
  %s52 = scalar_lea.smem %s0, 26
  %s53 = sld [smem:[%s52]]
  %s54 = scalar_lea.smem %s0, 27
  %s55 = sld [smem:[%s54]]
  %s56 = scalar_lea.smem %s0, 28
  %s57 = sld [smem:[%s56]]
  %s58 = scalar_lea.smem %s0, 29
  %s59 = sld [smem:[%s58]]
  %s60 = scalar_lea.smem %s0, 30
  %s61 = sld [smem:[%s60]]
  %s62 = scalar_lea.smem %s0, 31
  %s63 = sld [smem:[%s62]]
  %s64 = scalar_lea.smem %s0, 32
  %s65 = sld [smem:[%s64]]
  %s66 = scalar_lea.smem %s0, 33
  %s67 = sld [smem:[%s66]]
  %s68 = scalar_lea.smem %s0, 34
  %s69 = sld [smem:[%s68]]
  %s70 = scalar_lea.smem %s0, 35
  %s71 = sld [smem:[%s70]]
  %s72 = scalar_lea.smem %s0, 36
  %s73 = sld [smem:[%s72]]
  %s74 = scalar_lea.smem %s0, 37
  %s75 = sld [smem:[%s74]]
  %s76 = sld [smem:[#allocation0]]
  $region158: #{pooling_transformer_forward.1} parent=0
    _
  %s78 = ssub.s32 1, %s76
  %s79 = scalar_select 0, %s78, %s76
  $region1: #{pooling_transformer_forward.1} parent=0
    #allocation2 [shape = 'u8[1024]{0}', space=vmem, size = 0x400, scoped, tag = 'output window, operand 0, single buffered']
    #allocation3 [shape = 's32[1]{0}', space=sflag, size = 0x4, scoped, tag = 'scoped memory for pooling_transformer_forward.1']
    %80 = vsyncpa [#allocation3], 0
    // Predicated region
    $region2: #{pooling_transformer_forward.1} parent=1 // pred_check
      _
    $region3: #{pooling_transformer_forward.1} parent=1 // pred_check_branch
      %82 = sbr.rel (0) target = $region5
    $region4: #{pooling_transformer_forward.1} parent=1 // pred_region
      _
    $region5: #{pooling_transformer_forward.1} parent=1 // pred_fallthru
      _
    // Predicated region
    $region6: #{pooling_transformer_forward.1} parent=1 // pred_check
      _
    $region7: #{pooling_transformer_forward.1} parent=1 // pred_check_branch
      %84 = sbr.rel (0) target = $region9
    $region8: #{pooling_transformer_forward.1} parent=1 // pred_region
      _
    $region9: #{pooling_transformer_forward.1} parent=1 // pred_fallthru
      _
    // Predicated region
    $region10: #{pooling_transformer_forward.1} parent=1 // pred_check
      _
    $region11: #{pooling_transformer_forward.1} parent=1 // pred_check_branch
      %86 = sbr.rel (0) target = $region13
    $region12: #{pooling_transformer_forward.1} parent=1 // pred_region
      _
    $region13: #{pooling_transformer_forward.1} parent=1 // pred_fallthru
      _
    // Predicated region
    $region14: #{pooling_transformer_forward.1} parent=1 // pred_check
      _
    $region15: #{pooling_transformer_forward.1} parent=1 // pred_check_branch
      %88 = sbr.rel (0) target = $region17
    $region16: #{pooling_transformer_forward.1} parent=1 // pred_region
      _
    $region17: #{pooling_transformer_forward.1} parent=1 // pred_fallthru
      _
    // Predicated region
    $region18: #{pooling_transformer_forward.1} parent=1 // pred_check
      _
    $region19: #{pooling_transformer_forward.1} parent=1 // pred_check_branch
      %90 = sbr.rel (0) target = $region21
    $region20: #{pooling_transformer_forward.1} parent=1 // pred_region
      _
    $region21: #{pooling_transformer_forward.1} parent=1 // pred_fallthru
      _
    // Predicated region
    $region22: #{pooling_transformer_forward.1} parent=1 // pred_check
      _
    $region23: #{pooling_transformer_forward.1} parent=1 // pred_check_branch
      %92 = sbr.rel (0) target = $region25
    $region24: #{pooling_transformer_forward.1} parent=1 // pred_region
      _
    $region25: #{pooling_transformer_forward.1} parent=1 // pred_fallthru
      _
    // Predicated region
    $region26: #{pooling_transformer_forward.1} parent=1 // pred_check
      _
    $region27: #{pooling_transformer_forward.1} parent=1 // pred_check_branch
      %94 = sbr.rel (0) target = $region29
    $region28: #{pooling_transformer_forward.1} parent=1 // pred_region
      _
    $region29: #{pooling_transformer_forward.1} parent=1 // pred_fallthru
      _
    // Predicated region
    $region30: #{pooling_transformer_forward.1} parent=1 // pred_check
      _
    $region31: #{pooling_transformer_forward.1} parent=1 // pred_check_branch
      %96 = sbr.rel (0) target = $region33
    $region32: #{pooling_transformer_forward.1} parent=1 // pred_region
      _
    $region33: #{pooling_transformer_forward.1} parent=1 // pred_fallthru
      _
    // Predicated region
    $region34: #{pooling_transformer_forward.1} parent=1 // pred_check
      _
    $region35: #{pooling_transformer_forward.1} parent=1 // pred_check_branch
      %98 = sbr.rel (0) target = $region37
    $region36: #{pooling_transformer_forward.1} parent=1 // pred_region
      _
    $region37: #{pooling_transformer_forward.1} parent=1 // pred_fallthru
      _
    // Predicated region
    $region38: #{pooling_transformer_forward.1} parent=1 // pred_check
      _
    $region39: #{pooling_transformer_forward.1} parent=1 // pred_check_branch
      %100 = sbr.rel (0) target = $region41
    $region40: #{pooling_transformer_forward.1} parent=1 // pred_region
      _
    $region41: #{pooling_transformer_forward.1} parent=1 // pred_fallthru
      _
    // Predicated region
    $region42: #{pooling_transformer_forward.1} parent=1 // pred_check
      _
    $region43: #{pooling_transformer_forward.1} parent=1 // pred_check_branch
      %102 = sbr.rel (0) target = $region45
    $region44: #{pooling_transformer_forward.1} parent=1 // pred_region
      _
    $region45: #{pooling_transformer_forward.1} parent=1 // pred_fallthru
      _
    // Predicated region
    $region46: #{pooling_transformer_forward.1} parent=1 // pred_check
      _
    $region47: #{pooling_transformer_forward.1} parent=1 // pred_check_branch
      %104 = sbr.rel (0) target = $region49
    $region48: #{pooling_transformer_forward.1} parent=1 // pred_region
      _
    $region49: #{pooling_transformer_forward.1} parent=1 // pred_fallthru
      _
    // Predicated region
    $region50: #{pooling_transformer_forward.1} parent=1 // pred_check
      _
    $region51: #{pooling_transformer_forward.1} parent=1 // pred_check_branch
      %106 = sbr.rel (0) target = $region53
    $region52: #{pooling_transformer_forward.1} parent=1 // pred_region
      _
    $region53: #{pooling_transformer_forward.1} parent=1 // pred_fallthru
      _
    // Predicated region
    $region54: #{pooling_transformer_forward.1} parent=1 // pred_check
      _
    $region55: #{pooling_transformer_forward.1} parent=1 // pred_check_branch
      %108 = sbr.rel (0) target = $region57
    $region56: #{pooling_transformer_forward.1} parent=1 // pred_region
      _
    $region57: #{pooling_transformer_forward.1} parent=1 // pred_fallthru
      _
    // Predicated region
    $region58: #{pooling_transformer_forward.1} parent=1 // pred_check
      _
    $region59: #{pooling_transformer_forward.1} parent=1 // pred_check_branch
      %110 = sbr.rel (0) target = $region61
    $region60: #{pooling_transformer_forward.1} parent=1 // pred_region
      _
    $region61: #{pooling_transformer_forward.1} parent=1 // pred_fallthru
      _
    // Predicated region
    $region62: #{pooling_transformer_forward.1} parent=1 // pred_check
      _
    $region63: #{pooling_transformer_forward.1} parent=1 // pred_check_branch
      %112 = sbr.rel (0) target = $region65
    $region64: #{pooling_transformer_forward.1} parent=1 // pred_region
      _
    $region65: #{pooling_transformer_forward.1} parent=1 // pred_fallthru
      _
    // Predicated region
    $region66: #{pooling_transformer_forward.1} parent=1 // pred_check
      _
    $region67: #{pooling_transformer_forward.1} parent=1 // pred_check_branch
      %114 = sbr.rel (0) target = $region69
    $region68: #{pooling_transformer_forward.1} parent=1 // pred_region
      _
    $region69: #{pooling_transformer_forward.1} parent=1 // pred_fallthru
      _
    // Predicated region
    $region70: #{pooling_transformer_forward.1} parent=1 // pred_check
      _
    $region71: #{pooling_transformer_forward.1} parent=1 // pred_check_branch
      %116 = sbr.rel (0) target = $region73
    $region72: #{pooling_transformer_forward.1} parent=1 // pred_region
      _
    $region73: #{pooling_transformer_forward.1} parent=1 // pred_fallthru
      _
    // Predicated region
    $region74: #{pooling_transformer_forward.1} parent=1 // pred_check
      _
    $region75: #{pooling_transformer_forward.1} parent=1 // pred_check_branch
      %118 = sbr.rel (0) target = $region77
    $region76: #{pooling_transformer_forward.1} parent=1 // pred_region
      _
    $region77: #{pooling_transformer_forward.1} parent=1 // pred_fallthru
      _
    // Predicated region
    $region78: #{pooling_transformer_forward.1} parent=1 // pred_check
      _
    $region79: #{pooling_transformer_forward.1} parent=1 // pred_check_branch
      %120 = sbr.rel (0) target = $region81
    $region80: #{pooling_transformer_forward.1} parent=1 // pred_region
      _
    $region81: #{pooling_transformer_forward.1} parent=1 // pred_fallthru
      _
    // Predicated region
    $region82: #{pooling_transformer_forward.1} parent=1 // pred_check
      _
    $region83: #{pooling_transformer_forward.1} parent=1 // pred_check_branch
      %122 = sbr.rel (0) target = $region85
    $region84: #{pooling_transformer_forward.1} parent=1 // pred_region
      _
    $region85: #{pooling_transformer_forward.1} parent=1 // pred_fallthru
      _
    // Predicated region
    $region86: #{pooling_transformer_forward.1} parent=1 // pred_check
      _
    $region87: #{pooling_transformer_forward.1} parent=1 // pred_check_branch
      %124 = sbr.rel (0) target = $region89
    $region88: #{pooling_transformer_forward.1} parent=1 // pred_region
      _
    $region89: #{pooling_transformer_forward.1} parent=1 // pred_fallthru
      _
    // Predicated region
    $region90: #{pooling_transformer_forward.1} parent=1 // pred_check
      _
    $region91: #{pooling_transformer_forward.1} parent=1 // pred_check_branch
      %126 = sbr.rel (0) target = $region93
    $region92: #{pooling_transformer_forward.1} parent=1 // pred_region
      _
    $region93: #{pooling_transformer_forward.1} parent=1 // pred_fallthru
      _
    // Predicated region
    $region94: #{pooling_transformer_forward.1} parent=1 // pred_check
      _
    $region95: #{pooling_transformer_forward.1} parent=1 // pred_check_branch
      %128 = sbr.rel (0) target = $region97
    $region96: #{pooling_transformer_forward.1} parent=1 // pred_region
      _
    $region97: #{pooling_transformer_forward.1} parent=1 // pred_fallthru
      _
    // Predicated region
    $region98: #{pooling_transformer_forward.1} parent=1 // pred_check
      _
    $region99: #{pooling_transformer_forward.1} parent=1 // pred_check_branch
      %130 = sbr.rel (0) target = $region101
    $region100: #{pooling_transformer_forward.1} parent=1 // pred_region
      _
    $region101: #{pooling_transformer_forward.1} parent=1 // pred_fallthru
      _
    // Predicated region
    $region102: #{pooling_transformer_forward.1} parent=1 // pred_check
      _
    $region103: #{pooling_transformer_forward.1} parent=1 // pred_check_branch
      %132 = sbr.rel (0) target = $region105
    $region104: #{pooling_transformer_forward.1} parent=1 // pred_region
      _
    $region105: #{pooling_transformer_forward.1} parent=1 // pred_fallthru
      _
    // Predicated region
    $region106: #{pooling_transformer_forward.1} parent=1 // pred_check
      _
    $region107: #{pooling_transformer_forward.1} parent=1 // pred_check_branch
      %134 = sbr.rel (0) target = $region109
    $region108: #{pooling_transformer_forward.1} parent=1 // pred_region
      _
    $region109: #{pooling_transformer_forward.1} parent=1 // pred_fallthru
      _
    // Predicated region
    $region110: #{pooling_transformer_forward.1} parent=1 // pred_check
      _
    $region111: #{pooling_transformer_forward.1} parent=1 // pred_check_branch
      %136 = sbr.rel (0) target = $region113
    $region112: #{pooling_transformer_forward.1} parent=1 // pred_region
      _
    $region113: #{pooling_transformer_forward.1} parent=1 // pred_fallthru
      _
    // Predicated region
    $region114: #{pooling_transformer_forward.1} parent=1 // pred_check
      _
    $region115: #{pooling_transformer_forward.1} parent=1 // pred_check_branch
      %138 = sbr.rel (0) target = $region117
    $region116: #{pooling_transformer_forward.1} parent=1 // pred_region
      _
    $region117: #{pooling_transformer_forward.1} parent=1 // pred_fallthru
      _
    // Predicated region
    $region118: #{pooling_transformer_forward.1} parent=1 // pred_check
      _
    $region119: #{pooling_transformer_forward.1} parent=1 // pred_check_branch
      %140 = sbr.rel (0) target = $region121
    $region120: #{pooling_transformer_forward.1} parent=1 // pred_region
      _
    $region121: #{pooling_transformer_forward.1} parent=1 // pred_fallthru
      _
    // Predicated region
    $region122: #{pooling_transformer_forward.1} parent=1 // pred_check
      _
    $region123: #{pooling_transformer_forward.1} parent=1 // pred_check_branch
      %142 = sbr.rel (0) target = $region125
    $region124: #{pooling_transformer_forward.1} parent=1 // pred_region
      _
    $region125: #{pooling_transformer_forward.1} parent=1 // pred_fallthru
      _
    // Predicated region
    $region126: #{pooling_transformer_forward.1} parent=1 // pred_check
      _
    $region127: #{pooling_transformer_forward.1} parent=1 // pred_check_branch
      %144 = sbr.rel (0) target = $region129
    $region128: #{pooling_transformer_forward.1} parent=1 // pred_region
      _
    $region129: #{pooling_transformer_forward.1} parent=1 // pred_fallthru
      _
    // Predicated region
    $region130: #{pooling_transformer_forward.1} parent=1 // pred_check
      _
    $region131: #{pooling_transformer_forward.1} parent=1 // pred_check_branch
      %146 = sbr.rel (0) target = $region133
    $region132: #{pooling_transformer_forward.1} parent=1 // pred_region
      _
    $region133: #{pooling_transformer_forward.1} parent=1 // pred_fallthru
      _
    // Predicated region
    $region134: #{pooling_transformer_forward.1} parent=1 // pred_check
      _
    $region135: #{pooling_transformer_forward.1} parent=1 // pred_check_branch
      %148 = sbr.rel (0) target = $region137
    $region136: #{pooling_transformer_forward.1} parent=1 // pred_region
      _
    $region137: #{pooling_transformer_forward.1} parent=1 // pred_fallthru
      _
    // Predicated region
    $region138: #{pooling_transformer_forward.1} parent=1 // pred_check
      _
    $region139: #{pooling_transformer_forward.1} parent=1 // pred_check_branch
      %150 = sbr.rel (0) target = $region141
    $region140: #{pooling_transformer_forward.1} parent=1 // pred_region
      _
    $region141: #{pooling_transformer_forward.1} parent=1 // pred_fallthru
      _
    // Predicated region
    $region142: #{pooling_transformer_forward.1} parent=1 // pred_check
      _
    $region143: #{pooling_transformer_forward.1} parent=1 // pred_check_branch
      %152 = sbr.rel (0) target = $region145
    $region144: #{pooling_transformer_forward.1} parent=1 // pred_region
      _
    $region145: #{pooling_transformer_forward.1} parent=1 // pred_fallthru
      _
    // Predicated region
    $region146: #{pooling_transformer_forward.1} parent=1 // pred_check
      _
    $region147: #{pooling_transformer_forward.1} parent=1 // pred_check_branch
      %154 = sbr.rel (0) target = $region149
    $region148: #{pooling_transformer_forward.1} parent=1 // pred_region
      _
    $region149: #{pooling_transformer_forward.1} parent=1 // pred_fallthru
      _
    %v156 = vld [vmem:[%s1] sm:$0xf]
    %v157 = vld [vmem:[%s1 + $0x4] sm:$0xf]
    %v158 = vld [vmem:[%s1 + $0x8] sm:$0xf]
    %v159 = vld [vmem:[%s1 + $0xc] sm:$0xf]
    %v160 = vld [vmem:[%s3] sm:$0xf]
    %v161 = vld [vmem:[%s3 + $0x4] sm:$0xf]
    %v162 = vld [vmem:[%s3 + $0x8] sm:$0xf]
    %v163 = vld [vmem:[%s3 + $0xc] sm:$0xf]
    %v164 = vld [vmem:[%s3 + $0x10] sm:$0xf]
    %v165 = vld [vmem:[%s3 + $0x14] sm:$0xf]
    %v166 = vld [vmem:[%s5] sm:$0x1]
    %v168 = vperm.slane %v166, 0
    %v174 = vunpack.c.l.b16 %v156
    %v175 = vunpack.c.l.b16 %v157
    %v176 = vunpack.c.l.b16 %v158
    %v177 = vunpack.c.l.b16 %v159
    %v178 = vpack.c.b16 %v175, %v174
    %v179 = vpack.c.b16 %v177, %v176
    %v186 = vunpack.c.l.b16 %v160
    %v187 = vunpack.c.l.b16 %v161
    %v188 = vunpack.c.l.b16 %v162
    %v189 = vunpack.c.l.b16 %v163
    %v190 = vunpack.c.l.b16 %v164
    %v191 = vunpack.c.l.b16 %v165
    %v192 = vpack.c.b16 %v187, %v186
    %v193 = vpack.c.b16 %v189, %v188
    %v194 = vpack.c.b16 %v191, %v190
    %vm198 = vcmask 392192
    %v200 = vsel %vm198, %v178, 0
    %v203 = vsel %vm198, %v179, 0
    %205 = vmatpush.bf16.msra.mxu0 0
    %206 = vmatpush.bf16.msra.mxu0 0
    %207 = vmatpush.bf16.msra.mxu0 0
    %208 = vmatpush.bf16.msra.mxu0 0
    %209 = vmatpush.bf16.msra.mxu0 0
    %210 = vmatpush.bf16.msra.mxu0 %v194
    %211 = vmatpush.bf16.msra.mxu0 %v193
    %212 = vmatpush.bf16.msra.mxu0 %v192
    %213 = vmatmul.bf16.gmra.mxu0 %v200
    %v214 = vpop.f32.mrf.mxu0
    %v215 = vadd.f32 %v168, %v214
    %v216 = vpop.f32.mrf.mxu0
    %v217 = vadd.f32 %v168, %v216
    %218 = vmatmul.bf16.gmra.mxu0 %v203
    %v219 = vpop.f32.mrf.mxu0
    %v220 = vadd.f32 %v168, %v219
    %v221 = vpop.f32.mrf.mxu0
    %v222 = vadd.f32 %v168, %v221
    %223 = vdwg.mxu0
    %v224 = vld [vmem:[%s7] sm:$0xff]
    %v225 = vld [vmem:[%s7 + $0x8] sm:$0xff]
    %v226 = vadd.f32 %v215, %v224
    %v227 = vadd.f32 %v217, %v225
    %v228 = vadd.f32 %v220, %v224
    %v229 = vadd.f32 %v222, %v225
    %v230 = vld [vmem:[%s9] sm:$0x1]
    %vm235 = vcmask 1040384
    %v236 = vrot.slane %v226, 7
    %v237 = vrot.slane %v227, 7
    %v238 = vsel %vm235, %v236, %v237
    %v239 = vrot.slane %v228, 7
    %v240 = vrot.slane %v229, 7
    %v241 = vsel %vm235, %v239, %v240
    %v248 = vsel %vm235, %v230, %v236
    %v249 = vsel %vm235, %v230, %v239
    %v252 = vrot.slane %v248, 1
    %v253 = vrot.slane %v248, 2
    %v254 = vrot.slane %v248, 3
    %v255 = vrot.slane %v248, 4
    %v256 = vrot.slane %v248, 5
    %v257 = vrot.slane %v248, 6
    %v258 = vrot.slane %v248, 7
    %v259 = vrot.slane %v238, 1
    %v260 = vrot.slane %v238, 2
    %v261 = vrot.slane %v238, 3
    %v262 = vrot.slane %v238, 4
    %v263 = vrot.slane %v238, 5
    %v264 = vrot.slane %v238, 6
    %v265 = vrot.slane %v238, 7
    %v266 = vrot.slane %v249, 1
    %v267 = vrot.slane %v249, 2
    %v268 = vrot.slane %v249, 3
    %v269 = vrot.slane %v249, 4
    %v270 = vrot.slane %v249, 5
    %v271 = vrot.slane %v249, 6
    %v272 = vrot.slane %v249, 7
    %v273 = vrot.slane %v241, 1
    %v274 = vrot.slane %v241, 2
    %v275 = vrot.slane %v241, 3
    %v276 = vrot.slane %v241, 4
    %v277 = vrot.slane %v241, 5
    %v278 = vrot.slane %v241, 6
    %v279 = vrot.slane %v241, 7
    %v308 = vld [vmem:[%s11] sm:$0x1]
    %v309 = vld [vmem:[%s13] sm:$0x1]
    %310 = vst [vmem:[#allocation1] ss:$9 sm:$0xff] %v248
    %s311 = scalar_lea.vmem [#allocation1], 1
    %312 = vst [vmem:[%s311] ss:$9 sm:$0xff] %v252
    %s313 = scalar_lea.vmem [#allocation1], 2
    %314 = vst [vmem:[%s313] ss:$9 sm:$0xff] %v253
    %s315 = scalar_lea.vmem [#allocation1], 3
    %316 = vst [vmem:[%s315] ss:$9 sm:$0xff] %v254
    %s317 = scalar_lea.vmem [#allocation1], 4
    %318 = vst [vmem:[%s317] ss:$9 sm:$0xff] %v255
    %s319 = scalar_lea.vmem [#allocation1], 5
    %320 = vst [vmem:[%s319] ss:$9 sm:$0xff] %v256
    %s321 = scalar_lea.vmem [#allocation1], 6
    %322 = vst [vmem:[%s321] ss:$9 sm:$0xff] %v257
    %s323 = scalar_lea.vmem [#allocation1], 7
    %324 = vst [vmem:[%s323] ss:$9 sm:$0xff] %v258
    %v325 = vld [vmem:[#allocation1] sm:$0xff]
    %326 = vst [vmem:[#allocation1] ss:$9 sm:$0xff] %v238
    %327 = vst [vmem:[%s311] ss:$9 sm:$0xff] %v259
    %328 = vst [vmem:[%s313] ss:$9 sm:$0xff] %v260
    %329 = vst [vmem:[%s315] ss:$9 sm:$0xff] %v261
    %330 = vst [vmem:[%s317] ss:$9 sm:$0xff] %v262
    %331 = vst [vmem:[%s319] ss:$9 sm:$0xff] %v263
    %332 = vst [vmem:[%s321] ss:$9 sm:$0xff] %v264
    %333 = vst [vmem:[%s323] ss:$9 sm:$0xff] %v265
    %v334 = vld [vmem:[#allocation1] sm:$0xff]
    %335 = vst [vmem:[#allocation1] ss:$9 sm:$0xff] %v237
    %336 = vst [vmem:[%s311] ss:$9 sm:$0xff] %v249
    %337 = vst [vmem:[%s313] ss:$9 sm:$0xff] %v266
    %338 = vst [vmem:[%s315] ss:$9 sm:$0xff] %v267
    %339 = vst [vmem:[%s317] ss:$9 sm:$0xff] %v268
    %340 = vst [vmem:[%s319] ss:$9 sm:$0xff] %v269
    %341 = vst [vmem:[%s321] ss:$9 sm:$0xff] %v270
    %342 = vst [vmem:[%s323] ss:$9 sm:$0xff] %v271
    %v343 = vld [vmem:[#allocation1] sm:$0xff]
    %344 = vst [vmem:[#allocation1] ss:$9 sm:$0xff] %v272
    %345 = vst [vmem:[%s311] ss:$9 sm:$0xff] %v241
    %346 = vst [vmem:[%s313] ss:$9 sm:$0xff] %v273
    %347 = vst [vmem:[%s315] ss:$9 sm:$0xff] %v274
    %348 = vst [vmem:[%s317] ss:$9 sm:$0xff] %v275
    %349 = vst [vmem:[%s319] ss:$9 sm:$0xff] %v276
    %350 = vst [vmem:[%s321] ss:$9 sm:$0xff] %v277
    %351 = vst [vmem:[%s323] ss:$9 sm:$0xff] %v278
    %v352 = vld [vmem:[#allocation1] sm:$0xff]
    %353 = vst [vmem:[#allocation1] ss:$9 sm:$0xff] %v279
    %354 = vst [vmem:[%s311] ss:$9 sm:$0xff] %v240
    %v355 = vld [vmem:[#allocation1] sm:$0xff]
    %vm361 = vcmask 261120
    %v362 = vsel %vm361, %v325, 0.0
    %363 = vadd.xlane.f32.xlu0 %v362
    %v364 = vpop.xlane.xlu0 %363
    %v365 = vsel %vm361, %v334, 0.0
    %366 = vadd.xlane.f32.xlu0 %v365
    %v367 = vpop.xlane.xlu0 %366
    %v368 = vsel %vm361, %v343, 0.0
    %369 = vadd.xlane.f32.xlu0 %v368
    %v370 = vpop.xlane.xlu0 %369
    %v371 = vsel %vm361, %v352, 0.0
    %372 = vadd.xlane.f32.xlu0 %v371
    %v373 = vpop.xlane.xlu0 %372
    %vm374 = vcmask 254976
    %v375 = vsel %vm374, %v355, 0.0
    %376 = vadd.xlane.f32.xlu0 %v375
    %v377 = vpop.xlane.xlu0 %376
    %v378 = vrcp.pop 32.0
    %v379 = vmul.f32 32.0, %v378
    %v380 = vsub.f32 1.0, %v379
    %v381 = vmul.f32 %v378, %v380
    %v382 = vadd.f32 %v378, %v381
    %vm383 = vweird.f32 %v378
    %v384 = vsel %vm383, %v378, %v382
    %v385 = vmul.f32 %v364, %v384
    %v386 = vmul.f32 %v367, %v384
    %v387 = vmul.f32 %v370, %v384
    %v388 = vmul.f32 %v373, %v384
    %v389 = vmul.f32 %v377, %v384
    %v395 = vperm.slane %v385, 0
    %v396 = vperm.slane %v385, 1
    %v397 = vperm.slane %v385, 2
    %v398 = vperm.slane %v385, 3
    %v399 = vperm.slane %v385, 4
    %v400 = vperm.slane %v385, 5
    %v401 = vperm.slane %v385, 6
    %v402 = vperm.slane %v385, 7
    %v403 = vperm.slane %v386, 0
    %v404 = vperm.slane %v386, 1
    %v405 = vperm.slane %v386, 2
    %v406 = vperm.slane %v386, 3
    %v407 = vperm.slane %v386, 4
    %v408 = vperm.slane %v386, 5
    %v409 = vperm.slane %v386, 6
    %v410 = vperm.slane %v386, 7
    %v411 = vperm.slane %v387, 0
    %v412 = vperm.slane %v387, 1
    %v413 = vperm.slane %v387, 2
    %v414 = vperm.slane %v387, 3
    %v415 = vperm.slane %v387, 4
    %v416 = vperm.slane %v387, 5
    %v417 = vperm.slane %v387, 6
    %v418 = vperm.slane %v387, 7
    %v419 = vperm.slane %v388, 0
    %v420 = vperm.slane %v388, 1
    %v421 = vperm.slane %v388, 2
    %v422 = vperm.slane %v388, 3
    %v423 = vperm.slane %v388, 4
    %v424 = vperm.slane %v388, 5
    %v425 = vperm.slane %v388, 6
    %v426 = vperm.slane %v388, 7
    %v427 = vperm.slane %v389, 0
    %v428 = vperm.slane %v389, 1
    %v463 = vsub.f32 %v248, %v395
    %v464 = vsub.f32 %v252, %v396
    %v465 = vsub.f32 %v253, %v397
    %v466 = vsub.f32 %v254, %v398
    %v467 = vsub.f32 %v255, %v399
    %v468 = vsub.f32 %v256, %v400
    %v469 = vsub.f32 %v257, %v401
    %v470 = vsub.f32 %v258, %v402
    %v471 = vsub.f32 %v238, %v403
    %v472 = vsub.f32 %v259, %v404
    %v473 = vsub.f32 %v260, %v405
    %v474 = vsub.f32 %v261, %v406
    %v475 = vsub.f32 %v262, %v407
    %v476 = vsub.f32 %v263, %v408
    %v477 = vsub.f32 %v264, %v409
    %v478 = vsub.f32 %v265, %v410
    %v479 = vsub.f32 %v237, %v411
    %v480 = vsub.f32 %v249, %v412
    %v481 = vsub.f32 %v266, %v413
    %v482 = vsub.f32 %v267, %v414
    %v483 = vsub.f32 %v268, %v415
    %v484 = vsub.f32 %v269, %v416
    %v485 = vsub.f32 %v270, %v417
    %v486 = vsub.f32 %v271, %v418
    %v487 = vsub.f32 %v272, %v419
    %v488 = vsub.f32 %v241, %v420
    %v489 = vsub.f32 %v273, %v421
    %v490 = vsub.f32 %v274, %v422
    %v491 = vsub.f32 %v275, %v423
    %v492 = vsub.f32 %v276, %v424
    %v493 = vsub.f32 %v277, %v425
    %v494 = vsub.f32 %v278, %v426
    %v495 = vsub.f32 %v279, %v427
    %v496 = vsub.f32 %v240, %v428
    %v497 = vmul.f32 %v463, %v463
    %v498 = vmul.f32 %v464, %v464
    %v499 = vmul.f32 %v465, %v465
    %v500 = vmul.f32 %v466, %v466
    %v501 = vmul.f32 %v467, %v467
    %v502 = vmul.f32 %v468, %v468
    %v503 = vmul.f32 %v469, %v469
    %v504 = vmul.f32 %v470, %v470
    %v505 = vmul.f32 %v471, %v471
    %v506 = vmul.f32 %v472, %v472
    %v507 = vmul.f32 %v473, %v473
    %v508 = vmul.f32 %v474, %v474
    %v509 = vmul.f32 %v475, %v475
    %v510 = vmul.f32 %v476, %v476
    %v511 = vmul.f32 %v477, %v477
    %v512 = vmul.f32 %v478, %v478
    %v513 = vmul.f32 %v479, %v479
    %v514 = vmul.f32 %v480, %v480
    %v515 = vmul.f32 %v481, %v481
    %v516 = vmul.f32 %v482, %v482
    %v517 = vmul.f32 %v483, %v483
    %v518 = vmul.f32 %v484, %v484
    %v519 = vmul.f32 %v485, %v485
    %v520 = vmul.f32 %v486, %v486
    %v521 = vmul.f32 %v487, %v487
    %v522 = vmul.f32 %v488, %v488
    %v523 = vmul.f32 %v489, %v489
    %v524 = vmul.f32 %v490, %v490
    %v525 = vmul.f32 %v491, %v491
    %v526 = vmul.f32 %v492, %v492
    %v527 = vmul.f32 %v493, %v493
    %v528 = vmul.f32 %v494, %v494
    %v529 = vmul.f32 %v495, %v495
    %v530 = vmul.f32 %v496, %v496
    %565 = vst [vmem:[#allocation1] ss:$9 sm:$0xff] %v497
    %s566 = scalar_lea.vmem [#allocation1], 1
    %567 = vst [vmem:[%s566] ss:$9 sm:$0xff] %v498
    %s568 = scalar_lea.vmem [#allocation1], 2
    %569 = vst [vmem:[%s568] ss:$9 sm:$0xff] %v499
    %s570 = scalar_lea.vmem [#allocation1], 3
    %571 = vst [vmem:[%s570] ss:$9 sm:$0xff] %v500
    %s572 = scalar_lea.vmem [#allocation1], 4
    %573 = vst [vmem:[%s572] ss:$9 sm:$0xff] %v501
    %s574 = scalar_lea.vmem [#allocation1], 5
    %575 = vst [vmem:[%s574] ss:$9 sm:$0xff] %v502
    %s576 = scalar_lea.vmem [#allocation1], 6
    %577 = vst [vmem:[%s576] ss:$9 sm:$0xff] %v503
    %s578 = scalar_lea.vmem [#allocation1], 7
    %579 = vst [vmem:[%s578] ss:$9 sm:$0xff] %v504
    %v580 = vld [vmem:[#allocation1] sm:$0xff]
    %581 = vst [vmem:[#allocation1] ss:$9 sm:$0xff] %v505
    %582 = vst [vmem:[%s566] ss:$9 sm:$0xff] %v506
    %583 = vst [vmem:[%s568] ss:$9 sm:$0xff] %v507
    %584 = vst [vmem:[%s570] ss:$9 sm:$0xff] %v508
    %585 = vst [vmem:[%s572] ss:$9 sm:$0xff] %v509
    %586 = vst [vmem:[%s574] ss:$9 sm:$0xff] %v510
    %587 = vst [vmem:[%s576] ss:$9 sm:$0xff] %v511
    %588 = vst [vmem:[%s578] ss:$9 sm:$0xff] %v512
    %v589 = vld [vmem:[#allocation1] sm:$0xff]
    %590 = vst [vmem:[#allocation1] ss:$9 sm:$0xff] %v513
    %591 = vst [vmem:[%s566] ss:$9 sm:$0xff] %v514
    %592 = vst [vmem:[%s568] ss:$9 sm:$0xff] %v515
    %593 = vst [vmem:[%s570] ss:$9 sm:$0xff] %v516
    %594 = vst [vmem:[%s572] ss:$9 sm:$0xff] %v517
    %595 = vst [vmem:[%s574] ss:$9 sm:$0xff] %v518
    %596 = vst [vmem:[%s576] ss:$9 sm:$0xff] %v519
    %597 = vst [vmem:[%s578] ss:$9 sm:$0xff] %v520
    %v598 = vld [vmem:[#allocation1] sm:$0xff]
    %599 = vst [vmem:[#allocation1] ss:$9 sm:$0xff] %v521
    %600 = vst [vmem:[%s566] ss:$9 sm:$0xff] %v522
    %601 = vst [vmem:[%s568] ss:$9 sm:$0xff] %v523
    %602 = vst [vmem:[%s570] ss:$9 sm:$0xff] %v524
    %603 = vst [vmem:[%s572] ss:$9 sm:$0xff] %v525
    %604 = vst [vmem:[%s574] ss:$9 sm:$0xff] %v526
    %605 = vst [vmem:[%s576] ss:$9 sm:$0xff] %v527
    %606 = vst [vmem:[%s578] ss:$9 sm:$0xff] %v528
    %v607 = vld [vmem:[#allocation1] sm:$0xff]
    %608 = vst [vmem:[#allocation1] ss:$9 sm:$0xff] %v529
    %609 = vst [vmem:[%s566] ss:$9 sm:$0xff] %v530
    %v610 = vld [vmem:[#allocation1] sm:$0xff]
    %v616 = vsel %vm361, %v580, 0.0
    %617 = vadd.xlane.f32.xlu0 %v616
    %v618 = vpop.xlane.xlu0 %617
    %v619 = vsel %vm361, %v589, 0.0
    %620 = vadd.xlane.f32.xlu0 %v619
    %v621 = vpop.xlane.xlu0 %620
    %v622 = vsel %vm361, %v598, 0.0
    %623 = vadd.xlane.f32.xlu0 %v622
    %v624 = vpop.xlane.xlu0 %623
    %v625 = vsel %vm361, %v607, 0.0
    %626 = vadd.xlane.f32.xlu0 %v625
    %v627 = vpop.xlane.xlu0 %626
    %v628 = vsel %vm374, %v610, 0.0
    %629 = vadd.xlane.f32.xlu0 %v628
    %v630 = vpop.xlane.xlu0 %629
    %v631 = vmul.f32 %v618, %v384
    %v632 = vmul.f32 %v621, %v384
    %v633 = vmul.f32 %v624, %v384
    %v634 = vmul.f32 %v627, %v384
    %v635 = vmul.f32 %v630, %v384
    %v636 = vadd.f32 %v631, 1e-06
    %v637 = vadd.f32 %v632, 1e-06
    %v638 = vadd.f32 %v633, 1e-06
    %v639 = vadd.f32 %v634, 1e-06
    %v640 = vadd.f32 %v635, 1e-06
    %v641 = vrsqrt.pop %v636
    %v642 = vmul.f32 %v641, %v636
    %v643 = vmul.f32 %v642, %v641
    %v644 = vmul.f32 0.5, %v643
    %v645 = vsub.f32 1.5, %v644
    %v646 = vmul.f32 %v641, %v645
    %vm647 = vweird.f32 %v636
    %vm648 = vweird.f32 %v641
    %vm649 = vmor %vm647, %vm648
    %v650 = vsel %vm649, %v641, %v646
    %v651 = vrsqrt.pop %v637
    %v652 = vmul.f32 %v651, %v637
    %v653 = vmul.f32 %v652, %v651
    %v654 = vmul.f32 0.5, %v653
    %v655 = vsub.f32 1.5, %v654
    %v656 = vmul.f32 %v651, %v655
    %vm657 = vweird.f32 %v637
    %vm658 = vweird.f32 %v651
    %vm659 = vmor %vm657, %vm658
    %v660 = vsel %vm659, %v651, %v656
    %v661 = vrsqrt.pop %v638
    %v662 = vmul.f32 %v661, %v638
    %v663 = vmul.f32 %v662, %v661
    %v664 = vmul.f32 0.5, %v663
    %v665 = vsub.f32 1.5, %v664
    %v666 = vmul.f32 %v661, %v665
    %vm667 = vweird.f32 %v638
    %vm668 = vweird.f32 %v661
    %vm669 = vmor %vm667, %vm668
    %v670 = vsel %vm669, %v661, %v666
    %v671 = vrsqrt.pop %v639
    %v672 = vmul.f32 %v671, %v639
    %v673 = vmul.f32 %v672, %v671
    %v674 = vmul.f32 0.5, %v673
    %v675 = vsub.f32 1.5, %v674
    %v676 = vmul.f32 %v671, %v675
    %vm677 = vweird.f32 %v639
    %vm678 = vweird.f32 %v671
    %vm679 = vmor %vm677, %vm678
    %v680 = vsel %vm679, %v671, %v676
    %v681 = vrsqrt.pop %v640
    %v682 = vmul.f32 %v681, %v640
    %v683 = vmul.f32 %v682, %v681
    %v684 = vmul.f32 0.5, %v683
    %v685 = vsub.f32 1.5, %v684
    %v686 = vmul.f32 %v681, %v685
    %vm687 = vweird.f32 %v640
    %vm688 = vweird.f32 %v681
    %vm689 = vmor %vm687, %vm688
    %v690 = vsel %vm689, %v681, %v686
    %v696 = vperm.slane %v650, 0
    %v697 = vperm.slane %v650, 1
    %v698 = vperm.slane %v650, 2
    %v699 = vperm.slane %v650, 3
    %v700 = vperm.slane %v650, 4
    %v701 = vperm.slane %v650, 5
    %v702 = vperm.slane %v650, 6
    %v703 = vperm.slane %v650, 7
    %v704 = vperm.slane %v660, 0
    %v705 = vperm.slane %v660, 1
    %v706 = vperm.slane %v660, 2
    %v707 = vperm.slane %v660, 3
    %v708 = vperm.slane %v660, 4
    %v709 = vperm.slane %v660, 5
    %v710 = vperm.slane %v660, 6
    %v711 = vperm.slane %v660, 7
    %v712 = vperm.slane %v670, 0
    %v713 = vperm.slane %v670, 1
    %v714 = vperm.slane %v670, 2
    %v715 = vperm.slane %v670, 3
    %v716 = vperm.slane %v670, 4
    %v717 = vperm.slane %v670, 5
    %v718 = vperm.slane %v670, 6
    %v719 = vperm.slane %v670, 7
    %v720 = vperm.slane %v680, 0
    %v721 = vperm.slane %v680, 1
    %v722 = vperm.slane %v680, 2
    %v723 = vperm.slane %v680, 3
    %v724 = vperm.slane %v680, 4
    %v725 = vperm.slane %v680, 5
    %v726 = vperm.slane %v680, 6
    %v727 = vperm.slane %v680, 7
    %v728 = vperm.slane %v690, 0
    %v729 = vperm.slane %v690, 1
    %v764 = vmul.f32 %v463, %v696
    %v765 = vmul.f32 %v464, %v697
    %v766 = vmul.f32 %v465, %v698
    %v767 = vmul.f32 %v466, %v699
    %v768 = vmul.f32 %v467, %v700
    %v769 = vmul.f32 %v468, %v701
    %v770 = vmul.f32 %v469, %v702
    %v771 = vmul.f32 %v470, %v703
    %v772 = vmul.f32 %v471, %v704
    %v773 = vmul.f32 %v472, %v705
    %v774 = vmul.f32 %v473, %v706
    %v775 = vmul.f32 %v474, %v707
    %v776 = vmul.f32 %v475, %v708
    %v777 = vmul.f32 %v476, %v709
    %v778 = vmul.f32 %v477, %v710
    %v779 = vmul.f32 %v478, %v711
    %v780 = vmul.f32 %v479, %v712
    %v781 = vmul.f32 %v480, %v713
    %v782 = vmul.f32 %v481, %v714
    %v783 = vmul.f32 %v482, %v715
    %v784 = vmul.f32 %v483, %v716
    %v785 = vmul.f32 %v484, %v717
    %v786 = vmul.f32 %v485, %v718
    %v787 = vmul.f32 %v486, %v719
    %v788 = vmul.f32 %v487, %v720
    %v789 = vmul.f32 %v488, %v721
    %v790 = vmul.f32 %v489, %v722
    %v791 = vmul.f32 %v490, %v723
    %v792 = vmul.f32 %v491, %v724
    %v793 = vmul.f32 %v492, %v725
    %v794 = vmul.f32 %v493, %v726
    %v795 = vmul.f32 %v494, %v727
    %v796 = vmul.f32 %v495, %v728
    %v797 = vmul.f32 %v496, %v729
    %v799 = vperm.slane %v308, 0
    %v801 = vrot.slane %v799, 1
    %v802 = vrot.slane %v799, 2
    %v803 = vrot.slane %v799, 3
    %v804 = vrot.slane %v799, 4
    %v805 = vrot.slane %v799, 5
    %v806 = vrot.slane %v799, 6
    %v807 = vrot.slane %v799, 7
    %v815 = vmul.f32 %v764, %v799
    %v816 = vmul.f32 %v765, %v801
    %v817 = vmul.f32 %v766, %v802
    %v818 = vmul.f32 %v767, %v803
    %v819 = vmul.f32 %v768, %v804
    %v820 = vmul.f32 %v769, %v805
    %v821 = vmul.f32 %v770, %v806
    %v822 = vmul.f32 %v771, %v807
    %v823 = vmul.f32 %v772, %v799
    %v824 = vmul.f32 %v773, %v801
    %v825 = vmul.f32 %v774, %v802
    %v826 = vmul.f32 %v775, %v803
    %v827 = vmul.f32 %v776, %v804
    %v828 = vmul.f32 %v777, %v805
    %v829 = vmul.f32 %v778, %v806
    %v830 = vmul.f32 %v779, %v807
    %v831 = vmul.f32 %v780, %v799
    %v832 = vmul.f32 %v781, %v801
    %v833 = vmul.f32 %v782, %v802
    %v834 = vmul.f32 %v783, %v803
    %v835 = vmul.f32 %v784, %v804
    %v836 = vmul.f32 %v785, %v805
    %v837 = vmul.f32 %v786, %v806
    %v838 = vmul.f32 %v787, %v807
    %v839 = vmul.f32 %v788, %v799
    %v840 = vmul.f32 %v789, %v801
    %v841 = vmul.f32 %v790, %v802
    %v842 = vmul.f32 %v791, %v803
    %v843 = vmul.f32 %v792, %v804
    %v844 = vmul.f32 %v793, %v805
    %v845 = vmul.f32 %v794, %v806
    %v846 = vmul.f32 %v795, %v807
    %v847 = vmul.f32 %v796, %v799
    %v848 = vmul.f32 %v797, %v801
    %v850 = vperm.slane %v309, 0
    %v852 = vrot.slane %v850, 1
    %v853 = vrot.slane %v850, 2
    %v854 = vrot.slane %v850, 3
    %v855 = vrot.slane %v850, 4
    %v856 = vrot.slane %v850, 5
    %v857 = vrot.slane %v850, 6
    %v858 = vrot.slane %v850, 7
    %v866 = vadd.f32 %v815, %v850
    %v867 = vadd.f32 %v816, %v852
    %v868 = vadd.f32 %v817, %v853
    %v869 = vadd.f32 %v818, %v854
    %v870 = vadd.f32 %v819, %v855
    %v871 = vadd.f32 %v820, %v856
    %v872 = vadd.f32 %v821, %v857
    %v873 = vadd.f32 %v822, %v858
    %v874 = vadd.f32 %v823, %v850
    %v875 = vadd.f32 %v824, %v852
    %v876 = vadd.f32 %v825, %v853
    %v877 = vadd.f32 %v826, %v854
    %v878 = vadd.f32 %v827, %v855
    %v879 = vadd.f32 %v828, %v856
    %v880 = vadd.f32 %v829, %v857
    %v881 = vadd.f32 %v830, %v858
    %v882 = vadd.f32 %v831, %v850
    %v883 = vadd.f32 %v832, %v852
    %v884 = vadd.f32 %v833, %v853
    %v885 = vadd.f32 %v834, %v854
    %v886 = vadd.f32 %v835, %v855
    %v887 = vadd.f32 %v836, %v856
    %v888 = vadd.f32 %v837, %v857
    %v889 = vadd.f32 %v838, %v858
    %v890 = vadd.f32 %v839, %v850
    %v891 = vadd.f32 %v840, %v852
    %v892 = vadd.f32 %v841, %v853
    %v893 = vadd.f32 %v842, %v854
    %v894 = vadd.f32 %v843, %v855
    %v895 = vadd.f32 %v844, %v856
    %v896 = vadd.f32 %v845, %v857
    %v897 = vadd.f32 %v846, %v858
    %v898 = vadd.f32 %v847, %v850
    %v899 = vadd.f32 %v848, %v852
    %v900 = vld [vmem:[%s15] sm:$0xf]
    %v901 = vld [vmem:[%s15 + $0x4] sm:$0xf]
    %v902 = vld [vmem:[%s15 + $0x8] sm:$0xf]
    %v903 = vld [vmem:[%s15 + $0xc] sm:$0xf]
    %938 = vst [vmem:[#allocation1] ss:$9 sm:$0xff] %v866
    %s939 = scalar_lea.vmem [#allocation1], 1
    %940 = vst [vmem:[%s939] ss:$9 sm:$0xff] %v867
    %s941 = scalar_lea.vmem [#allocation1], 2
    %942 = vst [vmem:[%s941] ss:$9 sm:$0xff] %v868
    %s943 = scalar_lea.vmem [#allocation1], 3
    %944 = vst [vmem:[%s943] ss:$9 sm:$0xff] %v869
    %s945 = scalar_lea.vmem [#allocation1], 4
    %946 = vst [vmem:[%s945] ss:$9 sm:$0xff] %v870
    %s947 = scalar_lea.vmem [#allocation1], 5
    %948 = vst [vmem:[%s947] ss:$9 sm:$0xff] %v871
    %s949 = scalar_lea.vmem [#allocation1], 6
    %950 = vst [vmem:[%s949] ss:$9 sm:$0xff] %v872
    %s951 = scalar_lea.vmem [#allocation1], 7
    %952 = vst [vmem:[%s951] ss:$9 sm:$0xff] %v873
    %v953 = vld [vmem:[#allocation1] sm:$0xff]
    %954 = vst [vmem:[#allocation1] ss:$9 sm:$0xff] %v874
    %955 = vst [vmem:[%s939] ss:$9 sm:$0xff] %v875
    %956 = vst [vmem:[%s941] ss:$9 sm:$0xff] %v876
    %957 = vst [vmem:[%s943] ss:$9 sm:$0xff] %v877
    %958 = vst [vmem:[%s945] ss:$9 sm:$0xff] %v878
    %959 = vst [vmem:[%s947] ss:$9 sm:$0xff] %v879
    %960 = vst [vmem:[%s949] ss:$9 sm:$0xff] %v880
    %961 = vst [vmem:[%s951] ss:$9 sm:$0xff] %v881
    %v962 = vld [vmem:[#allocation1] sm:$0xff]
    %963 = vst [vmem:[#allocation1] ss:$9 sm:$0xff] %v882
    %964 = vst [vmem:[%s939] ss:$9 sm:$0xff] %v883
    %965 = vst [vmem:[%s941] ss:$9 sm:$0xff] %v884
    %966 = vst [vmem:[%s943] ss:$9 sm:$0xff] %v885
    %967 = vst [vmem:[%s945] ss:$9 sm:$0xff] %v886
    %968 = vst [vmem:[%s947] ss:$9 sm:$0xff] %v887
    %969 = vst [vmem:[%s949] ss:$9 sm:$0xff] %v888
    %970 = vst [vmem:[%s951] ss:$9 sm:$0xff] %v889
    %v971 = vld [vmem:[#allocation1] sm:$0xff]
    %972 = vst [vmem:[#allocation1] ss:$9 sm:$0xff] %v890
    %973 = vst [vmem:[%s939] ss:$9 sm:$0xff] %v891
    %974 = vst [vmem:[%s941] ss:$9 sm:$0xff] %v892
    %975 = vst [vmem:[%s943] ss:$9 sm:$0xff] %v893
    %976 = vst [vmem:[%s945] ss:$9 sm:$0xff] %v894
    %977 = vst [vmem:[%s947] ss:$9 sm:$0xff] %v895
    %978 = vst [vmem:[%s949] ss:$9 sm:$0xff] %v896
    %979 = vst [vmem:[%s951] ss:$9 sm:$0xff] %v897
    %v980 = vld [vmem:[#allocation1] sm:$0xff]
    %981 = vst [vmem:[#allocation1] ss:$9 sm:$0xff] %v898
    %982 = vst [vmem:[%s939] ss:$9 sm:$0xff] %v899
    %v983 = vld [vmem:[#allocation1] sm:$0xff]
    %v989 = vpack.c.bf16 %v962, %v953
    %v990 = vpack.c.bf16 %v980, %v971
    %v991 = vpack.c.bf16 %v983, %v983
    %v992 = vld [vmem:[%s17] sm:$0x1]
    %v994 = vperm.slane %v992, 0
    %v1000 = vunpack.c.l.b16 %v900
    %v1001 = vunpack.c.l.b16 %v901
    %v1002 = vunpack.c.l.b16 %v902
    %v1003 = vunpack.c.l.b16 %v903
    %v1004 = vpack.c.b16 %v1001, %v1000
    %v1005 = vpack.c.b16 %v1003, %v1002
    %v1009 = vsel %vm361, %v989, 0
    %v1012 = vsel %vm361, %v990, 0
    %v1015 = vsel %vm361, %v991, 0
    %1017 = vmatpush.bf16.msra.mxu0 0
    %1018 = vmatpush.bf16.msra.mxu0 0
    %1019 = vmatpush.bf16.msra.mxu0 0
    %1020 = vmatpush.bf16.msra.mxu0 0
    %1021 = vmatpush.bf16.msra.mxu0 0
    %1022 = vmatpush.bf16.msra.mxu0 0
    %1023 = vmatpush.bf16.msra.mxu0 %v1005
    %1024 = vmatpush.bf16.msra.mxu0 %v1004
    %1025 = vmatmul.bf16.gmra.mxu0 %v1009
    %v1026 = vpop.f32.mrf.mxu0
    %v1027 = vadd.f32 %v994, %v1026
    %v1028 = vpop.f32.mrf.mxu0
    %v1029 = vadd.f32 %v994, %v1028
    %1030 = vmatmul.bf16.gmra.mxu0 %v1012
    %v1031 = vpop.f32.mrf.mxu0
    %v1032 = vadd.f32 %v994, %v1031
    %v1033 = vpop.f32.mrf.mxu0
    %v1034 = vadd.f32 %v994, %v1033
    %1035 = vmatmul.bf16.gmra.mxu0 %v1015
    %v1036 = vpop.f32.mrf.mxu0
    %v1037 = vadd.f32 %v994, %v1036
    %v1038 = vpop.f32.mrf.mxu0
    %1039 = vdwg.mxu0
    %v1045 = vrot.slane %v1027, 1
    %v1046 = vrot.slane %v1027, 2
    %v1047 = vrot.slane %v1027, 3
    %v1048 = vrot.slane %v1027, 4
    %v1049 = vrot.slane %v1027, 5
    %v1050 = vrot.slane %v1027, 6
    %v1051 = vrot.slane %v1027, 7
    %v1052 = vrot.slane %v1029, 1
    %v1053 = vrot.slane %v1029, 2
    %v1054 = vrot.slane %v1029, 3
    %v1055 = vrot.slane %v1029, 4
    %v1056 = vrot.slane %v1029, 5
    %v1057 = vrot.slane %v1029, 6
    %v1058 = vrot.slane %v1029, 7
    %v1059 = vrot.slane %v1032, 1
    %v1060 = vrot.slane %v1032, 2
    %v1061 = vrot.slane %v1032, 3
    %v1062 = vrot.slane %v1032, 4
    %v1063 = vrot.slane %v1032, 5
    %v1064 = vrot.slane %v1032, 6
    %v1065 = vrot.slane %v1032, 7
    %v1066 = vrot.slane %v1034, 1
    %v1067 = vrot.slane %v1034, 2
    %v1068 = vrot.slane %v1034, 3
    %v1069 = vrot.slane %v1034, 4
    %v1070 = vrot.slane %v1034, 5
    %v1071 = vrot.slane %v1034, 6
    %v1072 = vrot.slane %v1034, 7
    %v1073 = vrot.slane %v1037, 1
    %v1074 = vld [vmem:[%s19] sm:$0xf]
    %v1075 = vld [vmem:[%s19 + $0x4] sm:$0xf]
    %v1076 = vld [vmem:[%s19 + $0x8] sm:$0xf]
    %v1077 = vld [vmem:[%s19 + $0xc] sm:$0xf]
    %1078 = vst [vmem:[#allocation1] ss:$9 sm:$0xff] %v1027
    %s1079 = scalar_lea.vmem [#allocation1], 1
    %1080 = vst [vmem:[%s1079] ss:$9 sm:$0xff] %v1045
    %s1081 = scalar_lea.vmem [#allocation1], 2
    %1082 = vst [vmem:[%s1081] ss:$9 sm:$0xff] %v1046
    %s1083 = scalar_lea.vmem [#allocation1], 3
    %1084 = vst [vmem:[%s1083] ss:$9 sm:$0xff] %v1047
    %s1085 = scalar_lea.vmem [#allocation1], 4
    %1086 = vst [vmem:[%s1085] ss:$9 sm:$0xff] %v1048
    %s1087 = scalar_lea.vmem [#allocation1], 5
    %1088 = vst [vmem:[%s1087] ss:$9 sm:$0xff] %v1049
    %s1089 = scalar_lea.vmem [#allocation1], 6
    %1090 = vst [vmem:[%s1089] ss:$9 sm:$0xff] %v1050
    %s1091 = scalar_lea.vmem [#allocation1], 7
    %1092 = vst [vmem:[%s1091] ss:$9 sm:$0xff] %v1051
    %v1093 = vld [vmem:[#allocation1] sm:$0xff]
    %1094 = vst [vmem:[#allocation1] ss:$9 sm:$0xff] %v1029
    %1095 = vst [vmem:[%s1079] ss:$9 sm:$0xff] %v1052
    %1096 = vst [vmem:[%s1081] ss:$9 sm:$0xff] %v1053
    %1097 = vst [vmem:[%s1083] ss:$9 sm:$0xff] %v1054
    %1098 = vst [vmem:[%s1085] ss:$9 sm:$0xff] %v1055
    %1099 = vst [vmem:[%s1087] ss:$9 sm:$0xff] %v1056
    %1100 = vst [vmem:[%s1089] ss:$9 sm:$0xff] %v1057
    %1101 = vst [vmem:[%s1091] ss:$9 sm:$0xff] %v1058
    %v1102 = vld [vmem:[#allocation1] sm:$0xff]
    %1103 = vst [vmem:[#allocation1] ss:$9 sm:$0xff] %v1032
    %v1104 = vld [vmem:[#allocation1] sm:$0xff]
    %1105 = vst [vmem:[#allocation1] ss:$9 sm:$0xff] %v1059
    %1106 = vst [vmem:[%s1079] ss:$9 sm:$0xff] %v1060
    %1107 = vst [vmem:[%s1081] ss:$9 sm:$0xff] %v1061
    %1108 = vst [vmem:[%s1083] ss:$9 sm:$0xff] %v1062
    %1109 = vst [vmem:[%s1085] ss:$9 sm:$0xff] %v1063
    %1110 = vst [vmem:[%s1087] ss:$9 sm:$0xff] %v1064
    %1111 = vst [vmem:[%s1089] ss:$9 sm:$0xff] %v1065
    %1112 = vst [vmem:[%s1091] ss:$9 sm:$0xff] %v1034
    %v1113 = vld [vmem:[#allocation1] sm:$0xff]
    %1114 = vst [vmem:[#allocation1] ss:$9 sm:$0xff] %v1066
    %1115 = vst [vmem:[%s1079] ss:$9 sm:$0xff] %v1067
    %1116 = vst [vmem:[%s1081] ss:$9 sm:$0xff] %v1068
    %1117 = vst [vmem:[%s1083] ss:$9 sm:$0xff] %v1069
    %1118 = vst [vmem:[%s1085] ss:$9 sm:$0xff] %v1070
    %1119 = vst [vmem:[%s1087] ss:$9 sm:$0xff] %v1071
    %1120 = vst [vmem:[%s1089] ss:$9 sm:$0xff] %v1072
    %1121 = vst [vmem:[%s1091] ss:$9 sm:$0xff] %v1037
    %v1122 = vld [vmem:[#allocation1] sm:$0xff]
    %1123 = vst [vmem:[#allocation1] ss:$9 sm:$0xff] %v1073
    %v1124 = vld [vmem:[#allocation1] sm:$0xff]
    %v1131 = vpack.c.bf16 %v1093, %v1093
    %v1132 = vpack.c.bf16 %v1102, %v1102
    %v1133 = vpack.c.bf16 %v1104, %v1104
    %v1134 = vpack.c.bf16 %v1113, %v1113
    %v1135 = vpack.c.bf16 %v1122, %v1122
    %v1136 = vpack.c.bf16 %v1124, %v1124
    %1137 = vst [vmem:[#allocation1] ss:$9 sm:$0xff] %v1027
    %s1138 = scalar_lea.vmem [#allocation1], 1
    %1139 = vst [vmem:[%s1138] ss:$9 sm:$0xff] %v1045
    %s1140 = scalar_lea.vmem [#allocation1], 2
    %1141 = vst [vmem:[%s1140] ss:$9 sm:$0xff] %v1046
    %s1142 = scalar_lea.vmem [#allocation1], 3
    %1143 = vst [vmem:[%s1142] ss:$9 sm:$0xff] %v1047
    %s1144 = scalar_lea.vmem [#allocation1], 4
    %1145 = vst [vmem:[%s1144] ss:$9 sm:$0xff] %v1048
    %s1146 = scalar_lea.vmem [#allocation1], 5
    %1147 = vst [vmem:[%s1146] ss:$9 sm:$0xff] %v1049
    %s1148 = scalar_lea.vmem [#allocation1], 6
    %1149 = vst [vmem:[%s1148] ss:$9 sm:$0xff] %v1050
    %s1150 = scalar_lea.vmem [#allocation1], 7
    %1151 = vst [vmem:[%s1150] ss:$9 sm:$0xff] %v1051
    %v1152 = vld [vmem:[#allocation1] sm:$0xff]
    %1153 = vst [vmem:[#allocation1] ss:$9 sm:$0xff] %v1029
    %1154 = vst [vmem:[%s1138] ss:$9 sm:$0xff] %v1052
    %1155 = vst [vmem:[%s1140] ss:$9 sm:$0xff] %v1053
    %1156 = vst [vmem:[%s1142] ss:$9 sm:$0xff] %v1054
    %1157 = vst [vmem:[%s1144] ss:$9 sm:$0xff] %v1055
    %1158 = vst [vmem:[%s1146] ss:$9 sm:$0xff] %v1056
    %1159 = vst [vmem:[%s1148] ss:$9 sm:$0xff] %v1057
    %1160 = vst [vmem:[%s1150] ss:$9 sm:$0xff] %v1058
    %v1161 = vld [vmem:[#allocation1] sm:$0xff]
    %1162 = vst [vmem:[#allocation1] ss:$9 sm:$0xff] %v1032
    %v1163 = vld [vmem:[#allocation1] sm:$0xff]
    %1164 = vst [vmem:[#allocation1] ss:$9 sm:$0xff] %v1059
    %1165 = vst [vmem:[%s1138] ss:$9 sm:$0xff] %v1060
    %1166 = vst [vmem:[%s1140] ss:$9 sm:$0xff] %v1061
    %1167 = vst [vmem:[%s1142] ss:$9 sm:$0xff] %v1062
    %1168 = vst [vmem:[%s1144] ss:$9 sm:$0xff] %v1063
    %1169 = vst [vmem:[%s1146] ss:$9 sm:$0xff] %v1064
    %1170 = vst [vmem:[%s1148] ss:$9 sm:$0xff] %v1065
    %1171 = vst [vmem:[%s1150] ss:$9 sm:$0xff] %v1034
    %v1172 = vld [vmem:[#allocation1] sm:$0xff]
    %1173 = vst [vmem:[#allocation1] ss:$9 sm:$0xff] %v1066
    %1174 = vst [vmem:[%s1138] ss:$9 sm:$0xff] %v1067
    %1175 = vst [vmem:[%s1140] ss:$9 sm:$0xff] %v1068
    %1176 = vst [vmem:[%s1142] ss:$9 sm:$0xff] %v1069
    %1177 = vst [vmem:[%s1144] ss:$9 sm:$0xff] %v1070
    %1178 = vst [vmem:[%s1146] ss:$9 sm:$0xff] %v1071
    %1179 = vst [vmem:[%s1148] ss:$9 sm:$0xff] %v1072
    %1180 = vst [vmem:[%s1150] ss:$9 sm:$0xff] %v1037
    %v1181 = vld [vmem:[#allocation1] sm:$0xff]
    %1182 = vst [vmem:[#allocation1] ss:$9 sm:$0xff] %v1073
    %v1183 = vld [vmem:[#allocation1] sm:$0xff]
    %v1190 = vpack.c.bf16 %v1152, %v1152
    %v1191 = vpack.c.bf16 %v1161, %v1161
    %v1192 = vpack.c.bf16 %v1163, %v1163
    %v1193 = vpack.c.bf16 %v1172, %v1172
    %v1194 = vpack.c.bf16 %v1181, %v1181
    %v1195 = vpack.c.bf16 %v1183, %v1183
    %v1199 = vunpack.c.l.b16 %v1131
    %v1200 = vunpack.c.l.b16 %v1132
    %v1201 = vunpack.c.l.b16 %v1133
    %v1202 = vpack.c.b16 %v1200, %v1199
    %v1203 = vpack.c.b16 %v1201, %v1201
    %v1207 = vunpack.c.l.b16 %v1190
    %v1208 = vunpack.c.l.b16 %v1191
    %v1209 = vunpack.c.l.b16 %v1192
    %v1210 = vpack.c.b16 %v1208, %v1207
    %v1211 = vpack.c.b16 %v1209, %v1209
    %1212 = vrot.lane.b32.xlu0 %v1210, 96
    %v1213 = vpop.permute.xlu0 %1212
    %1214 = vrot.lane.b32.xlu0 %v1211, 96
    %v1215 = vpop.permute.xlu0 %1214
    %vm1216 = vcmask 130048
    %v1218 = vsel %vm1216, %v1202, 0
    %v1221 = vsel %vm1216, %v1203, 0
    %v1224 = vsel %vm1216, %v1213, 0
    %v1227 = vsel %vm1216, %v1215, 0
    %1229 = vmatpush.bf16.xpose.msra.mxu0 0
    %1230 = vmatpush.bf16.xpose.msra.mxu0 0
    %1231 = vmatpush.bf16.xpose.msra.mxu0 0
    %1232 = vmatpush.bf16.xpose.msra.mxu0 0
    %1233 = vmatpush.bf16.xpose.msra.mxu0 0
    %1234 = vmatpush.bf16.xpose.msra.mxu0 0
    %1235 = vmatpush.bf16.xpose.msra.mxu0 %v1227
    %1236 = vmatpush.bf16.xpose.msra.mxu0 %v1224
    %1237 = vmatmul.bf16.gmra.mxu0 %v1218
    %v1238 = vpop.f32.mrf.mxu0
    %v1239 = vadd.f32 0.0, %v1238
    %v1240 = vpop.f32.mrf.mxu0
    %v1241 = vadd.f32 0.0, %v1240
    %1242 = vmatmul.bf16.gmra.mxu0 %v1221
    %v1243 = vpop.f32.mrf.mxu0
    %v1244 = vadd.f32 0.0, %v1243
    %v1245 = vpop.f32.mrf.mxu0
    %1246 = vdwg.mxu0
    %v1250 = vunpack.c.l.b16 %v1134
    %v1251 = vunpack.c.l.b16 %v1135
    %v1252 = vunpack.c.l.b16 %v1136
    %v1253 = vpack.c.b16 %v1251, %v1250
    %v1254 = vpack.c.b16 %v1252, %v1252
    %v1258 = vunpack.c.l.b16 %v1193
    %v1259 = vunpack.c.l.b16 %v1194
    %v1260 = vunpack.c.l.b16 %v1195
    %v1261 = vpack.c.b16 %v1259, %v1258
    %v1262 = vpack.c.b16 %v1260, %v1260
    %1263 = vrot.lane.b32.xlu0 %v1261, 96
    %v1264 = vpop.permute.xlu0 %1263
    %1265 = vrot.lane.b32.xlu0 %v1262, 96
    %v1266 = vpop.permute.xlu0 %1265
    %v1268 = vsel %vm1216, %v1253, 0
    %v1271 = vsel %vm1216, %v1254, 0
    %v1274 = vsel %vm1216, %v1264, 0
    %v1277 = vsel %vm1216, %v1266, 0
    %1279 = vmatpush.bf16.xpose.msra.mxu0 0
    %1280 = vmatpush.bf16.xpose.msra.mxu0 0
    %1281 = vmatpush.bf16.xpose.msra.mxu0 0
    %1282 = vmatpush.bf16.xpose.msra.mxu0 0
    %1283 = vmatpush.bf16.xpose.msra.mxu0 0
    %1284 = vmatpush.bf16.xpose.msra.mxu0 0
    %1285 = vmatpush.bf16.xpose.msra.mxu0 %v1277
    %1286 = vmatpush.bf16.xpose.msra.mxu0 %v1274
    %1287 = vmatmul.bf16.gmra.mxu0 %v1268
    %v1288 = vpop.f32.mrf.mxu0
    %v1289 = vadd.f32 0.0, %v1288
    %v1290 = vpop.f32.mrf.mxu0
    %v1291 = vadd.f32 0.0, %v1290
    %1292 = vmatmul.bf16.gmra.mxu0 %v1271
    %v1293 = vpop.f32.mrf.mxu0
    %v1294 = vadd.f32 0.0, %v1293
    %v1295 = vpop.f32.mrf.mxu0
    %1296 = vdwg.mxu0
    %vm1297 = vcmask 138240
    %v1298 = vsel %vm1297, %v1239, -inf
    %1299 = vmax.xlane.f32.xlu0 %v1298
    %v1300 = vpop.xlane.xlu0 %1299
    %v1301 = vsel %vm1297, %v1241, -inf
    %1302 = vmax.xlane.f32.xlu0 %v1301
    %v1303 = vpop.xlane.xlu0 %1302
    %vm1304 = vcmask 131072
    %v1305 = vsel %vm1304, %v1244, -inf
    %1306 = vmax.xlane.f32.xlu0 %v1305
    %v1307 = vpop.xlane.xlu0 %1306
    %v1308 = vsel %vm1297, %v1289, -inf
    %1309 = vmax.xlane.f32.xlu0 %v1308
    %v1310 = vpop.xlane.xlu0 %1309
    %v1311 = vsel %vm1297, %v1291, -inf
    %1312 = vmax.xlane.f32.xlu0 %v1311
    %v1313 = vpop.xlane.xlu0 %1312
    %v1314 = vsel %vm1304, %v1294, -inf
    %1315 = vmax.xlane.f32.xlu0 %v1314
    %v1316 = vpop.xlane.xlu0 %1315
    %v1317 = vsub.f32 %v1239, %v1300
    %v1318 = vsub.f32 %v1241, %v1303
    %v1319 = vsub.f32 %v1244, %v1307
    %v1320 = vsub.f32 %v1289, %v1310
    %v1321 = vsub.f32 %v1291, %v1313
    %v1322 = vsub.f32 %v1294, %v1316
    %v1323 = vmul.f32 %v1317, 1.442695
    %v1324 = vpow.pop %v1323
    %v1325 = vmul.f32 %v1318, 1.442695
    %v1326 = vpow.pop %v1325
    %v1327 = vmul.f32 %v1319, 1.442695
    %v1328 = vpow.pop %v1327
    %v1329 = vmul.f32 %v1320, 1.442695
    %v1330 = vpow.pop %v1329
    %v1331 = vmul.f32 %v1321, 1.442695
    %v1332 = vpow.pop %v1331
    %v1333 = vmul.f32 %v1322, 1.442695
    %v1334 = vpow.pop %v1333
    %v1335 = vsel %vm1297, %v1324, 0.0
    %1336 = vadd.xlane.f32.xlu0 %v1335
    %v1337 = vpop.xlane.xlu0 %1336
    %v1338 = vsel %vm1297, %v1326, 0.0
    %1339 = vadd.xlane.f32.xlu0 %v1338
    %v1340 = vpop.xlane.xlu0 %1339
    %v1341 = vsel %vm1304, %v1328, 0.0
    %1342 = vadd.xlane.f32.xlu0 %v1341
    %v1343 = vpop.xlane.xlu0 %1342
    %v1344 = vsel %vm1297, %v1330, 0.0
    %1345 = vadd.xlane.f32.xlu0 %v1344
    %v1346 = vpop.xlane.xlu0 %1345
    %v1347 = vsel %vm1297, %v1332, 0.0
    %1348 = vadd.xlane.f32.xlu0 %v1347
    %v1349 = vpop.xlane.xlu0 %1348
    %v1350 = vsel %vm1304, %v1334, 0.0
    %1351 = vadd.xlane.f32.xlu0 %v1350
    %v1352 = vpop.xlane.xlu0 %1351
    %v1353 = vpack.c.bf16 %v1324, %v1324
    %v1354 = vpack.c.bf16 %v1326, %v1326
    %v1355 = vpack.c.bf16 %v1328, %v1328
    %v1356 = vpack.c.bf16 %v1330, %v1330
    %v1357 = vpack.c.bf16 %v1332, %v1332
    %v1358 = vpack.c.bf16 %v1334, %v1334
    %1359 = vst [vmem:[#allocation1] ss:$9 sm:$0xff] %v1027
    %s1360 = scalar_lea.vmem [#allocation1], 1
    %1361 = vst [vmem:[%s1360] ss:$9 sm:$0xff] %v1045
    %s1362 = scalar_lea.vmem [#allocation1], 2
    %1363 = vst [vmem:[%s1362] ss:$9 sm:$0xff] %v1046
    %s1364 = scalar_lea.vmem [#allocation1], 3
    %1365 = vst [vmem:[%s1364] ss:$9 sm:$0xff] %v1047
    %s1366 = scalar_lea.vmem [#allocation1], 4
    %1367 = vst [vmem:[%s1366] ss:$9 sm:$0xff] %v1048
    %s1368 = scalar_lea.vmem [#allocation1], 5
    %1369 = vst [vmem:[%s1368] ss:$9 sm:$0xff] %v1049
    %s1370 = scalar_lea.vmem [#allocation1], 6
    %1371 = vst [vmem:[%s1370] ss:$9 sm:$0xff] %v1050
    %s1372 = scalar_lea.vmem [#allocation1], 7
    %1373 = vst [vmem:[%s1372] ss:$9 sm:$0xff] %v1051
    %v1374 = vld [vmem:[#allocation1] sm:$0xff]
    %1375 = vst [vmem:[#allocation1] ss:$9 sm:$0xff] %v1029
    %1376 = vst [vmem:[%s1360] ss:$9 sm:$0xff] %v1052
    %1377 = vst [vmem:[%s1362] ss:$9 sm:$0xff] %v1053
    %1378 = vst [vmem:[%s1364] ss:$9 sm:$0xff] %v1054
    %1379 = vst [vmem:[%s1366] ss:$9 sm:$0xff] %v1055
    %1380 = vst [vmem:[%s1368] ss:$9 sm:$0xff] %v1056
    %1381 = vst [vmem:[%s1370] ss:$9 sm:$0xff] %v1057
    %1382 = vst [vmem:[%s1372] ss:$9 sm:$0xff] %v1058
    %v1383 = vld [vmem:[#allocation1] sm:$0xff]
    %1384 = vst [vmem:[#allocation1] ss:$9 sm:$0xff] %v1032
    %v1385 = vld [vmem:[#allocation1] sm:$0xff]
    %1386 = vst [vmem:[#allocation1] ss:$9 sm:$0xff] %v1059
    %1387 = vst [vmem:[%s1360] ss:$9 sm:$0xff] %v1060
    %1388 = vst [vmem:[%s1362] ss:$9 sm:$0xff] %v1061
    %1389 = vst [vmem:[%s1364] ss:$9 sm:$0xff] %v1062
    %1390 = vst [vmem:[%s1366] ss:$9 sm:$0xff] %v1063
    %1391 = vst [vmem:[%s1368] ss:$9 sm:$0xff] %v1064
    %1392 = vst [vmem:[%s1370] ss:$9 sm:$0xff] %v1065
    %1393 = vst [vmem:[%s1372] ss:$9 sm:$0xff] %v1034
    %v1394 = vld [vmem:[#allocation1] sm:$0xff]
    %1395 = vst [vmem:[#allocation1] ss:$9 sm:$0xff] %v1066
    %1396 = vst [vmem:[%s1360] ss:$9 sm:$0xff] %v1067
    %1397 = vst [vmem:[%s1362] ss:$9 sm:$0xff] %v1068
    %1398 = vst [vmem:[%s1364] ss:$9 sm:$0xff] %v1069
    %1399 = vst [vmem:[%s1366] ss:$9 sm:$0xff] %v1070
    %1400 = vst [vmem:[%s1368] ss:$9 sm:$0xff] %v1071
    %1401 = vst [vmem:[%s1370] ss:$9 sm:$0xff] %v1072
    %1402 = vst [vmem:[%s1372] ss:$9 sm:$0xff] %v1037
    %v1403 = vld [vmem:[#allocation1] sm:$0xff]
    %1404 = vst [vmem:[#allocation1] ss:$9 sm:$0xff] %v1073
    %v1405 = vld [vmem:[#allocation1] sm:$0xff]
    %v1412 = vpack.c.bf16 %v1374, %v1374
    %v1413 = vpack.c.bf16 %v1383, %v1383
    %v1414 = vpack.c.bf16 %v1385, %v1385
    %v1415 = vpack.c.bf16 %v1394, %v1394
    %v1416 = vpack.c.bf16 %v1403, %v1403
    %v1417 = vpack.c.bf16 %v1405, %v1405
    %v1421 = vunpack.c.l.b16 %v1353
    %v1422 = vunpack.c.l.b16 %v1354
    %v1423 = vunpack.c.l.b16 %v1355
    %v1424 = vpack.c.b16 %v1422, %v1421
    %v1425 = vpack.c.b16 %v1423, %v1423
    %v1429 = vunpack.c.l.b16 %v1412
    %v1430 = vunpack.c.l.b16 %v1413
    %v1431 = vunpack.c.l.b16 %v1414
    %v1432 = vpack.c.b16 %v1430, %v1429
    %v1433 = vpack.c.b16 %v1431, %v1431
    %1434 = vrot.lane.b32.xlu0 %v1432, 64
    %v1435 = vpop.permute.xlu0 %1434
    %1436 = vrot.lane.b32.xlu0 %v1433, 64
    %v1437 = vpop.permute.xlu0 %1436
    %v1440 = vsel %vm1297, %v1424, 0
    %v1443 = vsel %vm1297, %v1425, 0
    %v1445 = vsel 0, 4294967295, 65535
    %v1446 = vsel %vm235, %v1445, 0
    %v1448 = vand.u32 %v1437, %v1446
    %1450 = vmatpush.bf16.msra.mxu0 0
    %1451 = vmatpush.bf16.msra.mxu0 0
    %1452 = vmatpush.bf16.msra.mxu0 0
    %1453 = vmatpush.bf16.msra.mxu0 0
    %1454 = vmatpush.bf16.msra.mxu0 0
    %1455 = vmatpush.bf16.msra.mxu0 0
    %1456 = vmatpush.bf16.msra.mxu0 %v1448
    %1457 = vmatpush.bf16.msra.mxu0 %v1435
    %1458 = vmatmul.bf16.gmra.mxu0 %v1440
    %v1459 = vpop.f32.mrf.mxu0
    %v1460 = vadd.f32 0.0, %v1459
    %v1461 = vpop.f32.mrf.mxu0
    %v1462 = vadd.f32 0.0, %v1461
    %1463 = vmatmul.bf16.gmra.mxu0 %v1443
    %v1464 = vpop.f32.mrf.mxu0
    %v1465 = vadd.f32 0.0, %v1464
    %v1466 = vpop.f32.mrf.mxu0
    %1467 = vdwg.mxu0
    %v1471 = vunpack.c.l.b16 %v1356
    %v1472 = vunpack.c.l.b16 %v1357
    %v1473 = vunpack.c.l.b16 %v1358
    %v1474 = vpack.c.b16 %v1472, %v1471
    %v1475 = vpack.c.b16 %v1473, %v1473
    %v1479 = vunpack.c.l.b16 %v1415
    %v1480 = vunpack.c.l.b16 %v1416
    %v1481 = vunpack.c.l.b16 %v1417
    %v1482 = vpack.c.b16 %v1480, %v1479
    %v1483 = vpack.c.b16 %v1481, %v1481
    %1484 = vrot.lane.b32.xlu0 %v1482, 64
    %v1485 = vpop.permute.xlu0 %1484
    %1486 = vrot.lane.b32.xlu0 %v1483, 64
    %v1487 = vpop.permute.xlu0 %1486
    %v1490 = vsel %vm1297, %v1474, 0
    %v1493 = vsel %vm1297, %v1475, 0
    %v1496 = vand.u32 %v1487, %v1446
    %1498 = vmatpush.bf16.msra.mxu0 0
    %1499 = vmatpush.bf16.msra.mxu0 0
    %1500 = vmatpush.bf16.msra.mxu0 0
    %1501 = vmatpush.bf16.msra.mxu0 0
    %1502 = vmatpush.bf16.msra.mxu0 0
    %1503 = vmatpush.bf16.msra.mxu0 0
    %1504 = vmatpush.bf16.msra.mxu0 %v1496
    %1505 = vmatpush.bf16.msra.mxu0 %v1485
    %1506 = vmatmul.bf16.gmra.mxu0 %v1490
    %v1507 = vpop.f32.mrf.mxu0
    %v1508 = vadd.f32 0.0, %v1507
    %v1509 = vpop.f32.mrf.mxu0
    %v1510 = vadd.f32 0.0, %v1509
    %1511 = vmatmul.bf16.gmra.mxu0 %v1493
    %v1512 = vpop.f32.mrf.mxu0
    %v1513 = vadd.f32 0.0, %v1512
    %v1514 = vpop.f32.mrf.mxu0
    %1515 = vdwg.mxu0
    %v1516 = vrcp.pop %v1337
    %v1517 = vrcp.pop %v1340
    %v1518 = vrcp.pop %v1343
    %v1519 = vrcp.pop %v1346
    %v1520 = vrcp.pop %v1349
    %v1521 = vrcp.pop %v1352
    %v1522 = vmul.f32 %v1460, %v1516
    %v1523 = vmul.f32 %v1462, %v1517
    %v1524 = vmul.f32 %v1465, %v1518
    %v1525 = vmul.f32 %v1508, %v1519
    %v1526 = vmul.f32 %v1510, %v1520
    %v1527 = vmul.f32 %v1513, %v1521
    %v1534 = vrot.slane %v1522, 1
    %v1535 = vrot.slane %v1522, 2
    %v1536 = vrot.slane %v1522, 3
    %v1537 = vrot.slane %v1522, 4
    %v1538 = vrot.slane %v1522, 5
    %v1539 = vrot.slane %v1522, 6
    %v1540 = vrot.slane %v1522, 7
    %v1541 = vrot.slane %v1523, 1
    %v1542 = vrot.slane %v1523, 2
    %v1543 = vrot.slane %v1523, 3
    %v1544 = vrot.slane %v1523, 4
    %v1545 = vrot.slane %v1523, 5
    %v1546 = vrot.slane %v1523, 6
    %v1547 = vrot.slane %v1523, 7
    %v1548 = vrot.slane %v1525, 1
    %v1549 = vrot.slane %v1525, 2
    %v1550 = vrot.slane %v1525, 3
    %v1551 = vrot.slane %v1525, 4
    %v1552 = vrot.slane %v1525, 5
    %v1553 = vrot.slane %v1525, 6
    %v1554 = vrot.slane %v1525, 7
    %v1555 = vrot.slane %v1526, 1
    %v1556 = vrot.slane %v1526, 2
    %v1557 = vrot.slane %v1526, 3
    %v1558 = vrot.slane %v1526, 4
    %v1559 = vrot.slane %v1526, 5
    %v1560 = vrot.slane %v1526, 6
    %v1561 = vrot.slane %v1526, 7
    %1562 = vst [vmem:[#allocation1] ss:$9 sm:$0xff] %v1522
    %s1563 = scalar_lea.vmem [#allocation1], 1
    %1564 = vst [vmem:[%s1563] ss:$9 sm:$0xff] %v1534
    %s1565 = scalar_lea.vmem [#allocation1], 2
    %1566 = vst [vmem:[%s1565] ss:$9 sm:$0xff] %v1535
    %s1567 = scalar_lea.vmem [#allocation1], 3
    %1568 = vst [vmem:[%s1567] ss:$9 sm:$0xff] %v1536
    %s1569 = scalar_lea.vmem [#allocation1], 4
    %1570 = vst [vmem:[%s1569] ss:$9 sm:$0xff] %v1537
    %s1571 = scalar_lea.vmem [#allocation1], 5
    %1572 = vst [vmem:[%s1571] ss:$9 sm:$0xff] %v1538
    %s1573 = scalar_lea.vmem [#allocation1], 6
    %1574 = vst [vmem:[%s1573] ss:$9 sm:$0xff] %v1539
    %s1575 = scalar_lea.vmem [#allocation1], 7
    %1576 = vst [vmem:[%s1575] ss:$9 sm:$0xff] %v1540
    %v1577 = vld [vmem:[#allocation1] sm:$0xff]
    %1578 = vst [vmem:[#allocation1] ss:$9 sm:$0xff] %v1523
    %1579 = vst [vmem:[%s1563] ss:$9 sm:$0xff] %v1541
    %1580 = vst [vmem:[%s1565] ss:$9 sm:$0xff] %v1542
    %1581 = vst [vmem:[%s1567] ss:$9 sm:$0xff] %v1543
    %1582 = vst [vmem:[%s1569] ss:$9 sm:$0xff] %v1544
    %1583 = vst [vmem:[%s1571] ss:$9 sm:$0xff] %v1545
    %1584 = vst [vmem:[%s1573] ss:$9 sm:$0xff] %v1546
    %1585 = vst [vmem:[%s1575] ss:$9 sm:$0xff] %v1547
    %v1586 = vld [vmem:[#allocation1] sm:$0xff]
    %1587 = vst [vmem:[#allocation1] ss:$9 sm:$0xff] %v1524
    %1588 = vst [vmem:[%s1563] ss:$9 sm:$0xff] %v1525
    %1589 = vst [vmem:[%s1565] ss:$9 sm:$0xff] %v1548
    %1590 = vst [vmem:[%s1567] ss:$9 sm:$0xff] %v1549
    %1591 = vst [vmem:[%s1569] ss:$9 sm:$0xff] %v1550
    %1592 = vst [vmem:[%s1571] ss:$9 sm:$0xff] %v1551
    %1593 = vst [vmem:[%s1573] ss:$9 sm:$0xff] %v1552
    %1594 = vst [vmem:[%s1575] ss:$9 sm:$0xff] %v1553
    %v1595 = vld [vmem:[#allocation1] sm:$0xff]
    %1596 = vst [vmem:[#allocation1] ss:$9 sm:$0xff] %v1554
    %1597 = vst [vmem:[%s1563] ss:$9 sm:$0xff] %v1526
    %1598 = vst [vmem:[%s1565] ss:$9 sm:$0xff] %v1555
    %1599 = vst [vmem:[%s1567] ss:$9 sm:$0xff] %v1556
    %1600 = vst [vmem:[%s1569] ss:$9 sm:$0xff] %v1557
    %1601 = vst [vmem:[%s1571] ss:$9 sm:$0xff] %v1558
    %1602 = vst [vmem:[%s1573] ss:$9 sm:$0xff] %v1559
    %1603 = vst [vmem:[%s1575] ss:$9 sm:$0xff] %v1560
    %v1604 = vld [vmem:[#allocation1] sm:$0xff]
    %1605 = vst [vmem:[#allocation1] ss:$9 sm:$0xff] %v1561
    %1606 = vst [vmem:[%s1563] ss:$9 sm:$0xff] %v1527
    %v1607 = vld [vmem:[#allocation1] sm:$0xff]
    %v1613 = vpack.c.bf16 %v1586, %v1577
    %v1614 = vpack.c.bf16 %v1604, %v1595
    %v1615 = vpack.c.bf16 %v1607, %v1607
    %1616 = vst [vmem:[#allocation1] ss:$9 sm:$0xff] %v1027
    %s1617 = scalar_lea.vmem [#allocation1], 1
    %1618 = vst [vmem:[%s1617] ss:$9 sm:$0xff] %v1045
    %s1619 = scalar_lea.vmem [#allocation1], 2
    %1620 = vst [vmem:[%s1619] ss:$9 sm:$0xff] %v1046
    %s1621 = scalar_lea.vmem [#allocation1], 3
    %1622 = vst [vmem:[%s1621] ss:$9 sm:$0xff] %v1047
    %s1623 = scalar_lea.vmem [#allocation1], 4
    %1624 = vst [vmem:[%s1623] ss:$9 sm:$0xff] %v1048
    %s1625 = scalar_lea.vmem [#allocation1], 5
    %1626 = vst [vmem:[%s1625] ss:$9 sm:$0xff] %v1049
    %s1627 = scalar_lea.vmem [#allocation1], 6
    %1628 = vst [vmem:[%s1627] ss:$9 sm:$0xff] %v1050
    %s1629 = scalar_lea.vmem [#allocation1], 7
    %1630 = vst [vmem:[%s1629] ss:$9 sm:$0xff] %v1051
    %v1631 = vld [vmem:[#allocation1] sm:$0xff]
    %1632 = vst [vmem:[#allocation1] ss:$9 sm:$0xff] %v1029
    %1633 = vst [vmem:[%s1617] ss:$9 sm:$0xff] %v1052
    %1634 = vst [vmem:[%s1619] ss:$9 sm:$0xff] %v1053
    %1635 = vst [vmem:[%s1621] ss:$9 sm:$0xff] %v1054
    %1636 = vst [vmem:[%s1623] ss:$9 sm:$0xff] %v1055
    %1637 = vst [vmem:[%s1625] ss:$9 sm:$0xff] %v1056
    %1638 = vst [vmem:[%s1627] ss:$9 sm:$0xff] %v1057
    %1639 = vst [vmem:[%s1629] ss:$9 sm:$0xff] %v1058
    %v1640 = vld [vmem:[#allocation1] sm:$0xff]
    %1641 = vst [vmem:[#allocation1] ss:$9 sm:$0xff] %v1032
    %v1642 = vld [vmem:[#allocation1] sm:$0xff]
    %1643 = vst [vmem:[#allocation1] ss:$9 sm:$0xff] %v1059
    %1644 = vst [vmem:[%s1617] ss:$9 sm:$0xff] %v1060
    %1645 = vst [vmem:[%s1619] ss:$9 sm:$0xff] %v1061
    %1646 = vst [vmem:[%s1621] ss:$9 sm:$0xff] %v1062
    %1647 = vst [vmem:[%s1623] ss:$9 sm:$0xff] %v1063
    %1648 = vst [vmem:[%s1625] ss:$9 sm:$0xff] %v1064
    %1649 = vst [vmem:[%s1627] ss:$9 sm:$0xff] %v1065
    %1650 = vst [vmem:[%s1629] ss:$9 sm:$0xff] %v1034
    %v1651 = vld [vmem:[#allocation1] sm:$0xff]
    %1652 = vst [vmem:[#allocation1] ss:$9 sm:$0xff] %v1066
    %1653 = vst [vmem:[%s1617] ss:$9 sm:$0xff] %v1067
    %1654 = vst [vmem:[%s1619] ss:$9 sm:$0xff] %v1068
    %1655 = vst [vmem:[%s1621] ss:$9 sm:$0xff] %v1069
    %1656 = vst [vmem:[%s1623] ss:$9 sm:$0xff] %v1070
    %1657 = vst [vmem:[%s1625] ss:$9 sm:$0xff] %v1071
    %1658 = vst [vmem:[%s1627] ss:$9 sm:$0xff] %v1072
    %1659 = vst [vmem:[%s1629] ss:$9 sm:$0xff] %v1037
    %v1660 = vld [vmem:[#allocation1] sm:$0xff]
    %1661 = vst [vmem:[#allocation1] ss:$9 sm:$0xff] %v1073
    %v1662 = vld [vmem:[#allocation1] sm:$0xff]
    %v1669 = vpack.c.bf16 %v1631, %v1631
    %v1670 = vpack.c.bf16 %v1640, %v1640
    %v1671 = vpack.c.bf16 %v1642, %v1642
    %v1672 = vpack.c.bf16 %v1651, %v1651
    %v1673 = vpack.c.bf16 %v1660, %v1660
    %v1674 = vpack.c.bf16 %v1662, %v1662
    %1675 = vst [vmem:[#allocation1] ss:$9 sm:$0xff] %v1027
    %s1676 = scalar_lea.vmem [#allocation1], 1
    %1677 = vst [vmem:[%s1676] ss:$9 sm:$0xff] %v1045
    %s1678 = scalar_lea.vmem [#allocation1], 2
    %1679 = vst [vmem:[%s1678] ss:$9 sm:$0xff] %v1046
    %s1680 = scalar_lea.vmem [#allocation1], 3
    %1681 = vst [vmem:[%s1680] ss:$9 sm:$0xff] %v1047
    %s1682 = scalar_lea.vmem [#allocation1], 4
    %1683 = vst [vmem:[%s1682] ss:$9 sm:$0xff] %v1048
    %s1684 = scalar_lea.vmem [#allocation1], 5
    %1685 = vst [vmem:[%s1684] ss:$9 sm:$0xff] %v1049
    %s1686 = scalar_lea.vmem [#allocation1], 6
    %1687 = vst [vmem:[%s1686] ss:$9 sm:$0xff] %v1050
    %s1688 = scalar_lea.vmem [#allocation1], 7
    %1689 = vst [vmem:[%s1688] ss:$9 sm:$0xff] %v1051
    %v1690 = vld [vmem:[#allocation1] sm:$0xff]
    %1691 = vst [vmem:[#allocation1] ss:$9 sm:$0xff] %v1029
    %1692 = vst [vmem:[%s1676] ss:$9 sm:$0xff] %v1052
    %1693 = vst [vmem:[%s1678] ss:$9 sm:$0xff] %v1053
    %1694 = vst [vmem:[%s1680] ss:$9 sm:$0xff] %v1054
    %1695 = vst [vmem:[%s1682] ss:$9 sm:$0xff] %v1055
    %1696 = vst [vmem:[%s1684] ss:$9 sm:$0xff] %v1056
    %1697 = vst [vmem:[%s1686] ss:$9 sm:$0xff] %v1057
    %1698 = vst [vmem:[%s1688] ss:$9 sm:$0xff] %v1058
    %v1699 = vld [vmem:[#allocation1] sm:$0xff]
    %1700 = vst [vmem:[#allocation1] ss:$9 sm:$0xff] %v1032
    %v1701 = vld [vmem:[#allocation1] sm:$0xff]
    %1702 = vst [vmem:[#allocation1] ss:$9 sm:$0xff] %v1059
    %1703 = vst [vmem:[%s1676] ss:$9 sm:$0xff] %v1060
    %1704 = vst [vmem:[%s1678] ss:$9 sm:$0xff] %v1061
    %1705 = vst [vmem:[%s1680] ss:$9 sm:$0xff] %v1062
    %1706 = vst [vmem:[%s1682] ss:$9 sm:$0xff] %v1063
    %1707 = vst [vmem:[%s1684] ss:$9 sm:$0xff] %v1064
    %1708 = vst [vmem:[%s1686] ss:$9 sm:$0xff] %v1065
    %1709 = vst [vmem:[%s1688] ss:$9 sm:$0xff] %v1034
    %v1710 = vld [vmem:[#allocation1] sm:$0xff]
    %1711 = vst [vmem:[#allocation1] ss:$9 sm:$0xff] %v1066
    %1712 = vst [vmem:[%s1676] ss:$9 sm:$0xff] %v1067
    %1713 = vst [vmem:[%s1678] ss:$9 sm:$0xff] %v1068
    %1714 = vst [vmem:[%s1680] ss:$9 sm:$0xff] %v1069
    %1715 = vst [vmem:[%s1682] ss:$9 sm:$0xff] %v1070
    %1716 = vst [vmem:[%s1684] ss:$9 sm:$0xff] %v1071
    %1717 = vst [vmem:[%s1686] ss:$9 sm:$0xff] %v1072
    %1718 = vst [vmem:[%s1688] ss:$9 sm:$0xff] %v1037
    %v1719 = vld [vmem:[#allocation1] sm:$0xff]
    %1720 = vst [vmem:[#allocation1] ss:$9 sm:$0xff] %v1073
    %v1721 = vld [vmem:[#allocation1] sm:$0xff]
    %v1728 = vpack.c.bf16 %v1690, %v1690
    %v1729 = vpack.c.bf16 %v1699, %v1699
    %v1730 = vpack.c.bf16 %v1701, %v1701
    %v1731 = vpack.c.bf16 %v1710, %v1710
    %v1732 = vpack.c.bf16 %v1719, %v1719
    %v1733 = vpack.c.bf16 %v1721, %v1721
    %v1737 = vunpack.c.l.b16 %v1669
    %v1738 = vunpack.c.l.b16 %v1670
    %v1739 = vunpack.c.l.b16 %v1671
    %v1740 = vpack.c.b16 %v1738, %v1737
    %v1741 = vpack.c.b16 %v1739, %v1739
    %1742 = vrot.lane.b32.xlu0 %v1740, 112
    %v1743 = vpop.permute.xlu0 %1742
    %1744 = vrot.lane.b32.xlu0 %v1741, 112
    %v1745 = vpop.permute.xlu0 %1744
    %v1749 = vunpack.c.l.b16 %v1728
    %v1750 = vunpack.c.l.b16 %v1729
    %v1751 = vunpack.c.l.b16 %v1730
    %v1752 = vpack.c.b16 %v1750, %v1749
    %v1753 = vpack.c.b16 %v1751, %v1751
    %1754 = vrot.lane.b32.xlu0 %v1752, 80
    %v1755 = vpop.permute.xlu0 %1754
    %1756 = vrot.lane.b32.xlu0 %v1753, 80
    %v1757 = vpop.permute.xlu0 %1756
    %v1759 = vsel %vm1216, %v1743, 0
    %v1762 = vsel %vm1216, %v1745, 0
    %v1765 = vsel %vm1216, %v1755, 0
    %v1768 = vsel %vm1216, %v1757, 0
    %1770 = vmatpush.bf16.xpose.msra.mxu0 0
    %1771 = vmatpush.bf16.xpose.msra.mxu0 0
    %1772 = vmatpush.bf16.xpose.msra.mxu0 0
    %1773 = vmatpush.bf16.xpose.msra.mxu0 0
    %1774 = vmatpush.bf16.xpose.msra.mxu0 0
    %1775 = vmatpush.bf16.xpose.msra.mxu0 0
    %1776 = vmatpush.bf16.xpose.msra.mxu0 %v1768
    %1777 = vmatpush.bf16.xpose.msra.mxu0 %v1765
    %1778 = vmatmul.bf16.gmra.mxu0 %v1759
    %v1779 = vpop.f32.mrf.mxu0
    %v1780 = vadd.f32 0.0, %v1779
    %v1781 = vpop.f32.mrf.mxu0
    %v1782 = vadd.f32 0.0, %v1781
    %1783 = vmatmul.bf16.gmra.mxu0 %v1762
    %v1784 = vpop.f32.mrf.mxu0
    %v1785 = vadd.f32 0.0, %v1784
    %v1786 = vpop.f32.mrf.mxu0
    %1787 = vdwg.mxu0
    %v1791 = vunpack.c.l.b16 %v1672
    %v1792 = vunpack.c.l.b16 %v1673
    %v1793 = vunpack.c.l.b16 %v1674
    %v1794 = vpack.c.b16 %v1792, %v1791
    %v1795 = vpack.c.b16 %v1793, %v1793
    %1796 = vrot.lane.b32.xlu0 %v1794, 112
    %v1797 = vpop.permute.xlu0 %1796
    %1798 = vrot.lane.b32.xlu0 %v1795, 112
    %v1799 = vpop.permute.xlu0 %1798
    %v1803 = vunpack.c.l.b16 %v1731
    %v1804 = vunpack.c.l.b16 %v1732
    %v1805 = vunpack.c.l.b16 %v1733
    %v1806 = vpack.c.b16 %v1804, %v1803
    %v1807 = vpack.c.b16 %v1805, %v1805
    %1808 = vrot.lane.b32.xlu0 %v1806, 80
    %v1809 = vpop.permute.xlu0 %1808
    %1810 = vrot.lane.b32.xlu0 %v1807, 80
    %v1811 = vpop.permute.xlu0 %1810
    %v1813 = vsel %vm1216, %v1797, 0
    %v1816 = vsel %vm1216, %v1799, 0
    %v1819 = vsel %vm1216, %v1809, 0
    %v1822 = vsel %vm1216, %v1811, 0
    %1824 = vmatpush.bf16.xpose.msra.mxu0 0
    %1825 = vmatpush.bf16.xpose.msra.mxu0 0
    %1826 = vmatpush.bf16.xpose.msra.mxu0 0
    %1827 = vmatpush.bf16.xpose.msra.mxu0 0
    %1828 = vmatpush.bf16.xpose.msra.mxu0 0
    %1829 = vmatpush.bf16.xpose.msra.mxu0 0
    %1830 = vmatpush.bf16.xpose.msra.mxu0 %v1822
    %1831 = vmatpush.bf16.xpose.msra.mxu0 %v1819
    %1832 = vmatmul.bf16.gmra.mxu0 %v1813
    %v1833 = vpop.f32.mrf.mxu0
    %v1834 = vadd.f32 0.0, %v1833
    %v1835 = vpop.f32.mrf.mxu0
    %v1836 = vadd.f32 0.0, %v1835
    %1837 = vmatmul.bf16.gmra.mxu0 %v1816
    %v1838 = vpop.f32.mrf.mxu0
    %v1839 = vadd.f32 0.0, %v1838
    %v1840 = vpop.f32.mrf.mxu0
    %1841 = vdwg.mxu0
    %v1842 = vsel %vm1297, %v1780, -inf
    %1843 = vmax.xlane.f32.xlu0 %v1842
    %v1844 = vpop.xlane.xlu0 %1843
    %v1845 = vsel %vm1297, %v1782, -inf
    %1846 = vmax.xlane.f32.xlu0 %v1845
    %v1847 = vpop.xlane.xlu0 %1846
    %v1848 = vsel %vm1304, %v1785, -inf
    %1849 = vmax.xlane.f32.xlu0 %v1848
    %v1850 = vpop.xlane.xlu0 %1849
    %v1851 = vsel %vm1297, %v1834, -inf
    %1852 = vmax.xlane.f32.xlu0 %v1851
    %v1853 = vpop.xlane.xlu0 %1852
    %v1854 = vsel %vm1297, %v1836, -inf
    %1855 = vmax.xlane.f32.xlu0 %v1854
    %v1856 = vpop.xlane.xlu0 %1855
    %v1857 = vsel %vm1304, %v1839, -inf
    %1858 = vmax.xlane.f32.xlu0 %v1857
    %v1859 = vpop.xlane.xlu0 %1858
    %v1860 = vsub.f32 %v1780, %v1844
    %v1861 = vsub.f32 %v1782, %v1847
    %v1862 = vsub.f32 %v1785, %v1850
    %v1863 = vsub.f32 %v1834, %v1853
    %v1864 = vsub.f32 %v1836, %v1856
    %v1865 = vsub.f32 %v1839, %v1859
    %v1866 = vmul.f32 %v1860, 1.442695
    %v1867 = vpow.pop %v1866
    %v1868 = vmul.f32 %v1861, 1.442695
    %v1869 = vpow.pop %v1868
    %v1870 = vmul.f32 %v1862, 1.442695
    %v1871 = vpow.pop %v1870
    %v1872 = vmul.f32 %v1863, 1.442695
    %v1873 = vpow.pop %v1872
    %v1874 = vmul.f32 %v1864, 1.442695
    %v1875 = vpow.pop %v1874
    %v1876 = vmul.f32 %v1865, 1.442695
    %v1877 = vpow.pop %v1876
    %v1878 = vsel %vm1297, %v1867, 0.0
    %1879 = vadd.xlane.f32.xlu0 %v1878
    %v1880 = vpop.xlane.xlu0 %1879
    %v1881 = vsel %vm1297, %v1869, 0.0
    %1882 = vadd.xlane.f32.xlu0 %v1881
    %v1883 = vpop.xlane.xlu0 %1882
    %v1884 = vsel %vm1304, %v1871, 0.0
    %1885 = vadd.xlane.f32.xlu0 %v1884
    %v1886 = vpop.xlane.xlu0 %1885
    %v1887 = vsel %vm1297, %v1873, 0.0
    %1888 = vadd.xlane.f32.xlu0 %v1887
    %v1889 = vpop.xlane.xlu0 %1888
    %v1890 = vsel %vm1297, %v1875, 0.0
    %1891 = vadd.xlane.f32.xlu0 %v1890
    %v1892 = vpop.xlane.xlu0 %1891
    %v1893 = vsel %vm1304, %v1877, 0.0
    %1894 = vadd.xlane.f32.xlu0 %v1893
    %v1895 = vpop.xlane.xlu0 %1894
    %v1896 = vpack.c.bf16 %v1867, %v1867
    %v1897 = vpack.c.bf16 %v1869, %v1869
    %v1898 = vpack.c.bf16 %v1871, %v1871
    %v1899 = vpack.c.bf16 %v1873, %v1873
    %v1900 = vpack.c.bf16 %v1875, %v1875
    %v1901 = vpack.c.bf16 %v1877, %v1877
    %1902 = vst [vmem:[#allocation1] ss:$9 sm:$0xff] %v1027
    %s1903 = scalar_lea.vmem [#allocation1], 1
    %1904 = vst [vmem:[%s1903] ss:$9 sm:$0xff] %v1045
    %s1905 = scalar_lea.vmem [#allocation1], 2
    %1906 = vst [vmem:[%s1905] ss:$9 sm:$0xff] %v1046
    %s1907 = scalar_lea.vmem [#allocation1], 3
    %1908 = vst [vmem:[%s1907] ss:$9 sm:$0xff] %v1047
    %s1909 = scalar_lea.vmem [#allocation1], 4
    %1910 = vst [vmem:[%s1909] ss:$9 sm:$0xff] %v1048
    %s1911 = scalar_lea.vmem [#allocation1], 5
    %1912 = vst [vmem:[%s1911] ss:$9 sm:$0xff] %v1049
    %s1913 = scalar_lea.vmem [#allocation1], 6
    %1914 = vst [vmem:[%s1913] ss:$9 sm:$0xff] %v1050
    %s1915 = scalar_lea.vmem [#allocation1], 7
    %1916 = vst [vmem:[%s1915] ss:$9 sm:$0xff] %v1051
    %v1917 = vld [vmem:[#allocation1] sm:$0xff]
    %1918 = vst [vmem:[#allocation1] ss:$9 sm:$0xff] %v1029
    %1919 = vst [vmem:[%s1903] ss:$9 sm:$0xff] %v1052
    %1920 = vst [vmem:[%s1905] ss:$9 sm:$0xff] %v1053
    %1921 = vst [vmem:[%s1907] ss:$9 sm:$0xff] %v1054
    %1922 = vst [vmem:[%s1909] ss:$9 sm:$0xff] %v1055
    %1923 = vst [vmem:[%s1911] ss:$9 sm:$0xff] %v1056
    %1924 = vst [vmem:[%s1913] ss:$9 sm:$0xff] %v1057
    %1925 = vst [vmem:[%s1915] ss:$9 sm:$0xff] %v1058
    %v1926 = vld [vmem:[#allocation1] sm:$0xff]
    %1927 = vst [vmem:[#allocation1] ss:$9 sm:$0xff] %v1032
    %v1928 = vld [vmem:[#allocation1] sm:$0xff]
    %1929 = vst [vmem:[#allocation1] ss:$9 sm:$0xff] %v1059
    %1930 = vst [vmem:[%s1903] ss:$9 sm:$0xff] %v1060
    %1931 = vst [vmem:[%s1905] ss:$9 sm:$0xff] %v1061
    %1932 = vst [vmem:[%s1907] ss:$9 sm:$0xff] %v1062
    %1933 = vst [vmem:[%s1909] ss:$9 sm:$0xff] %v1063
    %1934 = vst [vmem:[%s1911] ss:$9 sm:$0xff] %v1064
    %1935 = vst [vmem:[%s1913] ss:$9 sm:$0xff] %v1065
    %1936 = vst [vmem:[%s1915] ss:$9 sm:$0xff] %v1034
    %v1937 = vld [vmem:[#allocation1] sm:$0xff]
    %1938 = vst [vmem:[#allocation1] ss:$9 sm:$0xff] %v1066
    %1939 = vst [vmem:[%s1903] ss:$9 sm:$0xff] %v1067
    %1940 = vst [vmem:[%s1905] ss:$9 sm:$0xff] %v1068
    %1941 = vst [vmem:[%s1907] ss:$9 sm:$0xff] %v1069
    %1942 = vst [vmem:[%s1909] ss:$9 sm:$0xff] %v1070
    %1943 = vst [vmem:[%s1911] ss:$9 sm:$0xff] %v1071
    %1944 = vst [vmem:[%s1913] ss:$9 sm:$0xff] %v1072
    %1945 = vst [vmem:[%s1915] ss:$9 sm:$0xff] %v1037
    %v1946 = vld [vmem:[#allocation1] sm:$0xff]
    %1947 = vst [vmem:[#allocation1] ss:$9 sm:$0xff] %v1073
    %v1948 = vld [vmem:[#allocation1] sm:$0xff]
    %v1955 = vpack.c.bf16 %v1917, %v1917
    %v1956 = vpack.c.bf16 %v1926, %v1926
    %v1957 = vpack.c.bf16 %v1928, %v1928
    %v1958 = vpack.c.bf16 %v1937, %v1937
    %v1959 = vpack.c.bf16 %v1946, %v1946
    %v1960 = vpack.c.bf16 %v1948, %v1948
    %v1964 = vunpack.c.l.b16 %v1896
    %v1965 = vunpack.c.l.b16 %v1897
    %v1966 = vunpack.c.l.b16 %v1898
    %v1967 = vpack.c.b16 %v1965, %v1964
    %v1968 = vpack.c.b16 %v1966, %v1966
    %v1972 = vunpack.c.l.b16 %v1955
    %v1973 = vunpack.c.l.b16 %v1956
    %v1974 = vunpack.c.l.b16 %v1957
    %v1975 = vpack.c.b16 %v1973, %v1972
    %v1976 = vpack.c.b16 %v1974, %v1974
    %1977 = vrot.lane.b32.xlu0 %v1975, 48
    %v1978 = vpop.permute.xlu0 %1977
    %1979 = vrot.lane.b32.xlu0 %v1976, 48
    %v1980 = vpop.permute.xlu0 %1979
    %v1983 = vsel %vm1297, %v1967, 0
    %v1986 = vsel %vm1297, %v1968, 0
    %v1989 = vand.u32 %v1980, %v1446
    %1991 = vmatpush.bf16.msra.mxu0 0
    %1992 = vmatpush.bf16.msra.mxu0 0
    %1993 = vmatpush.bf16.msra.mxu0 0
    %1994 = vmatpush.bf16.msra.mxu0 0
    %1995 = vmatpush.bf16.msra.mxu0 0
    %1996 = vmatpush.bf16.msra.mxu0 0
    %1997 = vmatpush.bf16.msra.mxu0 %v1989
    %1998 = vmatpush.bf16.msra.mxu0 %v1978
    %1999 = vmatmul.bf16.gmra.mxu0 %v1983
    %v2000 = vpop.f32.mrf.mxu0
    %v2001 = vadd.f32 0.0, %v2000
    %v2002 = vpop.f32.mrf.mxu0
    %v2003 = vadd.f32 0.0, %v2002
    %2004 = vmatmul.bf16.gmra.mxu0 %v1986
    %v2005 = vpop.f32.mrf.mxu0
    %v2006 = vadd.f32 0.0, %v2005
    %v2007 = vpop.f32.mrf.mxu0
    %2008 = vdwg.mxu0
    %v2012 = vunpack.c.l.b16 %v1899
    %v2013 = vunpack.c.l.b16 %v1900
    %v2014 = vunpack.c.l.b16 %v1901
    %v2015 = vpack.c.b16 %v2013, %v2012
    %v2016 = vpack.c.b16 %v2014, %v2014
    %v2020 = vunpack.c.l.b16 %v1958
    %v2021 = vunpack.c.l.b16 %v1959
    %v2022 = vunpack.c.l.b16 %v1960
    %v2023 = vpack.c.b16 %v2021, %v2020
    %v2024 = vpack.c.b16 %v2022, %v2022
    %2025 = vrot.lane.b32.xlu0 %v2023, 48
    %v2026 = vpop.permute.xlu0 %2025
    %2027 = vrot.lane.b32.xlu0 %v2024, 48
    %v2028 = vpop.permute.xlu0 %2027
    %v2031 = vsel %vm1297, %v2015, 0
    %v2034 = vsel %vm1297, %v2016, 0
    %v2037 = vand.u32 %v2028, %v1446
    %2039 = vmatpush.bf16.msra.mxu0 0
    %2040 = vmatpush.bf16.msra.mxu0 0
    %2041 = vmatpush.bf16.msra.mxu0 0
    %2042 = vmatpush.bf16.msra.mxu0 0
    %2043 = vmatpush.bf16.msra.mxu0 0
    %2044 = vmatpush.bf16.msra.mxu0 0
    %2045 = vmatpush.bf16.msra.mxu0 %v2037
    %2046 = vmatpush.bf16.msra.mxu0 %v2026
    %2047 = vmatmul.bf16.gmra.mxu0 %v2031
    %v2048 = vpop.f32.mrf.mxu0
    %v2049 = vadd.f32 0.0, %v2048
    %v2050 = vpop.f32.mrf.mxu0
    %v2051 = vadd.f32 0.0, %v2050
    %2052 = vmatmul.bf16.gmra.mxu0 %v2034
    %v2053 = vpop.f32.mrf.mxu0
    %v2054 = vadd.f32 0.0, %v2053
    %v2055 = vpop.f32.mrf.mxu0
    %2056 = vdwg.mxu0
    %v2057 = vrcp.pop %v1880
    %v2058 = vrcp.pop %v1883
    %v2059 = vrcp.pop %v1886
    %v2060 = vrcp.pop %v1889
    %v2061 = vrcp.pop %v1892
    %v2062 = vrcp.pop %v1895
    %v2063 = vmul.f32 %v2001, %v2057
    %v2064 = vmul.f32 %v2003, %v2058
    %v2065 = vmul.f32 %v2006, %v2059
    %v2066 = vmul.f32 %v2049, %v2060
    %v2067 = vmul.f32 %v2051, %v2061
    %v2068 = vmul.f32 %v2054, %v2062
    %v2075 = vrot.slane %v2063, 1
    %v2076 = vrot.slane %v2063, 2
    %v2077 = vrot.slane %v2063, 3
    %v2078 = vrot.slane %v2063, 4
    %v2079 = vrot.slane %v2063, 5
    %v2080 = vrot.slane %v2063, 6
    %v2081 = vrot.slane %v2063, 7
    %v2082 = vrot.slane %v2064, 1
    %v2083 = vrot.slane %v2064, 2
    %v2084 = vrot.slane %v2064, 3
    %v2085 = vrot.slane %v2064, 4
    %v2086 = vrot.slane %v2064, 5
    %v2087 = vrot.slane %v2064, 6
    %v2088 = vrot.slane %v2064, 7
    %v2089 = vrot.slane %v2066, 1
    %v2090 = vrot.slane %v2066, 2
    %v2091 = vrot.slane %v2066, 3
    %v2092 = vrot.slane %v2066, 4
    %v2093 = vrot.slane %v2066, 5
    %v2094 = vrot.slane %v2066, 6
    %v2095 = vrot.slane %v2066, 7
    %v2096 = vrot.slane %v2067, 1
    %v2097 = vrot.slane %v2067, 2
    %v2098 = vrot.slane %v2067, 3
    %v2099 = vrot.slane %v2067, 4
    %v2100 = vrot.slane %v2067, 5
    %v2101 = vrot.slane %v2067, 6
    %v2102 = vrot.slane %v2067, 7
    %2103 = vst [vmem:[#allocation1] ss:$9 sm:$0xff] %v2063
    %s2104 = scalar_lea.vmem [#allocation1], 1
    %2105 = vst [vmem:[%s2104] ss:$9 sm:$0xff] %v2075
    %s2106 = scalar_lea.vmem [#allocation1], 2
    %2107 = vst [vmem:[%s2106] ss:$9 sm:$0xff] %v2076
    %s2108 = scalar_lea.vmem [#allocation1], 3
    %2109 = vst [vmem:[%s2108] ss:$9 sm:$0xff] %v2077
    %s2110 = scalar_lea.vmem [#allocation1], 4
    %2111 = vst [vmem:[%s2110] ss:$9 sm:$0xff] %v2078
    %s2112 = scalar_lea.vmem [#allocation1], 5
    %2113 = vst [vmem:[%s2112] ss:$9 sm:$0xff] %v2079
    %s2114 = scalar_lea.vmem [#allocation1], 6
    %2115 = vst [vmem:[%s2114] ss:$9 sm:$0xff] %v2080
    %s2116 = scalar_lea.vmem [#allocation1], 7
    %2117 = vst [vmem:[%s2116] ss:$9 sm:$0xff] %v2081
    %v2118 = vld [vmem:[#allocation1] sm:$0xff]
    %2119 = vst [vmem:[#allocation1] ss:$9 sm:$0xff] %v2064
    %2120 = vst [vmem:[%s2104] ss:$9 sm:$0xff] %v2082
    %2121 = vst [vmem:[%s2106] ss:$9 sm:$0xff] %v2083
    %2122 = vst [vmem:[%s2108] ss:$9 sm:$0xff] %v2084
    %2123 = vst [vmem:[%s2110] ss:$9 sm:$0xff] %v2085
    %2124 = vst [vmem:[%s2112] ss:$9 sm:$0xff] %v2086
    %2125 = vst [vmem:[%s2114] ss:$9 sm:$0xff] %v2087
    %2126 = vst [vmem:[%s2116] ss:$9 sm:$0xff] %v2088
    %v2127 = vld [vmem:[#allocation1] sm:$0xff]
    %2128 = vst [vmem:[#allocation1] ss:$9 sm:$0xff] %v2065
    %2129 = vst [vmem:[%s2104] ss:$9 sm:$0xff] %v2066
    %2130 = vst [vmem:[%s2106] ss:$9 sm:$0xff] %v2089
    %2131 = vst [vmem:[%s2108] ss:$9 sm:$0xff] %v2090
    %2132 = vst [vmem:[%s2110] ss:$9 sm:$0xff] %v2091
    %2133 = vst [vmem:[%s2112] ss:$9 sm:$0xff] %v2092
    %2134 = vst [vmem:[%s2114] ss:$9 sm:$0xff] %v2093
    %2135 = vst [vmem:[%s2116] ss:$9 sm:$0xff] %v2094
    %v2136 = vld [vmem:[#allocation1] sm:$0xff]
    %2137 = vst [vmem:[#allocation1] ss:$9 sm:$0xff] %v2095
    %2138 = vst [vmem:[%s2104] ss:$9 sm:$0xff] %v2067
    %2139 = vst [vmem:[%s2106] ss:$9 sm:$0xff] %v2096
    %2140 = vst [vmem:[%s2108] ss:$9 sm:$0xff] %v2097
    %2141 = vst [vmem:[%s2110] ss:$9 sm:$0xff] %v2098
    %2142 = vst [vmem:[%s2112] ss:$9 sm:$0xff] %v2099
    %2143 = vst [vmem:[%s2114] ss:$9 sm:$0xff] %v2100
    %2144 = vst [vmem:[%s2116] ss:$9 sm:$0xff] %v2101
    %v2145 = vld [vmem:[#allocation1] sm:$0xff]
    %2146 = vst [vmem:[#allocation1] ss:$9 sm:$0xff] %v2102
    %2147 = vst [vmem:[%s2104] ss:$9 sm:$0xff] %v2068
    %v2148 = vld [vmem:[#allocation1] sm:$0xff]
    %v2154 = vpack.c.bf16 %v2127, %v2118
    %v2155 = vpack.c.bf16 %v2145, %v2136
    %v2156 = vpack.c.bf16 %v2148, %v2148
    %v2159 = vunpack.c.l.b16 %v1076
    %v2160 = vunpack.c.l.b16 %v1077
    %v2161 = vpack.c.b16 %v2160, %v2159
    %v2164 = vsel %vm1216, %v2154, 0
    %v2167 = vsel %vm1216, %v2155, 0
    %v2170 = vsel %vm1216, %v2156, 0
    %2172 = vmatpush.bf16.msra.mxu0 0
    %2173 = vmatpush.bf16.msra.mxu0 0
    %2174 = vmatpush.bf16.msra.mxu0 0
    %2175 = vmatpush.bf16.msra.mxu0 0
    %2176 = vmatpush.bf16.msra.mxu0 0
    %2177 = vmatpush.bf16.msra.mxu0 0
    %2178 = vmatpush.bf16.msra.mxu0 0
    %2179 = vmatpush.bf16.msra.mxu0 %v2161
    %2180 = vmatmul.bf16.gmra.mxu0 %v2164
    %v2181 = vpop.f32.mrf.mxu0
    %v2182 = vadd.f32 0.0, %v2181
    %v2183 = vpop.f32.mrf.mxu0
    %v2184 = vadd.f32 0.0, %v2183
    %2185 = vmatmul.bf16.gmra.mxu0 %v2167
    %v2186 = vpop.f32.mrf.mxu0
    %v2187 = vadd.f32 0.0, %v2186
    %v2188 = vpop.f32.mrf.mxu0
    %v2189 = vadd.f32 0.0, %v2188
    %2190 = vmatmul.bf16.gmra.mxu0 %v2170
    %v2191 = vpop.f32.mrf.mxu0
    %v2192 = vadd.f32 0.0, %v2191
    %v2193 = vpop.f32.mrf.mxu0
    %2194 = vdwg.mxu0
    %v2197 = vunpack.c.l.b16 %v1074
    %v2198 = vunpack.c.l.b16 %v1075
    %v2199 = vpack.c.b16 %v2198, %v2197
    %v2202 = vsel %vm1216, %v1613, 0
    %v2205 = vsel %vm1216, %v1614, 0
    %v2208 = vsel %vm1216, %v1615, 0
    %2210 = vmatpush.bf16.msra.mxu0 0
    %2211 = vmatpush.bf16.msra.mxu0 0
    %2212 = vmatpush.bf16.msra.mxu0 0
    %2213 = vmatpush.bf16.msra.mxu0 0
    %2214 = vmatpush.bf16.msra.mxu0 0
    %2215 = vmatpush.bf16.msra.mxu0 0
    %2216 = vmatpush.bf16.msra.mxu0 0
    %2217 = vmatpush.bf16.msra.mxu0 %v2199
    %2218 = vmatmul.bf16.gmra.mxu0 %v2202
    %v2219 = vpop.f32.mrf.mxu0
    %v2220 = vadd.f32 %v2182, %v2219
    %v2221 = vpop.f32.mrf.mxu0
    %v2222 = vadd.f32 %v2184, %v2221
    %2223 = vmatmul.bf16.gmra.mxu0 %v2205
    %v2224 = vpop.f32.mrf.mxu0
    %v2225 = vadd.f32 %v2187, %v2224
    %v2226 = vpop.f32.mrf.mxu0
    %v2227 = vadd.f32 %v2189, %v2226
    %2228 = vmatmul.bf16.gmra.mxu0 %v2208
    %v2229 = vpop.f32.mrf.mxu0
    %v2230 = vadd.f32 %v2192, %v2229
    %v2231 = vpop.f32.mrf.mxu0
    %2232 = vdwg.mxu0
    %v2238 = vrot.slane %v2220, 1
    %v2239 = vrot.slane %v2220, 2
    %v2240 = vrot.slane %v2220, 3
    %v2241 = vrot.slane %v2220, 4
    %v2242 = vrot.slane %v2220, 5
    %v2243 = vrot.slane %v2220, 6
    %v2244 = vrot.slane %v2220, 7
    %v2245 = vrot.slane %v2222, 1
    %v2246 = vrot.slane %v2222, 2
    %v2247 = vrot.slane %v2222, 3
    %v2248 = vrot.slane %v2222, 4
    %v2249 = vrot.slane %v2222, 5
    %v2250 = vrot.slane %v2222, 6
    %v2251 = vrot.slane %v2222, 7
    %v2252 = vrot.slane %v2225, 1
    %v2253 = vrot.slane %v2225, 2
    %v2254 = vrot.slane %v2225, 3
    %v2255 = vrot.slane %v2225, 4
    %v2256 = vrot.slane %v2225, 5
    %v2257 = vrot.slane %v2225, 6
    %v2258 = vrot.slane %v2225, 7
    %v2259 = vrot.slane %v2227, 1
    %v2260 = vrot.slane %v2227, 2
    %v2261 = vrot.slane %v2227, 3
    %v2262 = vrot.slane %v2227, 4
    %v2263 = vrot.slane %v2227, 5
    %v2264 = vrot.slane %v2227, 6
    %v2265 = vrot.slane %v2227, 7
    %v2266 = vrot.slane %v2230, 1
    %v2296 = vadd.f32 %v248, %v2220
    %v2297 = vadd.f32 %v252, %v2238
    %v2298 = vadd.f32 %v253, %v2239
    %v2299 = vadd.f32 %v254, %v2240
    %v2300 = vadd.f32 %v255, %v2241
    %v2301 = vadd.f32 %v256, %v2242
    %v2302 = vadd.f32 %v257, %v2243
    %v2303 = vadd.f32 %v258, %v2244
    %v2304 = vadd.f32 %v238, %v2222
    %v2305 = vadd.f32 %v259, %v2245
    %v2306 = vadd.f32 %v260, %v2246
    %v2307 = vadd.f32 %v261, %v2247
    %v2308 = vadd.f32 %v262, %v2248
    %v2309 = vadd.f32 %v263, %v2249
    %v2310 = vadd.f32 %v264, %v2250
    %v2311 = vadd.f32 %v265, %v2251
    %v2312 = vadd.f32 %v237, %v2225
    %v2313 = vadd.f32 %v249, %v2252
    %v2314 = vadd.f32 %v266, %v2253
    %v2315 = vadd.f32 %v267, %v2254
    %v2316 = vadd.f32 %v268, %v2255
    %v2317 = vadd.f32 %v269, %v2256
    %v2318 = vadd.f32 %v270, %v2257
    %v2319 = vadd.f32 %v271, %v2258
    %v2320 = vadd.f32 %v272, %v2227
    %v2321 = vadd.f32 %v241, %v2259
    %v2322 = vadd.f32 %v273, %v2260
    %v2323 = vadd.f32 %v274, %v2261
    %v2324 = vadd.f32 %v275, %v2262
    %v2325 = vadd.f32 %v276, %v2263
    %v2326 = vadd.f32 %v277, %v2264
    %v2327 = vadd.f32 %v278, %v2265
    %v2328 = vadd.f32 %v279, %v2230
    %v2329 = vadd.f32 %v240, %v2266
    %v2330 = vld [vmem:[%s21] sm:$0x1]
    %v2332 = vperm.slane %v2330, 0
    %v2334 = vrot.slane %v2332, 1
    %v2335 = vrot.slane %v2332, 2
    %v2336 = vrot.slane %v2332, 3
    %v2337 = vrot.slane %v2332, 4
    %v2338 = vrot.slane %v2332, 5
    %v2339 = vrot.slane %v2332, 6
    %v2340 = vrot.slane %v2332, 7
    %v2348 = vadd.f32 %v2296, %v2332
    %v2349 = vadd.f32 %v2297, %v2334
    %v2350 = vadd.f32 %v2298, %v2335
    %v2351 = vadd.f32 %v2299, %v2336
    %v2352 = vadd.f32 %v2300, %v2337
    %v2353 = vadd.f32 %v2301, %v2338
    %v2354 = vadd.f32 %v2302, %v2339
    %v2355 = vadd.f32 %v2303, %v2340
    %v2356 = vadd.f32 %v2304, %v2332
    %v2357 = vadd.f32 %v2305, %v2334
    %v2358 = vadd.f32 %v2306, %v2335
    %v2359 = vadd.f32 %v2307, %v2336
    %v2360 = vadd.f32 %v2308, %v2337
    %v2361 = vadd.f32 %v2309, %v2338
    %v2362 = vadd.f32 %v2310, %v2339
    %v2363 = vadd.f32 %v2311, %v2340
    %v2364 = vadd.f32 %v2312, %v2332
    %v2365 = vadd.f32 %v2313, %v2334
    %v2366 = vadd.f32 %v2314, %v2335
    %v2367 = vadd.f32 %v2315, %v2336
    %v2368 = vadd.f32 %v2316, %v2337
    %v2369 = vadd.f32 %v2317, %v2338
    %v2370 = vadd.f32 %v2318, %v2339
    %v2371 = vadd.f32 %v2319, %v2340
    %v2372 = vadd.f32 %v2320, %v2332
    %v2373 = vadd.f32 %v2321, %v2334
    %v2374 = vadd.f32 %v2322, %v2335
    %v2375 = vadd.f32 %v2323, %v2336
    %v2376 = vadd.f32 %v2324, %v2337
    %v2377 = vadd.f32 %v2325, %v2338
    %v2378 = vadd.f32 %v2326, %v2339
    %v2379 = vadd.f32 %v2327, %v2340
    %v2380 = vadd.f32 %v2328, %v2332
    %v2381 = vadd.f32 %v2329, %v2334
    %v2382 = vld [vmem:[%s23] sm:$0x1]
    %v2383 = vld [vmem:[%s25] sm:$0x1]
    %2418 = vst [vmem:[#allocation1] ss:$9 sm:$0xff] %v2348
    %s2419 = scalar_lea.vmem [#allocation1], 1
    %2420 = vst [vmem:[%s2419] ss:$9 sm:$0xff] %v2349
    %s2421 = scalar_lea.vmem [#allocation1], 2
    %2422 = vst [vmem:[%s2421] ss:$9 sm:$0xff] %v2350
    %s2423 = scalar_lea.vmem [#allocation1], 3
    %2424 = vst [vmem:[%s2423] ss:$9 sm:$0xff] %v2351
    %s2425 = scalar_lea.vmem [#allocation1], 4
    %2426 = vst [vmem:[%s2425] ss:$9 sm:$0xff] %v2352
    %s2427 = scalar_lea.vmem [#allocation1], 5
    %2428 = vst [vmem:[%s2427] ss:$9 sm:$0xff] %v2353
    %s2429 = scalar_lea.vmem [#allocation1], 6
    %2430 = vst [vmem:[%s2429] ss:$9 sm:$0xff] %v2354
    %s2431 = scalar_lea.vmem [#allocation1], 7
    %2432 = vst [vmem:[%s2431] ss:$9 sm:$0xff] %v2355
    %v2433 = vld [vmem:[#allocation1] sm:$0xff]
    %2434 = vst [vmem:[#allocation1] ss:$9 sm:$0xff] %v2356
    %2435 = vst [vmem:[%s2419] ss:$9 sm:$0xff] %v2357
    %2436 = vst [vmem:[%s2421] ss:$9 sm:$0xff] %v2358
    %2437 = vst [vmem:[%s2423] ss:$9 sm:$0xff] %v2359
    %2438 = vst [vmem:[%s2425] ss:$9 sm:$0xff] %v2360
    %2439 = vst [vmem:[%s2427] ss:$9 sm:$0xff] %v2361
    %2440 = vst [vmem:[%s2429] ss:$9 sm:$0xff] %v2362
    %2441 = vst [vmem:[%s2431] ss:$9 sm:$0xff] %v2363
    %v2442 = vld [vmem:[#allocation1] sm:$0xff]
    %2443 = vst [vmem:[#allocation1] ss:$9 sm:$0xff] %v2364
    %2444 = vst [vmem:[%s2419] ss:$9 sm:$0xff] %v2365
    %2445 = vst [vmem:[%s2421] ss:$9 sm:$0xff] %v2366
    %2446 = vst [vmem:[%s2423] ss:$9 sm:$0xff] %v2367
    %2447 = vst [vmem:[%s2425] ss:$9 sm:$0xff] %v2368
    %2448 = vst [vmem:[%s2427] ss:$9 sm:$0xff] %v2369
    %2449 = vst [vmem:[%s2429] ss:$9 sm:$0xff] %v2370
    %2450 = vst [vmem:[%s2431] ss:$9 sm:$0xff] %v2371
    %v2451 = vld [vmem:[#allocation1] sm:$0xff]
    %2452 = vst [vmem:[#allocation1] ss:$9 sm:$0xff] %v2372
    %2453 = vst [vmem:[%s2419] ss:$9 sm:$0xff] %v2373
    %2454 = vst [vmem:[%s2421] ss:$9 sm:$0xff] %v2374
    %2455 = vst [vmem:[%s2423] ss:$9 sm:$0xff] %v2375
    %2456 = vst [vmem:[%s2425] ss:$9 sm:$0xff] %v2376
    %2457 = vst [vmem:[%s2427] ss:$9 sm:$0xff] %v2377
    %2458 = vst [vmem:[%s2429] ss:$9 sm:$0xff] %v2378
    %2459 = vst [vmem:[%s2431] ss:$9 sm:$0xff] %v2379
    %v2460 = vld [vmem:[#allocation1] sm:$0xff]
    %2461 = vst [vmem:[#allocation1] ss:$9 sm:$0xff] %v2380
    %2462 = vst [vmem:[%s2419] ss:$9 sm:$0xff] %v2381
    %v2463 = vld [vmem:[#allocation1] sm:$0xff]
    %v2469 = vsel %vm361, %v2433, 0.0
    %2470 = vadd.xlane.f32.xlu0 %v2469
    %v2471 = vpop.xlane.xlu0 %2470
    %v2472 = vsel %vm361, %v2442, 0.0
    %2473 = vadd.xlane.f32.xlu0 %v2472
    %v2474 = vpop.xlane.xlu0 %2473
    %v2475 = vsel %vm361, %v2451, 0.0
    %2476 = vadd.xlane.f32.xlu0 %v2475
    %v2477 = vpop.xlane.xlu0 %2476
    %v2478 = vsel %vm361, %v2460, 0.0
    %2479 = vadd.xlane.f32.xlu0 %v2478
    %v2480 = vpop.xlane.xlu0 %2479
    %v2481 = vsel %vm374, %v2463, 0.0
    %2482 = vadd.xlane.f32.xlu0 %v2481
    %v2483 = vpop.xlane.xlu0 %2482
    %v2484 = vmul.f32 %v2471, %v384
    %v2485 = vmul.f32 %v2474, %v384
    %v2486 = vmul.f32 %v2477, %v384
    %v2487 = vmul.f32 %v2480, %v384
    %v2488 = vmul.f32 %v2483, %v384
    %v2494 = vperm.slane %v2484, 0
    %v2495 = vperm.slane %v2484, 1
    %v2496 = vperm.slane %v2484, 2
    %v2497 = vperm.slane %v2484, 3
    %v2498 = vperm.slane %v2484, 4
    %v2499 = vperm.slane %v2484, 5
    %v2500 = vperm.slane %v2484, 6
    %v2501 = vperm.slane %v2484, 7
    %v2502 = vperm.slane %v2485, 0
    %v2503 = vperm.slane %v2485, 1
    %v2504 = vperm.slane %v2485, 2
    %v2505 = vperm.slane %v2485, 3
    %v2506 = vperm.slane %v2485, 4
    %v2507 = vperm.slane %v2485, 5
    %v2508 = vperm.slane %v2485, 6
    %v2509 = vperm.slane %v2485, 7
    %v2510 = vperm.slane %v2486, 0
    %v2511 = vperm.slane %v2486, 1
    %v2512 = vperm.slane %v2486, 2
    %v2513 = vperm.slane %v2486, 3
    %v2514 = vperm.slane %v2486, 4
    %v2515 = vperm.slane %v2486, 5
    %v2516 = vperm.slane %v2486, 6
    %v2517 = vperm.slane %v2486, 7
    %v2518 = vperm.slane %v2487, 0
    %v2519 = vperm.slane %v2487, 1
    %v2520 = vperm.slane %v2487, 2
    %v2521 = vperm.slane %v2487, 3
    %v2522 = vperm.slane %v2487, 4
    %v2523 = vperm.slane %v2487, 5
    %v2524 = vperm.slane %v2487, 6
    %v2525 = vperm.slane %v2487, 7
    %v2526 = vperm.slane %v2488, 0
    %v2527 = vperm.slane %v2488, 1
    %v2562 = vsub.f32 %v2348, %v2494
    %v2563 = vsub.f32 %v2349, %v2495
    %v2564 = vsub.f32 %v2350, %v2496
    %v2565 = vsub.f32 %v2351, %v2497
    %v2566 = vsub.f32 %v2352, %v2498
    %v2567 = vsub.f32 %v2353, %v2499
    %v2568 = vsub.f32 %v2354, %v2500
    %v2569 = vsub.f32 %v2355, %v2501
    %v2570 = vsub.f32 %v2356, %v2502
    %v2571 = vsub.f32 %v2357, %v2503
    %v2572 = vsub.f32 %v2358, %v2504
    %v2573 = vsub.f32 %v2359, %v2505
    %v2574 = vsub.f32 %v2360, %v2506
    %v2575 = vsub.f32 %v2361, %v2507
    %v2576 = vsub.f32 %v2362, %v2508
    %v2577 = vsub.f32 %v2363, %v2509
    %v2578 = vsub.f32 %v2364, %v2510
    %v2579 = vsub.f32 %v2365, %v2511
    %v2580 = vsub.f32 %v2366, %v2512
    %v2581 = vsub.f32 %v2367, %v2513
    %v2582 = vsub.f32 %v2368, %v2514
    %v2583 = vsub.f32 %v2369, %v2515
    %v2584 = vsub.f32 %v2370, %v2516
    %v2585 = vsub.f32 %v2371, %v2517
    %v2586 = vsub.f32 %v2372, %v2518
    %v2587 = vsub.f32 %v2373, %v2519
    %v2588 = vsub.f32 %v2374, %v2520
    %v2589 = vsub.f32 %v2375, %v2521
    %v2590 = vsub.f32 %v2376, %v2522
    %v2591 = vsub.f32 %v2377, %v2523
    %v2592 = vsub.f32 %v2378, %v2524
    %v2593 = vsub.f32 %v2379, %v2525
    %v2594 = vsub.f32 %v2380, %v2526
    %v2595 = vsub.f32 %v2381, %v2527
    %v2596 = vmul.f32 %v2562, %v2562
    %v2597 = vmul.f32 %v2563, %v2563
    %v2598 = vmul.f32 %v2564, %v2564
    %v2599 = vmul.f32 %v2565, %v2565
    %v2600 = vmul.f32 %v2566, %v2566
    %v2601 = vmul.f32 %v2567, %v2567
    %v2602 = vmul.f32 %v2568, %v2568
    %v2603 = vmul.f32 %v2569, %v2569
    %v2604 = vmul.f32 %v2570, %v2570
    %v2605 = vmul.f32 %v2571, %v2571
    %v2606 = vmul.f32 %v2572, %v2572
    %v2607 = vmul.f32 %v2573, %v2573
    %v2608 = vmul.f32 %v2574, %v2574
    %v2609 = vmul.f32 %v2575, %v2575
    %v2610 = vmul.f32 %v2576, %v2576
    %v2611 = vmul.f32 %v2577, %v2577
    %v2612 = vmul.f32 %v2578, %v2578
    %v2613 = vmul.f32 %v2579, %v2579
    %v2614 = vmul.f32 %v2580, %v2580
    %v2615 = vmul.f32 %v2581, %v2581
    %v2616 = vmul.f32 %v2582, %v2582
    %v2617 = vmul.f32 %v2583, %v2583
    %v2618 = vmul.f32 %v2584, %v2584
    %v2619 = vmul.f32 %v2585, %v2585
    %v2620 = vmul.f32 %v2586, %v2586
    %v2621 = vmul.f32 %v2587, %v2587
    %v2622 = vmul.f32 %v2588, %v2588
    %v2623 = vmul.f32 %v2589, %v2589
    %v2624 = vmul.f32 %v2590, %v2590
    %v2625 = vmul.f32 %v2591, %v2591
    %v2626 = vmul.f32 %v2592, %v2592
    %v2627 = vmul.f32 %v2593, %v2593
    %v2628 = vmul.f32 %v2594, %v2594
    %v2629 = vmul.f32 %v2595, %v2595
    %2664 = vst [vmem:[#allocation1] ss:$9 sm:$0xff] %v2596
    %s2665 = scalar_lea.vmem [#allocation1], 1
    %2666 = vst [vmem:[%s2665] ss:$9 sm:$0xff] %v2597
    %s2667 = scalar_lea.vmem [#allocation1], 2
    %2668 = vst [vmem:[%s2667] ss:$9 sm:$0xff] %v2598
    %s2669 = scalar_lea.vmem [#allocation1], 3
    %2670 = vst [vmem:[%s2669] ss:$9 sm:$0xff] %v2599
    %s2671 = scalar_lea.vmem [#allocation1], 4
    %2672 = vst [vmem:[%s2671] ss:$9 sm:$0xff] %v2600
    %s2673 = scalar_lea.vmem [#allocation1], 5
    %2674 = vst [vmem:[%s2673] ss:$9 sm:$0xff] %v2601
    %s2675 = scalar_lea.vmem [#allocation1], 6
    %2676 = vst [vmem:[%s2675] ss:$9 sm:$0xff] %v2602
    %s2677 = scalar_lea.vmem [#allocation1], 7
    %2678 = vst [vmem:[%s2677] ss:$9 sm:$0xff] %v2603
    %v2679 = vld [vmem:[#allocation1] sm:$0xff]
    %2680 = vst [vmem:[#allocation1] ss:$9 sm:$0xff] %v2604
    %2681 = vst [vmem:[%s2665] ss:$9 sm:$0xff] %v2605
    %2682 = vst [vmem:[%s2667] ss:$9 sm:$0xff] %v2606
    %2683 = vst [vmem:[%s2669] ss:$9 sm:$0xff] %v2607
    %2684 = vst [vmem:[%s2671] ss:$9 sm:$0xff] %v2608
    %2685 = vst [vmem:[%s2673] ss:$9 sm:$0xff] %v2609
    %2686 = vst [vmem:[%s2675] ss:$9 sm:$0xff] %v2610
    %2687 = vst [vmem:[%s2677] ss:$9 sm:$0xff] %v2611
    %v2688 = vld [vmem:[#allocation1] sm:$0xff]
    %2689 = vst [vmem:[#allocation1] ss:$9 sm:$0xff] %v2612
    %2690 = vst [vmem:[%s2665] ss:$9 sm:$0xff] %v2613
    %2691 = vst [vmem:[%s2667] ss:$9 sm:$0xff] %v2614
    %2692 = vst [vmem:[%s2669] ss:$9 sm:$0xff] %v2615
    %2693 = vst [vmem:[%s2671] ss:$9 sm:$0xff] %v2616
    %2694 = vst [vmem:[%s2673] ss:$9 sm:$0xff] %v2617
    %2695 = vst [vmem:[%s2675] ss:$9 sm:$0xff] %v2618
    %2696 = vst [vmem:[%s2677] ss:$9 sm:$0xff] %v2619
    %v2697 = vld [vmem:[#allocation1] sm:$0xff]
    %2698 = vst [vmem:[#allocation1] ss:$9 sm:$0xff] %v2620
    %2699 = vst [vmem:[%s2665] ss:$9 sm:$0xff] %v2621
    %2700 = vst [vmem:[%s2667] ss:$9 sm:$0xff] %v2622
    %2701 = vst [vmem:[%s2669] ss:$9 sm:$0xff] %v2623
    %2702 = vst [vmem:[%s2671] ss:$9 sm:$0xff] %v2624
    %2703 = vst [vmem:[%s2673] ss:$9 sm:$0xff] %v2625
    %2704 = vst [vmem:[%s2675] ss:$9 sm:$0xff] %v2626
    %2705 = vst [vmem:[%s2677] ss:$9 sm:$0xff] %v2627
    %v2706 = vld [vmem:[#allocation1] sm:$0xff]
    %2707 = vst [vmem:[#allocation1] ss:$9 sm:$0xff] %v2628
    %2708 = vst [vmem:[%s2665] ss:$9 sm:$0xff] %v2629
    %v2709 = vld [vmem:[#allocation1] sm:$0xff]
    %v2715 = vsel %vm361, %v2679, 0.0
    %2716 = vadd.xlane.f32.xlu0 %v2715
    %v2717 = vpop.xlane.xlu0 %2716
    %v2718 = vsel %vm361, %v2688, 0.0
    %2719 = vadd.xlane.f32.xlu0 %v2718
    %v2720 = vpop.xlane.xlu0 %2719
    %v2721 = vsel %vm361, %v2697, 0.0
    %2722 = vadd.xlane.f32.xlu0 %v2721
    %v2723 = vpop.xlane.xlu0 %2722
    %v2724 = vsel %vm361, %v2706, 0.0
    %2725 = vadd.xlane.f32.xlu0 %v2724
    %v2726 = vpop.xlane.xlu0 %2725
    %v2727 = vsel %vm374, %v2709, 0.0
    %2728 = vadd.xlane.f32.xlu0 %v2727
    %v2729 = vpop.xlane.xlu0 %2728
    %v2730 = vmul.f32 %v2717, %v384
    %v2731 = vmul.f32 %v2720, %v384
    %v2732 = vmul.f32 %v2723, %v384
    %v2733 = vmul.f32 %v2726, %v384
    %v2734 = vmul.f32 %v2729, %v384
    %v2735 = vadd.f32 %v2730, 1e-06
    %v2736 = vadd.f32 %v2731, 1e-06
    %v2737 = vadd.f32 %v2732, 1e-06
    %v2738 = vadd.f32 %v2733, 1e-06
    %v2739 = vadd.f32 %v2734, 1e-06
    %v2740 = vrsqrt.pop %v2735
    %v2741 = vmul.f32 %v2740, %v2735
    %v2742 = vmul.f32 %v2741, %v2740
    %v2743 = vmul.f32 0.5, %v2742
    %v2744 = vsub.f32 1.5, %v2743
    %v2745 = vmul.f32 %v2740, %v2744
    %vm2746 = vweird.f32 %v2735
    %vm2747 = vweird.f32 %v2740
    %vm2748 = vmor %vm2746, %vm2747
    %v2749 = vsel %vm2748, %v2740, %v2745
    %v2750 = vrsqrt.pop %v2736
    %v2751 = vmul.f32 %v2750, %v2736
    %v2752 = vmul.f32 %v2751, %v2750
    %v2753 = vmul.f32 0.5, %v2752
    %v2754 = vsub.f32 1.5, %v2753
    %v2755 = vmul.f32 %v2750, %v2754
    %vm2756 = vweird.f32 %v2736
    %vm2757 = vweird.f32 %v2750
    %vm2758 = vmor %vm2756, %vm2757
    %v2759 = vsel %vm2758, %v2750, %v2755
    %v2760 = vrsqrt.pop %v2737
    %v2761 = vmul.f32 %v2760, %v2737
    %v2762 = vmul.f32 %v2761, %v2760
    %v2763 = vmul.f32 0.5, %v2762
    %v2764 = vsub.f32 1.5, %v2763
    %v2765 = vmul.f32 %v2760, %v2764
    %vm2766 = vweird.f32 %v2737
    %vm2767 = vweird.f32 %v2760
    %vm2768 = vmor %vm2766, %vm2767
    %v2769 = vsel %vm2768, %v2760, %v2765
    %v2770 = vrsqrt.pop %v2738
    %v2771 = vmul.f32 %v2770, %v2738
    %v2772 = vmul.f32 %v2771, %v2770
    %v2773 = vmul.f32 0.5, %v2772
    %v2774 = vsub.f32 1.5, %v2773
    %v2775 = vmul.f32 %v2770, %v2774
    %vm2776 = vweird.f32 %v2738
    %vm2777 = vweird.f32 %v2770
    %vm2778 = vmor %vm2776, %vm2777
    %v2779 = vsel %vm2778, %v2770, %v2775
    %v2780 = vrsqrt.pop %v2739
    %v2781 = vmul.f32 %v2780, %v2739
    %v2782 = vmul.f32 %v2781, %v2780
    %v2783 = vmul.f32 0.5, %v2782
    %v2784 = vsub.f32 1.5, %v2783
    %v2785 = vmul.f32 %v2780, %v2784
    %vm2786 = vweird.f32 %v2739
    %vm2787 = vweird.f32 %v2780
    %vm2788 = vmor %vm2786, %vm2787
    %v2789 = vsel %vm2788, %v2780, %v2785
    %v2795 = vperm.slane %v2749, 0
    %v2796 = vperm.slane %v2749, 1
    %v2797 = vperm.slane %v2749, 2
    %v2798 = vperm.slane %v2749, 3
    %v2799 = vperm.slane %v2749, 4
    %v2800 = vperm.slane %v2749, 5
    %v2801 = vperm.slane %v2749, 6
    %v2802 = vperm.slane %v2749, 7
    %v2803 = vperm.slane %v2759, 0
    %v2804 = vperm.slane %v2759, 1
    %v2805 = vperm.slane %v2759, 2
    %v2806 = vperm.slane %v2759, 3
    %v2807 = vperm.slane %v2759, 4
    %v2808 = vperm.slane %v2759, 5
    %v2809 = vperm.slane %v2759, 6
    %v2810 = vperm.slane %v2759, 7
    %v2811 = vperm.slane %v2769, 0
    %v2812 = vperm.slane %v2769, 1
    %v2813 = vperm.slane %v2769, 2
    %v2814 = vperm.slane %v2769, 3
    %v2815 = vperm.slane %v2769, 4
    %v2816 = vperm.slane %v2769, 5
    %v2817 = vperm.slane %v2769, 6
    %v2818 = vperm.slane %v2769, 7
    %v2819 = vperm.slane %v2779, 0
    %v2820 = vperm.slane %v2779, 1
    %v2821 = vperm.slane %v2779, 2
    %v2822 = vperm.slane %v2779, 3
    %v2823 = vperm.slane %v2779, 4
    %v2824 = vperm.slane %v2779, 5
    %v2825 = vperm.slane %v2779, 6
    %v2826 = vperm.slane %v2779, 7
    %v2827 = vperm.slane %v2789, 0
    %v2828 = vperm.slane %v2789, 1
    %v2863 = vmul.f32 %v2562, %v2795
    %v2864 = vmul.f32 %v2563, %v2796
    %v2865 = vmul.f32 %v2564, %v2797
    %v2866 = vmul.f32 %v2565, %v2798
    %v2867 = vmul.f32 %v2566, %v2799
    %v2868 = vmul.f32 %v2567, %v2800
    %v2869 = vmul.f32 %v2568, %v2801
    %v2870 = vmul.f32 %v2569, %v2802
    %v2871 = vmul.f32 %v2570, %v2803
    %v2872 = vmul.f32 %v2571, %v2804
    %v2873 = vmul.f32 %v2572, %v2805
    %v2874 = vmul.f32 %v2573, %v2806
    %v2875 = vmul.f32 %v2574, %v2807
    %v2876 = vmul.f32 %v2575, %v2808
    %v2877 = vmul.f32 %v2576, %v2809
    %v2878 = vmul.f32 %v2577, %v2810
    %v2879 = vmul.f32 %v2578, %v2811
    %v2880 = vmul.f32 %v2579, %v2812
    %v2881 = vmul.f32 %v2580, %v2813
    %v2882 = vmul.f32 %v2581, %v2814
    %v2883 = vmul.f32 %v2582, %v2815
    %v2884 = vmul.f32 %v2583, %v2816
    %v2885 = vmul.f32 %v2584, %v2817
    %v2886 = vmul.f32 %v2585, %v2818
    %v2887 = vmul.f32 %v2586, %v2819
    %v2888 = vmul.f32 %v2587, %v2820
    %v2889 = vmul.f32 %v2588, %v2821
    %v2890 = vmul.f32 %v2589, %v2822
    %v2891 = vmul.f32 %v2590, %v2823
    %v2892 = vmul.f32 %v2591, %v2824
    %v2893 = vmul.f32 %v2592, %v2825
    %v2894 = vmul.f32 %v2593, %v2826
    %v2895 = vmul.f32 %v2594, %v2827
    %v2896 = vmul.f32 %v2595, %v2828
    %v2898 = vperm.slane %v2382, 0
    %v2900 = vrot.slane %v2898, 1
    %v2901 = vrot.slane %v2898, 2
    %v2902 = vrot.slane %v2898, 3
    %v2903 = vrot.slane %v2898, 4
    %v2904 = vrot.slane %v2898, 5
    %v2905 = vrot.slane %v2898, 6
    %v2906 = vrot.slane %v2898, 7
    %v2914 = vmul.f32 %v2863, %v2898
    %v2915 = vmul.f32 %v2864, %v2900
    %v2916 = vmul.f32 %v2865, %v2901
    %v2917 = vmul.f32 %v2866, %v2902
    %v2918 = vmul.f32 %v2867, %v2903
    %v2919 = vmul.f32 %v2868, %v2904
    %v2920 = vmul.f32 %v2869, %v2905
    %v2921 = vmul.f32 %v2870, %v2906
    %v2922 = vmul.f32 %v2871, %v2898
    %v2923 = vmul.f32 %v2872, %v2900
    %v2924 = vmul.f32 %v2873, %v2901
    %v2925 = vmul.f32 %v2874, %v2902
    %v2926 = vmul.f32 %v2875, %v2903
    %v2927 = vmul.f32 %v2876, %v2904
    %v2928 = vmul.f32 %v2877, %v2905
    %v2929 = vmul.f32 %v2878, %v2906
    %v2930 = vmul.f32 %v2879, %v2898
    %v2931 = vmul.f32 %v2880, %v2900
    %v2932 = vmul.f32 %v2881, %v2901
    %v2933 = vmul.f32 %v2882, %v2902
    %v2934 = vmul.f32 %v2883, %v2903
    %v2935 = vmul.f32 %v2884, %v2904
    %v2936 = vmul.f32 %v2885, %v2905
    %v2937 = vmul.f32 %v2886, %v2906
    %v2938 = vmul.f32 %v2887, %v2898
    %v2939 = vmul.f32 %v2888, %v2900
    %v2940 = vmul.f32 %v2889, %v2901
    %v2941 = vmul.f32 %v2890, %v2902
    %v2942 = vmul.f32 %v2891, %v2903
    %v2943 = vmul.f32 %v2892, %v2904
    %v2944 = vmul.f32 %v2893, %v2905
    %v2945 = vmul.f32 %v2894, %v2906
    %v2946 = vmul.f32 %v2895, %v2898
    %v2947 = vmul.f32 %v2896, %v2900
    %v2949 = vperm.slane %v2383, 0
    %v2951 = vrot.slane %v2949, 1
    %v2952 = vrot.slane %v2949, 2
    %v2953 = vrot.slane %v2949, 3
    %v2954 = vrot.slane %v2949, 4
    %v2955 = vrot.slane %v2949, 5
    %v2956 = vrot.slane %v2949, 6
    %v2957 = vrot.slane %v2949, 7
    %v2965 = vadd.f32 %v2914, %v2949
    %v2966 = vadd.f32 %v2915, %v2951
    %v2967 = vadd.f32 %v2916, %v2952
    %v2968 = vadd.f32 %v2917, %v2953
    %v2969 = vadd.f32 %v2918, %v2954
    %v2970 = vadd.f32 %v2919, %v2955
    %v2971 = vadd.f32 %v2920, %v2956
    %v2972 = vadd.f32 %v2921, %v2957
    %v2973 = vadd.f32 %v2922, %v2949
    %v2974 = vadd.f32 %v2923, %v2951
    %v2975 = vadd.f32 %v2924, %v2952
    %v2976 = vadd.f32 %v2925, %v2953
    %v2977 = vadd.f32 %v2926, %v2954
    %v2978 = vadd.f32 %v2927, %v2955
    %v2979 = vadd.f32 %v2928, %v2956
    %v2980 = vadd.f32 %v2929, %v2957
    %v2981 = vadd.f32 %v2930, %v2949
    %v2982 = vadd.f32 %v2931, %v2951
    %v2983 = vadd.f32 %v2932, %v2952
    %v2984 = vadd.f32 %v2933, %v2953
    %v2985 = vadd.f32 %v2934, %v2954
    %v2986 = vadd.f32 %v2935, %v2955
    %v2987 = vadd.f32 %v2936, %v2956
    %v2988 = vadd.f32 %v2937, %v2957
    %v2989 = vadd.f32 %v2938, %v2949
    %v2990 = vadd.f32 %v2939, %v2951
    %v2991 = vadd.f32 %v2940, %v2952
    %v2992 = vadd.f32 %v2941, %v2953
    %v2993 = vadd.f32 %v2942, %v2954
    %v2994 = vadd.f32 %v2943, %v2955
    %v2995 = vadd.f32 %v2944, %v2956
    %v2996 = vadd.f32 %v2945, %v2957
    %v2997 = vadd.f32 %v2946, %v2949
    %v2998 = vadd.f32 %v2947, %v2951
    %v2999 = vld [vmem:[%s27] sm:$0xf]
    %v3000 = vld [vmem:[%s27 + $0x4] sm:$0xf]
    %v3001 = vld [vmem:[%s27 + $0x8] sm:$0xf]
    %v3002 = vld [vmem:[%s27 + $0xc] sm:$0xf]
    %3037 = vst [vmem:[#allocation1] ss:$9 sm:$0xff] %v2965
    %s3038 = scalar_lea.vmem [#allocation1], 1
    %3039 = vst [vmem:[%s3038] ss:$9 sm:$0xff] %v2966
    %s3040 = scalar_lea.vmem [#allocation1], 2
    %3041 = vst [vmem:[%s3040] ss:$9 sm:$0xff] %v2967
    %s3042 = scalar_lea.vmem [#allocation1], 3
    %3043 = vst [vmem:[%s3042] ss:$9 sm:$0xff] %v2968
    %s3044 = scalar_lea.vmem [#allocation1], 4
    %3045 = vst [vmem:[%s3044] ss:$9 sm:$0xff] %v2969
    %s3046 = scalar_lea.vmem [#allocation1], 5
    %3047 = vst [vmem:[%s3046] ss:$9 sm:$0xff] %v2970
    %s3048 = scalar_lea.vmem [#allocation1], 6
    %3049 = vst [vmem:[%s3048] ss:$9 sm:$0xff] %v2971
    %s3050 = scalar_lea.vmem [#allocation1], 7
    %3051 = vst [vmem:[%s3050] ss:$9 sm:$0xff] %v2972
    %v3052 = vld [vmem:[#allocation1] sm:$0xff]
    %3053 = vst [vmem:[#allocation1] ss:$9 sm:$0xff] %v2973
    %3054 = vst [vmem:[%s3038] ss:$9 sm:$0xff] %v2974
    %3055 = vst [vmem:[%s3040] ss:$9 sm:$0xff] %v2975
    %3056 = vst [vmem:[%s3042] ss:$9 sm:$0xff] %v2976
    %3057 = vst [vmem:[%s3044] ss:$9 sm:$0xff] %v2977
    %3058 = vst [vmem:[%s3046] ss:$9 sm:$0xff] %v2978
    %3059 = vst [vmem:[%s3048] ss:$9 sm:$0xff] %v2979
    %3060 = vst [vmem:[%s3050] ss:$9 sm:$0xff] %v2980
    %v3061 = vld [vmem:[#allocation1] sm:$0xff]
    %3062 = vst [vmem:[#allocation1] ss:$9 sm:$0xff] %v2981
    %3063 = vst [vmem:[%s3038] ss:$9 sm:$0xff] %v2982
    %3064 = vst [vmem:[%s3040] ss:$9 sm:$0xff] %v2983
    %3065 = vst [vmem:[%s3042] ss:$9 sm:$0xff] %v2984
    %3066 = vst [vmem:[%s3044] ss:$9 sm:$0xff] %v2985
    %3067 = vst [vmem:[%s3046] ss:$9 sm:$0xff] %v2986
    %3068 = vst [vmem:[%s3048] ss:$9 sm:$0xff] %v2987
    %3069 = vst [vmem:[%s3050] ss:$9 sm:$0xff] %v2988
    %v3070 = vld [vmem:[#allocation1] sm:$0xff]
    %3071 = vst [vmem:[#allocation1] ss:$9 sm:$0xff] %v2989
    %3072 = vst [vmem:[%s3038] ss:$9 sm:$0xff] %v2990
    %3073 = vst [vmem:[%s3040] ss:$9 sm:$0xff] %v2991
    %3074 = vst [vmem:[%s3042] ss:$9 sm:$0xff] %v2992
    %3075 = vst [vmem:[%s3044] ss:$9 sm:$0xff] %v2993
    %3076 = vst [vmem:[%s3046] ss:$9 sm:$0xff] %v2994
    %3077 = vst [vmem:[%s3048] ss:$9 sm:$0xff] %v2995
    %3078 = vst [vmem:[%s3050] ss:$9 sm:$0xff] %v2996
    %v3079 = vld [vmem:[#allocation1] sm:$0xff]
    %3080 = vst [vmem:[#allocation1] ss:$9 sm:$0xff] %v2997
    %3081 = vst [vmem:[%s3038] ss:$9 sm:$0xff] %v2998
    %v3082 = vld [vmem:[#allocation1] sm:$0xff]
    %v3088 = vpack.c.bf16 %v3061, %v3052
    %v3089 = vpack.c.bf16 %v3079, %v3070
    %v3090 = vpack.c.bf16 %v3082, %v3082
    %v3091 = vld [vmem:[%s29] sm:$0x1]
    %v3093 = vperm.slane %v3091, 0
    %v3099 = vunpack.c.l.b16 %v2999
    %v3100 = vunpack.c.l.b16 %v3000
    %v3101 = vunpack.c.l.b16 %v3001
    %v3102 = vunpack.c.l.b16 %v3002
    %v3103 = vpack.c.b16 %v3100, %v3099
    %v3104 = vpack.c.b16 %v3102, %v3101
    %v3108 = vsel %vm361, %v3088, 0
    %v3111 = vsel %vm361, %v3089, 0
    %v3114 = vsel %vm361, %v3090, 0
    %3116 = vmatpush.bf16.msra.mxu0 0
    %3117 = vmatpush.bf16.msra.mxu0 0
    %3118 = vmatpush.bf16.msra.mxu0 0
    %3119 = vmatpush.bf16.msra.mxu0 0
    %3120 = vmatpush.bf16.msra.mxu0 0
    %3121 = vmatpush.bf16.msra.mxu0 0
    %3122 = vmatpush.bf16.msra.mxu0 %v3104
    %3123 = vmatpush.bf16.msra.mxu0 %v3103
    %3124 = vmatmul.bf16.gmra.mxu0 %v3108
    %v3125 = vpop.f32.mrf.mxu0
    %v3126 = vadd.f32 %v3093, %v3125
    %v3127 = vpop.f32.mrf.mxu0
    %v3128 = vadd.f32 %v3093, %v3127
    %3129 = vmatmul.bf16.gmra.mxu0 %v3111
    %v3130 = vpop.f32.mrf.mxu0
    %v3131 = vadd.f32 %v3093, %v3130
    %v3132 = vpop.f32.mrf.mxu0
    %v3133 = vadd.f32 %v3093, %v3132
    %3134 = vmatmul.bf16.gmra.mxu0 %v3114
    %v3135 = vpop.f32.mrf.mxu0
    %v3136 = vadd.f32 %v3093, %v3135
    %v3137 = vpop.f32.mrf.mxu0
    %3138 = vdwg.mxu0
    %v3139 = vmul.f32 %v3126, 0.5
    %v3140 = vmul.f32 %v3128, 0.5
    %v3141 = vmul.f32 %v3131, 0.5
    %v3142 = vmul.f32 %v3133, 0.5
    %v3143 = vmul.f32 %v3136, 0.5
    %v3144 = vmul.f32 %v3126, 0.70710677
    %v3145 = vmul.f32 %v3128, 0.70710677
    %v3146 = vmul.f32 %v3131, 0.70710677
    %v3147 = vmul.f32 %v3133, 0.70710677
    %v3148 = vmul.f32 %v3136, 0.70710677
    %v3149 = vand.u32 2147483647, %v3144
    %v3150 = vand.u32 2147483647, %v3145
    %v3151 = vand.u32 2147483647, %v3146
    %v3152 = vand.u32 2147483647, %v3147
    %v3153 = vand.u32 2147483647, %v3148
    %v3154 = vmul.f32 %v3149, 0.3275911
    %v3155 = vmul.f32 %v3150, 0.3275911
    %v3156 = vmul.f32 %v3151, 0.3275911
    %v3157 = vmul.f32 %v3152, 0.3275911
    %v3158 = vmul.f32 %v3153, 0.3275911
    %v3159 = vadd.f32 %v3154, 1.0
    %v3160 = vadd.f32 %v3155, 1.0
    %v3161 = vadd.f32 %v3156, 1.0
    %v3162 = vadd.f32 %v3157, 1.0
    %v3163 = vadd.f32 %v3158, 1.0
    %v3164 = vrcp.pop %v3159
    %v3165 = vmul.f32 %v3159, %v3164
    %v3166 = vsub.f32 1.0, %v3165
    %v3167 = vmul.f32 %v3164, %v3166
    %v3168 = vadd.f32 %v3164, %v3167
    %vm3169 = vweird.f32 %v3159
    %vm3170 = vweird.f32 %v3164
    %vm3171 = vmor %vm3169, %vm3170
    %v3172 = vsel %vm3171, %v3164, %v3168
    %v3173 = vand.u32 2147483647, %v3159
    %vm3174 = vcmp.eq.f32.partialorder %v3173, 8.507059e+37
    %v3175 = vand.u32 %v3159, 2147483648
    %v3176 = vor.u32 1.1754944e-38, %v3175
    %v3177 = vsel %vm3174, %v3176, %v3172
    %v3178 = vmul.f32 1.0, %v3177
    %v3179 = vrcp.pop %v3160
    %v3180 = vmul.f32 %v3160, %v3179
    %v3181 = vsub.f32 1.0, %v3180
    %v3182 = vmul.f32 %v3179, %v3181
    %v3183 = vadd.f32 %v3179, %v3182
    %vm3184 = vweird.f32 %v3160
    %vm3185 = vweird.f32 %v3179
    %vm3186 = vmor %vm3184, %vm3185
    %v3187 = vsel %vm3186, %v3179, %v3183
    %v3188 = vand.u32 2147483647, %v3160
    %vm3189 = vcmp.eq.f32.partialorder %v3188, 8.507059e+37
    %v3190 = vand.u32 %v3160, 2147483648
    %v3191 = vor.u32 1.1754944e-38, %v3190
    %v3192 = vsel %vm3189, %v3191, %v3187
    %v3193 = vmul.f32 1.0, %v3192
    %v3194 = vrcp.pop %v3161
    %v3195 = vmul.f32 %v3161, %v3194
    %v3196 = vsub.f32 1.0, %v3195
    %v3197 = vmul.f32 %v3194, %v3196
    %v3198 = vadd.f32 %v3194, %v3197
    %vm3199 = vweird.f32 %v3161
    %vm3200 = vweird.f32 %v3194
    %vm3201 = vmor %vm3199, %vm3200
    %v3202 = vsel %vm3201, %v3194, %v3198
    %v3203 = vand.u32 2147483647, %v3161
    %vm3204 = vcmp.eq.f32.partialorder %v3203, 8.507059e+37
    %v3205 = vand.u32 %v3161, 2147483648
    %v3206 = vor.u32 1.1754944e-38, %v3205
    %v3207 = vsel %vm3204, %v3206, %v3202
    %v3208 = vmul.f32 1.0, %v3207
    %v3209 = vrcp.pop %v3162
    %v3210 = vmul.f32 %v3162, %v3209
    %v3211 = vsub.f32 1.0, %v3210
    %v3212 = vmul.f32 %v3209, %v3211
    %v3213 = vadd.f32 %v3209, %v3212
    %vm3214 = vweird.f32 %v3162
    %vm3215 = vweird.f32 %v3209
    %vm3216 = vmor %vm3214, %vm3215
    %v3217 = vsel %vm3216, %v3209, %v3213
    %v3218 = vand.u32 2147483647, %v3162
    %vm3219 = vcmp.eq.f32.partialorder %v3218, 8.507059e+37
    %v3220 = vand.u32 %v3162, 2147483648
    %v3221 = vor.u32 1.1754944e-38, %v3220
    %v3222 = vsel %vm3219, %v3221, %v3217
    %v3223 = vmul.f32 1.0, %v3222
    %v3224 = vrcp.pop %v3163
    %v3225 = vmul.f32 %v3163, %v3224
    %v3226 = vsub.f32 1.0, %v3225
    %v3227 = vmul.f32 %v3224, %v3226
    %v3228 = vadd.f32 %v3224, %v3227
    %vm3229 = vweird.f32 %v3163
    %vm3230 = vweird.f32 %v3224
    %vm3231 = vmor %vm3229, %vm3230
    %v3232 = vsel %vm3231, %v3224, %v3228
    %v3233 = vand.u32 2147483647, %v3163
    %vm3234 = vcmp.eq.f32.partialorder %v3233, 8.507059e+37
    %v3235 = vand.u32 %v3163, 2147483648
    %v3236 = vor.u32 1.1754944e-38, %v3235
    %v3237 = vsel %vm3234, %v3236, %v3232
    %v3238 = vmul.f32 1.0, %v3237
    %v3239 = vmul.f32 %v3178, 1.0614054
    %v3240 = vmul.f32 %v3193, 1.0614054
    %v3241 = vmul.f32 %v3208, 1.0614054
    %v3242 = vmul.f32 %v3223, 1.0614054
    %v3243 = vmul.f32 %v3238, 1.0614054
    %v3244 = vadd.f32 %v3239, -1.4531521
    %v3245 = vadd.f32 %v3240, -1.4531521
    %v3246 = vadd.f32 %v3241, -1.4531521
    %v3247 = vadd.f32 %v3242, -1.4531521
    %v3248 = vadd.f32 %v3243, -1.4531521
    %v3249 = vmul.f32 %v3244, %v3178
    %v3250 = vmul.f32 %v3245, %v3193
    %v3251 = vmul.f32 %v3246, %v3208
    %v3252 = vmul.f32 %v3247, %v3223
    %v3253 = vmul.f32 %v3248, %v3238
    %v3254 = vadd.f32 %v3249, 1.4214138
    %v3255 = vadd.f32 %v3250, 1.4214138
    %v3256 = vadd.f32 %v3251, 1.4214138
    %v3257 = vadd.f32 %v3252, 1.4214138
    %v3258 = vadd.f32 %v3253, 1.4214138
    %v3259 = vmul.f32 %v3254, %v3178
    %v3260 = vmul.f32 %v3255, %v3193
    %v3261 = vmul.f32 %v3256, %v3208
    %v3262 = vmul.f32 %v3257, %v3223
    %v3263 = vmul.f32 %v3258, %v3238
    %v3264 = vadd.f32 %v3259, -0.28449672
    %v3265 = vadd.f32 %v3260, -0.28449672
    %v3266 = vadd.f32 %v3261, -0.28449672
    %v3267 = vadd.f32 %v3262, -0.28449672
    %v3268 = vadd.f32 %v3263, -0.28449672
    %v3269 = vmul.f32 %v3264, %v3178
    %v3270 = vmul.f32 %v3265, %v3193
    %v3271 = vmul.f32 %v3266, %v3208
    %v3272 = vmul.f32 %v3267, %v3223
    %v3273 = vmul.f32 %v3268, %v3238
    %v3274 = vadd.f32 %v3269, 0.2548296
    %v3275 = vadd.f32 %v3270, 0.2548296
    %v3276 = vadd.f32 %v3271, 0.2548296
    %v3277 = vadd.f32 %v3272, 0.2548296
    %v3278 = vadd.f32 %v3273, 0.2548296
    %v3279 = vmul.f32 %v3274, %v3178
    %v3280 = vmul.f32 %v3275, %v3193
    %v3281 = vmul.f32 %v3276, %v3208
    %v3282 = vmul.f32 %v3277, %v3223
    %v3283 = vmul.f32 %v3278, %v3238
    %v3284 = vsub.f32 0.0, %v3149
    %v3285 = vsub.f32 0.0, %v3150
    %v3286 = vsub.f32 0.0, %v3151
    %v3287 = vsub.f32 0.0, %v3152
    %v3288 = vsub.f32 0.0, %v3153
    %v3289 = vmul.f32 %v3284, %v3149
    %v3290 = vmul.f32 %v3285, %v3150
    %v3291 = vmul.f32 %v3286, %v3151
    %v3292 = vmul.f32 %v3287, %v3152
    %v3293 = vmul.f32 %v3288, %v3153
    %v3294 = vmul.f32 %v3289, 1.442695
    %v3295 = vpow.pop %v3294
    %v3296 = vmul.f32 %v3290, 1.442695
    %v3297 = vpow.pop %v3296
    %v3298 = vmul.f32 %v3291, 1.442695
    %v3299 = vpow.pop %v3298
    %v3300 = vmul.f32 %v3292, 1.442695
    %v3301 = vpow.pop %v3300
    %v3302 = vmul.f32 %v3293, 1.442695
    %v3303 = vpow.pop %v3302
    %v3304 = vmul.f32 %v3279, %v3295
    %v3305 = vmul.f32 %v3280, %v3297
    %v3306 = vmul.f32 %v3281, %v3299
    %v3307 = vmul.f32 %v3282, %v3301
    %v3308 = vmul.f32 %v3283, %v3303
    %v3309 = vsub.f32 1.0, %v3304
    %v3310 = vsub.f32 1.0, %v3305
    %v3311 = vsub.f32 1.0, %v3306
    %v3312 = vsub.f32 1.0, %v3307
    %v3313 = vsub.f32 1.0, %v3308
    %vm3314 = vcmp.ge.f32.partialorder %v3144, 0.0
    %vm3315 = vcmp.ge.f32.partialorder %v3145, 0.0
    %vm3316 = vcmp.ge.f32.partialorder %v3146, 0.0
    %vm3317 = vcmp.ge.f32.partialorder %v3147, 0.0
    %vm3318 = vcmp.ge.f32.partialorder %v3148, 0.0
    %v3319 = vsub.f32 0.0, %v3309
    %v3320 = vsub.f32 0.0, %v3310
    %v3321 = vsub.f32 0.0, %v3311
    %v3322 = vsub.f32 0.0, %v3312
    %v3323 = vsub.f32 0.0, %v3313
    %v3324 = vsel %vm3314, %v3309, %v3319
    %v3325 = vsel %vm3315, %v3310, %v3320
    %v3326 = vsel %vm3316, %v3311, %v3321
    %v3327 = vsel %vm3317, %v3312, %v3322
    %v3328 = vsel %vm3318, %v3313, %v3323
    %v3329 = vadd.f32 %v3324, 1.0
    %v3330 = vadd.f32 %v3325, 1.0
    %v3331 = vadd.f32 %v3326, 1.0
    %v3332 = vadd.f32 %v3327, 1.0
    %v3333 = vadd.f32 %v3328, 1.0
    %v3334 = vmul.f32 %v3139, %v3329
    %v3335 = vmul.f32 %v3140, %v3330
    %v3336 = vmul.f32 %v3141, %v3331
    %v3337 = vmul.f32 %v3142, %v3332
    %v3338 = vmul.f32 %v3143, %v3333
    %v3339 = vld [vmem:[%s31] sm:$0xf]
    %v3340 = vld [vmem:[%s31 + $0x4] sm:$0xf]
    %v3341 = vld [vmem:[%s31 + $0x8] sm:$0xf]
    %v3342 = vld [vmem:[%s31 + $0xc] sm:$0xf]
    %v3343 = vld [vmem:[%s31 + $0x10] sm:$0xf]
    %v3344 = vld [vmem:[%s31 + $0x14] sm:$0xf]
    %v3345 = vld [vmem:[%s31 + $0x18] sm:$0xf]
    %v3346 = vld [vmem:[%s31 + $0x1c] sm:$0xf]
    %v3347 = vld [vmem:[%s31 + $0x20] sm:$0xf]
    %v3348 = vld [vmem:[%s31 + $0x24] sm:$0xf]
    %v3349 = vld [vmem:[%s31 + $0x28] sm:$0xf]
    %v3350 = vld [vmem:[%s31 + $0x2c] sm:$0xf]
    %v3351 = vld [vmem:[%s31 + $0x30] sm:$0xf]
    %v3352 = vld [vmem:[%s31 + $0x34] sm:$0xf]
    %v3353 = vld [vmem:[%s31 + $0x38] sm:$0xf]
    %v3354 = vld [vmem:[%s31 + $0x3c] sm:$0xf]
    %v3355 = vpack.c.bf16 %v3335, %v3334
    %v3356 = vpack.c.bf16 %v3337, %v3336
    %v3357 = vpack.c.bf16 %v3338, %v3338
    %v3374 = vunpack.c.l.b16 %v3339
    %v3375 = vunpack.c.l.b16 %v3340
    %v3376 = vunpack.c.l.b16 %v3341
    %v3377 = vunpack.c.l.b16 %v3342
    %v3378 = vunpack.c.l.b16 %v3343
    %v3379 = vunpack.c.l.b16 %v3344
    %v3380 = vunpack.c.l.b16 %v3345
    %v3381 = vunpack.c.l.b16 %v3346
    %v3382 = vunpack.c.l.b16 %v3347
    %v3383 = vunpack.c.l.b16 %v3348
    %v3384 = vunpack.c.l.b16 %v3349
    %v3385 = vunpack.c.l.b16 %v3350
    %v3386 = vunpack.c.l.b16 %v3351
    %v3387 = vunpack.c.l.b16 %v3352
    %v3388 = vunpack.c.l.b16 %v3353
    %v3389 = vunpack.c.l.b16 %v3354
    %v3390 = vpack.c.b16 %v3375, %v3374
    %v3391 = vpack.c.b16 %v3377, %v3376
    %v3392 = vpack.c.b16 %v3379, %v3378
    %v3393 = vpack.c.b16 %v3381, %v3380
    %v3394 = vpack.c.b16 %v3383, %v3382
    %v3395 = vpack.c.b16 %v3385, %v3384
    %v3396 = vpack.c.b16 %v3387, %v3386
    %v3397 = vpack.c.b16 %v3389, %v3388
    %3406 = vmatpush.bf16.msra.mxu0 %v3397
    %3407 = vmatpush.bf16.msra.mxu0 %v3396
    %3408 = vmatpush.bf16.msra.mxu0 %v3395
    %3409 = vmatpush.bf16.msra.mxu0 %v3394
    %3410 = vmatpush.bf16.msra.mxu0 %v3393
    %3411 = vmatpush.bf16.msra.mxu0 %v3392
    %3412 = vmatpush.bf16.msra.mxu0 %v3391
    %3413 = vmatpush.bf16.msra.mxu0 %v3390
    %3414 = vmatmul.bf16.gmra.mxu0 %v3355
    %v3415 = vpop.f32.mrf.mxu0
    %v3416 = vadd.f32 0.0, %v3415
    %v3417 = vpop.f32.mrf.mxu0
    %v3418 = vadd.f32 0.0, %v3417
    %3419 = vmatmul.bf16.gmra.mxu0 %v3356
    %v3420 = vpop.f32.mrf.mxu0
    %v3421 = vadd.f32 0.0, %v3420
    %v3422 = vpop.f32.mrf.mxu0
    %v3423 = vadd.f32 0.0, %v3422
    %3424 = vmatmul.bf16.gmra.mxu0 %v3357
    %v3425 = vpop.f32.mrf.mxu0
    %v3426 = vadd.f32 0.0, %v3425
    %v3427 = vpop.f32.mrf.mxu0
    %3428 = vdwg.mxu0
    %v3434 = vrot.slane %v3416, 1
    %v3435 = vrot.slane %v3416, 2
    %v3436 = vrot.slane %v3416, 3
    %v3437 = vrot.slane %v3416, 4
    %v3438 = vrot.slane %v3416, 5
    %v3439 = vrot.slane %v3416, 6
    %v3440 = vrot.slane %v3416, 7
    %v3441 = vrot.slane %v3418, 1
    %v3442 = vrot.slane %v3418, 2
    %v3443 = vrot.slane %v3418, 3
    %v3444 = vrot.slane %v3418, 4
    %v3445 = vrot.slane %v3418, 5
    %v3446 = vrot.slane %v3418, 6
    %v3447 = vrot.slane %v3418, 7
    %v3448 = vrot.slane %v3421, 1
    %v3449 = vrot.slane %v3421, 2
    %v3450 = vrot.slane %v3421, 3
    %v3451 = vrot.slane %v3421, 4
    %v3452 = vrot.slane %v3421, 5
    %v3453 = vrot.slane %v3421, 6
    %v3454 = vrot.slane %v3421, 7
    %v3455 = vrot.slane %v3423, 1
    %v3456 = vrot.slane %v3423, 2
    %v3457 = vrot.slane %v3423, 3
    %v3458 = vrot.slane %v3423, 4
    %v3459 = vrot.slane %v3423, 5
    %v3460 = vrot.slane %v3423, 6
    %v3461 = vrot.slane %v3423, 7
    %v3462 = vrot.slane %v3426, 1
    %v3492 = vadd.f32 %v2348, %v3416
    %v3493 = vadd.f32 %v2349, %v3434
    %v3494 = vadd.f32 %v2350, %v3435
    %v3495 = vadd.f32 %v2351, %v3436
    %v3496 = vadd.f32 %v2352, %v3437
    %v3497 = vadd.f32 %v2353, %v3438
    %v3498 = vadd.f32 %v2354, %v3439
    %v3499 = vadd.f32 %v2355, %v3440
    %v3500 = vadd.f32 %v2356, %v3418
    %v3501 = vadd.f32 %v2357, %v3441
    %v3502 = vadd.f32 %v2358, %v3442
    %v3503 = vadd.f32 %v2359, %v3443
    %v3504 = vadd.f32 %v2360, %v3444
    %v3505 = vadd.f32 %v2361, %v3445
    %v3506 = vadd.f32 %v2362, %v3446
    %v3507 = vadd.f32 %v2363, %v3447
    %v3508 = vadd.f32 %v2364, %v3421
    %v3509 = vadd.f32 %v2365, %v3448
    %v3510 = vadd.f32 %v2366, %v3449
    %v3511 = vadd.f32 %v2367, %v3450
    %v3512 = vadd.f32 %v2368, %v3451
    %v3513 = vadd.f32 %v2369, %v3452
    %v3514 = vadd.f32 %v2370, %v3453
    %v3515 = vadd.f32 %v2371, %v3454
    %v3516 = vadd.f32 %v2372, %v3423
    %v3517 = vadd.f32 %v2373, %v3455
    %v3518 = vadd.f32 %v2374, %v3456
    %v3519 = vadd.f32 %v2375, %v3457
    %v3520 = vadd.f32 %v2376, %v3458
    %v3521 = vadd.f32 %v2377, %v3459
    %v3522 = vadd.f32 %v2378, %v3460
    %v3523 = vadd.f32 %v2379, %v3461
    %v3524 = vadd.f32 %v2380, %v3426
    %v3525 = vadd.f32 %v2381, %v3462
    %v3526 = vld [vmem:[%s33] sm:$0x1]
    %v3528 = vperm.slane %v3526, 0
    %v3530 = vrot.slane %v3528, 1
    %v3531 = vrot.slane %v3528, 2
    %v3532 = vrot.slane %v3528, 3
    %v3533 = vrot.slane %v3528, 4
    %v3534 = vrot.slane %v3528, 5
    %v3535 = vrot.slane %v3528, 6
    %v3536 = vrot.slane %v3528, 7
    %v3544 = vadd.f32 %v3492, %v3528
    %v3545 = vadd.f32 %v3493, %v3530
    %v3546 = vadd.f32 %v3494, %v3531
    %v3547 = vadd.f32 %v3495, %v3532
    %v3548 = vadd.f32 %v3496, %v3533
    %v3549 = vadd.f32 %v3497, %v3534
    %v3550 = vadd.f32 %v3498, %v3535
    %v3551 = vadd.f32 %v3499, %v3536
    %v3552 = vadd.f32 %v3500, %v3528
    %v3553 = vadd.f32 %v3501, %v3530
    %v3554 = vadd.f32 %v3502, %v3531
    %v3555 = vadd.f32 %v3503, %v3532
    %v3556 = vadd.f32 %v3504, %v3533
    %v3557 = vadd.f32 %v3505, %v3534
    %v3558 = vadd.f32 %v3506, %v3535
    %v3559 = vadd.f32 %v3507, %v3536
    %v3560 = vadd.f32 %v3508, %v3528
    %v3561 = vadd.f32 %v3509, %v3530
    %v3562 = vadd.f32 %v3510, %v3531
    %v3563 = vadd.f32 %v3511, %v3532
    %v3564 = vadd.f32 %v3512, %v3533
    %v3565 = vadd.f32 %v3513, %v3534
    %v3566 = vadd.f32 %v3514, %v3535
    %v3567 = vadd.f32 %v3515, %v3536
    %v3568 = vadd.f32 %v3516, %v3528
    %v3569 = vadd.f32 %v3517, %v3530
    %v3570 = vadd.f32 %v3518, %v3531
    %v3571 = vadd.f32 %v3519, %v3532
    %v3572 = vadd.f32 %v3520, %v3533
    %v3573 = vadd.f32 %v3521, %v3534
    %v3574 = vadd.f32 %v3522, %v3535
    %v3575 = vadd.f32 %v3523, %v3536
    %v3576 = vadd.f32 %v3524, %v3528
    %v3577 = vadd.f32 %v3525, %v3530
    %3610 = vst [vmem:[#allocation1] ss:$9 sm:$0xff] %v3545
    %s3611 = scalar_lea.vmem [#allocation1], 1
    %3612 = vst [vmem:[%s3611] ss:$9 sm:$0xff] %v3546
    %s3613 = scalar_lea.vmem [#allocation1], 2
    %3614 = vst [vmem:[%s3613] ss:$9 sm:$0xff] %v3547
    %s3615 = scalar_lea.vmem [#allocation1], 3
    %3616 = vst [vmem:[%s3615] ss:$9 sm:$0xff] %v3548
    %v3617 = vld [vmem:[#allocation1] sm:$0xff]
    %3618 = vst [vmem:[#allocation1] ss:$9 sm:$0xff] %v3549
    %3619 = vst [vmem:[%s3611] ss:$9 sm:$0xff] %v3550
    %3620 = vst [vmem:[%s3613] ss:$9 sm:$0xff] %v3551
    %3621 = vst [vmem:[%s3615] ss:$9 sm:$0xff] %v3552
    %v3622 = vld [vmem:[#allocation1] sm:$0xff]
    %3623 = vst [vmem:[#allocation1] ss:$9 sm:$0xff] %v3553
    %3624 = vst [vmem:[%s3611] ss:$9 sm:$0xff] %v3554
    %3625 = vst [vmem:[%s3613] ss:$9 sm:$0xff] %v3555
    %3626 = vst [vmem:[%s3615] ss:$9 sm:$0xff] %v3556
    %v3627 = vld [vmem:[#allocation1] sm:$0xff]
    %3628 = vst [vmem:[#allocation1] ss:$9 sm:$0xff] %v3557
    %3629 = vst [vmem:[%s3611] ss:$9 sm:$0xff] %v3558
    %3630 = vst [vmem:[%s3613] ss:$9 sm:$0xff] %v3559
    %3631 = vst [vmem:[%s3615] ss:$9 sm:$0xff] %v3560
    %v3632 = vld [vmem:[#allocation1] sm:$0xff]
    %3633 = vst [vmem:[#allocation1] ss:$9 sm:$0xff] %v3562
    %3634 = vst [vmem:[%s3611] ss:$9 sm:$0xff] %v3563
    %3635 = vst [vmem:[%s3613] ss:$9 sm:$0xff] %v3564
    %3636 = vst [vmem:[%s3615] ss:$9 sm:$0xff] %v3565
    %v3637 = vld [vmem:[#allocation1] sm:$0xff]
    %3638 = vst [vmem:[#allocation1] ss:$9 sm:$0xff] %v3566
    %3639 = vst [vmem:[%s3611] ss:$9 sm:$0xff] %v3567
    %3640 = vst [vmem:[%s3613] ss:$9 sm:$0xff] %v3568
    %3641 = vst [vmem:[%s3615] ss:$9 sm:$0xff] %v3569
    %v3642 = vld [vmem:[#allocation1] sm:$0xff]
    %3643 = vst [vmem:[#allocation1] ss:$9 sm:$0xff] %v3570
    %3644 = vst [vmem:[%s3611] ss:$9 sm:$0xff] %v3571
    %3645 = vst [vmem:[%s3613] ss:$9 sm:$0xff] %v3572
    %3646 = vst [vmem:[%s3615] ss:$9 sm:$0xff] %v3573
    %v3647 = vld [vmem:[#allocation1] sm:$0xff]
    %3648 = vst [vmem:[#allocation1] ss:$9 sm:$0xff] %v3574
    %3649 = vst [vmem:[%s3611] ss:$9 sm:$0xff] %v3575
    %3650 = vst [vmem:[%s3613] ss:$9 sm:$0xff] %v3576
    %3651 = vst [vmem:[%s3615] ss:$9 sm:$0xff] %v3577
    %v3652 = vld [vmem:[#allocation1] sm:$0xff]
    %v3654 = vrot.slane 0.0, 7
    %v3655 = vrot.slane %v3617, 7
    %v3656 = vrot.slane %v3622, 7
    %v3657 = vrot.slane %v3627, 7
    %v3658 = vrot.slane %v3632, 7
    %v3659 = vrot.slane %v3637, 7
    %v3660 = vrot.slane %v3642, 7
    %v3661 = vrot.slane %v3647, 7
    %v3662 = vrot.slane %v3652, 7
    %v3672 = vsel %vm235, 0.0, %v3654
    %v3673 = vsel %vm235, 0.0, %v3655
    %v3674 = vsel %vm235, 0.0, %v3656
    %v3675 = vsel %vm235, 0.0, %v3657
    %v3676 = vsel %vm235, 0.0, %v3658
    %v3677 = vsel %vm235, 0.0, %v3659
    %v3678 = vsel %vm235, 0.0, %v3660
    %v3679 = vsel %vm235, 0.0, %v3661
    %v3680 = vsel %vm235, 0.0, %v3662
    %vm3681 = vcmask 1044480
    %v3682 = vsel %vm3681, %v3672, 0.0
    %v3683 = vsel %vm3681, %v3673, 0.0
    %v3684 = vsel %vm3681, %v3674, 0.0
    %v3685 = vsel %vm3681, %v3675, 0.0
    %v3686 = vsel %vm3681, %v3676, 0.0
    %v3687 = vsel %vm3681, %v3677, 0.0
    %v3688 = vsel %vm3681, %v3678, 0.0
    %v3689 = vsel %vm3681, %v3679, 0.0
    %v3690 = vsel %vm3681, %v3680, 0.0
    %3700 = vrot.lane.b32.xlu0 %v3682, 32
    %v3701 = vpop.permute.xlu0 %3700
    %3702 = vrot.lane.b32.xlu0 %v3683, 32
    %v3703 = vpop.permute.xlu0 %3702
    %3704 = vrot.lane.b32.xlu0 %v3684, 32
    %v3705 = vpop.permute.xlu0 %3704
    %3706 = vrot.lane.b32.xlu0 %v3685, 32
    %v3707 = vpop.permute.xlu0 %3706
    %3708 = vrot.lane.b32.xlu0 %v3686, 32
    %v3709 = vpop.permute.xlu0 %3708
    %3710 = vrot.lane.b32.xlu0 %v3687, 32
    %v3711 = vpop.permute.xlu0 %3710
    %3712 = vrot.lane.b32.xlu0 %v3688, 32
    %v3713 = vpop.permute.xlu0 %3712
    %3714 = vrot.lane.b32.xlu0 %v3689, 32
    %v3715 = vpop.permute.xlu0 %3714
    %3716 = vrot.lane.b32.xlu0 %v3690, 32
    %v3717 = vpop.permute.xlu0 %3716
    %v3727 = vsel %vm361, %v3682, %v3701
    %v3728 = vsel %vm361, %v3683, %v3703
    %v3729 = vsel %vm361, %v3684, %v3705
    %v3730 = vsel %vm361, %v3685, %v3707
    %v3731 = vsel %vm361, %v3686, %v3709
    %v3732 = vsel %vm361, %v3687, %v3711
    %v3733 = vsel %vm361, %v3688, %v3713
    %v3734 = vsel %vm361, %v3689, %v3715
    %v3735 = vsel %vm361, %v3690, %v3717
    %v3736 = vld [vmem:[%s35] sm:$0x7]
    %v3737 = vld [vmem:[%s35 + $0x4] sm:$0x7]
    %v3738 = vld [vmem:[%s35 + $0x8] sm:$0x7]
    %v3739 = vperm.slane %v3736, 0
    %v3740 = vmul.f32 %v3727, %v3739
    %v3741 = vmul.f32 %v3729, %v3739
    %v3742 = vmul.f32 %v3733, %v3739
    %v3743 = vadd.f32 %v3740, 0.0
    %v3744 = vadd.f32 %v3741, 0.0
    %v3745 = vadd.f32 %v3742, 0.0
    %v3746 = vperm.slane %v3736, 1
    %v3747 = vmul.f32 %v3727, %v3746
    %v3748 = vmul.f32 %v3729, %v3746
    %v3749 = vmul.f32 %v3733, %v3746
    %v3753 = vrot.slane %v3747, 1
    %v3754 = vrot.slane %v3748, 1
    %v3755 = vrot.slane %v3749, 1
    %v3759 = vadd.f32 %v3743, %v3753
    %v3760 = vadd.f32 %v3744, %v3754
    %v3761 = vadd.f32 %v3745, %v3755
    %v3762 = vperm.slane %v3736, 2
    %v3763 = vmul.f32 %v3727, %v3762
    %v3764 = vmul.f32 %v3729, %v3762
    %v3765 = vmul.f32 %v3733, %v3762
    %v3769 = vrot.slane %v3763, 2
    %v3770 = vrot.slane %v3764, 2
    %v3771 = vrot.slane %v3765, 2
    %v3775 = vadd.f32 %v3759, %v3769
    %v3776 = vadd.f32 %v3760, %v3770
    %v3777 = vadd.f32 %v3761, %v3771
    %v3778 = vperm.slane %v3737, 0
    %v3779 = vmul.f32 %v3728, %v3778
    %v3780 = vmul.f32 %v3730, %v3778
    %v3781 = vmul.f32 %v3732, %v3778
    %v3782 = vmul.f32 %v3734, %v3778
    %v3783 = vadd.f32 %v3775, %v3779
    %v3784 = vadd.f32 %v3776, %v3780
    %v3785 = vadd.f32 %v3775, %v3781
    %v3786 = vadd.f32 %v3777, %v3782
    %v3787 = vperm.slane %v3737, 1
    %v3788 = vmul.f32 %v3728, %v3787
    %v3789 = vmul.f32 %v3730, %v3787
    %v3790 = vmul.f32 %v3732, %v3787
    %v3791 = vmul.f32 %v3734, %v3787
    %v3796 = vrot.slane %v3788, 1
    %v3797 = vrot.slane %v3789, 1
    %v3798 = vrot.slane %v3790, 1
    %v3799 = vrot.slane %v3791, 1
    %v3804 = vadd.f32 %v3783, %v3796
    %v3805 = vadd.f32 %v3784, %v3797
    %v3806 = vadd.f32 %v3785, %v3798
    %v3807 = vadd.f32 %v3786, %v3799
    %v3808 = vperm.slane %v3737, 2
    %v3809 = vmul.f32 %v3728, %v3808
    %v3810 = vmul.f32 %v3730, %v3808
    %v3811 = vmul.f32 %v3732, %v3808
    %v3812 = vmul.f32 %v3734, %v3808
    %v3817 = vrot.slane %v3809, 2
    %v3818 = vrot.slane %v3810, 2
    %v3819 = vrot.slane %v3811, 2
    %v3820 = vrot.slane %v3812, 2
    %v3825 = vadd.f32 %v3804, %v3817
    %v3826 = vadd.f32 %v3805, %v3818
    %v3827 = vadd.f32 %v3806, %v3819
    %v3828 = vadd.f32 %v3807, %v3820
    %v3829 = vperm.slane %v3738, 0
    %v3830 = vmul.f32 %v3729, %v3829
    %v3831 = vmul.f32 %v3731, %v3829
    %v3832 = vmul.f32 %v3733, %v3829
    %v3833 = vmul.f32 %v3735, %v3829
    %v3834 = vadd.f32 %v3825, %v3830
    %v3835 = vadd.f32 %v3826, %v3831
    %v3836 = vadd.f32 %v3827, %v3832
    %v3837 = vadd.f32 %v3828, %v3833
    %v3838 = vperm.slane %v3738, 1
    %v3839 = vmul.f32 %v3729, %v3838
    %v3840 = vmul.f32 %v3731, %v3838
    %v3841 = vmul.f32 %v3733, %v3838
    %v3842 = vmul.f32 %v3735, %v3838
    %v3847 = vrot.slane %v3839, 1
    %v3848 = vrot.slane %v3840, 1
    %v3849 = vrot.slane %v3841, 1
    %v3850 = vrot.slane %v3842, 1
    %v3855 = vadd.f32 %v3834, %v3847
    %v3856 = vadd.f32 %v3835, %v3848
    %v3857 = vadd.f32 %v3836, %v3849
    %v3858 = vadd.f32 %v3837, %v3850
    %v3859 = vperm.slane %v3738, 2
    %v3860 = vmul.f32 %v3729, %v3859
    %v3861 = vmul.f32 %v3731, %v3859
    %v3862 = vmul.f32 %v3733, %v3859
    %v3863 = vmul.f32 %v3735, %v3859
    %v3868 = vrot.slane %v3860, 2
    %v3869 = vrot.slane %v3861, 2
    %v3870 = vrot.slane %v3862, 2
    %v3871 = vrot.slane %v3863, 2
    %v3876 = vadd.f32 %v3855, %v3868
    %v3877 = vadd.f32 %v3856, %v3869
    %v3878 = vadd.f32 %v3857, %v3870
    %v3879 = vadd.f32 %v3858, %v3871
    %v3880 = vld [vmem:[%s37] sm:$0x1]
    %v3882 = vperm.slane %v3880, 0
    %v3884 = vadd.f32 %v3876, %v3882
    %v3885 = vadd.f32 %v3877, %v3882
    %v3886 = vadd.f32 %v3878, %v3882
    %v3887 = vadd.f32 %v3879, %v3882
    %v3892 = vrot.slane %v3884, 1
    %v3893 = vrot.slane %v3885, 1
    %v3894 = vrot.slane %v3886, 1
    %v3895 = vrot.slane %v3887, 1
    %v3900 = vsel %vm235, %v3884, %v3892
    %v3901 = vsel %vm235, %v3885, %v3893
    %v3902 = vsel %vm235, %v3886, %v3894
    %v3903 = vsel %vm235, %v3887, %v3895
    %v3904 = vld [vmem:[%s39] sm:$0xf]
    %v3905 = vld [vmem:[%s39 + $0x4] sm:$0xf]
    %v3906 = vld [vmem:[%s39 + $0x8] sm:$0xf]
    %v3907 = vld [vmem:[%s39 + $0xc] sm:$0xf]
    %v3908 = vpack.c.bf16 %v3544, %v3544
    %v3909 = vpack.c.bf16 %v3561, %v3561
    %v3910 = vld [vmem:[%s41] sm:$0x1]
    %v3912 = vperm.slane %v3910, 0
    %v3916 = vunpack.c.l.b16 %v3908
    %v3917 = vunpack.c.l.b16 %v3909
    %v3918 = vrot.slane %v3917, 7
    %vm3919 = vcmask 1041409
    %v3920 = vsel %vm3919, %v3918, %v3916
    %v3921 = vpack.c.b16 %v3920, %v3920
    %v3926 = vunpack.c.l.b16 %v3904
    %v3927 = vunpack.c.l.b16 %v3905
    %v3928 = vunpack.c.l.b16 %v3906
    %v3929 = vunpack.c.l.b16 %v3907
    %v3930 = vpack.c.b16 %v3927, %v3926
    %v3931 = vpack.c.b16 %v3929, %v3928
    %v3935 = vsel %vm361, %v3921, 0
    %3937 = vmatpush.bf16.msra.mxu0 0
    %3938 = vmatpush.bf16.msra.mxu0 0
    %3939 = vmatpush.bf16.msra.mxu0 0
    %3940 = vmatpush.bf16.msra.mxu0 0
    %3941 = vmatpush.bf16.msra.mxu0 0
    %3942 = vmatpush.bf16.msra.mxu0 0
    %3943 = vmatpush.bf16.msra.mxu0 %v3931
    %3944 = vmatpush.bf16.msra.mxu0 %v3930
    %3945 = vmatmul.bf16.gmra.mxu0 %v3935
    %v3946 = vpop.f32.mrf.mxu0
    %v3947 = vadd.f32 %v3912, %v3946
    %v3948 = vpop.f32.mrf.mxu0
    %3949 = vdwg.mxu0
    %v3951 = vrot.slane %v3947, 1
    %3957 = vst [vmem:[#allocation1] ss:$4 sm:$0xff] %v3900
    %s3958 = scalar_lea.vmem [#allocation1], 1
    %3959 = vst [vmem:[%s3958] ss:$4 sm:$0xff] %v3901
    %v3960 = vld.sshfl [vmem:[#allocation1] sm:$0xff pattern:$0x73625140]
    %s3961 = scalar_lea.vmem [#allocation1], 32
    %3962 = vst [vmem:[%s3961] ss:$4 sm:$0xff] %v3902
    %s3963 = scalar_lea.vmem [#allocation1], 33
    %3964 = vst [vmem:[%s3963] ss:$4 sm:$0xff] %v3903
    %v3965 = vld.sshfl [vmem:[#allocation1 + $0x20] sm:$0xff pattern:$0x73625140]
    %v3966 = vrot.slane %v3960, 7
    %v3967 = vrot.slane %v3965, 7
    %v3970 = vsel %vm235, %v3947, %v3966
    %v3971 = vsel %vm235, %v3951, %v3967
    %v3974 = vrot.slane %v3970, 1
    %v3975 = vrot.slane %v3970, 2
    %v3976 = vrot.slane %v3970, 3
    %v3977 = vrot.slane %v3970, 4
    %v3978 = vrot.slane %v3971, 1
    %v3979 = vrot.slane %v3971, 2
    %v3980 = vrot.slane %v3971, 3
    %v3981 = vrot.slane %v3971, 4
    %v3990 = vld [vmem:[%s43] sm:$0x1]
    %v3991 = vld [vmem:[%s45] sm:$0x1]
    %3992 = vst [vmem:[#allocation1] ss:$9 sm:$0xff] %v3970
    %s3993 = scalar_lea.vmem [#allocation1], 1
    %3994 = vst [vmem:[%s3993] ss:$9 sm:$0xff] %v3974
    %s3995 = scalar_lea.vmem [#allocation1], 2
    %3996 = vst [vmem:[%s3995] ss:$9 sm:$0xff] %v3975
    %s3997 = scalar_lea.vmem [#allocation1], 3
    %3998 = vst [vmem:[%s3997] ss:$9 sm:$0xff] %v3976
    %s3999 = scalar_lea.vmem [#allocation1], 4
    %4000 = vst [vmem:[%s3999] ss:$9 sm:$0xff] %v3977
    %s4001 = scalar_lea.vmem [#allocation1], 5
    %4002 = vst [vmem:[%s4001] ss:$9 sm:$0xff] %v3971
    %s4003 = scalar_lea.vmem [#allocation1], 6
    %4004 = vst [vmem:[%s4003] ss:$9 sm:$0xff] %v3978
    %s4005 = scalar_lea.vmem [#allocation1], 7
    %4006 = vst [vmem:[%s4005] ss:$9 sm:$0xff] %v3979
    %v4007 = vld [vmem:[#allocation1] sm:$0xff]
    %4008 = vst [vmem:[#allocation1] ss:$9 sm:$0xff] %v3980
    %4009 = vst [vmem:[%s3993] ss:$9 sm:$0xff] %v3981
    %v4010 = vld [vmem:[#allocation1] sm:$0xff]
    %vm4013 = vcmask 523264
    %v4014 = vsel %vm4013, %v4007, 0.0
    %4015 = vadd.xlane.f32.xlu0 %v4014
    %v4016 = vpop.xlane.xlu0 %4015
    %vm4017 = vcmask 517120
    %v4018 = vsel %vm4017, %v4010, 0.0
    %4019 = vadd.xlane.f32.xlu0 %v4018
    %v4020 = vpop.xlane.xlu0 %4019
    %v4021 = vrcp.pop 64.0
    %v4022 = vmul.f32 64.0, %v4021
    %v4023 = vsub.f32 1.0, %v4022
    %v4024 = vmul.f32 %v4021, %v4023
    %v4025 = vadd.f32 %v4021, %v4024
    %vm4026 = vweird.f32 %v4021
    %v4027 = vsel %vm4026, %v4021, %v4025
    %v4028 = vmul.f32 %v4016, %v4027
    %v4029 = vmul.f32 %v4020, %v4027
    %v4032 = vperm.slane %v4028, 0
    %v4033 = vperm.slane %v4028, 1
    %v4034 = vperm.slane %v4028, 2
    %v4035 = vperm.slane %v4028, 3
    %v4036 = vperm.slane %v4028, 4
    %v4037 = vperm.slane %v4028, 5
    %v4038 = vperm.slane %v4028, 6
    %v4039 = vperm.slane %v4028, 7
    %v4040 = vperm.slane %v4029, 0
    %v4041 = vperm.slane %v4029, 1
    %v4052 = vsub.f32 %v3970, %v4032
    %v4053 = vsub.f32 %v3974, %v4033
    %v4054 = vsub.f32 %v3975, %v4034
    %v4055 = vsub.f32 %v3976, %v4035
    %v4056 = vsub.f32 %v3977, %v4036
    %v4057 = vsub.f32 %v3971, %v4037
    %v4058 = vsub.f32 %v3978, %v4038
    %v4059 = vsub.f32 %v3979, %v4039
    %v4060 = vsub.f32 %v3980, %v4040
    %v4061 = vsub.f32 %v3981, %v4041
    %v4062 = vmul.f32 %v4052, %v4052
    %v4063 = vmul.f32 %v4053, %v4053
    %v4064 = vmul.f32 %v4054, %v4054
    %v4065 = vmul.f32 %v4055, %v4055
    %v4066 = vmul.f32 %v4056, %v4056
    %v4067 = vmul.f32 %v4057, %v4057
    %v4068 = vmul.f32 %v4058, %v4058
    %v4069 = vmul.f32 %v4059, %v4059
    %v4070 = vmul.f32 %v4060, %v4060
    %v4071 = vmul.f32 %v4061, %v4061
    %4082 = vst [vmem:[#allocation1] ss:$9 sm:$0xff] %v4062
    %s4083 = scalar_lea.vmem [#allocation1], 1
    %4084 = vst [vmem:[%s4083] ss:$9 sm:$0xff] %v4063
    %s4085 = scalar_lea.vmem [#allocation1], 2
    %4086 = vst [vmem:[%s4085] ss:$9 sm:$0xff] %v4064
    %s4087 = scalar_lea.vmem [#allocation1], 3
    %4088 = vst [vmem:[%s4087] ss:$9 sm:$0xff] %v4065
    %s4089 = scalar_lea.vmem [#allocation1], 4
    %4090 = vst [vmem:[%s4089] ss:$9 sm:$0xff] %v4066
    %s4091 = scalar_lea.vmem [#allocation1], 5
    %4092 = vst [vmem:[%s4091] ss:$9 sm:$0xff] %v4067
    %s4093 = scalar_lea.vmem [#allocation1], 6
    %4094 = vst [vmem:[%s4093] ss:$9 sm:$0xff] %v4068
    %s4095 = scalar_lea.vmem [#allocation1], 7
    %4096 = vst [vmem:[%s4095] ss:$9 sm:$0xff] %v4069
    %v4097 = vld [vmem:[#allocation1] sm:$0xff]
    %4098 = vst [vmem:[#allocation1] ss:$9 sm:$0xff] %v4070
    %4099 = vst [vmem:[%s4083] ss:$9 sm:$0xff] %v4071
    %v4100 = vld [vmem:[#allocation1] sm:$0xff]
    %v4103 = vsel %vm4013, %v4097, 0.0
    %4104 = vadd.xlane.f32.xlu0 %v4103
    %v4105 = vpop.xlane.xlu0 %4104
    %v4106 = vsel %vm4017, %v4100, 0.0
    %4107 = vadd.xlane.f32.xlu0 %v4106
    %v4108 = vpop.xlane.xlu0 %4107
    %v4109 = vmul.f32 %v4105, %v4027
    %v4110 = vmul.f32 %v4108, %v4027
    %v4111 = vadd.f32 %v4109, 1e-06
    %v4112 = vadd.f32 %v4110, 1e-06
    %v4113 = vrsqrt.pop %v4111
    %v4114 = vmul.f32 %v4113, %v4111
    %v4115 = vmul.f32 %v4114, %v4113
    %v4116 = vmul.f32 0.5, %v4115
    %v4117 = vsub.f32 1.5, %v4116
    %v4118 = vmul.f32 %v4113, %v4117
    %vm4119 = vweird.f32 %v4111
    %vm4120 = vweird.f32 %v4113
    %vm4121 = vmor %vm4119, %vm4120
    %v4122 = vsel %vm4121, %v4113, %v4118
    %v4123 = vrsqrt.pop %v4112
    %v4124 = vmul.f32 %v4123, %v4112
    %v4125 = vmul.f32 %v4124, %v4123
    %v4126 = vmul.f32 0.5, %v4125
    %v4127 = vsub.f32 1.5, %v4126
    %v4128 = vmul.f32 %v4123, %v4127
    %vm4129 = vweird.f32 %v4112
    %vm4130 = vweird.f32 %v4123
    %vm4131 = vmor %vm4129, %vm4130
    %v4132 = vsel %vm4131, %v4123, %v4128
    %v4135 = vperm.slane %v4122, 0
    %v4136 = vperm.slane %v4122, 1
    %v4137 = vperm.slane %v4122, 2
    %v4138 = vperm.slane %v4122, 3
    %v4139 = vperm.slane %v4122, 4
    %v4140 = vperm.slane %v4122, 5
    %v4141 = vperm.slane %v4122, 6
    %v4142 = vperm.slane %v4122, 7
    %v4143 = vperm.slane %v4132, 0
    %v4144 = vperm.slane %v4132, 1
    %v4155 = vmul.f32 %v4052, %v4135
    %v4156 = vmul.f32 %v4053, %v4136
    %v4157 = vmul.f32 %v4054, %v4137
    %v4158 = vmul.f32 %v4055, %v4138
    %v4159 = vmul.f32 %v4056, %v4139
    %v4160 = vmul.f32 %v4057, %v4140
    %v4161 = vmul.f32 %v4058, %v4141
    %v4162 = vmul.f32 %v4059, %v4142
    %v4163 = vmul.f32 %v4060, %v4143
    %v4164 = vmul.f32 %v4061, %v4144
    %v4166 = vperm.slane %v3990, 0
    %v4168 = vrot.slane %v4166, 1
    %v4169 = vrot.slane %v4166, 2
    %v4170 = vrot.slane %v4166, 3
    %v4171 = vrot.slane %v4166, 4
    %v4172 = vrot.slane %v4166, 5
    %v4173 = vrot.slane %v4166, 6
    %v4174 = vrot.slane %v4166, 7
    %v4182 = vmul.f32 %v4155, %v4166
    %v4183 = vmul.f32 %v4156, %v4168
    %v4184 = vmul.f32 %v4157, %v4169
    %v4185 = vmul.f32 %v4158, %v4170
    %v4186 = vmul.f32 %v4159, %v4171
    %v4187 = vmul.f32 %v4160, %v4172
    %v4188 = vmul.f32 %v4161, %v4173
    %v4189 = vmul.f32 %v4162, %v4174
    %v4190 = vmul.f32 %v4163, %v4166
    %v4191 = vmul.f32 %v4164, %v4168
    %v4193 = vperm.slane %v3991, 0
    %v4195 = vrot.slane %v4193, 1
    %v4196 = vrot.slane %v4193, 2
    %v4197 = vrot.slane %v4193, 3
    %v4198 = vrot.slane %v4193, 4
    %v4199 = vrot.slane %v4193, 5
    %v4200 = vrot.slane %v4193, 6
    %v4201 = vrot.slane %v4193, 7
    %v4209 = vadd.f32 %v4182, %v4193
    %v4210 = vadd.f32 %v4183, %v4195
    %v4211 = vadd.f32 %v4184, %v4196
    %v4212 = vadd.f32 %v4185, %v4197
    %v4213 = vadd.f32 %v4186, %v4198
    %v4214 = vadd.f32 %v4187, %v4199
    %v4215 = vadd.f32 %v4188, %v4200
    %v4216 = vadd.f32 %v4189, %v4201
    %v4217 = vadd.f32 %v4190, %v4193
    %v4218 = vadd.f32 %v4191, %v4195
    %v4219 = vld [vmem:[%s47] sm:$0xff]
    %v4220 = vld [vmem:[%s47 + $0x8] sm:$0xff]
    %v4221 = vld [vmem:[%s47 + $0x10] sm:$0xff]
    %v4222 = vld [vmem:[%s47 + $0x18] sm:$0xff]
    %v4223 = vld [vmem:[%s47 + $0x20] sm:$0xff]
    %v4224 = vld [vmem:[%s47 + $0x28] sm:$0xff]
    %v4225 = vld [vmem:[%s47 + $0x30] sm:$0xff]
    %v4226 = vld [vmem:[%s47 + $0x38] sm:$0xff]
    %4237 = vst [vmem:[#allocation1] ss:$9 sm:$0xff] %v4209
    %s4238 = scalar_lea.vmem [#allocation1], 1
    %4239 = vst [vmem:[%s4238] ss:$9 sm:$0xff] %v4210
    %s4240 = scalar_lea.vmem [#allocation1], 2
    %4241 = vst [vmem:[%s4240] ss:$9 sm:$0xff] %v4211
    %s4242 = scalar_lea.vmem [#allocation1], 3
    %4243 = vst [vmem:[%s4242] ss:$9 sm:$0xff] %v4212
    %s4244 = scalar_lea.vmem [#allocation1], 4
    %4245 = vst [vmem:[%s4244] ss:$9 sm:$0xff] %v4213
    %s4246 = scalar_lea.vmem [#allocation1], 5
    %4247 = vst [vmem:[%s4246] ss:$9 sm:$0xff] %v4214
    %s4248 = scalar_lea.vmem [#allocation1], 6
    %4249 = vst [vmem:[%s4248] ss:$9 sm:$0xff] %v4215
    %s4250 = scalar_lea.vmem [#allocation1], 7
    %4251 = vst [vmem:[%s4250] ss:$9 sm:$0xff] %v4216
    %v4252 = vld [vmem:[#allocation1] sm:$0xff]
    %4253 = vst [vmem:[#allocation1] ss:$9 sm:$0xff] %v4217
    %4254 = vst [vmem:[%s4238] ss:$9 sm:$0xff] %v4218
    %v4255 = vld [vmem:[#allocation1] sm:$0xff]
    %v4258 = vpack.c.bf16 %v4255, %v4252
    %v4259 = vld [vmem:[%s49] sm:$0x3]
    %v4261 = vperm.slane %v4259, 0
    %v4262 = vperm.slane %v4259, 1
    %v4273 = vunpack.c.l.b16 %v4219
    %v4274 = vunpack.c.h.b16 %v4219
    %v4275 = vunpack.c.l.b16 %v4220
    %v4276 = vunpack.c.h.b16 %v4220
    %v4277 = vunpack.c.l.b16 %v4221
    %v4278 = vunpack.c.h.b16 %v4221
    %v4279 = vunpack.c.l.b16 %v4222
    %v4280 = vunpack.c.h.b16 %v4222
    %v4281 = vunpack.c.l.b16 %v4223
    %v4282 = vunpack.c.h.b16 %v4223
    %v4283 = vunpack.c.l.b16 %v4224
    %v4284 = vunpack.c.h.b16 %v4224
    %v4285 = vunpack.c.l.b16 %v4225
    %v4286 = vunpack.c.h.b16 %v4225
    %v4287 = vunpack.c.l.b16 %v4226
    %v4288 = vunpack.c.h.b16 %v4226
    %v4289 = vpack.c.b16 %v4275, %v4273
    %v4290 = vpack.c.b16 %v4276, %v4274
    %v4291 = vpack.c.b16 %v4279, %v4277
    %v4292 = vpack.c.b16 %v4280, %v4278
    %v4293 = vpack.c.b16 %v4283, %v4281
    %v4294 = vpack.c.b16 %v4284, %v4282
    %v4295 = vpack.c.b16 %v4287, %v4285
    %v4296 = vpack.c.b16 %v4288, %v4286
    %v4306 = vsel %vm4013, %v4258, 0
    %4308 = vmatpush.bf16.msra.mxu0 0
    %4309 = vmatpush.bf16.msra.mxu0 0
    %4310 = vmatpush.bf16.msra.mxu0 0
    %4311 = vmatpush.bf16.msra.mxu0 0
    %4312 = vmatpush.bf16.msra.mxu0 %v4295
    %4313 = vmatpush.bf16.msra.mxu0 %v4293
    %4314 = vmatpush.bf16.msra.mxu0 %v4291
    %4315 = vmatpush.bf16.msra.mxu0 %v4289
    %4316 = vmatmul.bf16.gmra.mxu0 %v4306
    %v4317 = vpop.f32.mrf.mxu0
    %v4318 = vadd.f32 %v4261, %v4317
    %v4319 = vpop.f32.mrf.mxu0
    %v4320 = vadd.f32 %v4261, %v4319
    %4321 = vdwg.mxu0
    %4322 = vmatpush.bf16.msra.mxu0 0
    %4323 = vmatpush.bf16.msra.mxu0 0
    %4324 = vmatpush.bf16.msra.mxu0 0
    %4325 = vmatpush.bf16.msra.mxu0 0
    %4326 = vmatpush.bf16.msra.mxu0 %v4296
    %4327 = vmatpush.bf16.msra.mxu0 %v4294
    %4328 = vmatpush.bf16.msra.mxu0 %v4292
    %4329 = vmatpush.bf16.msra.mxu0 %v4290
    %4330 = vmatmul.bf16.gmra.mxu0 %v4306
    %v4331 = vpop.f32.mrf.mxu0
    %v4332 = vadd.f32 %v4262, %v4331
    %v4333 = vpop.f32.mrf.mxu0
    %v4334 = vadd.f32 %v4262, %v4333
    %4335 = vdwg.mxu0
    %v4340 = vrot.slane %v4332, 7
    %v4341 = vrot.slane %v4334, 7
    %v4342 = vsel %vm235, %v4318, %v4340
    %v4343 = vsel %vm3919, %v4318, %v4340
    %v4344 = vrot.slane %v4343, 1
    %vm4345 = vcmask 1042434
    %v4346 = vsel %vm4345, %v4318, %v4340
    %v4347 = vrot.slane %v4346, 2
    %vm4348 = vcmask 1043459
    %v4349 = vsel %vm4348, %v4318, %v4340
    %v4350 = vrot.slane %v4349, 3
    %vm4351 = vcmask 1044484
    %v4352 = vsel %vm4351, %v4318, %v4340
    %v4353 = vrot.slane %v4352, 4
    %vm4354 = vcmask 1045509
    %v4355 = vsel %vm4354, %v4318, %v4340
    %v4356 = vrot.slane %v4355, 5
    %vm4357 = vcmask 1046534
    %v4358 = vsel %vm4357, %v4318, %v4340
    %v4359 = vrot.slane %v4358, 6
    %vm4360 = vcmask 1046528
    %v4361 = vsel %vm4360, %v4340, %v4318
    %v4362 = vrot.slane %v4361, 7
    %v4363 = vsel %vm235, %v4320, %v4341
    %v4364 = vsel %vm3919, %v4320, %v4341
    %v4365 = vrot.slane %v4364, 1
    %v4366 = vld [vmem:[%s51] sm:$0xf]
    %v4367 = vld [vmem:[%s51 + $0x4] sm:$0xf]
    %v4368 = vld [vmem:[%s51 + $0x8] sm:$0xf]
    %v4369 = vld [vmem:[%s51 + $0xc] sm:$0xf]
    %v4370 = vld [vmem:[%s51 + $0x10] sm:$0xf]
    %v4371 = vld [vmem:[%s51 + $0x14] sm:$0xf]
    %v4372 = vld [vmem:[%s51 + $0x18] sm:$0xf]
    %v4373 = vld [vmem:[%s51 + $0x1c] sm:$0xf]
    %4374 = vst [vmem:[#allocation1] ss:$9 sm:$0xff] %v4342
    %s4375 = scalar_lea.vmem [#allocation1], 1
    %4376 = vst [vmem:[%s4375] ss:$9 sm:$0xff] %v4344
    %s4377 = scalar_lea.vmem [#allocation1], 2
    %4378 = vst [vmem:[%s4377] ss:$9 sm:$0xff] %v4347
    %s4379 = scalar_lea.vmem [#allocation1], 3
    %4380 = vst [vmem:[%s4379] ss:$9 sm:$0xff] %v4350
    %s4381 = scalar_lea.vmem [#allocation1], 4
    %4382 = vst [vmem:[%s4381] ss:$9 sm:$0xff] %v4353
    %v4383 = vld [vmem:[#allocation1] sm:$0xff]
    %4384 = vst [vmem:[#allocation1] ss:$9 sm:$0xff] %v4356
    %4385 = vst [vmem:[%s4375] ss:$9 sm:$0xff] %v4359
    %4386 = vst [vmem:[%s4377] ss:$9 sm:$0xff] %v4362
    %4387 = vst [vmem:[%s4379] ss:$9 sm:$0xff] %v4363
    %4388 = vst [vmem:[%s4381] ss:$9 sm:$0xff] %v4365
    %v4389 = vld [vmem:[#allocation1] sm:$0xff]
    %v4392 = vpack.c.bf16 %v4383, %v4383
    %v4393 = vpack.c.bf16 %v4389, %v4389
    %4394 = vst [vmem:[#allocation1] ss:$9 sm:$0xff] %v4342
    %s4395 = scalar_lea.vmem [#allocation1], 1
    %4396 = vst [vmem:[%s4395] ss:$9 sm:$0xff] %v4344
    %s4397 = scalar_lea.vmem [#allocation1], 2
    %4398 = vst [vmem:[%s4397] ss:$9 sm:$0xff] %v4347
    %s4399 = scalar_lea.vmem [#allocation1], 3
    %4400 = vst [vmem:[%s4399] ss:$9 sm:$0xff] %v4350
    %s4401 = scalar_lea.vmem [#allocation1], 4
    %4402 = vst [vmem:[%s4401] ss:$9 sm:$0xff] %v4353
    %v4403 = vld [vmem:[#allocation1] sm:$0xff]
    %4404 = vst [vmem:[#allocation1] ss:$9 sm:$0xff] %v4356
    %4405 = vst [vmem:[%s4395] ss:$9 sm:$0xff] %v4359
    %4406 = vst [vmem:[%s4397] ss:$9 sm:$0xff] %v4362
    %4407 = vst [vmem:[%s4399] ss:$9 sm:$0xff] %v4363
    %4408 = vst [vmem:[%s4401] ss:$9 sm:$0xff] %v4365
    %v4409 = vld [vmem:[#allocation1] sm:$0xff]
    %v4412 = vpack.c.bf16 %v4403, %v4403
    %v4413 = vpack.c.bf16 %v4409, %v4409
    %v4415 = vunpack.c.l.b16 %v4412
    %v4416 = vpack.c.b16 %v4415, %v4415
    %4417 = vrot.lane.b32.xlu0 %v4416, 64
    %v4418 = vpop.permute.xlu0 %4417
    %v4420 = vsel %vm1216, %v4392, 0
    %v4423 = vsel %vm1216, %v4418, 0
    %4425 = vmatpush.bf16.xpose.msra.mxu0 0
    %4426 = vmatpush.bf16.xpose.msra.mxu0 0
    %4427 = vmatpush.bf16.xpose.msra.mxu0 0
    %4428 = vmatpush.bf16.xpose.msra.mxu0 0
    %4429 = vmatpush.bf16.xpose.msra.mxu0 0
    %4430 = vmatpush.bf16.xpose.msra.mxu0 0
    %4431 = vmatpush.bf16.xpose.msra.mxu0 0
    %4432 = vmatpush.bf16.xpose.msra.mxu0 %v4423
    %4433 = vmatmul.bf16.gmra.mxu0 %v4420
    %v4434 = vpop.f32.mrf.mxu0
    %v4435 = vadd.f32 0.0, %v4434
    %v4436 = vpop.f32.mrf.mxu0
    %4437 = vdwg.mxu0
    %v4439 = vunpack.c.l.b16 %v4413
    %v4440 = vpack.c.b16 %v4439, %v4439
    %4441 = vrot.lane.b32.xlu0 %v4440, 64
    %v4442 = vpop.permute.xlu0 %4441
    %v4444 = vsel %vm1216, %v4393, 0
    %v4447 = vsel %vm1216, %v4442, 0
    %4449 = vmatpush.bf16.xpose.msra.mxu0 0
    %4450 = vmatpush.bf16.xpose.msra.mxu0 0
    %4451 = vmatpush.bf16.xpose.msra.mxu0 0
    %4452 = vmatpush.bf16.xpose.msra.mxu0 0
    %4453 = vmatpush.bf16.xpose.msra.mxu0 0
    %4454 = vmatpush.bf16.xpose.msra.mxu0 0
    %4455 = vmatpush.bf16.xpose.msra.mxu0 0
    %4456 = vmatpush.bf16.xpose.msra.mxu0 %v4447
    %4457 = vmatmul.bf16.gmra.mxu0 %v4444
    %v4458 = vpop.f32.mrf.mxu0
    %v4459 = vadd.f32 0.0, %v4458
    %v4460 = vpop.f32.mrf.mxu0
    %4461 = vdwg.mxu0
    %vm4462 = vcmask 36864
    %v4463 = vsel %vm4462, %v4435, -inf
    %4464 = vmax.xlane.f32.xlu0 %v4463
    %v4465 = vpop.xlane.xlu0 %4464
    %v4466 = vsel %vm4462, %v4459, -inf
    %4467 = vmax.xlane.f32.xlu0 %v4466
    %v4468 = vpop.xlane.xlu0 %4467
    %v4469 = vsub.f32 %v4435, %v4465
    %v4470 = vsub.f32 %v4459, %v4468
    %v4471 = vmul.f32 %v4469, 1.442695
    %v4472 = vpow.pop %v4471
    %v4473 = vmul.f32 %v4470, 1.442695
    %v4474 = vpow.pop %v4473
    %v4475 = vsel %vm4462, %v4472, 0.0
    %4476 = vadd.xlane.f32.xlu0 %v4475
    %v4477 = vpop.xlane.xlu0 %4476
    %v4478 = vsel %vm4462, %v4474, 0.0
    %4479 = vadd.xlane.f32.xlu0 %v4478
    %v4480 = vpop.xlane.xlu0 %4479
    %v4481 = vpack.c.bf16 %v4472, %v4472
    %v4482 = vpack.c.bf16 %v4474, %v4474
    %4483 = vst [vmem:[#allocation1] ss:$9 sm:$0xff] %v4342
    %s4484 = scalar_lea.vmem [#allocation1], 1
    %4485 = vst [vmem:[%s4484] ss:$9 sm:$0xff] %v4344
    %s4486 = scalar_lea.vmem [#allocation1], 2
    %4487 = vst [vmem:[%s4486] ss:$9 sm:$0xff] %v4347
    %s4488 = scalar_lea.vmem [#allocation1], 3
    %4489 = vst [vmem:[%s4488] ss:$9 sm:$0xff] %v4350
    %s4490 = scalar_lea.vmem [#allocation1], 4
    %4491 = vst [vmem:[%s4490] ss:$9 sm:$0xff] %v4353
    %v4492 = vld [vmem:[#allocation1 + $0x9] sm:$0xff]
    %4493 = vst [vmem:[#allocation1] ss:$9 sm:$0xff] %v4356
    %4494 = vst [vmem:[%s4484] ss:$9 sm:$0xff] %v4359
    %4495 = vst [vmem:[%s4486] ss:$9 sm:$0xff] %v4362
    %4496 = vst [vmem:[%s4488] ss:$9 sm:$0xff] %v4363
    %4497 = vst [vmem:[%s4490] ss:$9 sm:$0xff] %v4365
    %v4498 = vld [vmem:[#allocation1 + $0x9] sm:$0xff]
    %v4501 = vpack.c.bf16 %v4492, %v4492
    %v4502 = vpack.c.bf16 %v4498, %v4498
    %vm4503 = vcmask 39936
    %v4505 = vsel %vm4503, %v4481, 0
    %vm4507 = vcmask 1041408
    %vm4508 = vcmask 1042432
    %v4509 = vsel %vm4507, 4294967295, 65535
    %v4510 = vsel %vm4508, %v4509, 0
    %v4512 = vand.u32 %v4501, %v4510
    %4514 = vmatpush.bf16.msra.mxu0 0
    %4515 = vmatpush.bf16.msra.mxu0 0
    %4516 = vmatpush.bf16.msra.mxu0 0
    %4517 = vmatpush.bf16.msra.mxu0 0
    %4518 = vmatpush.bf16.msra.mxu0 0
    %4519 = vmatpush.bf16.msra.mxu0 0
    %4520 = vmatpush.bf16.msra.mxu0 0
    %4521 = vmatpush.bf16.msra.mxu0 %v4512
    %4522 = vmatmul.bf16.gmra.mxu0 %v4505
    %v4523 = vpop.f32.mrf.mxu0
    %v4524 = vadd.f32 0.0, %v4523
    %v4525 = vpop.f32.mrf.mxu0
    %4526 = vdwg.mxu0
    %v4528 = vsel %vm4503, %v4482, 0
    %v4531 = vand.u32 %v4502, %v4510
    %4533 = vmatpush.bf16.msra.mxu0 0
    %4534 = vmatpush.bf16.msra.mxu0 0
    %4535 = vmatpush.bf16.msra.mxu0 0
    %4536 = vmatpush.bf16.msra.mxu0 0
    %4537 = vmatpush.bf16.msra.mxu0 0
    %4538 = vmatpush.bf16.msra.mxu0 0
    %4539 = vmatpush.bf16.msra.mxu0 0
    %4540 = vmatpush.bf16.msra.mxu0 %v4531
    %4541 = vmatmul.bf16.gmra.mxu0 %v4528
    %v4542 = vpop.f32.mrf.mxu0
    %v4543 = vadd.f32 0.0, %v4542
    %v4544 = vpop.f32.mrf.mxu0
    %4545 = vdwg.mxu0
    %v4546 = vrcp.pop %v4477
    %v4547 = vrcp.pop %v4480
    %v4548 = vmul.f32 %v4524, %v4546
    %v4549 = vmul.f32 %v4543, %v4547
    %v4552 = vrot.slane %v4548, 1
    %v4553 = vrot.slane %v4548, 2
    %v4554 = vrot.slane %v4548, 3
    %v4555 = vrot.slane %v4548, 4
    %v4556 = vrot.slane %v4549, 1
    %v4557 = vrot.slane %v4549, 2
    %v4558 = vrot.slane %v4549, 3
    %v4559 = vrot.slane %v4549, 4
    %4560 = vst [vmem:[#allocation1] ss:$9 sm:$0xff] %v4548
    %s4561 = scalar_lea.vmem [#allocation1], 1
    %4562 = vst [vmem:[%s4561] ss:$9 sm:$0xff] %v4552
    %s4563 = scalar_lea.vmem [#allocation1], 2
    %4564 = vst [vmem:[%s4563] ss:$9 sm:$0xff] %v4553
    %s4565 = scalar_lea.vmem [#allocation1], 3
    %4566 = vst [vmem:[%s4565] ss:$9 sm:$0xff] %v4554
    %s4567 = scalar_lea.vmem [#allocation1], 4
    %4568 = vst [vmem:[%s4567] ss:$9 sm:$0xff] %v4555
    %s4569 = scalar_lea.vmem [#allocation1], 5
    %4570 = vst [vmem:[%s4569] ss:$9 sm:$0xff] %v4549
    %s4571 = scalar_lea.vmem [#allocation1], 6
    %4572 = vst [vmem:[%s4571] ss:$9 sm:$0xff] %v4556
    %s4573 = scalar_lea.vmem [#allocation1], 7
    %4574 = vst [vmem:[%s4573] ss:$9 sm:$0xff] %v4557
    %v4575 = vld [vmem:[#allocation1] sm:$0xff]
    %4576 = vst [vmem:[#allocation1] ss:$9 sm:$0xff] %v4558
    %4577 = vst [vmem:[%s4561] ss:$9 sm:$0xff] %v4559
    %v4578 = vld [vmem:[#allocation1] sm:$0xff]
    %v4581 = vpack.c.bf16 %v4578, %v4575
    %4582 = vst [vmem:[#allocation1] ss:$9 sm:$0xff] %v4342
    %s4583 = scalar_lea.vmem [#allocation1], 1
    %4584 = vst [vmem:[%s4583] ss:$9 sm:$0xff] %v4344
    %s4585 = scalar_lea.vmem [#allocation1], 2
    %4586 = vst [vmem:[%s4585] ss:$9 sm:$0xff] %v4347
    %s4587 = scalar_lea.vmem [#allocation1], 3
    %4588 = vst [vmem:[%s4587] ss:$9 sm:$0xff] %v4350
    %s4589 = scalar_lea.vmem [#allocation1], 4
    %4590 = vst [vmem:[%s4589] ss:$9 sm:$0xff] %v4353
    %v4591 = vld [vmem:[#allocation1] sm:$0xff]
    %4592 = vst [vmem:[#allocation1] ss:$9 sm:$0xff] %v4356
    %4593 = vst [vmem:[%s4583] ss:$9 sm:$0xff] %v4359
    %4594 = vst [vmem:[%s4585] ss:$9 sm:$0xff] %v4362
    %4595 = vst [vmem:[%s4587] ss:$9 sm:$0xff] %v4363
    %4596 = vst [vmem:[%s4589] ss:$9 sm:$0xff] %v4365
    %v4597 = vld [vmem:[#allocation1] sm:$0xff]
    %v4600 = vpack.c.bf16 %v4591, %v4591
    %v4601 = vpack.c.bf16 %v4597, %v4597
    %4602 = vst [vmem:[#allocation1] ss:$9 sm:$0xff] %v4342
    %s4603 = scalar_lea.vmem [#allocation1], 1
    %4604 = vst [vmem:[%s4603] ss:$9 sm:$0xff] %v4344
    %s4605 = scalar_lea.vmem [#allocation1], 2
    %4606 = vst [vmem:[%s4605] ss:$9 sm:$0xff] %v4347
    %s4607 = scalar_lea.vmem [#allocation1], 3
    %4608 = vst [vmem:[%s4607] ss:$9 sm:$0xff] %v4350
    %s4609 = scalar_lea.vmem [#allocation1], 4
    %4610 = vst [vmem:[%s4609] ss:$9 sm:$0xff] %v4353
    %v4611 = vld [vmem:[#allocation1] sm:$0xff]
    %4612 = vst [vmem:[#allocation1] ss:$9 sm:$0xff] %v4356
    %4613 = vst [vmem:[%s4603] ss:$9 sm:$0xff] %v4359
    %4614 = vst [vmem:[%s4605] ss:$9 sm:$0xff] %v4362
    %4615 = vst [vmem:[%s4607] ss:$9 sm:$0xff] %v4363
    %4616 = vst [vmem:[%s4609] ss:$9 sm:$0xff] %v4365
    %v4617 = vld [vmem:[#allocation1] sm:$0xff]
    %v4620 = vpack.c.bf16 %v4611, %v4611
    %v4621 = vpack.c.bf16 %v4617, %v4617
    %v4623 = vunpack.c.l.b16 %v4600
    %v4624 = vpack.c.b16 %v4623, %v4623
    %4625 = vrot.lane.b32.xlu0 %v4624, 112
    %v4626 = vpop.permute.xlu0 %4625
    %v4628 = vunpack.c.l.b16 %v4620
    %v4629 = vpack.c.b16 %v4628, %v4628
    %4630 = vrot.lane.b32.xlu0 %v4629, 48
    %v4631 = vpop.permute.xlu0 %4630
    %v4633 = vsel %vm1216, %v4626, 0
    %v4636 = vsel %vm1216, %v4631, 0
    %4638 = vmatpush.bf16.xpose.msra.mxu0 0
    %4639 = vmatpush.bf16.xpose.msra.mxu0 0
    %4640 = vmatpush.bf16.xpose.msra.mxu0 0
    %4641 = vmatpush.bf16.xpose.msra.mxu0 0
    %4642 = vmatpush.bf16.xpose.msra.mxu0 0
    %4643 = vmatpush.bf16.xpose.msra.mxu0 0
    %4644 = vmatpush.bf16.xpose.msra.mxu0 0
    %4645 = vmatpush.bf16.xpose.msra.mxu0 %v4636
    %4646 = vmatmul.bf16.gmra.mxu0 %v4633
    %v4647 = vpop.f32.mrf.mxu0
    %v4648 = vadd.f32 0.0, %v4647
    %v4649 = vpop.f32.mrf.mxu0
    %4650 = vdwg.mxu0
    %v4652 = vunpack.c.l.b16 %v4601
    %v4653 = vpack.c.b16 %v4652, %v4652
    %4654 = vrot.lane.b32.xlu0 %v4653, 112
    %v4655 = vpop.permute.xlu0 %4654
    %v4657 = vunpack.c.l.b16 %v4621
    %v4658 = vpack.c.b16 %v4657, %v4657
    %4659 = vrot.lane.b32.xlu0 %v4658, 48
    %v4660 = vpop.permute.xlu0 %4659
    %v4662 = vsel %vm1216, %v4655, 0
    %v4665 = vsel %vm1216, %v4660, 0
    %4667 = vmatpush.bf16.xpose.msra.mxu0 0
    %4668 = vmatpush.bf16.xpose.msra.mxu0 0
    %4669 = vmatpush.bf16.xpose.msra.mxu0 0
    %4670 = vmatpush.bf16.xpose.msra.mxu0 0
    %4671 = vmatpush.bf16.xpose.msra.mxu0 0
    %4672 = vmatpush.bf16.xpose.msra.mxu0 0
    %4673 = vmatpush.bf16.xpose.msra.mxu0 0
    %4674 = vmatpush.bf16.xpose.msra.mxu0 %v4665
    %4675 = vmatmul.bf16.gmra.mxu0 %v4662
    %v4676 = vpop.f32.mrf.mxu0
    %v4677 = vadd.f32 0.0, %v4676
    %v4678 = vpop.f32.mrf.mxu0
    %4679 = vdwg.mxu0
    %v4680 = vsel %vm4462, %v4648, -inf
    %4681 = vmax.xlane.f32.xlu0 %v4680
    %v4682 = vpop.xlane.xlu0 %4681
    %v4683 = vsel %vm4462, %v4677, -inf
    %4684 = vmax.xlane.f32.xlu0 %v4683
    %v4685 = vpop.xlane.xlu0 %4684
    %v4686 = vsub.f32 %v4648, %v4682
    %v4687 = vsub.f32 %v4677, %v4685
    %v4688 = vmul.f32 %v4686, 1.442695
    %v4689 = vpow.pop %v4688
    %v4690 = vmul.f32 %v4687, 1.442695
    %v4691 = vpow.pop %v4690
    %v4692 = vsel %vm4462, %v4689, 0.0
    %4693 = vadd.xlane.f32.xlu0 %v4692
    %v4694 = vpop.xlane.xlu0 %4693
    %v4695 = vsel %vm4462, %v4691, 0.0
    %4696 = vadd.xlane.f32.xlu0 %v4695
    %v4697 = vpop.xlane.xlu0 %4696
    %v4698 = vpack.c.bf16 %v4689, %v4689
    %v4699 = vpack.c.bf16 %v4691, %v4691
    %4700 = vst [vmem:[#allocation1] ss:$9 sm:$0xff] %v4342
    %s4701 = scalar_lea.vmem [#allocation1], 1
    %4702 = vst [vmem:[%s4701] ss:$9 sm:$0xff] %v4344
    %s4703 = scalar_lea.vmem [#allocation1], 2
    %4704 = vst [vmem:[%s4703] ss:$9 sm:$0xff] %v4347
    %s4705 = scalar_lea.vmem [#allocation1], 3
    %4706 = vst [vmem:[%s4705] ss:$9 sm:$0xff] %v4350
    %s4707 = scalar_lea.vmem [#allocation1], 4
    %4708 = vst [vmem:[%s4707] ss:$9 sm:$0xff] %v4353
    %v4709 = vld [vmem:[#allocation1 + $0x9] sm:$0xff]
    %4710 = vst [vmem:[#allocation1] ss:$9 sm:$0xff] %v4356
    %4711 = vst [vmem:[%s4701] ss:$9 sm:$0xff] %v4359
    %4712 = vst [vmem:[%s4703] ss:$9 sm:$0xff] %v4362
    %4713 = vst [vmem:[%s4705] ss:$9 sm:$0xff] %v4363
    %4714 = vst [vmem:[%s4707] ss:$9 sm:$0xff] %v4365
    %v4715 = vld [vmem:[#allocation1 + $0x9] sm:$0xff]
    %4716 = vrot.lane.b32.xlu0 %v4709, 112
    %v4717 = vpop.permute.xlu0 %4716
    %4718 = vrot.lane.b32.xlu0 %v4715, 112
    %v4719 = vpop.permute.xlu0 %4718
    %v4722 = vpack.c.bf16 %v4717, %v4717
    %v4723 = vpack.c.bf16 %v4719, %v4719
    %v4725 = vsel %vm4503, %v4698, 0
    %v4728 = vand.u32 %v4722, %v4510
    %4730 = vmatpush.bf16.msra.mxu0 0
    %4731 = vmatpush.bf16.msra.mxu0 0
    %4732 = vmatpush.bf16.msra.mxu0 0
    %4733 = vmatpush.bf16.msra.mxu0 0
    %4734 = vmatpush.bf16.msra.mxu0 0
    %4735 = vmatpush.bf16.msra.mxu0 0
    %4736 = vmatpush.bf16.msra.mxu0 0
    %4737 = vmatpush.bf16.msra.mxu0 %v4728
    %4738 = vmatmul.bf16.gmra.mxu0 %v4725
    %v4739 = vpop.f32.mrf.mxu0
    %v4740 = vadd.f32 0.0, %v4739
    %v4741 = vpop.f32.mrf.mxu0
    %4742 = vdwg.mxu0
    %v4744 = vsel %vm4503, %v4699, 0
    %v4747 = vand.u32 %v4723, %v4510
    %4749 = vmatpush.bf16.msra.mxu0 0
    %4750 = vmatpush.bf16.msra.mxu0 0
    %4751 = vmatpush.bf16.msra.mxu0 0
    %4752 = vmatpush.bf16.msra.mxu0 0
    %4753 = vmatpush.bf16.msra.mxu0 0
    %4754 = vmatpush.bf16.msra.mxu0 0
    %4755 = vmatpush.bf16.msra.mxu0 0
    %4756 = vmatpush.bf16.msra.mxu0 %v4747
    %4757 = vmatmul.bf16.gmra.mxu0 %v4744
    %v4758 = vpop.f32.mrf.mxu0
    %v4759 = vadd.f32 0.0, %v4758
    %v4760 = vpop.f32.mrf.mxu0
    %4761 = vdwg.mxu0
    %v4762 = vrcp.pop %v4694
    %v4763 = vrcp.pop %v4697
    %v4764 = vmul.f32 %v4740, %v4762
    %v4765 = vmul.f32 %v4759, %v4763
    %v4768 = vrot.slane %v4764, 1
    %v4769 = vrot.slane %v4764, 2
    %v4770 = vrot.slane %v4764, 3
    %v4771 = vrot.slane %v4764, 4
    %v4772 = vrot.slane %v4765, 1
    %v4773 = vrot.slane %v4765, 2
    %v4774 = vrot.slane %v4765, 3
    %v4775 = vrot.slane %v4765, 4
    %4776 = vst [vmem:[#allocation1] ss:$9 sm:$0xff] %v4764
    %s4777 = scalar_lea.vmem [#allocation1], 1
    %4778 = vst [vmem:[%s4777] ss:$9 sm:$0xff] %v4768
    %s4779 = scalar_lea.vmem [#allocation1], 2
    %4780 = vst [vmem:[%s4779] ss:$9 sm:$0xff] %v4769
    %s4781 = scalar_lea.vmem [#allocation1], 3
    %4782 = vst [vmem:[%s4781] ss:$9 sm:$0xff] %v4770
    %s4783 = scalar_lea.vmem [#allocation1], 4
    %4784 = vst [vmem:[%s4783] ss:$9 sm:$0xff] %v4771
    %s4785 = scalar_lea.vmem [#allocation1], 5
    %4786 = vst [vmem:[%s4785] ss:$9 sm:$0xff] %v4765
    %s4787 = scalar_lea.vmem [#allocation1], 6
    %4788 = vst [vmem:[%s4787] ss:$9 sm:$0xff] %v4772
    %s4789 = scalar_lea.vmem [#allocation1], 7
    %4790 = vst [vmem:[%s4789] ss:$9 sm:$0xff] %v4773
    %v4791 = vld [vmem:[#allocation1] sm:$0xff]
    %4792 = vst [vmem:[#allocation1] ss:$9 sm:$0xff] %v4774
    %4793 = vst [vmem:[%s4777] ss:$9 sm:$0xff] %v4775
    %v4794 = vld [vmem:[#allocation1] sm:$0xff]
    %v4797 = vpack.c.bf16 %v4794, %v4791
    %v4800 = vunpack.c.l.b16 %v4368
    %v4801 = vunpack.c.l.b16 %v4369
    %v4802 = vpack.c.b16 %v4801, %v4800
    %v4805 = vsel %vm1216, %v4797, 0
    %4807 = vmatpush.bf16.msra.mxu0 0
    %4808 = vmatpush.bf16.msra.mxu0 0
    %4809 = vmatpush.bf16.msra.mxu0 0
    %4810 = vmatpush.bf16.msra.mxu0 0
    %4811 = vmatpush.bf16.msra.mxu0 0
    %4812 = vmatpush.bf16.msra.mxu0 0
    %4813 = vmatpush.bf16.msra.mxu0 0
    %4814 = vmatpush.bf16.msra.mxu0 %v4802
    %4815 = vmatmul.bf16.gmra.mxu0 %v4805
    %v4816 = vpop.f32.mrf.mxu0
    %v4817 = vadd.f32 0.0, %v4816
    %v4818 = vpop.f32.mrf.mxu0
    %v4819 = vadd.f32 0.0, %v4818
    %4820 = vdwg.mxu0
    %v4823 = vunpack.c.l.b16 %v4366
    %v4824 = vunpack.c.l.b16 %v4367
    %v4825 = vpack.c.b16 %v4824, %v4823
    %v4828 = vsel %vm1216, %v4581, 0
    %4830 = vmatpush.bf16.msra.mxu0 0
    %4831 = vmatpush.bf16.msra.mxu0 0
    %4832 = vmatpush.bf16.msra.mxu0 0
    %4833 = vmatpush.bf16.msra.mxu0 0
    %4834 = vmatpush.bf16.msra.mxu0 0
    %4835 = vmatpush.bf16.msra.mxu0 0
    %4836 = vmatpush.bf16.msra.mxu0 0
    %4837 = vmatpush.bf16.msra.mxu0 %v4825
    %4838 = vmatmul.bf16.gmra.mxu0 %v4828
    %v4839 = vpop.f32.mrf.mxu0
    %v4840 = vadd.f32 %v4817, %v4839
    %v4841 = vpop.f32.mrf.mxu0
    %v4842 = vadd.f32 %v4819, %v4841
    %4843 = vdwg.mxu0
    %4844 = vst [vmem:[#allocation1] ss:$9 sm:$0xff] %v4342
    %s4845 = scalar_lea.vmem [#allocation1], 1
    %4846 = vst [vmem:[%s4845] ss:$9 sm:$0xff] %v4344
    %s4847 = scalar_lea.vmem [#allocation1], 2
    %4848 = vst [vmem:[%s4847] ss:$9 sm:$0xff] %v4347
    %s4849 = scalar_lea.vmem [#allocation1], 3
    %4850 = vst [vmem:[%s4849] ss:$9 sm:$0xff] %v4350
    %s4851 = scalar_lea.vmem [#allocation1], 4
    %4852 = vst [vmem:[%s4851] ss:$9 sm:$0xff] %v4353
    %v4853 = vld [vmem:[#allocation1] sm:$0xff]
    %4854 = vst [vmem:[#allocation1] ss:$9 sm:$0xff] %v4356
    %4855 = vst [vmem:[%s4845] ss:$9 sm:$0xff] %v4359
    %4856 = vst [vmem:[%s4847] ss:$9 sm:$0xff] %v4362
    %4857 = vst [vmem:[%s4849] ss:$9 sm:$0xff] %v4363
    %4858 = vst [vmem:[%s4851] ss:$9 sm:$0xff] %v4365
    %v4859 = vld [vmem:[#allocation1] sm:$0xff]
    %v4862 = vpack.c.bf16 %v4853, %v4853
    %v4863 = vpack.c.bf16 %v4859, %v4859
    %4864 = vst [vmem:[#allocation1] ss:$9 sm:$0xff] %v4342
    %s4865 = scalar_lea.vmem [#allocation1], 1
    %4866 = vst [vmem:[%s4865] ss:$9 sm:$0xff] %v4344
    %s4867 = scalar_lea.vmem [#allocation1], 2
    %4868 = vst [vmem:[%s4867] ss:$9 sm:$0xff] %v4347
    %s4869 = scalar_lea.vmem [#allocation1], 3
    %4870 = vst [vmem:[%s4869] ss:$9 sm:$0xff] %v4350
    %s4871 = scalar_lea.vmem [#allocation1], 4
    %4872 = vst [vmem:[%s4871] ss:$9 sm:$0xff] %v4353
    %v4873 = vld [vmem:[#allocation1] sm:$0xff]
    %4874 = vst [vmem:[#allocation1] ss:$9 sm:$0xff] %v4356
    %4875 = vst [vmem:[%s4865] ss:$9 sm:$0xff] %v4359
    %4876 = vst [vmem:[%s4867] ss:$9 sm:$0xff] %v4362
    %4877 = vst [vmem:[%s4869] ss:$9 sm:$0xff] %v4363
    %4878 = vst [vmem:[%s4871] ss:$9 sm:$0xff] %v4365
    %v4879 = vld [vmem:[#allocation1] sm:$0xff]
    %v4882 = vpack.c.bf16 %v4873, %v4873
    %v4883 = vpack.c.bf16 %v4879, %v4879
    %v4885 = vunpack.c.l.b16 %v4862
    %v4886 = vpack.c.b16 %v4885, %v4885
    %4887 = vrot.lane.b32.xlu0 %v4886, 96
    %v4888 = vpop.permute.xlu0 %4887
    %v4890 = vunpack.c.l.b16 %v4882
    %v4891 = vpack.c.b16 %v4890, %v4890
    %4892 = vrot.lane.b32.xlu0 %v4891, 32
    %v4893 = vpop.permute.xlu0 %4892
    %v4895 = vsel %vm1216, %v4888, 0
    %v4898 = vsel %vm1216, %v4893, 0
    %4900 = vmatpush.bf16.xpose.msra.mxu0 0
    %4901 = vmatpush.bf16.xpose.msra.mxu0 0
    %4902 = vmatpush.bf16.xpose.msra.mxu0 0
    %4903 = vmatpush.bf16.xpose.msra.mxu0 0
    %4904 = vmatpush.bf16.xpose.msra.mxu0 0
    %4905 = vmatpush.bf16.xpose.msra.mxu0 0
    %4906 = vmatpush.bf16.xpose.msra.mxu0 0
    %4907 = vmatpush.bf16.xpose.msra.mxu0 %v4898
    %4908 = vmatmul.bf16.gmra.mxu0 %v4895
    %v4909 = vpop.f32.mrf.mxu0
    %v4910 = vadd.f32 0.0, %v4909
    %v4911 = vpop.f32.mrf.mxu0
    %4912 = vdwg.mxu0
    %v4914 = vunpack.c.l.b16 %v4863
    %v4915 = vpack.c.b16 %v4914, %v4914
    %4916 = vrot.lane.b32.xlu0 %v4915, 96
    %v4917 = vpop.permute.xlu0 %4916
    %v4919 = vunpack.c.l.b16 %v4883
    %v4920 = vpack.c.b16 %v4919, %v4919
    %4921 = vrot.lane.b32.xlu0 %v4920, 32
    %v4922 = vpop.permute.xlu0 %4921
    %v4924 = vsel %vm1216, %v4917, 0
    %v4927 = vsel %vm1216, %v4922, 0
    %4929 = vmatpush.bf16.xpose.msra.mxu0 0
    %4930 = vmatpush.bf16.xpose.msra.mxu0 0
    %4931 = vmatpush.bf16.xpose.msra.mxu0 0
    %4932 = vmatpush.bf16.xpose.msra.mxu0 0
    %4933 = vmatpush.bf16.xpose.msra.mxu0 0
    %4934 = vmatpush.bf16.xpose.msra.mxu0 0
    %4935 = vmatpush.bf16.xpose.msra.mxu0 0
    %4936 = vmatpush.bf16.xpose.msra.mxu0 %v4927
    %4937 = vmatmul.bf16.gmra.mxu0 %v4924
    %v4938 = vpop.f32.mrf.mxu0
    %v4939 = vadd.f32 0.0, %v4938
    %v4940 = vpop.f32.mrf.mxu0
    %4941 = vdwg.mxu0
    %v4942 = vsel %vm4462, %v4910, -inf
    %4943 = vmax.xlane.f32.xlu0 %v4942
    %v4944 = vpop.xlane.xlu0 %4943
    %v4945 = vsel %vm4462, %v4939, -inf
    %4946 = vmax.xlane.f32.xlu0 %v4945
    %v4947 = vpop.xlane.xlu0 %4946
    %v4948 = vsub.f32 %v4910, %v4944
    %v4949 = vsub.f32 %v4939, %v4947
    %v4950 = vmul.f32 %v4948, 1.442695
    %v4951 = vpow.pop %v4950
    %v4952 = vmul.f32 %v4949, 1.442695
    %v4953 = vpow.pop %v4952
    %v4954 = vsel %vm4462, %v4951, 0.0
    %4955 = vadd.xlane.f32.xlu0 %v4954
    %v4956 = vpop.xlane.xlu0 %4955
    %v4957 = vsel %vm4462, %v4953, 0.0
    %4958 = vadd.xlane.f32.xlu0 %v4957
    %v4959 = vpop.xlane.xlu0 %4958
    %v4960 = vpack.c.bf16 %v4951, %v4951
    %v4961 = vpack.c.bf16 %v4953, %v4953
    %4962 = vst [vmem:[#allocation1] ss:$9 sm:$0xff] %v4342
    %s4963 = scalar_lea.vmem [#allocation1], 1
    %4964 = vst [vmem:[%s4963] ss:$9 sm:$0xff] %v4344
    %s4965 = scalar_lea.vmem [#allocation1], 2
    %4966 = vst [vmem:[%s4965] ss:$9 sm:$0xff] %v4347
    %s4967 = scalar_lea.vmem [#allocation1], 3
    %4968 = vst [vmem:[%s4967] ss:$9 sm:$0xff] %v4350
    %s4969 = scalar_lea.vmem [#allocation1], 4
    %4970 = vst [vmem:[%s4969] ss:$9 sm:$0xff] %v4353
    %v4971 = vld [vmem:[#allocation1 + $0x9] sm:$0xff]
    %4972 = vst [vmem:[#allocation1] ss:$9 sm:$0xff] %v4356
    %4973 = vst [vmem:[%s4963] ss:$9 sm:$0xff] %v4359
    %4974 = vst [vmem:[%s4965] ss:$9 sm:$0xff] %v4362
    %4975 = vst [vmem:[%s4967] ss:$9 sm:$0xff] %v4363
    %4976 = vst [vmem:[%s4969] ss:$9 sm:$0xff] %v4365
    %v4977 = vld [vmem:[#allocation1 + $0x9] sm:$0xff]
    %4978 = vrot.lane.b32.xlu0 %v4971, 96
    %v4979 = vpop.permute.xlu0 %4978
    %4980 = vrot.lane.b32.xlu0 %v4977, 96
    %v4981 = vpop.permute.xlu0 %4980
    %v4984 = vpack.c.bf16 %v4979, %v4979
    %v4985 = vpack.c.bf16 %v4981, %v4981
    %v4987 = vsel %vm4503, %v4960, 0
    %v4990 = vand.u32 %v4984, %v4510
    %4992 = vmatpush.bf16.msra.mxu0 0
    %4993 = vmatpush.bf16.msra.mxu0 0
    %4994 = vmatpush.bf16.msra.mxu0 0
    %4995 = vmatpush.bf16.msra.mxu0 0
    %4996 = vmatpush.bf16.msra.mxu0 0
    %4997 = vmatpush.bf16.msra.mxu0 0
    %4998 = vmatpush.bf16.msra.mxu0 0
    %4999 = vmatpush.bf16.msra.mxu0 %v4990
    %5000 = vmatmul.bf16.gmra.mxu0 %v4987
    %v5001 = vpop.f32.mrf.mxu0
    %v5002 = vadd.f32 0.0, %v5001
    %v5003 = vpop.f32.mrf.mxu0
    %5004 = vdwg.mxu0
    %v5006 = vsel %vm4503, %v4961, 0
    %v5009 = vand.u32 %v4985, %v4510
    %5011 = vmatpush.bf16.msra.mxu0 0
    %5012 = vmatpush.bf16.msra.mxu0 0
    %5013 = vmatpush.bf16.msra.mxu0 0
    %5014 = vmatpush.bf16.msra.mxu0 0
    %5015 = vmatpush.bf16.msra.mxu0 0
    %5016 = vmatpush.bf16.msra.mxu0 0
    %5017 = vmatpush.bf16.msra.mxu0 0
    %5018 = vmatpush.bf16.msra.mxu0 %v5009
    %5019 = vmatmul.bf16.gmra.mxu0 %v5006
    %v5020 = vpop.f32.mrf.mxu0
    %v5021 = vadd.f32 0.0, %v5020
    %v5022 = vpop.f32.mrf.mxu0
    %5023 = vdwg.mxu0
    %v5024 = vrcp.pop %v4956
    %v5025 = vrcp.pop %v4959
    %v5026 = vmul.f32 %v5002, %v5024
    %v5027 = vmul.f32 %v5021, %v5025
    %v5030 = vrot.slane %v5026, 1
    %v5031 = vrot.slane %v5026, 2
    %v5032 = vrot.slane %v5026, 3
    %v5033 = vrot.slane %v5026, 4
    %v5034 = vrot.slane %v5027, 1
    %v5035 = vrot.slane %v5027, 2
    %v5036 = vrot.slane %v5027, 3
    %v5037 = vrot.slane %v5027, 4
    %5038 = vst [vmem:[#allocation1] ss:$9 sm:$0xff] %v5026
    %s5039 = scalar_lea.vmem [#allocation1], 1
    %5040 = vst [vmem:[%s5039] ss:$9 sm:$0xff] %v5030
    %s5041 = scalar_lea.vmem [#allocation1], 2
    %5042 = vst [vmem:[%s5041] ss:$9 sm:$0xff] %v5031
    %s5043 = scalar_lea.vmem [#allocation1], 3
    %5044 = vst [vmem:[%s5043] ss:$9 sm:$0xff] %v5032
    %s5045 = scalar_lea.vmem [#allocation1], 4
    %5046 = vst [vmem:[%s5045] ss:$9 sm:$0xff] %v5033
    %s5047 = scalar_lea.vmem [#allocation1], 5
    %5048 = vst [vmem:[%s5047] ss:$9 sm:$0xff] %v5027
    %s5049 = scalar_lea.vmem [#allocation1], 6
    %5050 = vst [vmem:[%s5049] ss:$9 sm:$0xff] %v5034
    %s5051 = scalar_lea.vmem [#allocation1], 7
    %5052 = vst [vmem:[%s5051] ss:$9 sm:$0xff] %v5035
    %v5053 = vld [vmem:[#allocation1] sm:$0xff]
    %5054 = vst [vmem:[#allocation1] ss:$9 sm:$0xff] %v5036
    %5055 = vst [vmem:[%s5039] ss:$9 sm:$0xff] %v5037
    %v5056 = vld [vmem:[#allocation1] sm:$0xff]
    %v5059 = vpack.c.bf16 %v5056, %v5053
    %v5062 = vunpack.c.l.b16 %v4370
    %v5063 = vunpack.c.l.b16 %v4371
    %v5064 = vpack.c.b16 %v5063, %v5062
    %v5067 = vsel %vm1216, %v5059, 0
    %5069 = vmatpush.bf16.msra.mxu0 0
    %5070 = vmatpush.bf16.msra.mxu0 0
    %5071 = vmatpush.bf16.msra.mxu0 0
    %5072 = vmatpush.bf16.msra.mxu0 0
    %5073 = vmatpush.bf16.msra.mxu0 0
    %5074 = vmatpush.bf16.msra.mxu0 0
    %5075 = vmatpush.bf16.msra.mxu0 0
    %5076 = vmatpush.bf16.msra.mxu0 %v5064
    %5077 = vmatmul.bf16.gmra.mxu0 %v5067
    %v5078 = vpop.f32.mrf.mxu0
    %v5079 = vadd.f32 0.0, %v5078
    %v5080 = vpop.f32.mrf.mxu0
    %v5081 = vadd.f32 0.0, %v5080
    %5082 = vdwg.mxu0
    %v5083 = vadd.f32 %v4840, %v5079
    %v5084 = vadd.f32 %v4842, %v5081
    %5085 = vst [vmem:[#allocation1] ss:$9 sm:$0xff] %v4342
    %s5086 = scalar_lea.vmem [#allocation1], 1
    %5087 = vst [vmem:[%s5086] ss:$9 sm:$0xff] %v4344
    %s5088 = scalar_lea.vmem [#allocation1], 2
    %5089 = vst [vmem:[%s5088] ss:$9 sm:$0xff] %v4347
    %s5090 = scalar_lea.vmem [#allocation1], 3
    %5091 = vst [vmem:[%s5090] ss:$9 sm:$0xff] %v4350
    %s5092 = scalar_lea.vmem [#allocation1], 4
    %5093 = vst [vmem:[%s5092] ss:$9 sm:$0xff] %v4353
    %v5094 = vld [vmem:[#allocation1] sm:$0xff]
    %5095 = vst [vmem:[#allocation1] ss:$9 sm:$0xff] %v4356
    %5096 = vst [vmem:[%s5086] ss:$9 sm:$0xff] %v4359
    %5097 = vst [vmem:[%s5088] ss:$9 sm:$0xff] %v4362
    %5098 = vst [vmem:[%s5090] ss:$9 sm:$0xff] %v4363
    %5099 = vst [vmem:[%s5092] ss:$9 sm:$0xff] %v4365
    %v5100 = vld [vmem:[#allocation1] sm:$0xff]
    %v5103 = vpack.c.bf16 %v5094, %v5094
    %v5104 = vpack.c.bf16 %v5100, %v5100
    %5105 = vst [vmem:[#allocation1] ss:$9 sm:$0xff] %v4342
    %s5106 = scalar_lea.vmem [#allocation1], 1
    %5107 = vst [vmem:[%s5106] ss:$9 sm:$0xff] %v4344
    %s5108 = scalar_lea.vmem [#allocation1], 2
    %5109 = vst [vmem:[%s5108] ss:$9 sm:$0xff] %v4347
    %s5110 = scalar_lea.vmem [#allocation1], 3
    %5111 = vst [vmem:[%s5110] ss:$9 sm:$0xff] %v4350
    %s5112 = scalar_lea.vmem [#allocation1], 4
    %5113 = vst [vmem:[%s5112] ss:$9 sm:$0xff] %v4353
    %v5114 = vld [vmem:[#allocation1] sm:$0xff]
    %5115 = vst [vmem:[#allocation1] ss:$9 sm:$0xff] %v4356
    %5116 = vst [vmem:[%s5106] ss:$9 sm:$0xff] %v4359
    %5117 = vst [vmem:[%s5108] ss:$9 sm:$0xff] %v4362
    %5118 = vst [vmem:[%s5110] ss:$9 sm:$0xff] %v4363
    %5119 = vst [vmem:[%s5112] ss:$9 sm:$0xff] %v4365
    %v5120 = vld [vmem:[#allocation1] sm:$0xff]
    %v5123 = vpack.c.bf16 %v5114, %v5114
    %v5124 = vpack.c.bf16 %v5120, %v5120
    %v5126 = vunpack.c.l.b16 %v5103
    %v5127 = vpack.c.b16 %v5126, %v5126
    %5128 = vrot.lane.b32.xlu0 %v5127, 80
    %v5129 = vpop.permute.xlu0 %5128
    %v5131 = vunpack.c.l.b16 %v5123
    %v5132 = vpack.c.b16 %v5131, %v5131
    %5133 = vrot.lane.b32.xlu0 %v5132, 16
    %v5134 = vpop.permute.xlu0 %5133
    %v5136 = vsel %vm1216, %v5129, 0
    %v5139 = vsel %vm1216, %v5134, 0
    %5141 = vmatpush.bf16.xpose.msra.mxu0 0
    %5142 = vmatpush.bf16.xpose.msra.mxu0 0
    %5143 = vmatpush.bf16.xpose.msra.mxu0 0
    %5144 = vmatpush.bf16.xpose.msra.mxu0 0
    %5145 = vmatpush.bf16.xpose.msra.mxu0 0
    %5146 = vmatpush.bf16.xpose.msra.mxu0 0
    %5147 = vmatpush.bf16.xpose.msra.mxu0 0
    %5148 = vmatpush.bf16.xpose.msra.mxu0 %v5139
    %5149 = vmatmul.bf16.gmra.mxu0 %v5136
    %v5150 = vpop.f32.mrf.mxu0
    %v5151 = vadd.f32 0.0, %v5150
    %v5152 = vpop.f32.mrf.mxu0
    %5153 = vdwg.mxu0
    %v5155 = vunpack.c.l.b16 %v5104
    %v5156 = vpack.c.b16 %v5155, %v5155
    %5157 = vrot.lane.b32.xlu0 %v5156, 80
    %v5158 = vpop.permute.xlu0 %5157
    %v5160 = vunpack.c.l.b16 %v5124
    %v5161 = vpack.c.b16 %v5160, %v5160
    %5162 = vrot.lane.b32.xlu0 %v5161, 16
    %v5163 = vpop.permute.xlu0 %5162
    %v5165 = vsel %vm1216, %v5158, 0
    %v5168 = vsel %vm1216, %v5163, 0
    %5170 = vmatpush.bf16.xpose.msra.mxu0 0
    %5171 = vmatpush.bf16.xpose.msra.mxu0 0
    %5172 = vmatpush.bf16.xpose.msra.mxu0 0
    %5173 = vmatpush.bf16.xpose.msra.mxu0 0
    %5174 = vmatpush.bf16.xpose.msra.mxu0 0
    %5175 = vmatpush.bf16.xpose.msra.mxu0 0
    %5176 = vmatpush.bf16.xpose.msra.mxu0 0
    %5177 = vmatpush.bf16.xpose.msra.mxu0 %v5168
    %5178 = vmatmul.bf16.gmra.mxu0 %v5165
    %v5179 = vpop.f32.mrf.mxu0
    %v5180 = vadd.f32 0.0, %v5179
    %v5181 = vpop.f32.mrf.mxu0
    %5182 = vdwg.mxu0
    %v5183 = vsel %vm4462, %v5151, -inf
    %5184 = vmax.xlane.f32.xlu0 %v5183
    %v5185 = vpop.xlane.xlu0 %5184
    %v5186 = vsel %vm4462, %v5180, -inf
    %5187 = vmax.xlane.f32.xlu0 %v5186
    %v5188 = vpop.xlane.xlu0 %5187
    %v5189 = vsub.f32 %v5151, %v5185
    %v5190 = vsub.f32 %v5180, %v5188
    %v5191 = vmul.f32 %v5189, 1.442695
    %v5192 = vpow.pop %v5191
    %v5193 = vmul.f32 %v5190, 1.442695
    %v5194 = vpow.pop %v5193
    %v5195 = vsel %vm4462, %v5192, 0.0
    %5196 = vadd.xlane.f32.xlu0 %v5195
    %v5197 = vpop.xlane.xlu0 %5196
    %v5198 = vsel %vm4462, %v5194, 0.0
    %5199 = vadd.xlane.f32.xlu0 %v5198
    %v5200 = vpop.xlane.xlu0 %5199
    %v5201 = vpack.c.bf16 %v5192, %v5192
    %v5202 = vpack.c.bf16 %v5194, %v5194
    %5203 = vst [vmem:[#allocation1] ss:$9 sm:$0xff] %v4342
    %s5204 = scalar_lea.vmem [#allocation1], 1
    %5205 = vst [vmem:[%s5204] ss:$9 sm:$0xff] %v4344
    %s5206 = scalar_lea.vmem [#allocation1], 2
    %5207 = vst [vmem:[%s5206] ss:$9 sm:$0xff] %v4347
    %s5208 = scalar_lea.vmem [#allocation1], 3
    %5209 = vst [vmem:[%s5208] ss:$9 sm:$0xff] %v4350
    %s5210 = scalar_lea.vmem [#allocation1], 4
    %5211 = vst [vmem:[%s5210] ss:$9 sm:$0xff] %v4353
    %v5212 = vld [vmem:[#allocation1 + $0x9] sm:$0xff]
    %5213 = vst [vmem:[#allocation1] ss:$9 sm:$0xff] %v4356
    %5214 = vst [vmem:[%s5204] ss:$9 sm:$0xff] %v4359
    %5215 = vst [vmem:[%s5206] ss:$9 sm:$0xff] %v4362
    %5216 = vst [vmem:[%s5208] ss:$9 sm:$0xff] %v4363
    %5217 = vst [vmem:[%s5210] ss:$9 sm:$0xff] %v4365
    %v5218 = vld [vmem:[#allocation1 + $0x9] sm:$0xff]
    %5219 = vrot.lane.b32.xlu0 %v5212, 80
    %v5220 = vpop.permute.xlu0 %5219
    %5221 = vrot.lane.b32.xlu0 %v5218, 80
    %v5222 = vpop.permute.xlu0 %5221
    %v5225 = vpack.c.bf16 %v5220, %v5220
    %v5226 = vpack.c.bf16 %v5222, %v5222
    %v5228 = vsel %vm4503, %v5201, 0
    %v5231 = vand.u32 %v5225, %v4510
    %5233 = vmatpush.bf16.msra.mxu0 0
    %5234 = vmatpush.bf16.msra.mxu0 0
    %5235 = vmatpush.bf16.msra.mxu0 0
    %5236 = vmatpush.bf16.msra.mxu0 0
    %5237 = vmatpush.bf16.msra.mxu0 0
    %5238 = vmatpush.bf16.msra.mxu0 0
    %5239 = vmatpush.bf16.msra.mxu0 0
    %5240 = vmatpush.bf16.msra.mxu0 %v5231
    %5241 = vmatmul.bf16.gmra.mxu0 %v5228
    %v5242 = vpop.f32.mrf.mxu0
    %v5243 = vadd.f32 0.0, %v5242
    %v5244 = vpop.f32.mrf.mxu0
    %5245 = vdwg.mxu0
    %v5247 = vsel %vm4503, %v5202, 0
    %v5250 = vand.u32 %v5226, %v4510
    %5252 = vmatpush.bf16.msra.mxu0 0
    %5253 = vmatpush.bf16.msra.mxu0 0
    %5254 = vmatpush.bf16.msra.mxu0 0
    %5255 = vmatpush.bf16.msra.mxu0 0
    %5256 = vmatpush.bf16.msra.mxu0 0
    %5257 = vmatpush.bf16.msra.mxu0 0
    %5258 = vmatpush.bf16.msra.mxu0 0
    %5259 = vmatpush.bf16.msra.mxu0 %v5250
    %5260 = vmatmul.bf16.gmra.mxu0 %v5247
    %v5261 = vpop.f32.mrf.mxu0
    %v5262 = vadd.f32 0.0, %v5261
    %v5263 = vpop.f32.mrf.mxu0
    %5264 = vdwg.mxu0
    %v5265 = vrcp.pop %v5197
    %v5266 = vrcp.pop %v5200
    %v5267 = vmul.f32 %v5243, %v5265
    %v5268 = vmul.f32 %v5262, %v5266
    %v5271 = vrot.slane %v5267, 1
    %v5272 = vrot.slane %v5267, 2
    %v5273 = vrot.slane %v5267, 3
    %v5274 = vrot.slane %v5267, 4
    %v5275 = vrot.slane %v5268, 1
    %v5276 = vrot.slane %v5268, 2
    %v5277 = vrot.slane %v5268, 3
    %v5278 = vrot.slane %v5268, 4
    %5279 = vst [vmem:[#allocation1] ss:$9 sm:$0xff] %v5267
    %s5280 = scalar_lea.vmem [#allocation1], 1
    %5281 = vst [vmem:[%s5280] ss:$9 sm:$0xff] %v5271
    %s5282 = scalar_lea.vmem [#allocation1], 2
    %5283 = vst [vmem:[%s5282] ss:$9 sm:$0xff] %v5272
    %s5284 = scalar_lea.vmem [#allocation1], 3
    %5285 = vst [vmem:[%s5284] ss:$9 sm:$0xff] %v5273
    %s5286 = scalar_lea.vmem [#allocation1], 4
    %5287 = vst [vmem:[%s5286] ss:$9 sm:$0xff] %v5274
    %s5288 = scalar_lea.vmem [#allocation1], 5
    %5289 = vst [vmem:[%s5288] ss:$9 sm:$0xff] %v5268
    %s5290 = scalar_lea.vmem [#allocation1], 6
    %5291 = vst [vmem:[%s5290] ss:$9 sm:$0xff] %v5275
    %s5292 = scalar_lea.vmem [#allocation1], 7
    %5293 = vst [vmem:[%s5292] ss:$9 sm:$0xff] %v5276
    %v5294 = vld [vmem:[#allocation1] sm:$0xff]
    %5295 = vst [vmem:[#allocation1] ss:$9 sm:$0xff] %v5277
    %5296 = vst [vmem:[%s5280] ss:$9 sm:$0xff] %v5278
    %v5297 = vld [vmem:[#allocation1] sm:$0xff]
    %v5300 = vpack.c.bf16 %v5297, %v5294
    %v5303 = vunpack.c.l.b16 %v4372
    %v5304 = vunpack.c.l.b16 %v4373
    %v5305 = vpack.c.b16 %v5304, %v5303
    %v5308 = vsel %vm1216, %v5300, 0
    %5310 = vmatpush.bf16.msra.mxu0 0
    %5311 = vmatpush.bf16.msra.mxu0 0
    %5312 = vmatpush.bf16.msra.mxu0 0
    %5313 = vmatpush.bf16.msra.mxu0 0
    %5314 = vmatpush.bf16.msra.mxu0 0
    %5315 = vmatpush.bf16.msra.mxu0 0
    %5316 = vmatpush.bf16.msra.mxu0 0
    %5317 = vmatpush.bf16.msra.mxu0 %v5305
    %5318 = vmatmul.bf16.gmra.mxu0 %v5308
    %v5319 = vpop.f32.mrf.mxu0
    %v5320 = vadd.f32 0.0, %v5319
    %v5321 = vpop.f32.mrf.mxu0
    %v5322 = vadd.f32 0.0, %v5321
    %5323 = vdwg.mxu0
    %v5324 = vadd.f32 %v5083, %v5320
    %v5325 = vadd.f32 %v5084, %v5322
    %v5328 = vrot.slane %v5324, 1
    %v5329 = vrot.slane %v5324, 2
    %v5330 = vrot.slane %v5324, 3
    %v5331 = vrot.slane %v5324, 4
    %v5332 = vrot.slane %v5324, 5
    %v5333 = vrot.slane %v5324, 6
    %v5334 = vrot.slane %v5324, 7
    %v5335 = vrot.slane %v5325, 1
    %v5344 = vadd.f32 %v3970, %v5324
    %v5345 = vadd.f32 %v3974, %v5328
    %v5346 = vadd.f32 %v3975, %v5329
    %v5347 = vadd.f32 %v3976, %v5330
    %v5348 = vadd.f32 %v3977, %v5331
    %v5349 = vadd.f32 %v3971, %v5332
    %v5350 = vadd.f32 %v3978, %v5333
    %v5351 = vadd.f32 %v3979, %v5334
    %v5352 = vadd.f32 %v3980, %v5325
    %v5353 = vadd.f32 %v3981, %v5335
    %v5354 = vld [vmem:[%s53] sm:$0x1]
    %v5356 = vperm.slane %v5354, 0
    %v5358 = vrot.slane %v5356, 1
    %v5359 = vrot.slane %v5356, 2
    %v5360 = vrot.slane %v5356, 3
    %v5361 = vrot.slane %v5356, 4
    %v5362 = vrot.slane %v5356, 5
    %v5363 = vrot.slane %v5356, 6
    %v5364 = vrot.slane %v5356, 7
    %v5372 = vadd.f32 %v5344, %v5356
    %v5373 = vadd.f32 %v5345, %v5358
    %v5374 = vadd.f32 %v5346, %v5359
    %v5375 = vadd.f32 %v5347, %v5360
    %v5376 = vadd.f32 %v5348, %v5361
    %v5377 = vadd.f32 %v5349, %v5362
    %v5378 = vadd.f32 %v5350, %v5363
    %v5379 = vadd.f32 %v5351, %v5364
    %v5380 = vadd.f32 %v5352, %v5356
    %v5381 = vadd.f32 %v5353, %v5358
    %v5382 = vld [vmem:[%s55] sm:$0x1]
    %v5383 = vld [vmem:[%s57] sm:$0x1]
    %5394 = vst [vmem:[#allocation1] ss:$9 sm:$0xff] %v5372
    %s5395 = scalar_lea.vmem [#allocation1], 1
    %5396 = vst [vmem:[%s5395] ss:$9 sm:$0xff] %v5373
    %s5397 = scalar_lea.vmem [#allocation1], 2
    %5398 = vst [vmem:[%s5397] ss:$9 sm:$0xff] %v5374
    %s5399 = scalar_lea.vmem [#allocation1], 3
    %5400 = vst [vmem:[%s5399] ss:$9 sm:$0xff] %v5375
    %s5401 = scalar_lea.vmem [#allocation1], 4
    %5402 = vst [vmem:[%s5401] ss:$9 sm:$0xff] %v5376
    %s5403 = scalar_lea.vmem [#allocation1], 5
    %5404 = vst [vmem:[%s5403] ss:$9 sm:$0xff] %v5377
    %s5405 = scalar_lea.vmem [#allocation1], 6
    %5406 = vst [vmem:[%s5405] ss:$9 sm:$0xff] %v5378
    %s5407 = scalar_lea.vmem [#allocation1], 7
    %5408 = vst [vmem:[%s5407] ss:$9 sm:$0xff] %v5379
    %v5409 = vld [vmem:[#allocation1] sm:$0xff]
    %5410 = vst [vmem:[#allocation1] ss:$9 sm:$0xff] %v5380
    %5411 = vst [vmem:[%s5395] ss:$9 sm:$0xff] %v5381
    %v5412 = vld [vmem:[#allocation1] sm:$0xff]
    %v5415 = vsel %vm4013, %v5409, 0.0
    %5416 = vadd.xlane.f32.xlu0 %v5415
    %v5417 = vpop.xlane.xlu0 %5416
    %v5418 = vsel %vm4017, %v5412, 0.0
    %5419 = vadd.xlane.f32.xlu0 %v5418
    %v5420 = vpop.xlane.xlu0 %5419
    %v5421 = vmul.f32 %v5417, %v4027
    %v5422 = vmul.f32 %v5420, %v4027
    %v5425 = vperm.slane %v5421, 0
    %v5426 = vperm.slane %v5421, 1
    %v5427 = vperm.slane %v5421, 2
    %v5428 = vperm.slane %v5421, 3
    %v5429 = vperm.slane %v5421, 4
    %v5430 = vperm.slane %v5421, 5
    %v5431 = vperm.slane %v5421, 6
    %v5432 = vperm.slane %v5421, 7
    %v5433 = vperm.slane %v5422, 0
    %v5434 = vperm.slane %v5422, 1
    %v5445 = vsub.f32 %v5372, %v5425
    %v5446 = vsub.f32 %v5373, %v5426
    %v5447 = vsub.f32 %v5374, %v5427
    %v5448 = vsub.f32 %v5375, %v5428
    %v5449 = vsub.f32 %v5376, %v5429
    %v5450 = vsub.f32 %v5377, %v5430
    %v5451 = vsub.f32 %v5378, %v5431
    %v5452 = vsub.f32 %v5379, %v5432
    %v5453 = vsub.f32 %v5380, %v5433
    %v5454 = vsub.f32 %v5381, %v5434
    %v5455 = vmul.f32 %v5445, %v5445
    %v5456 = vmul.f32 %v5446, %v5446
    %v5457 = vmul.f32 %v5447, %v5447
    %v5458 = vmul.f32 %v5448, %v5448
    %v5459 = vmul.f32 %v5449, %v5449
    %v5460 = vmul.f32 %v5450, %v5450
    %v5461 = vmul.f32 %v5451, %v5451
    %v5462 = vmul.f32 %v5452, %v5452
    %v5463 = vmul.f32 %v5453, %v5453
    %v5464 = vmul.f32 %v5454, %v5454
    %5475 = vst [vmem:[#allocation1] ss:$9 sm:$0xff] %v5455
    %s5476 = scalar_lea.vmem [#allocation1], 1
    %5477 = vst [vmem:[%s5476] ss:$9 sm:$0xff] %v5456
    %s5478 = scalar_lea.vmem [#allocation1], 2
    %5479 = vst [vmem:[%s5478] ss:$9 sm:$0xff] %v5457
    %s5480 = scalar_lea.vmem [#allocation1], 3
    %5481 = vst [vmem:[%s5480] ss:$9 sm:$0xff] %v5458
    %s5482 = scalar_lea.vmem [#allocation1], 4
    %5483 = vst [vmem:[%s5482] ss:$9 sm:$0xff] %v5459
    %s5484 = scalar_lea.vmem [#allocation1], 5
    %5485 = vst [vmem:[%s5484] ss:$9 sm:$0xff] %v5460
    %s5486 = scalar_lea.vmem [#allocation1], 6
    %5487 = vst [vmem:[%s5486] ss:$9 sm:$0xff] %v5461
    %s5488 = scalar_lea.vmem [#allocation1], 7
    %5489 = vst [vmem:[%s5488] ss:$9 sm:$0xff] %v5462
    %v5490 = vld [vmem:[#allocation1] sm:$0xff]
    %5491 = vst [vmem:[#allocation1] ss:$9 sm:$0xff] %v5463
    %5492 = vst [vmem:[%s5476] ss:$9 sm:$0xff] %v5464
    %v5493 = vld [vmem:[#allocation1] sm:$0xff]
    %v5496 = vsel %vm4013, %v5490, 0.0
    %5497 = vadd.xlane.f32.xlu0 %v5496
    %v5498 = vpop.xlane.xlu0 %5497
    %v5499 = vsel %vm4017, %v5493, 0.0
    %5500 = vadd.xlane.f32.xlu0 %v5499
    %v5501 = vpop.xlane.xlu0 %5500
    %v5502 = vmul.f32 %v5498, %v4027
    %v5503 = vmul.f32 %v5501, %v4027
    %v5504 = vadd.f32 %v5502, 1e-06
    %v5505 = vadd.f32 %v5503, 1e-06
    %v5506 = vrsqrt.pop %v5504
    %v5507 = vmul.f32 %v5506, %v5504
    %v5508 = vmul.f32 %v5507, %v5506
    %v5509 = vmul.f32 0.5, %v5508
    %v5510 = vsub.f32 1.5, %v5509
    %v5511 = vmul.f32 %v5506, %v5510
    %vm5512 = vweird.f32 %v5504
    %vm5513 = vweird.f32 %v5506
    %vm5514 = vmor %vm5512, %vm5513
    %v5515 = vsel %vm5514, %v5506, %v5511
    %v5516 = vrsqrt.pop %v5505
    %v5517 = vmul.f32 %v5516, %v5505
    %v5518 = vmul.f32 %v5517, %v5516
    %v5519 = vmul.f32 0.5, %v5518
    %v5520 = vsub.f32 1.5, %v5519
    %v5521 = vmul.f32 %v5516, %v5520
    %vm5522 = vweird.f32 %v5505
    %vm5523 = vweird.f32 %v5516
    %vm5524 = vmor %vm5522, %vm5523
    %v5525 = vsel %vm5524, %v5516, %v5521
    %v5528 = vperm.slane %v5515, 0
    %v5529 = vperm.slane %v5515, 1
    %v5530 = vperm.slane %v5515, 2
    %v5531 = vperm.slane %v5515, 3
    %v5532 = vperm.slane %v5515, 4
    %v5533 = vperm.slane %v5515, 5
    %v5534 = vperm.slane %v5515, 6
    %v5535 = vperm.slane %v5515, 7
    %v5536 = vperm.slane %v5525, 0
    %v5537 = vperm.slane %v5525, 1
    %v5548 = vmul.f32 %v5445, %v5528
    %v5549 = vmul.f32 %v5446, %v5529
    %v5550 = vmul.f32 %v5447, %v5530
    %v5551 = vmul.f32 %v5448, %v5531
    %v5552 = vmul.f32 %v5449, %v5532
    %v5553 = vmul.f32 %v5450, %v5533
    %v5554 = vmul.f32 %v5451, %v5534
    %v5555 = vmul.f32 %v5452, %v5535
    %v5556 = vmul.f32 %v5453, %v5536
    %v5557 = vmul.f32 %v5454, %v5537
    %v5559 = vperm.slane %v5382, 0
    %v5561 = vrot.slane %v5559, 1
    %v5562 = vrot.slane %v5559, 2
    %v5563 = vrot.slane %v5559, 3
    %v5564 = vrot.slane %v5559, 4
    %v5565 = vrot.slane %v5559, 5
    %v5566 = vrot.slane %v5559, 6
    %v5567 = vrot.slane %v5559, 7
    %v5575 = vmul.f32 %v5548, %v5559
    %v5576 = vmul.f32 %v5549, %v5561
    %v5577 = vmul.f32 %v5550, %v5562
    %v5578 = vmul.f32 %v5551, %v5563
    %v5579 = vmul.f32 %v5552, %v5564
    %v5580 = vmul.f32 %v5553, %v5565
    %v5581 = vmul.f32 %v5554, %v5566
    %v5582 = vmul.f32 %v5555, %v5567
    %v5583 = vmul.f32 %v5556, %v5559
    %v5584 = vmul.f32 %v5557, %v5561
    %v5586 = vperm.slane %v5383, 0
    %v5588 = vrot.slane %v5586, 1
    %v5589 = vrot.slane %v5586, 2
    %v5590 = vrot.slane %v5586, 3
    %v5591 = vrot.slane %v5586, 4
    %v5592 = vrot.slane %v5586, 5
    %v5593 = vrot.slane %v5586, 6
    %v5594 = vrot.slane %v5586, 7
    %v5602 = vadd.f32 %v5575, %v5586
    %v5603 = vadd.f32 %v5576, %v5588
    %v5604 = vadd.f32 %v5577, %v5589
    %v5605 = vadd.f32 %v5578, %v5590
    %v5606 = vadd.f32 %v5579, %v5591
    %v5607 = vadd.f32 %v5580, %v5592
    %v5608 = vadd.f32 %v5581, %v5593
    %v5609 = vadd.f32 %v5582, %v5594
    %v5610 = vadd.f32 %v5583, %v5586
    %v5611 = vadd.f32 %v5584, %v5588
    %v5612 = vld [vmem:[%s59] sm:$0xff]
    %v5613 = vld [vmem:[%s59 + $0x8] sm:$0xff]
    %v5614 = vld [vmem:[%s59 + $0x10] sm:$0xff]
    %v5615 = vld [vmem:[%s59 + $0x18] sm:$0xff]
    %v5616 = vld [vmem:[%s59 + $0x20] sm:$0xff]
    %v5617 = vld [vmem:[%s59 + $0x28] sm:$0xff]
    %v5618 = vld [vmem:[%s59 + $0x30] sm:$0xff]
    %v5619 = vld [vmem:[%s59 + $0x38] sm:$0xff]
    %5630 = vst [vmem:[#allocation1] ss:$9 sm:$0xff] %v5602
    %s5631 = scalar_lea.vmem [#allocation1], 1
    %5632 = vst [vmem:[%s5631] ss:$9 sm:$0xff] %v5603
    %s5633 = scalar_lea.vmem [#allocation1], 2
    %5634 = vst [vmem:[%s5633] ss:$9 sm:$0xff] %v5604
    %s5635 = scalar_lea.vmem [#allocation1], 3
    %5636 = vst [vmem:[%s5635] ss:$9 sm:$0xff] %v5605
    %s5637 = scalar_lea.vmem [#allocation1], 4
    %5638 = vst [vmem:[%s5637] ss:$9 sm:$0xff] %v5606
    %s5639 = scalar_lea.vmem [#allocation1], 5
    %5640 = vst [vmem:[%s5639] ss:$9 sm:$0xff] %v5607
    %s5641 = scalar_lea.vmem [#allocation1], 6
    %5642 = vst [vmem:[%s5641] ss:$9 sm:$0xff] %v5608
    %s5643 = scalar_lea.vmem [#allocation1], 7
    %5644 = vst [vmem:[%s5643] ss:$9 sm:$0xff] %v5609
    %v5645 = vld [vmem:[#allocation1] sm:$0xff]
    %5646 = vst [vmem:[#allocation1] ss:$9 sm:$0xff] %v5610
    %5647 = vst [vmem:[%s5631] ss:$9 sm:$0xff] %v5611
    %v5648 = vld [vmem:[#allocation1] sm:$0xff]
    %v5651 = vpack.c.bf16 %v5648, %v5645
    %v5652 = vld [vmem:[%s61] sm:$0x3]
    %v5654 = vperm.slane %v5652, 0
    %v5655 = vperm.slane %v5652, 1
    %v5666 = vunpack.c.l.b16 %v5612
    %v5667 = vunpack.c.h.b16 %v5612
    %v5668 = vunpack.c.l.b16 %v5613
    %v5669 = vunpack.c.h.b16 %v5613
    %v5670 = vunpack.c.l.b16 %v5614
    %v5671 = vunpack.c.h.b16 %v5614
    %v5672 = vunpack.c.l.b16 %v5615
    %v5673 = vunpack.c.h.b16 %v5615
    %v5674 = vunpack.c.l.b16 %v5616
    %v5675 = vunpack.c.h.b16 %v5616
    %v5676 = vunpack.c.l.b16 %v5617
    %v5677 = vunpack.c.h.b16 %v5617
    %v5678 = vunpack.c.l.b16 %v5618
    %v5679 = vunpack.c.h.b16 %v5618
    %v5680 = vunpack.c.l.b16 %v5619
    %v5681 = vunpack.c.h.b16 %v5619
    %v5682 = vpack.c.b16 %v5668, %v5666
    %v5683 = vpack.c.b16 %v5669, %v5667
    %v5684 = vpack.c.b16 %v5672, %v5670
    %v5685 = vpack.c.b16 %v5673, %v5671
    %v5686 = vpack.c.b16 %v5676, %v5674
    %v5687 = vpack.c.b16 %v5677, %v5675
    %v5688 = vpack.c.b16 %v5680, %v5678
    %v5689 = vpack.c.b16 %v5681, %v5679
    %v5699 = vsel %vm4013, %v5651, 0
    %5701 = vmatpush.bf16.msra.mxu0 0
    %5702 = vmatpush.bf16.msra.mxu0 0
    %5703 = vmatpush.bf16.msra.mxu0 0
    %5704 = vmatpush.bf16.msra.mxu0 0
    %5705 = vmatpush.bf16.msra.mxu0 %v5688
    %5706 = vmatpush.bf16.msra.mxu0 %v5686
    %5707 = vmatpush.bf16.msra.mxu0 %v5684
    %5708 = vmatpush.bf16.msra.mxu0 %v5682
    %5709 = vmatmul.bf16.gmra.mxu0 %v5699
    %v5710 = vpop.f32.mrf.mxu0
    %v5711 = vadd.f32 %v5654, %v5710
    %v5712 = vpop.f32.mrf.mxu0
    %v5713 = vadd.f32 %v5654, %v5712
    %5714 = vdwg.mxu0
    %5715 = vmatpush.bf16.msra.mxu0 0
    %5716 = vmatpush.bf16.msra.mxu0 0
    %5717 = vmatpush.bf16.msra.mxu0 0
    %5718 = vmatpush.bf16.msra.mxu0 0
    %5719 = vmatpush.bf16.msra.mxu0 %v5689
    %5720 = vmatpush.bf16.msra.mxu0 %v5687
    %5721 = vmatpush.bf16.msra.mxu0 %v5685
    %5722 = vmatpush.bf16.msra.mxu0 %v5683
    %5723 = vmatmul.bf16.gmra.mxu0 %v5699
    %v5724 = vpop.f32.mrf.mxu0
    %v5725 = vadd.f32 %v5655, %v5724
    %v5726 = vpop.f32.mrf.mxu0
    %v5727 = vadd.f32 %v5655, %v5726
    %5728 = vdwg.mxu0
    %v5729 = vmul.f32 %v5711, 0.5
    %v5730 = vmul.f32 %v5725, 0.5
    %v5731 = vmul.f32 %v5713, 0.5
    %v5732 = vmul.f32 %v5727, 0.5
    %v5733 = vmul.f32 %v5711, 0.70710677
    %v5734 = vmul.f32 %v5725, 0.70710677
    %v5735 = vmul.f32 %v5713, 0.70710677
    %v5736 = vmul.f32 %v5727, 0.70710677
    %v5737 = vand.u32 2147483647, %v5733
    %v5738 = vand.u32 2147483647, %v5734
    %v5739 = vand.u32 2147483647, %v5735
    %v5740 = vand.u32 2147483647, %v5736
    %v5741 = vmul.f32 %v5737, 0.3275911
    %v5742 = vmul.f32 %v5738, 0.3275911
    %v5743 = vmul.f32 %v5739, 0.3275911
    %v5744 = vmul.f32 %v5740, 0.3275911
    %v5745 = vadd.f32 %v5741, 1.0
    %v5746 = vadd.f32 %v5742, 1.0
    %v5747 = vadd.f32 %v5743, 1.0
    %v5748 = vadd.f32 %v5744, 1.0
    %v5749 = vrcp.pop %v5745
    %v5750 = vmul.f32 %v5745, %v5749
    %v5751 = vsub.f32 1.0, %v5750
    %v5752 = vmul.f32 %v5749, %v5751
    %v5753 = vadd.f32 %v5749, %v5752
    %vm5754 = vweird.f32 %v5745
    %vm5755 = vweird.f32 %v5749
    %vm5756 = vmor %vm5754, %vm5755
    %v5757 = vsel %vm5756, %v5749, %v5753
    %v5758 = vand.u32 2147483647, %v5745
    %vm5759 = vcmp.eq.f32.partialorder %v5758, 8.507059e+37
    %v5760 = vand.u32 %v5745, 2147483648
    %v5761 = vor.u32 1.1754944e-38, %v5760
    %v5762 = vsel %vm5759, %v5761, %v5757
    %v5763 = vmul.f32 1.0, %v5762
    %v5764 = vrcp.pop %v5746
    %v5765 = vmul.f32 %v5746, %v5764
    %v5766 = vsub.f32 1.0, %v5765
    %v5767 = vmul.f32 %v5764, %v5766
    %v5768 = vadd.f32 %v5764, %v5767
    %vm5769 = vweird.f32 %v5746
    %vm5770 = vweird.f32 %v5764
    %vm5771 = vmor %vm5769, %vm5770
    %v5772 = vsel %vm5771, %v5764, %v5768
    %v5773 = vand.u32 2147483647, %v5746
    %vm5774 = vcmp.eq.f32.partialorder %v5773, 8.507059e+37
    %v5775 = vand.u32 %v5746, 2147483648
    %v5776 = vor.u32 1.1754944e-38, %v5775
    %v5777 = vsel %vm5774, %v5776, %v5772
    %v5778 = vmul.f32 1.0, %v5777
    %v5779 = vrcp.pop %v5747
    %v5780 = vmul.f32 %v5747, %v5779
    %v5781 = vsub.f32 1.0, %v5780
    %v5782 = vmul.f32 %v5779, %v5781
    %v5783 = vadd.f32 %v5779, %v5782
    %vm5784 = vweird.f32 %v5747
    %vm5785 = vweird.f32 %v5779
    %vm5786 = vmor %vm5784, %vm5785
    %v5787 = vsel %vm5786, %v5779, %v5783
    %v5788 = vand.u32 2147483647, %v5747
    %vm5789 = vcmp.eq.f32.partialorder %v5788, 8.507059e+37
    %v5790 = vand.u32 %v5747, 2147483648
    %v5791 = vor.u32 1.1754944e-38, %v5790
    %v5792 = vsel %vm5789, %v5791, %v5787
    %v5793 = vmul.f32 1.0, %v5792
    %v5794 = vrcp.pop %v5748
    %v5795 = vmul.f32 %v5748, %v5794
    %v5796 = vsub.f32 1.0, %v5795
    %v5797 = vmul.f32 %v5794, %v5796
    %v5798 = vadd.f32 %v5794, %v5797
    %vm5799 = vweird.f32 %v5748
    %vm5800 = vweird.f32 %v5794
    %vm5801 = vmor %vm5799, %vm5800
    %v5802 = vsel %vm5801, %v5794, %v5798
    %v5803 = vand.u32 2147483647, %v5748
    %vm5804 = vcmp.eq.f32.partialorder %v5803, 8.507059e+37
    %v5805 = vand.u32 %v5748, 2147483648
    %v5806 = vor.u32 1.1754944e-38, %v5805
    %v5807 = vsel %vm5804, %v5806, %v5802
    %v5808 = vmul.f32 1.0, %v5807
    %v5809 = vmul.f32 %v5763, 1.0614054
    %v5810 = vmul.f32 %v5778, 1.0614054
    %v5811 = vmul.f32 %v5793, 1.0614054
    %v5812 = vmul.f32 %v5808, 1.0614054
    %v5813 = vadd.f32 %v5809, -1.4531521
    %v5814 = vadd.f32 %v5810, -1.4531521
    %v5815 = vadd.f32 %v5811, -1.4531521
    %v5816 = vadd.f32 %v5812, -1.4531521
    %v5817 = vmul.f32 %v5813, %v5763
    %v5818 = vmul.f32 %v5814, %v5778
    %v5819 = vmul.f32 %v5815, %v5793
    %v5820 = vmul.f32 %v5816, %v5808
    %v5821 = vadd.f32 %v5817, 1.4214138
    %v5822 = vadd.f32 %v5818, 1.4214138
    %v5823 = vadd.f32 %v5819, 1.4214138
    %v5824 = vadd.f32 %v5820, 1.4214138
    %v5825 = vmul.f32 %v5821, %v5763
    %v5826 = vmul.f32 %v5822, %v5778
    %v5827 = vmul.f32 %v5823, %v5793
    %v5828 = vmul.f32 %v5824, %v5808
    %v5829 = vadd.f32 %v5825, -0.28449672
    %v5830 = vadd.f32 %v5826, -0.28449672
    %v5831 = vadd.f32 %v5827, -0.28449672
    %v5832 = vadd.f32 %v5828, -0.28449672
    %v5833 = vmul.f32 %v5829, %v5763
    %v5834 = vmul.f32 %v5830, %v5778
    %v5835 = vmul.f32 %v5831, %v5793
    %v5836 = vmul.f32 %v5832, %v5808
    %v5837 = vadd.f32 %v5833, 0.2548296
    %v5838 = vadd.f32 %v5834, 0.2548296
    %v5839 = vadd.f32 %v5835, 0.2548296
    %v5840 = vadd.f32 %v5836, 0.2548296
    %v5841 = vmul.f32 %v5837, %v5763
    %v5842 = vmul.f32 %v5838, %v5778
    %v5843 = vmul.f32 %v5839, %v5793
    %v5844 = vmul.f32 %v5840, %v5808
    %v5845 = vsub.f32 0.0, %v5737
    %v5846 = vsub.f32 0.0, %v5738
    %v5847 = vsub.f32 0.0, %v5739
    %v5848 = vsub.f32 0.0, %v5740
    %v5849 = vmul.f32 %v5845, %v5737
    %v5850 = vmul.f32 %v5846, %v5738
    %v5851 = vmul.f32 %v5847, %v5739
    %v5852 = vmul.f32 %v5848, %v5740
    %v5853 = vmul.f32 %v5849, 1.442695
    %v5854 = vpow.pop %v5853
    %v5855 = vmul.f32 %v5850, 1.442695
    %v5856 = vpow.pop %v5855
    %v5857 = vmul.f32 %v5851, 1.442695
    %v5858 = vpow.pop %v5857
    %v5859 = vmul.f32 %v5852, 1.442695
    %v5860 = vpow.pop %v5859
    %v5861 = vmul.f32 %v5841, %v5854
    %v5862 = vmul.f32 %v5842, %v5856
    %v5863 = vmul.f32 %v5843, %v5858
    %v5864 = vmul.f32 %v5844, %v5860
    %v5865 = vsub.f32 1.0, %v5861
    %v5866 = vsub.f32 1.0, %v5862
    %v5867 = vsub.f32 1.0, %v5863
    %v5868 = vsub.f32 1.0, %v5864
    %vm5869 = vcmp.ge.f32.partialorder %v5733, 0.0
    %vm5870 = vcmp.ge.f32.partialorder %v5734, 0.0
    %vm5871 = vcmp.ge.f32.partialorder %v5735, 0.0
    %vm5872 = vcmp.ge.f32.partialorder %v5736, 0.0
    %v5873 = vsub.f32 0.0, %v5865
    %v5874 = vsub.f32 0.0, %v5866
    %v5875 = vsub.f32 0.0, %v5867
    %v5876 = vsub.f32 0.0, %v5868
    %v5877 = vsel %vm5869, %v5865, %v5873
    %v5878 = vsel %vm5870, %v5866, %v5874
    %v5879 = vsel %vm5871, %v5867, %v5875
    %v5880 = vsel %vm5872, %v5868, %v5876
    %v5881 = vadd.f32 %v5877, 1.0
    %v5882 = vadd.f32 %v5878, 1.0
    %v5883 = vadd.f32 %v5879, 1.0
    %v5884 = vadd.f32 %v5880, 1.0
    %v5885 = vmul.f32 %v5729, %v5881
    %v5886 = vmul.f32 %v5730, %v5882
    %v5887 = vmul.f32 %v5731, %v5883
    %v5888 = vmul.f32 %v5732, %v5884
    %v5889 = vld [vmem:[%s63] sm:$0xf]
    %v5890 = vld [vmem:[%s63 + $0x4] sm:$0xf]
    %v5891 = vld [vmem:[%s63 + $0x8] sm:$0xf]
    %v5892 = vld [vmem:[%s63 + $0xc] sm:$0xf]
    %v5893 = vld [vmem:[%s63 + $0x10] sm:$0xf]
    %v5894 = vld [vmem:[%s63 + $0x14] sm:$0xf]
    %v5895 = vld [vmem:[%s63 + $0x18] sm:$0xf]
    %v5896 = vld [vmem:[%s63 + $0x1c] sm:$0xf]
    %v5897 = vld [vmem:[%s63 + $0x20] sm:$0xf]
    %v5898 = vld [vmem:[%s63 + $0x24] sm:$0xf]
    %v5899 = vld [vmem:[%s63 + $0x28] sm:$0xf]
    %v5900 = vld [vmem:[%s63 + $0x2c] sm:$0xf]
    %v5901 = vld [vmem:[%s63 + $0x30] sm:$0xf]
    %v5902 = vld [vmem:[%s63 + $0x34] sm:$0xf]
    %v5903 = vld [vmem:[%s63 + $0x38] sm:$0xf]
    %v5904 = vld [vmem:[%s63 + $0x3c] sm:$0xf]
    %v5905 = vld [vmem:[%s63 + $0x40] sm:$0xf]
    %v5906 = vld [vmem:[%s63 + $0x44] sm:$0xf]
    %v5907 = vld [vmem:[%s63 + $0x48] sm:$0xf]
    %v5908 = vld [vmem:[%s63 + $0x4c] sm:$0xf]
    %v5909 = vld [vmem:[%s63 + $0x50] sm:$0xf]
    %v5910 = vld [vmem:[%s63 + $0x54] sm:$0xf]
    %v5911 = vld [vmem:[%s63 + $0x58] sm:$0xf]
    %v5912 = vld [vmem:[%s63 + $0x5c] sm:$0xf]
    %v5913 = vld [vmem:[%s63 + $0x60] sm:$0xf]
    %v5914 = vld [vmem:[%s63 + $0x64] sm:$0xf]
    %v5915 = vld [vmem:[%s63 + $0x68] sm:$0xf]
    %v5916 = vld [vmem:[%s63 + $0x6c] sm:$0xf]
    %v5917 = vld [vmem:[%s63 + $0x70] sm:$0xf]
    %v5918 = vld [vmem:[%s63 + $0x74] sm:$0xf]
    %v5919 = vld [vmem:[%s63 + $0x78] sm:$0xf]
    %v5920 = vld [vmem:[%s63 + $0x7c] sm:$0xf]
    %v5921 = vpack.c.bf16 %v5887, %v5885
    %v5922 = vpack.c.bf16 %v5888, %v5886
    %v5955 = vunpack.c.l.b16 %v5889
    %v5956 = vunpack.c.l.b16 %v5890
    %v5957 = vunpack.c.l.b16 %v5891
    %v5958 = vunpack.c.l.b16 %v5892
    %v5959 = vunpack.c.l.b16 %v5893
    %v5960 = vunpack.c.l.b16 %v5894
    %v5961 = vunpack.c.l.b16 %v5895
    %v5962 = vunpack.c.l.b16 %v5896
    %v5963 = vunpack.c.l.b16 %v5897
    %v5964 = vunpack.c.l.b16 %v5898
    %v5965 = vunpack.c.l.b16 %v5899
    %v5966 = vunpack.c.l.b16 %v5900
    %v5967 = vunpack.c.l.b16 %v5901
    %v5968 = vunpack.c.l.b16 %v5902
    %v5969 = vunpack.c.l.b16 %v5903
    %v5970 = vunpack.c.l.b16 %v5904
    %v5971 = vunpack.c.l.b16 %v5905
    %v5972 = vunpack.c.l.b16 %v5906
    %v5973 = vunpack.c.l.b16 %v5907
    %v5974 = vunpack.c.l.b16 %v5908
    %v5975 = vunpack.c.l.b16 %v5909
    %v5976 = vunpack.c.l.b16 %v5910
    %v5977 = vunpack.c.l.b16 %v5911
    %v5978 = vunpack.c.l.b16 %v5912
    %v5979 = vunpack.c.l.b16 %v5913
    %v5980 = vunpack.c.l.b16 %v5914
    %v5981 = vunpack.c.l.b16 %v5915
    %v5982 = vunpack.c.l.b16 %v5916
    %v5983 = vunpack.c.l.b16 %v5917
    %v5984 = vunpack.c.l.b16 %v5918
    %v5985 = vunpack.c.l.b16 %v5919
    %v5986 = vunpack.c.l.b16 %v5920
    %v5987 = vpack.c.b16 %v5956, %v5955
    %v5988 = vpack.c.b16 %v5958, %v5957
    %v5989 = vpack.c.b16 %v5960, %v5959
    %v5990 = vpack.c.b16 %v5962, %v5961
    %v5991 = vpack.c.b16 %v5964, %v5963
    %v5992 = vpack.c.b16 %v5966, %v5965
    %v5993 = vpack.c.b16 %v5968, %v5967
    %v5994 = vpack.c.b16 %v5970, %v5969
    %v5995 = vpack.c.b16 %v5972, %v5971
    %v5996 = vpack.c.b16 %v5974, %v5973
    %v5997 = vpack.c.b16 %v5976, %v5975
    %v5998 = vpack.c.b16 %v5978, %v5977
    %v5999 = vpack.c.b16 %v5980, %v5979
    %v6000 = vpack.c.b16 %v5982, %v5981
    %v6001 = vpack.c.b16 %v5984, %v5983
    %v6002 = vpack.c.b16 %v5986, %v5985
    %6019 = vmatpush.bf16.msra.mxu0 %v5994
    %6020 = vmatpush.bf16.msra.mxu0 %v5993
    %6021 = vmatpush.bf16.msra.mxu0 %v5992
    %6022 = vmatpush.bf16.msra.mxu0 %v5991
    %6023 = vmatpush.bf16.msra.mxu0 %v5990
    %6024 = vmatpush.bf16.msra.mxu0 %v5989
    %6025 = vmatpush.bf16.msra.mxu0 %v5988
    %6026 = vmatpush.bf16.msra.mxu0 %v5987
    %6027 = vmatmul.bf16.gmra.mxu0 %v5921
    %v6028 = vpop.f32.mrf.mxu0
    %v6029 = vadd.f32 0.0, %v6028
    %v6030 = vpop.f32.mrf.mxu0
    %6031 = vdwg.mxu0
    %6032 = vmatpush.bf16.msra.mxu0 %v6002
    %6033 = vmatpush.bf16.msra.mxu0 %v6001
    %6034 = vmatpush.bf16.msra.mxu0 %v6000
    %6035 = vmatpush.bf16.msra.mxu0 %v5999
    %6036 = vmatpush.bf16.msra.mxu0 %v5998
    %6037 = vmatpush.bf16.msra.mxu0 %v5997
    %6038 = vmatpush.bf16.msra.mxu0 %v5996
    %6039 = vmatpush.bf16.msra.mxu0 %v5995
    %6040 = vmatmul.bf16.gmra.mxu0 %v5922
    %v6041 = vpop.f32.mrf.mxu0
    %v6042 = vadd.f32 %v6029, %v6041
    %v6043 = vpop.f32.mrf.mxu0
    %6044 = vdwg.mxu0
    %v6046 = vrot.slane %v6042, 5
    %v6048 = vadd.f32 %v5372, %v6042
    %v6049 = vadd.f32 %v5377, %v6046
    %v6050 = vld [vmem:[%s65] sm:$0x1]
    %v6052 = vperm.slane %v6050, 0
    %v6054 = vrot.slane %v6052, 5
    %v6056 = vadd.f32 %v6048, %v6052
    %v6057 = vadd.f32 %v6049, %v6054
    %v6058 = vld [vmem:[%s67] sm:$0x1]
    %v6059 = vld [vmem:[%s69] sm:$0x1]
    %6062 = vst [vmem:[#allocation1] ss:$9 sm:$0xff] %v6056
    %s6063 = scalar_lea.vmem [#allocation1], 1
    %6064 = vst [vmem:[%s6063] ss:$9 sm:$0xff] %v6057
    %v6065 = vld [vmem:[#allocation1] sm:$0xff]
    %v6067 = vsel %vm4017, %v6065, 0.0
    %6068 = vadd.xlane.f32.xlu0 %v6067
    %v6069 = vpop.xlane.xlu0 %6068
    %v6070 = vmul.f32 %v6069, %v4027
    %v6072 = vperm.slane %v6070, 0
    %v6073 = vperm.slane %v6070, 1
    %v6076 = vsub.f32 %v6056, %v6072
    %v6077 = vsub.f32 %v6057, %v6073
    %v6078 = vmul.f32 %v6076, %v6076
    %v6079 = vmul.f32 %v6077, %v6077
    %6082 = vst [vmem:[#allocation1] ss:$9 sm:$0xff] %v6078
    %s6083 = scalar_lea.vmem [#allocation1], 1
    %6084 = vst [vmem:[%s6083] ss:$9 sm:$0xff] %v6079
    %v6085 = vld [vmem:[#allocation1] sm:$0xff]
    %v6087 = vsel %vm4017, %v6085, 0.0
    %6088 = vadd.xlane.f32.xlu0 %v6087
    %v6089 = vpop.xlane.xlu0 %6088
    %v6090 = vmul.f32 %v6089, %v4027
    %v6091 = vadd.f32 %v6090, 1e-06
    %v6092 = vrsqrt.pop %v6091
    %v6093 = vmul.f32 %v6092, %v6091
    %v6094 = vmul.f32 %v6093, %v6092
    %v6095 = vmul.f32 0.5, %v6094
    %v6096 = vsub.f32 1.5, %v6095
    %v6097 = vmul.f32 %v6092, %v6096
    %vm6098 = vweird.f32 %v6091
    %vm6099 = vweird.f32 %v6092
    %vm6100 = vmor %vm6098, %vm6099
    %v6101 = vsel %vm6100, %v6092, %v6097
    %v6103 = vperm.slane %v6101, 0
    %v6104 = vperm.slane %v6101, 1
    %v6107 = vmul.f32 %v6076, %v6103
    %v6108 = vmul.f32 %v6077, %v6104
    %v6110 = vperm.slane %v6058, 0
    %v6112 = vrot.slane %v6110, 1
    %v6114 = vmul.f32 %v6107, %v6110
    %v6115 = vmul.f32 %v6108, %v6112
    %v6117 = vperm.slane %v6059, 0
    %v6119 = vrot.slane %v6117, 1
    %v6121 = vadd.f32 %v6114, %v6117
    %v6122 = vadd.f32 %v6115, %v6119
    %v6123 = vld [vmem:[%s71] sm:$0xf]
    %v6124 = vld [vmem:[%s71 + $0x4] sm:$0xf]
    %v6125 = vld [vmem:[%s71 + $0x8] sm:$0xf]
    %v6126 = vld [vmem:[%s71 + $0xc] sm:$0xf]
    %v6127 = vld [vmem:[%s71 + $0x10] sm:$0xf]
    %v6128 = vld [vmem:[%s71 + $0x14] sm:$0xf]
    %v6129 = vld [vmem:[%s71 + $0x18] sm:$0xf]
    %v6130 = vld [vmem:[%s71 + $0x1c] sm:$0xf]
    %v6131 = vpack.c.bf16 %v6121, %v6121
    %v6132 = vpack.c.bf16 %v6122, %v6122
    %v6133 = vld [vmem:[%s73] sm:$0x1]
    %v6135 = vperm.slane %v6133, 0
    %v6139 = vunpack.c.l.b16 %v6131
    %v6140 = vunpack.c.l.b16 %v6132
    %v6141 = vrot.slane %v6140, 7
    %v6142 = vsel %vm3919, %v6141, %v6139
    %v6143 = vpack.c.b16 %v6142, %v6142
    %v6152 = vunpack.c.l.b16 %v6123
    %v6153 = vunpack.c.l.b16 %v6124
    %v6154 = vunpack.c.l.b16 %v6125
    %v6155 = vunpack.c.l.b16 %v6126
    %v6156 = vunpack.c.l.b16 %v6127
    %v6157 = vunpack.c.l.b16 %v6128
    %v6158 = vunpack.c.l.b16 %v6129
    %v6159 = vunpack.c.l.b16 %v6130
    %v6160 = vpack.c.b16 %v6153, %v6152
    %v6161 = vpack.c.b16 %v6155, %v6154
    %v6162 = vpack.c.b16 %v6157, %v6156
    %v6163 = vpack.c.b16 %v6159, %v6158
    %v6169 = vsel %vm4013, %v6143, 0
    %6171 = vmatpush.bf16.msra.mxu0 0
    %6172 = vmatpush.bf16.msra.mxu0 0
    %6173 = vmatpush.bf16.msra.mxu0 0
    %6174 = vmatpush.bf16.msra.mxu0 0
    %6175 = vmatpush.bf16.msra.mxu0 %v6163
    %6176 = vmatpush.bf16.msra.mxu0 %v6162
    %6177 = vmatpush.bf16.msra.mxu0 %v6161
    %6178 = vmatpush.bf16.msra.mxu0 %v6160
    %6179 = vmatmul.bf16.gmra.mxu0 %v6169
    %v6180 = vpop.f32.mrf.mxu0
    %v6181 = vadd.f32 %v6135, %v6180
    %v6182 = vpop.f32.mrf.mxu0
    %6183 = vdwg.mxu0
    %6184 = vst [vmem:[#allocation2] sm:$0x3] %v6181
    // Predicated region
    $region150: #{pooling_transformer_forward.1} parent=1 // pred_check
      _
    $region151: #{pooling_transformer_forward.1} parent=1 // pred_check_branch
      %6186 = sbr.rel (0) target = $region153
    $region152: #{pooling_transformer_forward.1} parent=1 // pred_region
      %6188 = vsyncadd [#allocation3], 0
      %s6190 = sshll.u32 [#allocation2], 4
      %s6191 = int_to_ptr.vmem [resolvable:$true] %s6190
      %s6192 = sshll.u32 %s75, 4
      %s6193 = int_to_ptr.hbm [resolvable:$true] %s6192
      %6195 = dma.vmem_to_hbm [thread:$0]  %s6191, 32, %s6193, [#allocation3]
    $region153: #{pooling_transformer_forward.1} parent=1 // pred_fallthru
      _
    // Predicated region
    $region154: #{pooling_transformer_forward.1} parent=1 // pred_check
      _
    $region155: #{pooling_transformer_forward.1} parent=1 // pred_check_branch
      %6197 = sbr.rel (0) target = $region157
    $region156: #{pooling_transformer_forward.1} parent=1 // pred_region
      %6199 = dma.done [#allocation3], 32
    $region157: #{pooling_transformer_forward.1} parent=1 // pred_fallthru
      _
    %6200 = vsyncpa [#allocation3], 1

</llo_original>
